<compile_context>
chip_gen: v6e
topology: v6e:2x2x1
jax: 0.10.0
libtpu: 0.0.40
codegen_flags: <defaults>
</compile_context>

<pallas_src>
import functools

import jax
import jax.numpy as jnp
import numpy as np
from jax.experimental import pallas as pl
from jax.experimental.pallas import tpu as pltpu

_LANES = 128


def _layernorm(x, gamma, beta, eps=1e-5):
    # Two-pass (x - mu)^2 form: matches PyTorch LayerNorm and cannot cancel to a
    # negative variance (the E[x^2] - mu^2 form can, and rsqrt would then NaN).
    mu = jnp.mean(x, axis=-1, keepdims=True)
    xc = x - mu
    var = jnp.mean(xc * xc, axis=-1, keepdims=True)
    return xc * jax.lax.rsqrt(var + eps) * gamma + beta


def _build_selectors(group, n_out, n_chunks, dtype):
    """sel[c, k, o] = 1 iff global column c*128+k reduces into output o,
    i.e. (c*128 + k) // group == o (requires group | 128)."""
    sel = np.zeros((n_chunks, _LANES, n_out), np.float32)
    for c in range(n_chunks):
        for k in range(_LANES):
            sel[c, k, (c * _LANES + k) // group] = 1.0
    return jnp.asarray(sel, dtype=dtype)


def dyn_traj_decoder_kernel(
    x_ref,
    wx_ref, bl1_ref, lng_ref, lnb_ref,
    wl2a_ref, bl2_ref,
    w_all_ref, b_all_ref,
    ln1g_ref, ln1b_ref,
    sel1_ref, sel2_ref,
    out_ref,
    *, d_in, d_out,
):
    f32 = jnp.float32
    cdt = x_ref.dtype                              # compute dtype (bf16 v6e/v7x, f32 v5e)
    x = x_ref[...]                                 # [TB, D_in] compute dtype

    # --- MLP(D_in, D_in, residual=True): layer1 and the residual half of layer2
    #     share LHS x -> one fused [D_in, 2*D_in] matmul.
    xw = jnp.dot(x, wx_ref[...], preferred_element_type=f32)        # [TB, 2*D_in] f32
    h = _layernorm(xw[:, :d_in] + bl1_ref[...], lng_ref[...], lnb_ref[...])
    h = jnp.maximum(h, 0.0)
    ws = (jnp.dot(h.astype(cdt), wl2a_ref[...], preferred_element_type=f32)
          + xw[:, d_in:] + bl2_ref[...])                            # [TB, D_in] f32

    # --- one fused projection of ws onto all four dynamic heads; result stays in
    #     the compute dtype so the big [TB, ~800] intermediate and the products
    #     below never exist as f32 (MXU still accumulates f32 internally).
    heads = jnp.dot(ws.astype(cdt), w_all_ref[...]) + b_all_ref[...]  # [TB, C] cdt
    c_w2 = d_out * d_in
    c_b = c_w2 + d_out * d_out
    b1 = heads[:, c_b:c_b + d_out].astype(f32)                        # 128-aligned slice
    # b2 starts mid-lane-tile (c_b + d_out); the 16-lane rotate on a [TB,16] slab is
    # a few vregs of XLU work -- cheaper than padding the head block to 128 columns.
    b2 = heads[:, c_b + d_out:c_b + 2 * d_out].astype(f32)

    # --- stage 1: out1[b,o] = sum_i W1[b, o*D_in+i] * x[b,i] + b1 ; LayerNorm ; ReLU
    # Only a single 128-lane replica of x is materialized; it is reused for every
    # 128-column (lane-tile aligned) chunk of W1.  Products are cdt VPU multiplies;
    # the reduction is a tiny MXU matmul against a resident 0/1 selector.
    n1 = (d_out * d_in) // _LANES
    n2 = (d_out * d_out) // _LANES
    xrep = jnp.tile(x, (1, _LANES // d_in))                           # [TB, 128] cdt
    acc1 = b1
    for c in range(n1):                                               # static unroll
        prod = heads[:, c * _LANES:(c + 1) * _LANES] * xrep
        acc1 = acc1 + jnp.dot(prod, sel1_ref[c], preferred_element_type=f32)
    out1 = jnp.maximum(_layernorm(acc1, ln1g_ref[...], ln1b_ref[...]), 0.0)

    # --- stage 2: out2[b,o] = sum_j W2[b, o*D_out+j] * out1[b,j] + b2
    hrep = jnp.tile(out1.astype(cdt), (1, _LANES // d_out))           # [TB, 128] cdt
    acc2 = b2
    for c in range(n2):
        prod = heads[:, c_w2 + c * _LANES:c_w2 + (c + 1) * _LANES] * hrep
        acc2 = acc2 + jnp.dot(prod, sel2_ref[c], preferred_element_type=f32)

    # TODO(synk): D_out=16 < 128 so this store is a masked vst; the (TB,16) ->
    # (TB//8,128) sublane->lane repack was evaluated but skipped: the required
    # in-kernel reshape is a Mosaic lowering risk and, after the bf16/replication
    # changes above, the output block (~16 KiB/tile) is <10% of per-tile store traffic.
    out_ref[...] = acc2.astype(out_ref.dtype)


def dynamic_trajectory_decoder(agent_features, params, *, tile_b=512,
                               compute_dtype=jnp.bfloat16):
    """compute_dtype: bfloat16 on v6e/v7x (bf16 VALU + MXU); use float32 on v5e."""
    N, M, D_in = agent_features.shape
    D_out = params["bb1"].shape[-1]
    assert _LANES % D_in == 0 and _LANES % D_out == 0, "D_in/D_out must divide 128"
    assert (D_out * D_in) % _LANES == 0 and (D_out * D_out) % _LANES == 0

    B = N * M
    round_up = lambda v, m: ((v + m - 1) // m) * m
    # >=2 grid steps whenever possible so both v7x TensorCores get work; otherwise
    # big tiles to amortize per-step overhead on single-TC v5e/v6e.
    tb = min(int(tile_b), max(8, round_up(pl.cdiv(B, 2), 8)))
    n_blocks = pl.cdiv(B, tb)
    B_pad = n_blocks * tb

    cdt = compute_dtype
    x = agent_features.reshape(B, D_in).astype(cdt)
    if B_pad != B:
        x = jnp.pad(x, ((0, B_pad - B), (0, 0)))

    n1 = (D_out * D_in) // _LANES
    n2 = (D_out * D_out) // _LANES

    # Fused weights: [wl1 | wl2b] share LHS x; [w1 | w2 | wb1 | wb2] share LHS ws
    # (wide, 128-aligned chunks first so the kernel's W1/W2 slices are lane-tile aligned).
    w_x = jnp.concatenate([params["wl1"], params["wl2b"]], axis=1).astype(cdt)
    w_all = jnp.concatenate(
        [params["w1"], params["w2"], params["wb1"], params["wb2"]], axis=1).astype(cdt)
    b_all = jnp.concatenate(
        [params["w1b"], params["w2b"], params["bb1"], params["bb2"]], axis=1).astype(cdt)

    sel1 = _build_selectors(D_in, D_out, n1, cdt)     # [n1, 128, D_out]
    sel2 = _build_selectors(D_out, D_out, n2, cdt)    # [n2, 128, D_out]

    ordered = [
        w_x, params["bl1"], params["lng"], params["lnb"],
        params["wl2a"].astype(cdt), params["bl2"],
        w_all, b_all,
        params["ln1g"], params["ln1b"],
        sel1, sel2,
    ]

    def full_spec(a):
        nd = a.ndim
        return pl.BlockSpec(a.shape, lambda i, _nd=nd: (0,) * _nd)

    kernel = functools.partial(dyn_traj_decoder_kernel, d_in=D_in, d_out=D_out)

    out = pl.pallas_call(
        kernel,
        out_shape=jax.ShapeDtypeStruct((B_pad, D_out), jnp.float32),
        grid_spec=pltpu.PrefetchScalarGridSpec(
            num_scalar_prefetch=0,
            grid=(n_blocks,),
            in_specs=[pl.BlockSpec((tb, D_in), lambda i: (i, 0))]
                     + [full_spec(a) for a in ordered],
            out_specs=pl.BlockSpec((tb, D_out), lambda i: (i, 0)),
        ),
        compiler_params=pltpu.CompilerParams(
            dimension_semantics=("parallel",),
            vmem_limit_bytes=32 * 1024 * 1024,   # plenty for ~3 MiB/tile, safe on all gens
        ),
    )(x, *ordered)
    return out[:B].reshape(N, M, D_out)


def init_params(key, D_in, D_out):
    """Deterministic synthetic init (PyTorch Linear-style uniform bounds)."""
    ks = jax.random.split(key, 6)

    def lin(k, fan_in, fan_out):
        bound = 1.0 / np.sqrt(fan_in)
        kw, kb = jax.random.split(k)
        w = jax.random.uniform(kw, (fan_in, fan_out), jnp.float32, -bound, bound)
        b = jax.random.uniform(kb, (1, fan_out), jnp.float32, -bound, bound)
        return w, b

    p = {}
    # MLP(D_in, D_in, residual=True)
    p["wl1"], p["bl1"] = lin(ks[0], D_in, D_in)
    p["lng"] = jnp.ones((1, D_in), jnp.float32)
    p["lnb"] = jnp.zeros((1, D_in), jnp.float32)
    wl2_full, p["bl2"] = lin(ks[1], 2 * D_in, D_in)      # layer2: in = hidden + input
    p["wl2a"] = wl2_full[:D_in]                          # applied to relu(norm(layer1))
    p["wl2b"] = wl2_full[D_in:]                          # applied to the residual x
    # Dynamic decoder heads
    p["w1"], p["w1b"] = lin(ks[2], D_in, D_out * D_in)   # weight_layer1
    p["wb1"], p["bb1"] = lin(ks[3], D_in, D_out)         # bias1
    p["w2"], p["w2b"] = lin(ks[4], D_in, D_out * D_out)  # weight_layer2
    p["wb2"], p["bb2"] = lin(ks[5], D_in, D_out)         # bias2
    p["ln1g"] = jnp.ones((1, D_out), jnp.float32)
    p["ln1b"] = jnp.zeros((1, D_out), jnp.float32)
    return p


def reference(agent_features, p, compute_dtype=jnp.float32):
    """Pure-JAX mirror of the PyTorch forward.  compute_dtype mirrors the kernel's
    matmul/elementwise precision; compute_dtype=float32 gives the exact PyTorch math."""
    N, M, D_in = agent_features.shape
    D_out = p["bb1"].shape[-1]
    f32 = jnp.float32
    cdt = compute_dtype
    x = agent_features.reshape(N * M, D_in).astype(cdt)

    def mm(a, b):
        return jnp.dot(a.astype(cdt), b.astype(cdt), preferred_element_type=f32)

    xw = mm(x, jnp.concatenate([p["wl1"], p["wl2b"]], axis=1))
    h = jnp.maximum(_layernorm(xw[:, :D_in] + p["bl1"], p["lng"], p["lnb"]), 0.0)
    ws = mm(h, p["wl2a"]) + xw[:, D_in:] + p["bl2"]

    w_all = jnp.concatenate([p["w1"], p["w2"], p["wb1"], p["wb2"]], axis=1)
    b_all = jnp.concatenate([p["w1b"], p["w2b"], p["bb1"], p["bb2"]], axis=1)
    heads = jnp.dot(ws.astype(cdt), w_all.astype(cdt)) + b_all.astype(cdt)
    c_w2 = D_out * D_in
    c_b = c_w2 + D_out * D_out
    w1f, w2f = heads[:, :c_w2], heads[:, c_w2:c_b]
    b1 = heads[:, c_b:c_b + D_out].astype(f32)
    b2 = heads[:, c_b + D_out:].astype(f32)

    prod1 = (w1f * jnp.tile(x, (1, D_out)).astype(cdt)).astype(f32)
    out = prod1.reshape(-1, D_out, D_in).sum(-1) + b1          # == bmm(W_1, x) + b_1
    out = jnp.maximum(_layernorm(out, p["ln1g"], p["ln1b"]), 0.0)
    prod2 = (w2f * jnp.tile(out.astype(cdt), (1, D_out))).astype(f32)
    out = prod2.reshape(-1, D_out, D_out).sum(-1) + b2         # == bmm(W_2, out) + b_2
    return out.reshape(N, M, D_out)


if __name__ == "__main__":
    N, M, D_in, D_out = 4, 128, 32, 16     # B = N*M = 512 rows -> grid of 2 tiles of 256
    key = jax.random.PRNGKey(0)
    kx, kp = jax.random.split(key)
    agent_features = jax.random.normal(kx, (N, M, D_in), jnp.float32)
    params = init_params(kp, D_in, D_out)

    # f32 path (the v5e-recommended precision): structural check vs exact PyTorch math.
    out_f32 = dynamic_trajectory_decoder(agent_features, params,
                                         compute_dtype=jnp.float32)
    out_f32 = jax.block_until_ready(out_f32)
    assert out_f32.shape == (N, M, D_out), out_f32.shape
    ref_f32 = reference(agent_features, params, compute_dtype=jnp.float32)
    scale = float(jnp.max(jnp.abs(ref_f32))) + 1.0
    err = float(jnp.max(jnp.abs(out_f32 - ref_f32)))
    assert err <= 1e-2 * scale, f"f32 path: max abs err {err} (scale {scale})"

    # bf16 path (v6e/v7x): tight check vs a precision-matched mirror, loose vs exact f32.
    out_bf = dynamic_trajectory_decoder(agent_features, params,
                                        compute_dtype=jnp.bfloat16)
    out_bf = jax.block_until_ready(out_bf)
    assert out_bf.shape == (N, M, D_out), out_bf.shape
    ref_bf = reference(agent_features, params, compute_dtype=jnp.bfloat16)
    scale_m = float(jnp.max(jnp.abs(ref_bf))) + 1.0
    err_m = float(jnp.max(jnp.abs(out_bf - ref_bf)))
    assert err_m <= 5e-3 * scale_m, f"matched-precision max abs err {err_m} (scale {scale_m})"
    err_l = float(jnp.max(jnp.abs(out_bf - ref_f32)))
    assert err_l <= 1e-1 * scale, f"f32-reference max abs err {err_l} (scale {scale})"

    print("KERNEL_OK")
</pallas_src>

<mosaic_0001>
module attributes {stable_mosaic.version = 11 : i64} {
  func.func @dyn_traj_decoder_kernel(%arg0: i32, %arg1: memref<256x32xf32, #tpu.memory_space<vmem>>, %arg2: memref<32x64xf32, #tpu.memory_space<vmem>>, %arg3: memref<1x32xf32, #tpu.memory_space<vmem>>, %arg4: memref<1x32xf32, #tpu.memory_space<vmem>>, %arg5: memref<1x32xf32, #tpu.memory_space<vmem>>, %arg6: memref<32x32xf32, #tpu.memory_space<vmem>>, %arg7: memref<1x32xf32, #tpu.memory_space<vmem>>, %arg8: memref<32x800xf32, #tpu.memory_space<vmem>>, %arg9: memref<1x800xf32, #tpu.memory_space<vmem>>, %arg10: memref<1x16xf32, #tpu.memory_space<vmem>>, %arg11: memref<1x16xf32, #tpu.memory_space<vmem>>, %arg12: memref<4x128x16xf32, #tpu.memory_space<vmem>>, %arg13: memref<2x128x16xf32, #tpu.memory_space<vmem>>, %arg14: memref<256x16xf32, #tpu.memory_space<vmem>>) attributes {dimension_semantics = [#tpu.dimension_semantics<parallel>], iteration_bounds = array<i64: 2>, scalar_prefetch = 0 : i64, scratch_operands = 0 : i64, tpu.core_type = #tpu.core_type<tc>, window_params = [{transform_indices = @transform_0, window_bounds = array<i64: 256, 32>}, {pipeline_mode = #tpu.pipeline_mode<synchronous>, transform_indices = @transform_1, window_bounds = array<i64: 32, 64>}, {pipeline_mode = #tpu.pipeline_mode<synchronous>, transform_indices = @transform_2, window_bounds = array<i64: 1, 32>}, {pipeline_mode = #tpu.pipeline_mode<synchronous>, transform_indices = @transform_3, window_bounds = array<i64: 1, 32>}, {pipeline_mode = #tpu.pipeline_mode<synchronous>, transform_indices = @transform_4, window_bounds = array<i64: 1, 32>}, {pipeline_mode = #tpu.pipeline_mode<synchronous>, transform_indices = @transform_5, window_bounds = array<i64: 32, 32>}, {pipeline_mode = #tpu.pipeline_mode<synchronous>, transform_indices = @transform_6, window_bounds = array<i64: 1, 32>}, {pipeline_mode = #tpu.pipeline_mode<synchronous>, transform_indices = @transform_7, window_bounds = array<i64: 32, 800>}, {pipeline_mode = #tpu.pipeline_mode<synchronous>, transform_indices = @transform_8, window_bounds = array<i64: 1, 800>}, {pipeline_mode = #tpu.pipeline_mode<synchronous>, transform_indices = @transform_9, window_bounds = array<i64: 1, 16>}, {pipeline_mode = #tpu.pipeline_mode<synchronous>, transform_indices = @transform_10, window_bounds = array<i64: 1, 16>}, {pipeline_mode = #tpu.pipeline_mode<synchronous>, transform_indices = @transform_11, window_bounds = array<i64: 4, 128, 16>}, {pipeline_mode = #tpu.pipeline_mode<synchronous>, transform_indices = @transform_12, window_bounds = array<i64: 2, 128, 16>}, {transform_indices = @transform_13, window_bounds = array<i64: 256, 16>}]} {
    %c0 = arith.constant 0 : index
    %c0_0 = arith.constant 0 : index
    %0 = vector.load %arg1[%c0, %c0_0] : memref<256x32xf32, #tpu.memory_space<vmem>>, vector<256x32xf32>
    %c0_1 = arith.constant 0 : index
    %c0_2 = arith.constant 0 : index
    %1 = vector.load %arg2[%c0_1, %c0_2] : memref<32x64xf32, #tpu.memory_space<vmem>>, vector<32x64xf32>
    %cst = arith.constant dense<0.000000e+00> : vector<256x64xf32>
    %2 = tpu.matmul %0, %1, %cst {dimension_numbers = #tpu.dot_dimension_numbers<[1], [0], [0], [1], [0, 0, 1, 1], [], []>} : vector<256x32xf32>, vector<32x64xf32>, vector<256x64xf32> -> vector<256x64xf32>
    %3 = vector.extract_strided_slice %2 {offsets = [0, 0], sizes = [256, 32], strides = [1, 1]} : vector<256x64xf32> to vector<256x32xf32>
    %c0_3 = arith.constant 0 : index
    %c0_4 = arith.constant 0 : index
    %4 = vector.load %arg3[%c0_3, %c0_4] : memref<1x32xf32, #tpu.memory_space<vmem>>, vector<1x32xf32>
    %5 = vector.broadcast %4 : vector<1x32xf32> to vector<256x32xf32>
    %6 = arith.addf %3, %5 : vector<256x32xf32>
    %c0_5 = arith.constant 0 : index
    %c0_6 = arith.constant 0 : index
    %7 = vector.load %arg4[%c0_5, %c0_6] : memref<1x32xf32, #tpu.memory_space<vmem>>, vector<1x32xf32>
    %c0_7 = arith.constant 0 : index
    %c0_8 = arith.constant 0 : index
    %8 = vector.load %arg5[%c0_7, %c0_8] : memref<1x32xf32, #tpu.memory_space<vmem>>, vector<1x32xf32>
    %cst_9 = arith.constant dense<0.000000e+00> : vector<256xf32>
    %9 = vector.multi_reduction <add>, %6, %cst_9 [1] : vector<256x32xf32> to vector<256xf32>
    %10 = vector.shape_cast %9 : vector<256xf32> to vector<256x1xf32>
    %cst_10 = arith.constant 3.200000e+01 : f32
    %11 = vector.broadcast %cst_10 : f32 to vector<256x1xf32>
    %12 = arith.divf %10, %11 : vector<256x1xf32>
    %13 = vector.broadcast %12 : vector<256x1xf32> to vector<256x32xf32>
    %14 = arith.subf %6, %13 : vector<256x32xf32>
    %15 = arith.mulf %14, %14 : vector<256x32xf32>
    %cst_11 = arith.constant dense<0.000000e+00> : vector<256xf32>
    %16 = vector.multi_reduction <add>, %15, %cst_11 [1] : vector<256x32xf32> to vector<256xf32>
    %17 = vector.shape_cast %16 : vector<256xf32> to vector<256x1xf32>
    %cst_12 = arith.constant 3.200000e+01 : f32
    %18 = vector.broadcast %cst_12 : f32 to vector<256x1xf32>
    %19 = arith.divf %17, %18 : vector<256x1xf32>
    %cst_13 = arith.constant 9.99999974E-6 : f32
    %20 = vector.broadcast %cst_13 : f32 to vector<256x1xf32>
    %21 = arith.addf %19, %20 : vector<256x1xf32>
    %22 = math.rsqrt %21 : vector<256x1xf32>
    %23 = vector.broadcast %22 : vector<256x1xf32> to vector<256x32xf32>
    %24 = arith.mulf %14, %23 : vector<256x32xf32>
    %25 = vector.broadcast %7 : vector<1x32xf32> to vector<256x32xf32>
    %26 = arith.mulf %24, %25 : vector<256x32xf32>
    %27 = vector.broadcast %8 : vector<1x32xf32> to vector<256x32xf32>
    %28 = arith.addf %26, %27 : vector<256x32xf32>
    %cst_14 = arith.constant 0.000000e+00 : f32
    %29 = vector.broadcast %cst_14 : f32 to vector<256x32xf32>
    %30 = arith.maximumf %28, %29 : vector<256x32xf32>
    %c0_15 = arith.constant 0 : index
    %c0_16 = arith.constant 0 : index
    %31 = vector.load %arg6[%c0_15, %c0_16] : memref<32x32xf32, #tpu.memory_space<vmem>>, vector<32x32xf32>
    %cst_17 = arith.constant dense<0.000000e+00> : vector<256x32xf32>
    %32 = tpu.matmul %30, %31, %cst_17 {dimension_numbers = #tpu.dot_dimension_numbers<[1], [0], [0], [1], [0, 0, 1, 1], [], []>} : vector<256x32xf32>, vector<32x32xf32>, vector<256x32xf32> -> vector<256x32xf32>
    %33 = vector.extract_strided_slice %2 {offsets = [0, 32], sizes = [256, 32], strides = [1, 1]} : vector<256x64xf32> to vector<256x32xf32>
    %34 = arith.addf %32, %33 : vector<256x32xf32>
    %c0_18 = arith.constant 0 : index
    %c0_19 = arith.constant 0 : index
    %35 = vector.load %arg7[%c0_18, %c0_19] : memref<1x32xf32, #tpu.memory_space<vmem>>, vector<1x32xf32>
    %36 = vector.broadcast %35 : vector<1x32xf32> to vector<256x32xf32>
    %37 = arith.addf %34, %36 : vector<256x32xf32>
    %c0_20 = arith.constant 0 : index
    %c0_21 = arith.constant 0 : index
    %38 = vector.load %arg8[%c0_20, %c0_21] : memref<32x800xf32, #tpu.memory_space<vmem>>, vector<32x800xf32>
    %cst_22 = arith.constant dense<0.000000e+00> : vector<256x800xf32>
    %39 = tpu.matmul %37, %38, %cst_22 {dimension_numbers = #tpu.dot_dimension_numbers<[1], [0], [0], [1], [0, 0, 1, 1], [], []>} : vector<256x32xf32>, vector<32x800xf32>, vector<256x800xf32> -> vector<256x800xf32>
    %c0_23 = arith.constant 0 : index
    %c0_24 = arith.constant 0 : index
    %40 = vector.load %arg9[%c0_23, %c0_24] : memref<1x800xf32, #tpu.memory_space<vmem>>, vector<1x800xf32>
    %41 = vector.broadcast %40 : vector<1x800xf32> to vector<256x800xf32>
    %42 = arith.addf %39, %41 : vector<256x800xf32>
    %43 = vector.extract_strided_slice %42 {offsets = [0, 768], sizes = [256, 16], strides = [1, 1]} : vector<256x800xf32> to vector<256x16xf32>
    %44 = vector.extract_strided_slice %42 {offsets = [0, 784], sizes = [256, 16], strides = [1, 1]} : vector<256x800xf32> to vector<256x16xf32>
    %45 = tpu.concatenate %0, %0, %0, %0 in 1 : vector<256x32xf32>, vector<256x32xf32>, vector<256x32xf32>, vector<256x32xf32> -> vector<256x128xf32>
    %46 = vector.extract_strided_slice %42 {offsets = [0, 0], sizes = [256, 128], strides = [1, 1]} : vector<256x800xf32> to vector<256x128xf32>
    %47 = arith.mulf %46, %45 : vector<256x128xf32>
    %c0_25 = arith.constant 0 : index
    %c0_26 = arith.constant 0 : index
    %c0_27 = arith.constant 0 : index
    %48 = vector.load %arg12[%c0_25, %c0_26, %c0_27] : memref<4x128x16xf32, #tpu.memory_space<vmem>>, vector<1x128x16xf32>
    %49 = vector.shape_cast %48 : vector<1x128x16xf32> to vector<128x16xf32>
    %cst_28 = arith.constant dense<0.000000e+00> : vector<256x16xf32>
    %50 = tpu.matmul %47, %49, %cst_28 {dimension_numbers = #tpu.dot_dimension_numbers<[1], [0], [0], [1], [0, 0, 1, 1], [], []>} : vector<256x128xf32>, vector<128x16xf32>, vector<256x16xf32> -> vector<256x16xf32>
    %51 = arith.addf %43, %50 : vector<256x16xf32>
    %52 = vector.extract_strided_slice %42 {offsets = [0, 128], sizes = [256, 128], strides = [1, 1]} : vector<256x800xf32> to vector<256x128xf32>
    %53 = arith.mulf %52, %45 : vector<256x128xf32>
    %c1 = arith.constant 1 : index
    %c0_29 = arith.constant 0 : index
    %c0_30 = arith.constant 0 : index
    %54 = vector.load %arg12[%c1, %c0_29, %c0_30] : memref<4x128x16xf32, #tpu.memory_space<vmem>>, vector<1x128x16xf32>
    %55 = vector.shape_cast %54 : vector<1x128x16xf32> to vector<128x16xf32>
    %cst_31 = arith.constant dense<0.000000e+00> : vector<256x16xf32>
    %56 = tpu.matmul %53, %55, %cst_31 {dimension_numbers = #tpu.dot_dimension_numbers<[1], [0], [0], [1], [0, 0, 1, 1], [], []>} : vector<256x128xf32>, vector<128x16xf32>, vector<256x16xf32> -> vector<256x16xf32>
    %57 = arith.addf %51, %56 : vector<256x16xf32>
    %58 = vector.extract_strided_slice %42 {offsets = [0, 256], sizes = [256, 128], strides = [1, 1]} : vector<256x800xf32> to vector<256x128xf32>
    %59 = arith.mulf %58, %45 : vector<256x128xf32>
    %c2 = arith.constant 2 : index
    %c0_32 = arith.constant 0 : index
    %c0_33 = arith.constant 0 : index
    %60 = vector.load %arg12[%c2, %c0_32, %c0_33] : memref<4x128x16xf32, #tpu.memory_space<vmem>>, vector<1x128x16xf32>
    %61 = vector.shape_cast %60 : vector<1x128x16xf32> to vector<128x16xf32>
    %cst_34 = arith.constant dense<0.000000e+00> : vector<256x16xf32>
    %62 = tpu.matmul %59, %61, %cst_34 {dimension_numbers = #tpu.dot_dimension_numbers<[1], [0], [0], [1], [0, 0, 1, 1], [], []>} : vector<256x128xf32>, vector<128x16xf32>, vector<256x16xf32> -> vector<256x16xf32>
    %63 = arith.addf %57, %62 : vector<256x16xf32>
    %64 = vector.extract_strided_slice %42 {offsets = [0, 384], sizes = [256, 128], strides = [1, 1]} : vector<256x800xf32> to vector<256x128xf32>
    %65 = arith.mulf %64, %45 : vector<256x128xf32>
    %c3 = arith.constant 3 : index
    %c0_35 = arith.constant 0 : index
    %c0_36 = arith.constant 0 : index
    %66 = vector.load %arg12[%c3, %c0_35, %c0_36] : memref<4x128x16xf32, #tpu.memory_space<vmem>>, vector<1x128x16xf32>
    %67 = vector.shape_cast %66 : vector<1x128x16xf32> to vector<128x16xf32>
    %cst_37 = arith.constant dense<0.000000e+00> : vector<256x16xf32>
    %68 = tpu.matmul %65, %67, %cst_37 {dimension_numbers = #tpu.dot_dimension_numbers<[1], [0], [0], [1], [0, 0, 1, 1], [], []>} : vector<256x128xf32>, vector<128x16xf32>, vector<256x16xf32> -> vector<256x16xf32>
    %69 = arith.addf %63, %68 : vector<256x16xf32>
    %c0_38 = arith.constant 0 : index
    %c0_39 = arith.constant 0 : index
    %70 = vector.load %arg10[%c0_38, %c0_39] : memref<1x16xf32, #tpu.memory_space<vmem>>, vector<1x16xf32>
    %c0_40 = arith.constant 0 : index
    %c0_41 = arith.constant 0 : index
    %71 = vector.load %arg11[%c0_40, %c0_41] : memref<1x16xf32, #tpu.memory_space<vmem>>, vector<1x16xf32>
    %cst_42 = arith.constant dense<0.000000e+00> : vector<256xf32>
    %72 = vector.multi_reduction <add>, %69, %cst_42 [1] : vector<256x16xf32> to vector<256xf32>
    %73 = vector.shape_cast %72 : vector<256xf32> to vector<256x1xf32>
    %cst_43 = arith.constant 1.600000e+01 : f32
    %74 = vector.broadcast %cst_43 : f32 to vector<256x1xf32>
    %75 = arith.divf %73, %74 : vector<256x1xf32>
    %76 = vector.broadcast %75 : vector<256x1xf32> to vector<256x16xf32>
    %77 = arith.subf %69, %76 : vector<256x16xf32>
    %78 = arith.mulf %77, %77 : vector<256x16xf32>
    %cst_44 = arith.constant dense<0.000000e+00> : vector<256xf32>
    %79 = vector.multi_reduction <add>, %78, %cst_44 [1] : vector<256x16xf32> to vector<256xf32>
    %80 = vector.shape_cast %79 : vector<256xf32> to vector<256x1xf32>
    %cst_45 = arith.constant 1.600000e+01 : f32
    %81 = vector.broadcast %cst_45 : f32 to vector<256x1xf32>
    %82 = arith.divf %80, %81 : vector<256x1xf32>
    %cst_46 = arith.constant 9.99999974E-6 : f32
    %83 = vector.broadcast %cst_46 : f32 to vector<256x1xf32>
    %84 = arith.addf %82, %83 : vector<256x1xf32>
    %85 = math.rsqrt %84 : vector<256x1xf32>
    %86 = vector.broadcast %85 : vector<256x1xf32> to vector<256x16xf32>
    %87 = arith.mulf %77, %86 : vector<256x16xf32>
    %88 = vector.broadcast %70 : vector<1x16xf32> to vector<256x16xf32>
    %89 = arith.mulf %87, %88 : vector<256x16xf32>
    %90 = vector.broadcast %71 : vector<1x16xf32> to vector<256x16xf32>
    %91 = arith.addf %89, %90 : vector<256x16xf32>
    %cst_47 = arith.constant 0.000000e+00 : f32
    %92 = vector.broadcast %cst_47 : f32 to vector<256x16xf32>
    %93 = arith.maximumf %91, %92 : vector<256x16xf32>
    %94 = tpu.concatenate %93, %93, %93, %93, %93, %93, %93, %93 in 1 : vector<256x16xf32>, vector<256x16xf32>, vector<256x16xf32>, vector<256x16xf32>, vector<256x16xf32>, vector<256x16xf32>, vector<256x16xf32>, vector<256x16xf32> -> vector<256x128xf32>
    %95 = vector.extract_strided_slice %42 {offsets = [0, 512], sizes = [256, 128], strides = [1, 1]} : vector<256x800xf32> to vector<256x128xf32>
    %96 = arith.mulf %95, %94 : vector<256x128xf32>
    %c0_48 = arith.constant 0 : index
    %c0_49 = arith.constant 0 : index
    %c0_50 = arith.constant 0 : index
    %97 = vector.load %arg13[%c0_48, %c0_49, %c0_50] : memref<2x128x16xf32, #tpu.memory_space<vmem>>, vector<1x128x16xf32>
    %98 = vector.shape_cast %97 : vector<1x128x16xf32> to vector<128x16xf32>
    %cst_51 = arith.constant dense<0.000000e+00> : vector<256x16xf32>
    %99 = tpu.matmul %96, %98, %cst_51 {dimension_numbers = #tpu.dot_dimension_numbers<[1], [0], [0], [1], [0, 0, 1, 1], [], []>} : vector<256x128xf32>, vector<128x16xf32>, vector<256x16xf32> -> vector<256x16xf32>
    %100 = arith.addf %44, %99 : vector<256x16xf32>
    %101 = vector.extract_strided_slice %42 {offsets = [0, 640], sizes = [256, 128], strides = [1, 1]} : vector<256x800xf32> to vector<256x128xf32>
    %102 = arith.mulf %101, %94 : vector<256x128xf32>
    %c1_52 = arith.constant 1 : index
    %c0_53 = arith.constant 0 : index
    %c0_54 = arith.constant 0 : index
    %103 = vector.load %arg13[%c1_52, %c0_53, %c0_54] : memref<2x128x16xf32, #tpu.memory_space<vmem>>, vector<1x128x16xf32>
    %104 = vector.shape_cast %103 : vector<1x128x16xf32> to vector<128x16xf32>
    %cst_55 = arith.constant dense<0.000000e+00> : vector<256x16xf32>
    %105 = tpu.matmul %102, %104, %cst_55 {dimension_numbers = #tpu.dot_dimension_numbers<[1], [0], [0], [1], [0, 0, 1, 1], [], []>} : vector<256x128xf32>, vector<128x16xf32>, vector<256x16xf32> -> vector<256x16xf32>
    %106 = arith.addf %100, %105 : vector<256x16xf32>
    %c0_56 = arith.constant 0 : index
    %c0_57 = arith.constant 0 : index
    %107 = vector.load %arg14[%c0_56, %c0_57] : memref<256x16xf32, #tpu.memory_space<vmem>>, vector<256x16xf32>
    tpu.vector_store %arg14[%c0_56, %c0_57], %106 {strides = array<i32>} : memref<256x16xf32, #tpu.memory_space<vmem>>, vector<256x16xf32>,
    return
  }
  func.func @transform_0(%arg0: i32) -> (i32, i32) {
    %c0_i32 = arith.constant 0 : i32
    %c0_i32_0 = arith.constant 0 : i32
    return %arg0, %c0_i32 : i32, i32
  }
  func.func @transform_1(%arg0: i32) -> (i32, i32) {
    %c0_i32 = arith.constant 0 : i32
    %c0_i32_0 = arith.constant 0 : i32
    %c0_i32_1 = arith.constant 0 : i32
    return %c0_i32, %c0_i32_0 : i32, i32
  }
  func.func @transform_2(%arg0: i32) -> (i32, i32) {
    %c0_i32 = arith.constant 0 : i32
    %c0_i32_0 = arith.constant 0 : i32
    %c0_i32_1 = arith.constant 0 : i32
    return %c0_i32, %c0_i32_0 : i32, i32
  }
  func.func @transform_3(%arg0: i32) -> (i32, i32) {
    %c0_i32 = arith.constant 0 : i32
    %c0_i32_0 = arith.constant 0 : i32
    %c0_i32_1 = arith.constant 0 : i32
    return %c0_i32, %c0_i32_0 : i32, i32
  }
  func.func @transform_4(%arg0: i32) -> (i32, i32) {
    %c0_i32 = arith.constant 0 : i32
    %c0_i32_0 = arith.constant 0 : i32
    %c0_i32_1 = arith.constant 0 : i32
    return %c0_i32, %c0_i32_0 : i32, i32
  }
  func.func @transform_5(%arg0: i32) -> (i32, i32) {
    %c0_i32 = arith.constant 0 : i32
    %c0_i32_0 = arith.constant 0 : i32
    %c0_i32_1 = arith.constant 0 : i32
    return %c0_i32, %c0_i32_0 : i32, i32
  }
  func.func @transform_6(%arg0: i32) -> (i32, i32) {
    %c0_i32 = arith.constant 0 : i32
    %c0_i32_0 = arith.constant 0 : i32
    %c0_i32_1 = arith.constant 0 : i32
    return %c0_i32, %c0_i32_0 : i32, i32
  }
  func.func @transform_7(%arg0: i32) -> (i32, i32) {
    %c0_i32 = arith.constant 0 : i32
    %c0_i32_0 = arith.constant 0 : i32
    %c0_i32_1 = arith.constant 0 : i32
    return %c0_i32, %c0_i32_0 : i32, i32
  }
  func.func @transform_8(%arg0: i32) -> (i32, i32) {
    %c0_i32 = arith.constant 0 : i32
    %c0_i32_0 = arith.constant 0 : i32
    %c0_i32_1 = arith.constant 0 : i32
    return %c0_i32, %c0_i32_0 : i32, i32
  }
  func.func @transform_9(%arg0: i32) -> (i32, i32) {
    %c0_i32 = arith.constant 0 : i32
    %c0_i32_0 = arith.constant 0 : i32
    %c0_i32_1 = arith.constant 0 : i32
    return %c0_i32, %c0_i32_0 : i32, i32
  }
  func.func @transform_10(%arg0: i32) -> (i32, i32) {
    %c0_i32 = arith.constant 0 : i32
    %c0_i32_0 = arith.constant 0 : i32
    %c0_i32_1 = arith.constant 0 : i32
    return %c0_i32, %c0_i32_0 : i32, i32
  }
  func.func @transform_11(%arg0: i32) -> (i32, i32, i32) {
    %c0_i32 = arith.constant 0 : i32
    %c0_i32_0 = arith.constant 0 : i32
    %c0_i32_1 = arith.constant 0 : i32
    %c0_i32_2 = arith.constant 0 : i32
    return %c0_i32, %c0_i32_0, %c0_i32_1 : i32, i32, i32
  }
  func.func @transform_12(%arg0: i32) -> (i32, i32, i32) {
    %c0_i32 = arith.constant 0 : i32
    %c0_i32_0 = arith.constant 0 : i32
    %c0_i32_1 = arith.constant 0 : i32
    %c0_i32_2 = arith.constant 0 : i32
    return %c0_i32, %c0_i32_0, %c0_i32_1 : i32, i32, i32
  }
  func.func @transform_13(%arg0: i32) -> (i32, i32) {
    %c0_i32 = arith.constant 0 : i32
    %c0_i32_0 = arith.constant 0 : i32
    return %arg0, %c0_i32 : i32, i32
  }
}

</mosaic_0001>

<llo_original>
// kernel: tpu_custom_call.1
$region0: #{tpu_custom_call.1}
  #allocation0 [shape = 'u32[]', space=smem, size = 0x4, offset = 0x4, fixed_abs, tag = 'smem constant byte address 0x4 - core index']
  #allocation1 [shape = 'u32[144,128]{1,0:T(1,128)}', space=vmem, size = 0x12000, scoped, tag = 'internal scratch']
  %s0 = inlined_call_operand.vmem [shape: f32[512,32], index: 0, kind: input, shape index: {}]
  %s1 = inlined_call_operand.vmem [shape: f32[32,64], index: 1, kind: input, shape index: {}]
  %s2 = inlined_call_operand.vmem [shape: f32[1,32], index: 2, kind: input, shape index: {}]
  %s3 = inlined_call_operand.vmem [shape: f32[1,32], index: 3, kind: input, shape index: {}]
  %s4 = inlined_call_operand.vmem [shape: f32[1,32], index: 4, kind: input, shape index: {}]
  %s5 = inlined_call_operand.vmem [shape: f32[32,32], index: 5, kind: input, shape index: {}]
  %s6 = inlined_call_operand.vmem [shape: f32[1,32], index: 6, kind: input, shape index: {}]
  %s7 = inlined_call_operand.vmem [shape: f32[32,800], index: 7, kind: input, shape index: {}]
  %s8 = inlined_call_operand.vmem [shape: f32[1,800], index: 8, kind: input, shape index: {}]
  %s9 = inlined_call_operand.vmem [shape: f32[1,16], index: 9, kind: input, shape index: {}]
  %s10 = inlined_call_operand.vmem [shape: f32[1,16], index: 10, kind: input, shape index: {}]
  %s11 = inlined_call_operand.vmem [shape: f32[4,128,16], index: 11, kind: input, shape index: {}]
  %s12 = inlined_call_operand.vmem [shape: f32[2,128,16], index: 12, kind: input, shape index: {}]
  %s13 = inlined_call_operand.vmem [shape: f32[512,16], index: 13, kind: output, shape index: {}]
  %s14 = sld [smem:[#allocation0]]
  $region85: #{tpu_custom_call.1} parent=0
    _
  %s16 = ssub.s32 1, %s14
  %s17 = scalar_select 0, %s16, %s14
  loop: start=0, step=1, limit=4
  $region2: #{tpu_custom_call.1} parent=0 // loop_pre_header
    _
  $region3: #{tpu_custom_call.1} parent=0 // loop_header
    %s19 = sphi 0, %s23
    %p20 = scmp.ge.s32.totalorder %s19, 4
    %s29 = sphi 0, %s31
    %s32 = sphi 0, %s29
    %s33 = sphi 0, %s32
    %s49 = sphi 0, %s33
    %s53 = sphi 0, %s53
    %s55 = sphi 0, %s53
    %s56 = sphi 0, %s55
    %s70 = sphi 0, %s56
    %s74 = sphi 0, %s74
    %s76 = sphi 0, %s74
    %s77 = sphi 0, %s76
    %s91 = sphi 0, %s77
    %s95 = sphi 0, %s95
    %s97 = sphi 0, %s95
    %s98 = sphi 0, %s97
    %s112 = sphi 0, %s98
    %s116 = sphi 0, %s116
    %s118 = sphi 0, %s116
    %s119 = sphi 0, %s118
    %s133 = sphi 0, %s119
    %s137 = sphi 0, %s137
    %s139 = sphi 0, %s137
    %s140 = sphi 0, %s139
    %s154 = sphi 0, %s140
    %s158 = sphi 0, %s158
    %s160 = sphi 0, %s158
    %s161 = sphi 0, %s160
    %s175 = sphi 0, %s161
    %s179 = sphi 0, %s179
    %s181 = sphi 0, %s179
    %s182 = sphi 0, %s181
    %s196 = sphi 0, %s182
    %s200 = sphi 0, %s200
    %s202 = sphi 0, %s200
    %s203 = sphi 0, %s202
    %s217 = sphi 0, %s203
    %s221 = sphi 0, %s221
    %s223 = sphi 0, %s221
    %s224 = sphi 0, %s223
    %s238 = sphi 0, %s224
    %s242 = sphi 0, %s242
    %s244 = sphi 0, %s242
    %s245 = sphi 0, %s244
    %s259 = sphi 0, %s245
    %s263 = sphi 0, %s263
    %s265 = sphi 0, %s263
    %s266 = sphi 0, %s265
    %s280 = sphi 0, %s266
    %s284 = sphi 0, %s284
    %s286 = sphi 0, %s284
    %s287 = sphi 0, %s286
    %s301 = sphi 0, %s287
    %s307 = sphi 0, %s309
    %s310 = sphi 0, %s307
    %s311 = sphi 0, %s310
    %s327 = sphi 0, %s311
  $region4: #{tpu_custom_call.1} parent=0 // loop_header_branch
    %22 = sbr.rel (%p20) target = $region8
  $region5: #{tpu_custom_call.1} parent=0 // loop_body
    %s24 = ssub.s32 %s19, 1
    %s25 = ssub.s32 %s19, 2
    %s26 = sadd.s32 %s19, 1
    %s27 = ssub.s32 %s19, %s26
    %p28 = scmp.eq.s32.totalorder %s27, 0
    %s30 = sadd.s32 %s29, 1
    %s31 = scalar_select %p28, %s29, %s30
    %p34 = pneg %p28
    %p35 = scmp.eq.s32.totalorder %s19, 1
    %p36 = por %p34, %p35
    %p37 = scmp.ne.s32.totalorder %s29, %s32
    %p38 = scmp.eq.s32.totalorder %s19, 0
    %p39 = por %p37, %p38
    %p40 = scmp.ne.s32.totalorder %s29, %s32
    %p41 = scmp.eq.s32.totalorder %s24, 1
    %p42 = por %p40, %p41
    %p43 = scmp.ne.s32.totalorder %s32, %s33
    %p44 = scmp.eq.s32.totalorder %s24, 0
    %p45 = por %p43, %p44
    %p46 = scmp.ne.s32.totalorder %s32, %s33
    %p47 = scmp.eq.s32.totalorder %s25, 1
    %p48 = por %p46, %p47
    %p50 = scmp.ne.s32.totalorder %s33, %s49
    %p51 = scmp.eq.s32.totalorder %s25, 0
    %p52 = por %p50, %p51
    %s54 = sadd.s32 %s53, 1
    %p57 = scmp.eq.s32.totalorder %s19, 1
    %p58 = scmp.ne.s32.totalorder %s53, %s55
    %p59 = scmp.eq.s32.totalorder %s19, 0
    %p60 = por %p58, %p59
    %p61 = scmp.ne.s32.totalorder %s53, %s55
    %p62 = scmp.eq.s32.totalorder %s24, 1
    %p63 = por %p61, %p62
    %p64 = scmp.ne.s32.totalorder %s55, %s56
    %p65 = scmp.eq.s32.totalorder %s24, 0
    %p66 = por %p64, %p65
    %p67 = scmp.ne.s32.totalorder %s55, %s56
    %p68 = scmp.eq.s32.totalorder %s25, 1
    %p69 = por %p67, %p68
    %p71 = scmp.ne.s32.totalorder %s56, %s70
    %p72 = scmp.eq.s32.totalorder %s25, 0
    %p73 = por %p71, %p72
    %s75 = sadd.s32 %s74, 1
    %p78 = scmp.eq.s32.totalorder %s19, 1
    %p79 = scmp.ne.s32.totalorder %s74, %s76
    %p80 = scmp.eq.s32.totalorder %s19, 0
    %p81 = por %p79, %p80
    %p82 = scmp.ne.s32.totalorder %s74, %s76
    %p83 = scmp.eq.s32.totalorder %s24, 1
    %p84 = por %p82, %p83
    %p85 = scmp.ne.s32.totalorder %s76, %s77
    %p86 = scmp.eq.s32.totalorder %s24, 0
    %p87 = por %p85, %p86
    %p88 = scmp.ne.s32.totalorder %s76, %s77
    %p89 = scmp.eq.s32.totalorder %s25, 1
    %p90 = por %p88, %p89
    %p92 = scmp.ne.s32.totalorder %s77, %s91
    %p93 = scmp.eq.s32.totalorder %s25, 0
    %p94 = por %p92, %p93
    %s96 = sadd.s32 %s95, 1
    %p99 = scmp.eq.s32.totalorder %s19, 1
    %p100 = scmp.ne.s32.totalorder %s95, %s97
    %p101 = scmp.eq.s32.totalorder %s19, 0
    %p102 = por %p100, %p101
    %p103 = scmp.ne.s32.totalorder %s95, %s97
    %p104 = scmp.eq.s32.totalorder %s24, 1
    %p105 = por %p103, %p104
    %p106 = scmp.ne.s32.totalorder %s97, %s98
    %p107 = scmp.eq.s32.totalorder %s24, 0
    %p108 = por %p106, %p107
    %p109 = scmp.ne.s32.totalorder %s97, %s98
    %p110 = scmp.eq.s32.totalorder %s25, 1
    %p111 = por %p109, %p110
    %p113 = scmp.ne.s32.totalorder %s98, %s112
    %p114 = scmp.eq.s32.totalorder %s25, 0
    %p115 = por %p113, %p114
    %s117 = sadd.s32 %s116, 1
    %p120 = scmp.eq.s32.totalorder %s19, 1
    %p121 = scmp.ne.s32.totalorder %s116, %s118
    %p122 = scmp.eq.s32.totalorder %s19, 0
    %p123 = por %p121, %p122
    %p124 = scmp.ne.s32.totalorder %s116, %s118
    %p125 = scmp.eq.s32.totalorder %s24, 1
    %p126 = por %p124, %p125
    %p127 = scmp.ne.s32.totalorder %s118, %s119
    %p128 = scmp.eq.s32.totalorder %s24, 0
    %p129 = por %p127, %p128
    %p130 = scmp.ne.s32.totalorder %s118, %s119
    %p131 = scmp.eq.s32.totalorder %s25, 1
    %p132 = por %p130, %p131
    %p134 = scmp.ne.s32.totalorder %s119, %s133
    %p135 = scmp.eq.s32.totalorder %s25, 0
    %p136 = por %p134, %p135
    %s138 = sadd.s32 %s137, 1
    %p141 = scmp.eq.s32.totalorder %s19, 1
    %p142 = scmp.ne.s32.totalorder %s137, %s139
    %p143 = scmp.eq.s32.totalorder %s19, 0
    %p144 = por %p142, %p143
    %p145 = scmp.ne.s32.totalorder %s137, %s139
    %p146 = scmp.eq.s32.totalorder %s24, 1
    %p147 = por %p145, %p146
    %p148 = scmp.ne.s32.totalorder %s139, %s140
    %p149 = scmp.eq.s32.totalorder %s24, 0
    %p150 = por %p148, %p149
    %p151 = scmp.ne.s32.totalorder %s139, %s140
    %p152 = scmp.eq.s32.totalorder %s25, 1
    %p153 = por %p151, %p152
    %p155 = scmp.ne.s32.totalorder %s140, %s154
    %p156 = scmp.eq.s32.totalorder %s25, 0
    %p157 = por %p155, %p156
    %s159 = sadd.s32 %s158, 1
    %p162 = scmp.eq.s32.totalorder %s19, 1
    %p163 = scmp.ne.s32.totalorder %s158, %s160
    %p164 = scmp.eq.s32.totalorder %s19, 0
    %p165 = por %p163, %p164
    %p166 = scmp.ne.s32.totalorder %s158, %s160
    %p167 = scmp.eq.s32.totalorder %s24, 1
    %p168 = por %p166, %p167
    %p169 = scmp.ne.s32.totalorder %s160, %s161
    %p170 = scmp.eq.s32.totalorder %s24, 0
    %p171 = por %p169, %p170
    %p172 = scmp.ne.s32.totalorder %s160, %s161
    %p173 = scmp.eq.s32.totalorder %s25, 1
    %p174 = por %p172, %p173
    %p176 = scmp.ne.s32.totalorder %s161, %s175
    %p177 = scmp.eq.s32.totalorder %s25, 0
    %p178 = por %p176, %p177
    %s180 = sadd.s32 %s179, 1
    %p183 = scmp.eq.s32.totalorder %s19, 1
    %p184 = scmp.ne.s32.totalorder %s179, %s181
    %p185 = scmp.eq.s32.totalorder %s19, 0
    %p186 = por %p184, %p185
    %p187 = scmp.ne.s32.totalorder %s179, %s181
    %p188 = scmp.eq.s32.totalorder %s24, 1
    %p189 = por %p187, %p188
    %p190 = scmp.ne.s32.totalorder %s181, %s182
    %p191 = scmp.eq.s32.totalorder %s24, 0
    %p192 = por %p190, %p191
    %p193 = scmp.ne.s32.totalorder %s181, %s182
    %p194 = scmp.eq.s32.totalorder %s25, 1
    %p195 = por %p193, %p194
    %p197 = scmp.ne.s32.totalorder %s182, %s196
    %p198 = scmp.eq.s32.totalorder %s25, 0
    %p199 = por %p197, %p198
    %s201 = sadd.s32 %s200, 1
    %p204 = scmp.eq.s32.totalorder %s19, 1
    %p205 = scmp.ne.s32.totalorder %s200, %s202
    %p206 = scmp.eq.s32.totalorder %s19, 0
    %p207 = por %p205, %p206
    %p208 = scmp.ne.s32.totalorder %s200, %s202
    %p209 = scmp.eq.s32.totalorder %s24, 1
    %p210 = por %p208, %p209
    %p211 = scmp.ne.s32.totalorder %s202, %s203
    %p212 = scmp.eq.s32.totalorder %s24, 0
    %p213 = por %p211, %p212
    %p214 = scmp.ne.s32.totalorder %s202, %s203
    %p215 = scmp.eq.s32.totalorder %s25, 1
    %p216 = por %p214, %p215
    %p218 = scmp.ne.s32.totalorder %s203, %s217
    %p219 = scmp.eq.s32.totalorder %s25, 0
    %p220 = por %p218, %p219
    %s222 = sadd.s32 %s221, 1
    %p225 = scmp.eq.s32.totalorder %s19, 1
    %p226 = scmp.ne.s32.totalorder %s221, %s223
    %p227 = scmp.eq.s32.totalorder %s19, 0
    %p228 = por %p226, %p227
    %p229 = scmp.ne.s32.totalorder %s221, %s223
    %p230 = scmp.eq.s32.totalorder %s24, 1
    %p231 = por %p229, %p230
    %p232 = scmp.ne.s32.totalorder %s223, %s224
    %p233 = scmp.eq.s32.totalorder %s24, 0
    %p234 = por %p232, %p233
    %p235 = scmp.ne.s32.totalorder %s223, %s224
    %p236 = scmp.eq.s32.totalorder %s25, 1
    %p237 = por %p235, %p236
    %p239 = scmp.ne.s32.totalorder %s224, %s238
    %p240 = scmp.eq.s32.totalorder %s25, 0
    %p241 = por %p239, %p240
    %s243 = sadd.s32 %s242, 1
    %p246 = scmp.eq.s32.totalorder %s19, 1
    %p247 = scmp.ne.s32.totalorder %s242, %s244
    %p248 = scmp.eq.s32.totalorder %s19, 0
    %p249 = por %p247, %p248
    %p250 = scmp.ne.s32.totalorder %s242, %s244
    %p251 = scmp.eq.s32.totalorder %s24, 1
    %p252 = por %p250, %p251
    %p253 = scmp.ne.s32.totalorder %s244, %s245
    %p254 = scmp.eq.s32.totalorder %s24, 0
    %p255 = por %p253, %p254
    %p256 = scmp.ne.s32.totalorder %s244, %s245
    %p257 = scmp.eq.s32.totalorder %s25, 1
    %p258 = por %p256, %p257
    %p260 = scmp.ne.s32.totalorder %s245, %s259
    %p261 = scmp.eq.s32.totalorder %s25, 0
    %p262 = por %p260, %p261
    %s264 = sadd.s32 %s263, 1
    %p267 = scmp.eq.s32.totalorder %s19, 1
    %p268 = scmp.ne.s32.totalorder %s263, %s265
    %p269 = scmp.eq.s32.totalorder %s19, 0
    %p270 = por %p268, %p269
    %p271 = scmp.ne.s32.totalorder %s263, %s265
    %p272 = scmp.eq.s32.totalorder %s24, 1
    %p273 = por %p271, %p272
    %p274 = scmp.ne.s32.totalorder %s265, %s266
    %p275 = scmp.eq.s32.totalorder %s24, 0
    %p276 = por %p274, %p275
    %p277 = scmp.ne.s32.totalorder %s265, %s266
    %p278 = scmp.eq.s32.totalorder %s25, 1
    %p279 = por %p277, %p278
    %p281 = scmp.ne.s32.totalorder %s266, %s280
    %p282 = scmp.eq.s32.totalorder %s25, 0
    %p283 = por %p281, %p282
    %s285 = sadd.s32 %s284, 1
    %p288 = scmp.eq.s32.totalorder %s19, 1
    %p289 = scmp.ne.s32.totalorder %s284, %s286
    %p290 = scmp.eq.s32.totalorder %s19, 0
    %p291 = por %p289, %p290
    %p292 = scmp.ne.s32.totalorder %s284, %s286
    %p293 = scmp.eq.s32.totalorder %s24, 1
    %p294 = por %p292, %p293
    %p295 = scmp.ne.s32.totalorder %s286, %s287
    %p296 = scmp.eq.s32.totalorder %s24, 0
    %p297 = por %p295, %p296
    %p298 = scmp.ne.s32.totalorder %s286, %s287
    %p299 = scmp.eq.s32.totalorder %s25, 1
    %p300 = por %p298, %p299
    %p302 = scmp.ne.s32.totalorder %s287, %s301
    %p303 = scmp.eq.s32.totalorder %s25, 0
    %p304 = por %p302, %p303
    %s305 = ssub.s32 %s19, %s26
    %p306 = scmp.eq.s32.totalorder %s305, 0
    %s308 = sadd.s32 %s307, 1
    %s309 = scalar_select %p306, %s307, %s308
    %p312 = pneg %p306
    %p313 = scmp.eq.s32.totalorder %s19, 1
    %p314 = por %p312, %p313
    %p315 = scmp.ne.s32.totalorder %s307, %s310
    %p316 = scmp.eq.s32.totalorder %s19, 0
    %p317 = por %p315, %p316
    %p318 = scmp.ne.s32.totalorder %s307, %s310
    %p319 = scmp.eq.s32.totalorder %s24, 1
    %p320 = por %p318, %p319
    %p321 = scmp.ne.s32.totalorder %s310, %s311
    %p322 = scmp.eq.s32.totalorder %s24, 0
    %p323 = por %p321, %p322
    %p324 = scmp.ne.s32.totalorder %s310, %s311
    %p325 = scmp.eq.s32.totalorder %s25, 1
    %p326 = por %p324, %p325
    %p328 = scmp.ne.s32.totalorder %s311, %s327
    %p329 = scmp.eq.s32.totalorder %s25, 0
    %p330 = por %p328, %p329
    %p331 = scmp.le.s32.totalorder 1, %s19
    %p332 = scmp.lt.s32.totalorder %s19, 3
    %p333 = pnand %p331, %p332
    %p334 = pneg %p333
    // Predicated region
    $region9: #{tpu_custom_call.1} parent=5 // pred_check
      _
    $region10: #{tpu_custom_call.1} parent=5 // pred_check_branch
      %336 = sbr.rel (%p333) target = $region12
    $region11: #{tpu_custom_call.1} parent=5 // pred_region
      %s337 = ssub.s32 %s19, 1
      // Predicated region
      $region13: #{tpu_custom_call.1} parent=11 // pred_check
        %p338 = pneg %p66
      $region14: #{tpu_custom_call.1} parent=11 // pred_check_branch
        %340 = sbr.rel (%p338) target = $region16
      $region15: #{tpu_custom_call.1} parent=11 // pred_region
        _
      $region16: #{tpu_custom_call.1} parent=11 // pred_fallthru
        _
      // Predicated region
      $region17: #{tpu_custom_call.1} parent=11 // pred_check
        %p341 = pneg %p87
      $region18: #{tpu_custom_call.1} parent=11 // pred_check_branch
        %343 = sbr.rel (%p341) target = $region20
      $region19: #{tpu_custom_call.1} parent=11 // pred_region
        _
      $region20: #{tpu_custom_call.1} parent=11 // pred_fallthru
        _
      // Predicated region
      $region21: #{tpu_custom_call.1} parent=11 // pred_check
        %p344 = pneg %p108
      $region22: #{tpu_custom_call.1} parent=11 // pred_check_branch
        %346 = sbr.rel (%p344) target = $region24
      $region23: #{tpu_custom_call.1} parent=11 // pred_region
        _
      $region24: #{tpu_custom_call.1} parent=11 // pred_fallthru
        _
      // Predicated region
      $region25: #{tpu_custom_call.1} parent=11 // pred_check
        %p347 = pneg %p129
      $region26: #{tpu_custom_call.1} parent=11 // pred_check_branch
        %349 = sbr.rel (%p347) target = $region28
      $region27: #{tpu_custom_call.1} parent=11 // pred_region
        _
      $region28: #{tpu_custom_call.1} parent=11 // pred_fallthru
        _
      // Predicated region
      $region29: #{tpu_custom_call.1} parent=11 // pred_check
        %p350 = pneg %p150
      $region30: #{tpu_custom_call.1} parent=11 // pred_check_branch
        %352 = sbr.rel (%p350) target = $region32
      $region31: #{tpu_custom_call.1} parent=11 // pred_region
        _
      $region32: #{tpu_custom_call.1} parent=11 // pred_fallthru
        _
      // Predicated region
      $region33: #{tpu_custom_call.1} parent=11 // pred_check
        %p353 = pneg %p171
      $region34: #{tpu_custom_call.1} parent=11 // pred_check_branch
        %355 = sbr.rel (%p353) target = $region36
      $region35: #{tpu_custom_call.1} parent=11 // pred_region
        _
      $region36: #{tpu_custom_call.1} parent=11 // pred_fallthru
        _
      // Predicated region
      $region37: #{tpu_custom_call.1} parent=11 // pred_check
        %p356 = pneg %p192
      $region38: #{tpu_custom_call.1} parent=11 // pred_check_branch
        %358 = sbr.rel (%p356) target = $region40
      $region39: #{tpu_custom_call.1} parent=11 // pred_region
        _
      $region40: #{tpu_custom_call.1} parent=11 // pred_fallthru
        _
      // Predicated region
      $region41: #{tpu_custom_call.1} parent=11 // pred_check
        %p359 = pneg %p213
      $region42: #{tpu_custom_call.1} parent=11 // pred_check_branch
        %361 = sbr.rel (%p359) target = $region44
      $region43: #{tpu_custom_call.1} parent=11 // pred_region
        _
      $region44: #{tpu_custom_call.1} parent=11 // pred_fallthru
        _
      // Predicated region
      $region45: #{tpu_custom_call.1} parent=11 // pred_check
        %p362 = pneg %p234
      $region46: #{tpu_custom_call.1} parent=11 // pred_check_branch
        %364 = sbr.rel (%p362) target = $region48
      $region47: #{tpu_custom_call.1} parent=11 // pred_region
        _
      $region48: #{tpu_custom_call.1} parent=11 // pred_fallthru
        _
      // Predicated region
      $region49: #{tpu_custom_call.1} parent=11 // pred_check
        %p365 = pneg %p255
      $region50: #{tpu_custom_call.1} parent=11 // pred_check_branch
        %367 = sbr.rel (%p365) target = $region52
      $region51: #{tpu_custom_call.1} parent=11 // pred_region
        _
      $region52: #{tpu_custom_call.1} parent=11 // pred_fallthru
        _
      // Predicated region
      $region53: #{tpu_custom_call.1} parent=11 // pred_check
        %p368 = pneg %p276
      $region54: #{tpu_custom_call.1} parent=11 // pred_check_branch
        %370 = sbr.rel (%p368) target = $region56
      $region55: #{tpu_custom_call.1} parent=11 // pred_region
        _
      $region56: #{tpu_custom_call.1} parent=11 // pred_fallthru
        _
      // Predicated region
      $region57: #{tpu_custom_call.1} parent=11 // pred_check
        %p371 = pneg %p297
      $region58: #{tpu_custom_call.1} parent=11 // pred_check_branch
        %373 = sbr.rel (%p371) target = $region60
      $region59: #{tpu_custom_call.1} parent=11 // pred_region
        _
      $region60: #{tpu_custom_call.1} parent=11 // pred_fallthru
        _
    $region12: #{tpu_custom_call.1} parent=5 // pred_fallthru
      _
    %p374 = scmp.lt.s32.totalorder %s19, 2
    // Predicated region
    $region61: #{tpu_custom_call.1} parent=5 // pred_check
      %p375 = pneg %p374
    $region62: #{tpu_custom_call.1} parent=5 // pred_check_branch
      %377 = sbr.rel (%p375) target = $region64
    $region63: #{tpu_custom_call.1} parent=5 // pred_region
      // Predicated region
      $region65: #{tpu_custom_call.1} parent=63 // pred_check
        %p378 = pneg %p39
      $region66: #{tpu_custom_call.1} parent=63 // pred_check_branch
        %380 = sbr.rel (%p378) target = $region68
      $region67: #{tpu_custom_call.1} parent=63 // pred_region
        %s381 = smul.u32 32, %s19
        %p382 = scmp.lt.s32.totalorder %s381, 63
        %s383 = scalar_select %p382, %s381, 63
        %s384 = smul.addr %s383, 8
        %s385 = scalar_lea.vmem %s0, %s384
        %s386 = smul.u32 32, %s19
      $region68: #{tpu_custom_call.1} parent=63 // pred_fallthru
        _
    $region64: #{tpu_custom_call.1} parent=5 // pred_fallthru
      _
    %p387 = scmp.le.s32.totalorder 1, %s19
    %p388 = scmp.lt.s32.totalorder %s19, 3
    %p389 = pnand %p387, %p388
    %p390 = pneg %p389
    // Predicated region
    $region69: #{tpu_custom_call.1} parent=5 // pred_check
      _
    $region70: #{tpu_custom_call.1} parent=5 // pred_check_branch
      %392 = sbr.rel (%p389) target = $region72
    $region71: #{tpu_custom_call.1} parent=5 // pred_region
      %s393 = ssub.s32 %s19, 1
      %s394 = smul.u32 32, %s24
      %p395 = scmp.lt.s32.totalorder %s394, 63
      %s396 = scalar_select %p395, %s394, 63
      %s397 = smul.addr %s396, 8
      %s398 = scalar_lea.vmem %s0, %s397
      %p399 = pneg %p45
      %p400 = pneg %p42
      %p401 = pneg %p66
      %p402 = pneg %p63
      %p403 = pneg %p87
      %p404 = pneg %p84
      %p405 = pneg %p108
      %p406 = pneg %p105
      %p407 = pneg %p129
      %p408 = pneg %p126
      %p409 = pneg %p150
      %p410 = pneg %p147
      %p411 = pneg %p171
      %p412 = pneg %p168
      %p413 = pneg %p192
      %p414 = pneg %p189
      %p415 = pneg %p213
      %p416 = pneg %p210
      %p417 = pneg %p234
      %p418 = pneg %p231
      %p419 = pneg %p255
      %p420 = pneg %p252
      %p421 = pneg %p276
      %p422 = pneg %p273
      %p423 = pneg %p297
      %p424 = pneg %p294
      %p425 = pneg %p323
      %p426 = pneg %p320
      %s427 = smul.u32 32, %s24
      %p428 = scmp.lt.s32.totalorder %s427, 63
      %s429 = scalar_select %p428, %s427, 63
      %s430 = smul.addr %s429, 8
      %s431 = scalar_lea.vmem %s13, %s430
      %s432 = smul.u32 32, %s24
      %p433 = scmp.lt.s32.totalorder %s432, 63
      %s434 = scalar_select %p433, %s432, 63
      %s435 = smul.addr %s434, 8
      %s436 = scalar_lea.vmem %s0, %s435
      %s437 = smul.u32 32, %s24
      %s438 = smul.u32 32, %s24
      %p439 = scmp.lt.s32.totalorder %s438, 63
      %s440 = scalar_select %p439, %s438, 63
      %s441 = smul.addr %s440, 8
      %s442 = scalar_lea.vmem %s13, %s441
      %s443 = smul.u32 32, %s24
      %v444 = vld [vmem:[%s436] sm:$0xff]
      %v445 = vld [vmem:[%s436 + $0x8] sm:$0xff]
      %v446 = vld [vmem:[%s436 + $0x10] sm:$0xff]
      %v447 = vld [vmem:[%s436 + $0x18] sm:$0xff]
      %v448 = vld [vmem:[%s436 + $0x20] sm:$0xff]
      %v449 = vld [vmem:[%s436 + $0x28] sm:$0xff]
      %v450 = vld [vmem:[%s436 + $0x30] sm:$0xff]
      %v451 = vld [vmem:[%s436 + $0x38] sm:$0xff]
      %v452 = vld [vmem:[%s436 + $0x40] sm:$0xff]
      %v453 = vld [vmem:[%s436 + $0x48] sm:$0xff]
      %v454 = vld [vmem:[%s436 + $0x50] sm:$0xff]
      %v455 = vld [vmem:[%s436 + $0x58] sm:$0xff]
      %v456 = vld [vmem:[%s436 + $0x60] sm:$0xff]
      %v457 = vld [vmem:[%s436 + $0x68] sm:$0xff]
      %v458 = vld [vmem:[%s436 + $0x70] sm:$0xff]
      %v459 = vld [vmem:[%s436 + $0x78] sm:$0xff]
      %v460 = vld [vmem:[%s436 + $0x80] sm:$0xff]
      %v461 = vld [vmem:[%s436 + $0x88] sm:$0xff]
      %v462 = vld [vmem:[%s436 + $0x90] sm:$0xff]
      %v463 = vld [vmem:[%s436 + $0x98] sm:$0xff]
      %v464 = vld [vmem:[%s436 + $0xa0] sm:$0xff]
      %v465 = vld [vmem:[%s436 + $0xa8] sm:$0xff]
      %v466 = vld [vmem:[%s436 + $0xb0] sm:$0xff]
      %v467 = vld [vmem:[%s436 + $0xb8] sm:$0xff]
      %v468 = vld [vmem:[%s436 + $0xc0] sm:$0xff]
      %v469 = vld [vmem:[%s436 + $0xc8] sm:$0xff]
      %v470 = vld [vmem:[%s436 + $0xd0] sm:$0xff]
      %v471 = vld [vmem:[%s436 + $0xd8] sm:$0xff]
      %v472 = vld [vmem:[%s436 + $0xe0] sm:$0xff]
      %v473 = vld [vmem:[%s436 + $0xe8] sm:$0xff]
      %v474 = vld [vmem:[%s436 + $0xf0] sm:$0xff]
      %v475 = vld [vmem:[%s436 + $0xf8] sm:$0xff]
      %v476 = vld [vmem:[%s1] sm:$0xff]
      %v477 = vld [vmem:[%s1 + $0x8] sm:$0xff]
      %v478 = vld [vmem:[%s1 + $0x10] sm:$0xff]
      %v479 = vld [vmem:[%s1 + $0x18] sm:$0xff]
      %vm480 = vcmask 261120
      %v482 = vsel %vm480, %v444, 0
      %v485 = vsel %vm480, %v445, 0
      %v488 = vsel %vm480, %v446, 0
      %v491 = vsel %vm480, %v447, 0
      %v494 = vsel %vm480, %v448, 0
      %v497 = vsel %vm480, %v449, 0
      %v500 = vsel %vm480, %v450, 0
      %v503 = vsel %vm480, %v451, 0
      %v506 = vsel %vm480, %v452, 0
      %v509 = vsel %vm480, %v453, 0
      %v512 = vsel %vm480, %v454, 0
      %v515 = vsel %vm480, %v455, 0
      %v518 = vsel %vm480, %v456, 0
      %v521 = vsel %vm480, %v457, 0
      %v524 = vsel %vm480, %v458, 0
      %v527 = vsel %vm480, %v459, 0
      %v530 = vsel %vm480, %v460, 0
      %v533 = vsel %vm480, %v461, 0
      %v536 = vsel %vm480, %v462, 0
      %v539 = vsel %vm480, %v463, 0
      %v542 = vsel %vm480, %v464, 0
      %v545 = vsel %vm480, %v465, 0
      %v548 = vsel %vm480, %v466, 0
      %v551 = vsel %vm480, %v467, 0
      %v554 = vsel %vm480, %v468, 0
      %v557 = vsel %vm480, %v469, 0
      %v560 = vsel %vm480, %v470, 0
      %v563 = vsel %vm480, %v471, 0
      %v566 = vsel %vm480, %v472, 0
      %v569 = vsel %vm480, %v473, 0
      %v572 = vsel %vm480, %v474, 0
      %v575 = vsel %vm480, %v475, 0
      %577 = vmatprep.subr.mxu0 0.0
      %578 = vmatpush1.msra.mxu0 0.0
      %579 = vmatprep.subr.mxu0 0.0
      %580 = vmatpush1.msra.mxu0 0.0
      %581 = vmatprep.subr.mxu0 0.0
      %582 = vmatpush1.msra.mxu0 0.0
      %583 = vmatprep.subr.mxu0 0.0
      %584 = vmatpush1.msra.mxu0 0.0
      %585 = vmatprep.subr.mxu0 0.0
      %586 = vmatpush1.msra.mxu0 0.0
      %587 = vmatprep.subr.mxu0 0.0
      %588 = vmatpush1.msra.mxu0 0.0
      %589 = vmatprep.subr.mxu0 0.0
      %590 = vmatpush1.msra.mxu0 0.0
      %591 = vmatprep.subr.mxu0 0.0
      %592 = vmatpush1.msra.mxu0 0.0
      %593 = vmatprep.subr.mxu0 0.0
      %594 = vmatpush1.msra.mxu0 0.0
      %595 = vmatprep.subr.mxu0 0.0
      %596 = vmatpush1.msra.mxu0 0.0
      %597 = vmatprep.subr.mxu0 0.0
      %598 = vmatpush1.msra.mxu0 0.0
      %599 = vmatprep.subr.mxu0 0.0
      %600 = vmatpush1.msra.mxu0 0.0
      %601 = vmatprep.subr.mxu0 0.0
      %602 = vmatpush1.msra.mxu0 %v479
      %603 = vmatprep.subr.mxu0 0.0
      %604 = vmatpush1.msra.mxu0 %v478
      %605 = vmatprep.subr.mxu0 0.0
      %606 = vmatpush1.msra.mxu0 %v477
      %607 = vmatprep.subr.mxu0 0.0
      %608 = vmatpush1.msra.mxu0 %v476
      %609 = vmatprep.subr.mxu0 0.0
      %610 = vmatpush2.msra.mxu0 0.0
      %611 = vmatprep.subr.mxu0 0.0
      %612 = vmatpush2.msra.mxu0 0.0
      %613 = vmatprep.subr.mxu0 0.0
      %614 = vmatpush2.msra.mxu0 0.0
      %615 = vmatprep.subr.mxu0 0.0
      %616 = vmatpush2.msra.mxu0 0.0
      %617 = vmatprep.subr.mxu0 0.0
      %618 = vmatpush2.msra.mxu0 0.0
      %619 = vmatprep.subr.mxu0 0.0
      %620 = vmatpush2.msra.mxu0 0.0
      %621 = vmatprep.subr.mxu0 0.0
      %622 = vmatpush2.msra.mxu0 0.0
      %623 = vmatprep.subr.mxu0 0.0
      %624 = vmatpush2.msra.mxu0 0.0
      %625 = vmatprep.subr.mxu0 0.0
      %626 = vmatpush2.msra.mxu0 0.0
      %627 = vmatprep.subr.mxu0 0.0
      %628 = vmatpush2.msra.mxu0 0.0
      %629 = vmatprep.subr.mxu0 0.0
      %630 = vmatpush2.msra.mxu0 0.0
      %631 = vmatprep.subr.mxu0 0.0
      %632 = vmatpush2.msra.mxu0 0.0
      %633 = vmatprep.subr.mxu0 0.0
      %634 = vmatpush2.msra.mxu0 0.0
      %635 = vmatprep.subr.mxu0 0.0
      %636 = vmatpush2.msra.mxu0 0.0
      %637 = vmatprep.subr.mxu0 0.0
      %638 = vmatpush2.msra.mxu0 0.0
      %639 = vmatprep.subr.mxu0 0.0
      %640 = vmatpush2.msra.mxu0 0.0
      %641 = vmatprep.mubr.f32.mxu0 0.0
      %642 = vmatmul.mubr.f32.gmra.mxu0 %v482
      %v643 = vpop.f32.mrf.mxu0
      %v644 = vadd.f32 0.0, %v643
      %v645 = vpop.f32.mrf.mxu0
      %646 = vmatprep.mubr.f32.mxu0 0.0
      %647 = vmatmul.mubr.f32.gmra.mxu0 %v485
      %v648 = vpop.f32.mrf.mxu0
      %v649 = vadd.f32 0.0, %v648
      %v650 = vpop.f32.mrf.mxu0
      %651 = vmatprep.mubr.f32.mxu0 0.0
      %652 = vmatmul.mubr.f32.gmra.mxu0 %v488
      %v653 = vpop.f32.mrf.mxu0
      %v654 = vadd.f32 0.0, %v653
      %v655 = vpop.f32.mrf.mxu0
      %656 = vmatprep.mubr.f32.mxu0 0.0
      %657 = vmatmul.mubr.f32.gmra.mxu0 %v491
      %v658 = vpop.f32.mrf.mxu0
      %v659 = vadd.f32 0.0, %v658
      %v660 = vpop.f32.mrf.mxu0
      %661 = vmatprep.mubr.f32.mxu0 0.0
      %662 = vmatmul.mubr.f32.gmra.mxu0 %v494
      %v663 = vpop.f32.mrf.mxu0
      %v664 = vadd.f32 0.0, %v663
      %v665 = vpop.f32.mrf.mxu0
      %666 = vmatprep.mubr.f32.mxu0 0.0
      %667 = vmatmul.mubr.f32.gmra.mxu0 %v497
      %v668 = vpop.f32.mrf.mxu0
      %v669 = vadd.f32 0.0, %v668
      %v670 = vpop.f32.mrf.mxu0
      %671 = vmatprep.mubr.f32.mxu0 0.0
      %672 = vmatmul.mubr.f32.gmra.mxu0 %v500
      %v673 = vpop.f32.mrf.mxu0
      %v674 = vadd.f32 0.0, %v673
      %v675 = vpop.f32.mrf.mxu0
      %676 = vmatprep.mubr.f32.mxu0 0.0
      %677 = vmatmul.mubr.f32.gmra.mxu0 %v503
      %v678 = vpop.f32.mrf.mxu0
      %v679 = vadd.f32 0.0, %v678
      %v680 = vpop.f32.mrf.mxu0
      %681 = vmatprep.mubr.f32.mxu0 0.0
      %682 = vmatmul.mubr.f32.gmra.mxu0 %v506
      %v683 = vpop.f32.mrf.mxu0
      %v684 = vadd.f32 0.0, %v683
      %v685 = vpop.f32.mrf.mxu0
      %686 = vmatprep.mubr.f32.mxu0 0.0
      %687 = vmatmul.mubr.f32.gmra.mxu0 %v509
      %v688 = vpop.f32.mrf.mxu0
      %v689 = vadd.f32 0.0, %v688
      %v690 = vpop.f32.mrf.mxu0
      %691 = vmatprep.mubr.f32.mxu0 0.0
      %692 = vmatmul.mubr.f32.gmra.mxu0 %v512
      %v693 = vpop.f32.mrf.mxu0
      %v694 = vadd.f32 0.0, %v693
      %v695 = vpop.f32.mrf.mxu0
      %696 = vmatprep.mubr.f32.mxu0 0.0
      %697 = vmatmul.mubr.f32.gmra.mxu0 %v515
      %v698 = vpop.f32.mrf.mxu0
      %v699 = vadd.f32 0.0, %v698
      %v700 = vpop.f32.mrf.mxu0
      %701 = vmatprep.mubr.f32.mxu0 0.0
      %702 = vmatmul.mubr.f32.gmra.mxu0 %v518
      %v703 = vpop.f32.mrf.mxu0
      %v704 = vadd.f32 0.0, %v703
      %v705 = vpop.f32.mrf.mxu0
      %706 = vmatprep.mubr.f32.mxu0 0.0
      %707 = vmatmul.mubr.f32.gmra.mxu0 %v521
      %v708 = vpop.f32.mrf.mxu0
      %v709 = vadd.f32 0.0, %v708
      %v710 = vpop.f32.mrf.mxu0
      %711 = vmatprep.mubr.f32.mxu0 0.0
      %712 = vmatmul.mubr.f32.gmra.mxu0 %v524
      %v713 = vpop.f32.mrf.mxu0
      %v714 = vadd.f32 0.0, %v713
      %v715 = vpop.f32.mrf.mxu0
      %716 = vmatprep.mubr.f32.mxu0 0.0
      %717 = vmatmul.mubr.f32.gmra.mxu0 %v527
      %v718 = vpop.f32.mrf.mxu0
      %v719 = vadd.f32 0.0, %v718
      %v720 = vpop.f32.mrf.mxu0
      %721 = vmatprep.mubr.f32.mxu0 0.0
      %722 = vmatmul.mubr.f32.gmra.mxu0 %v530
      %v723 = vpop.f32.mrf.mxu0
      %v724 = vadd.f32 0.0, %v723
      %v725 = vpop.f32.mrf.mxu0
      %726 = vmatprep.mubr.f32.mxu0 0.0
      %727 = vmatmul.mubr.f32.gmra.mxu0 %v533
      %v728 = vpop.f32.mrf.mxu0
      %v729 = vadd.f32 0.0, %v728
      %v730 = vpop.f32.mrf.mxu0
      %731 = vmatprep.mubr.f32.mxu0 0.0
      %732 = vmatmul.mubr.f32.gmra.mxu0 %v536
      %v733 = vpop.f32.mrf.mxu0
      %v734 = vadd.f32 0.0, %v733
      %v735 = vpop.f32.mrf.mxu0
      %736 = vmatprep.mubr.f32.mxu0 0.0
      %737 = vmatmul.mubr.f32.gmra.mxu0 %v539
      %v738 = vpop.f32.mrf.mxu0
      %v739 = vadd.f32 0.0, %v738
      %v740 = vpop.f32.mrf.mxu0
      %741 = vmatprep.mubr.f32.mxu0 0.0
      %742 = vmatmul.mubr.f32.gmra.mxu0 %v542
      %v743 = vpop.f32.mrf.mxu0
      %v744 = vadd.f32 0.0, %v743
      %v745 = vpop.f32.mrf.mxu0
      %746 = vmatprep.mubr.f32.mxu0 0.0
      %747 = vmatmul.mubr.f32.gmra.mxu0 %v545
      %v748 = vpop.f32.mrf.mxu0
      %v749 = vadd.f32 0.0, %v748
      %v750 = vpop.f32.mrf.mxu0
      %751 = vmatprep.mubr.f32.mxu0 0.0
      %752 = vmatmul.mubr.f32.gmra.mxu0 %v548
      %v753 = vpop.f32.mrf.mxu0
      %v754 = vadd.f32 0.0, %v753
      %v755 = vpop.f32.mrf.mxu0
      %756 = vmatprep.mubr.f32.mxu0 0.0
      %757 = vmatmul.mubr.f32.gmra.mxu0 %v551
      %v758 = vpop.f32.mrf.mxu0
      %v759 = vadd.f32 0.0, %v758
      %v760 = vpop.f32.mrf.mxu0
      %761 = vmatprep.mubr.f32.mxu0 0.0
      %762 = vmatmul.mubr.f32.gmra.mxu0 %v554
      %v763 = vpop.f32.mrf.mxu0
      %v764 = vadd.f32 0.0, %v763
      %v765 = vpop.f32.mrf.mxu0
      %766 = vmatprep.mubr.f32.mxu0 0.0
      %767 = vmatmul.mubr.f32.gmra.mxu0 %v557
      %v768 = vpop.f32.mrf.mxu0
      %v769 = vadd.f32 0.0, %v768
      %v770 = vpop.f32.mrf.mxu0
      %771 = vmatprep.mubr.f32.mxu0 0.0
      %772 = vmatmul.mubr.f32.gmra.mxu0 %v560
      %v773 = vpop.f32.mrf.mxu0
      %v774 = vadd.f32 0.0, %v773
      %v775 = vpop.f32.mrf.mxu0
      %776 = vmatprep.mubr.f32.mxu0 0.0
      %777 = vmatmul.mubr.f32.gmra.mxu0 %v563
      %v778 = vpop.f32.mrf.mxu0
      %v779 = vadd.f32 0.0, %v778
      %v780 = vpop.f32.mrf.mxu0
      %781 = vmatprep.mubr.f32.mxu0 0.0
      %782 = vmatmul.mubr.f32.gmra.mxu0 %v566
      %v783 = vpop.f32.mrf.mxu0
      %v784 = vadd.f32 0.0, %v783
      %v785 = vpop.f32.mrf.mxu0
      %786 = vmatprep.mubr.f32.mxu0 0.0
      %787 = vmatmul.mubr.f32.gmra.mxu0 %v569
      %v788 = vpop.f32.mrf.mxu0
      %v789 = vadd.f32 0.0, %v788
      %v790 = vpop.f32.mrf.mxu0
      %791 = vmatprep.mubr.f32.mxu0 0.0
      %792 = vmatmul.mubr.f32.gmra.mxu0 %v572
      %v793 = vpop.f32.mrf.mxu0
      %v794 = vadd.f32 0.0, %v793
      %v795 = vpop.f32.mrf.mxu0
      %796 = vmatprep.mubr.f32.mxu0 0.0
      %797 = vmatmul.mubr.f32.gmra.mxu0 %v575
      %v798 = vpop.f32.mrf.mxu0
      %v799 = vadd.f32 0.0, %v798
      %v800 = vpop.f32.mrf.mxu0
      %801 = vdwg.mxu0
      %v802 = vld [vmem:[%s2] sm:$0x1]
      %v804 = vlaneseq
      %v805 = vshrl.u32 %v804, 7
      %v806 = vsub.s32 0, %v805
      %v807 = vrot.slane %v802, %v806
      %v809 = vadd.f32 %v644, %v807
      %v810 = vadd.f32 %v649, %v807
      %v811 = vadd.f32 %v654, %v807
      %v812 = vadd.f32 %v659, %v807
      %v813 = vadd.f32 %v664, %v807
      %v814 = vadd.f32 %v669, %v807
      %v815 = vadd.f32 %v674, %v807
      %v816 = vadd.f32 %v679, %v807
      %v817 = vadd.f32 %v684, %v807
      %v818 = vadd.f32 %v689, %v807
      %v819 = vadd.f32 %v694, %v807
      %v820 = vadd.f32 %v699, %v807
      %v821 = vadd.f32 %v704, %v807
      %v822 = vadd.f32 %v709, %v807
      %v823 = vadd.f32 %v714, %v807
      %v824 = vadd.f32 %v719, %v807
      %v825 = vadd.f32 %v724, %v807
      %v826 = vadd.f32 %v729, %v807
      %v827 = vadd.f32 %v734, %v807
      %v828 = vadd.f32 %v739, %v807
      %v829 = vadd.f32 %v744, %v807
      %v830 = vadd.f32 %v749, %v807
      %v831 = vadd.f32 %v754, %v807
      %v832 = vadd.f32 %v759, %v807
      %v833 = vadd.f32 %v764, %v807
      %v834 = vadd.f32 %v769, %v807
      %v835 = vadd.f32 %v774, %v807
      %v836 = vadd.f32 %v779, %v807
      %v837 = vadd.f32 %v784, %v807
      %v838 = vadd.f32 %v789, %v807
      %v839 = vadd.f32 %v794, %v807
      %v840 = vadd.f32 %v799, %v807
      %v841 = vld [vmem:[%s3] sm:$0x1]
      %v842 = vld [vmem:[%s4] sm:$0x1]
      %v843 = vsel %vm480, %v809, 0.0
      %844 = vadd.xlane.f32.xlu0 %v843
      %v845 = vpop.xlane.xlu0 %844
      %v846 = vsel %vm480, %v810, 0.0
      %847 = vadd.xlane.f32.xlu0 %v846
      %v848 = vpop.xlane.xlu0 %847
      %v849 = vsel %vm480, %v811, 0.0
      %850 = vadd.xlane.f32.xlu0 %v849
      %v851 = vpop.xlane.xlu0 %850
      %v852 = vsel %vm480, %v812, 0.0
      %853 = vadd.xlane.f32.xlu0 %v852
      %v854 = vpop.xlane.xlu0 %853
      %v855 = vsel %vm480, %v813, 0.0
      %856 = vadd.xlane.f32.xlu0 %v855
      %v857 = vpop.xlane.xlu0 %856
      %v858 = vsel %vm480, %v814, 0.0
      %859 = vadd.xlane.f32.xlu0 %v858
      %v860 = vpop.xlane.xlu0 %859
      %v861 = vsel %vm480, %v815, 0.0
      %862 = vadd.xlane.f32.xlu0 %v861
      %v863 = vpop.xlane.xlu0 %862
      %v864 = vsel %vm480, %v816, 0.0
      %865 = vadd.xlane.f32.xlu0 %v864
      %v866 = vpop.xlane.xlu0 %865
      %v867 = vsel %vm480, %v817, 0.0
      %868 = vadd.xlane.f32.xlu0 %v867
      %v869 = vpop.xlane.xlu0 %868
      %v870 = vsel %vm480, %v818, 0.0
      %871 = vadd.xlane.f32.xlu0 %v870
      %v872 = vpop.xlane.xlu0 %871
      %v873 = vsel %vm480, %v819, 0.0
      %874 = vadd.xlane.f32.xlu0 %v873
      %v875 = vpop.xlane.xlu0 %874
      %v876 = vsel %vm480, %v820, 0.0
      %877 = vadd.xlane.f32.xlu0 %v876
      %v878 = vpop.xlane.xlu0 %877
      %v879 = vsel %vm480, %v821, 0.0
      %880 = vadd.xlane.f32.xlu0 %v879
      %v881 = vpop.xlane.xlu0 %880
      %v882 = vsel %vm480, %v822, 0.0
      %883 = vadd.xlane.f32.xlu0 %v882
      %v884 = vpop.xlane.xlu0 %883
      %v885 = vsel %vm480, %v823, 0.0
      %886 = vadd.xlane.f32.xlu0 %v885
      %v887 = vpop.xlane.xlu0 %886
      %v888 = vsel %vm480, %v824, 0.0
      %889 = vadd.xlane.f32.xlu0 %v888
      %v890 = vpop.xlane.xlu0 %889
      %v891 = vsel %vm480, %v825, 0.0
      %892 = vadd.xlane.f32.xlu0 %v891
      %v893 = vpop.xlane.xlu0 %892
      %v894 = vsel %vm480, %v826, 0.0
      %895 = vadd.xlane.f32.xlu0 %v894
      %v896 = vpop.xlane.xlu0 %895
      %v897 = vsel %vm480, %v827, 0.0
      %898 = vadd.xlane.f32.xlu0 %v897
      %v899 = vpop.xlane.xlu0 %898
      %v900 = vsel %vm480, %v828, 0.0
      %901 = vadd.xlane.f32.xlu0 %v900
      %v902 = vpop.xlane.xlu0 %901
      %v903 = vsel %vm480, %v829, 0.0
      %904 = vadd.xlane.f32.xlu0 %v903
      %v905 = vpop.xlane.xlu0 %904
      %v906 = vsel %vm480, %v830, 0.0
      %907 = vadd.xlane.f32.xlu0 %v906
      %v908 = vpop.xlane.xlu0 %907
      %v909 = vsel %vm480, %v831, 0.0
      %910 = vadd.xlane.f32.xlu0 %v909
      %v911 = vpop.xlane.xlu0 %910
      %v912 = vsel %vm480, %v832, 0.0
      %913 = vadd.xlane.f32.xlu0 %v912
      %v914 = vpop.xlane.xlu0 %913
      %v915 = vsel %vm480, %v833, 0.0
      %916 = vadd.xlane.f32.xlu0 %v915
      %v917 = vpop.xlane.xlu0 %916
      %v918 = vsel %vm480, %v834, 0.0
      %919 = vadd.xlane.f32.xlu0 %v918
      %v920 = vpop.xlane.xlu0 %919
      %v921 = vsel %vm480, %v835, 0.0
      %922 = vadd.xlane.f32.xlu0 %v921
      %v923 = vpop.xlane.xlu0 %922
      %v924 = vsel %vm480, %v836, 0.0
      %925 = vadd.xlane.f32.xlu0 %v924
      %v926 = vpop.xlane.xlu0 %925
      %v927 = vsel %vm480, %v837, 0.0
      %928 = vadd.xlane.f32.xlu0 %v927
      %v929 = vpop.xlane.xlu0 %928
      %v930 = vsel %vm480, %v838, 0.0
      %931 = vadd.xlane.f32.xlu0 %v930
      %v932 = vpop.xlane.xlu0 %931
      %v933 = vsel %vm480, %v839, 0.0
      %934 = vadd.xlane.f32.xlu0 %v933
      %v935 = vpop.xlane.xlu0 %934
      %v936 = vsel %vm480, %v840, 0.0
      %937 = vadd.xlane.f32.xlu0 %v936
      %v938 = vpop.xlane.xlu0 %937
      %v939 = vrcp.pop 32.0
      %v940 = vmul.f32 %v845, %v939
      %v941 = vmul.f32 %v848, %v939
      %v942 = vmul.f32 %v851, %v939
      %v943 = vmul.f32 %v854, %v939
      %v944 = vmul.f32 %v857, %v939
      %v945 = vmul.f32 %v860, %v939
      %v946 = vmul.f32 %v863, %v939
      %v947 = vmul.f32 %v866, %v939
      %v948 = vmul.f32 %v869, %v939
      %v949 = vmul.f32 %v872, %v939
      %v950 = vmul.f32 %v875, %v939
      %v951 = vmul.f32 %v878, %v939
      %v952 = vmul.f32 %v881, %v939
      %v953 = vmul.f32 %v884, %v939
      %v954 = vmul.f32 %v887, %v939
      %v955 = vmul.f32 %v890, %v939
      %v956 = vmul.f32 %v893, %v939
      %v957 = vmul.f32 %v896, %v939
      %v958 = vmul.f32 %v899, %v939
      %v959 = vmul.f32 %v902, %v939
      %v960 = vmul.f32 %v905, %v939
      %v961 = vmul.f32 %v908, %v939
      %v962 = vmul.f32 %v911, %v939
      %v963 = vmul.f32 %v914, %v939
      %v964 = vmul.f32 %v917, %v939
      %v965 = vmul.f32 %v920, %v939
      %v966 = vmul.f32 %v923, %v939
      %v967 = vmul.f32 %v926, %v939
      %v968 = vmul.f32 %v929, %v939
      %v969 = vmul.f32 %v932, %v939
      %v970 = vmul.f32 %v935, %v939
      %v971 = vmul.f32 %v938, %v939
      %v972 = vsub.f32 %v809, %v940
      %v973 = vsub.f32 %v810, %v941
      %v974 = vsub.f32 %v811, %v942
      %v975 = vsub.f32 %v812, %v943
      %v976 = vsub.f32 %v813, %v944
      %v977 = vsub.f32 %v814, %v945
      %v978 = vsub.f32 %v815, %v946
      %v979 = vsub.f32 %v816, %v947
      %v980 = vsub.f32 %v817, %v948
      %v981 = vsub.f32 %v818, %v949
      %v982 = vsub.f32 %v819, %v950
      %v983 = vsub.f32 %v820, %v951
      %v984 = vsub.f32 %v821, %v952
      %v985 = vsub.f32 %v822, %v953
      %v986 = vsub.f32 %v823, %v954
      %v987 = vsub.f32 %v824, %v955
      %v988 = vsub.f32 %v825, %v956
      %v989 = vsub.f32 %v826, %v957
      %v990 = vsub.f32 %v827, %v958
      %v991 = vsub.f32 %v828, %v959
      %v992 = vsub.f32 %v829, %v960
      %v993 = vsub.f32 %v830, %v961
      %v994 = vsub.f32 %v831, %v962
      %v995 = vsub.f32 %v832, %v963
      %v996 = vsub.f32 %v833, %v964
      %v997 = vsub.f32 %v834, %v965
      %v998 = vsub.f32 %v835, %v966
      %v999 = vsub.f32 %v836, %v967
      %v1000 = vsub.f32 %v837, %v968
      %v1001 = vsub.f32 %v838, %v969
      %v1002 = vsub.f32 %v839, %v970
      %v1003 = vsub.f32 %v840, %v971
      %v1004 = vmul.f32 %v972, %v972
      %v1005 = vmul.f32 %v973, %v973
      %v1006 = vmul.f32 %v974, %v974
      %v1007 = vmul.f32 %v975, %v975
      %v1008 = vmul.f32 %v976, %v976
      %v1009 = vmul.f32 %v977, %v977
      %v1010 = vmul.f32 %v978, %v978
      %v1011 = vmul.f32 %v979, %v979
      %v1012 = vmul.f32 %v980, %v980
      %v1013 = vmul.f32 %v981, %v981
      %v1014 = vmul.f32 %v982, %v982
      %v1015 = vmul.f32 %v983, %v983
      %v1016 = vmul.f32 %v984, %v984
      %v1017 = vmul.f32 %v985, %v985
      %v1018 = vmul.f32 %v986, %v986
      %v1019 = vmul.f32 %v987, %v987
      %v1020 = vmul.f32 %v988, %v988
      %v1021 = vmul.f32 %v989, %v989
      %v1022 = vmul.f32 %v990, %v990
      %v1023 = vmul.f32 %v991, %v991
      %v1024 = vmul.f32 %v992, %v992
      %v1025 = vmul.f32 %v993, %v993
      %v1026 = vmul.f32 %v994, %v994
      %v1027 = vmul.f32 %v995, %v995
      %v1028 = vmul.f32 %v996, %v996
      %v1029 = vmul.f32 %v997, %v997
      %v1030 = vmul.f32 %v998, %v998
      %v1031 = vmul.f32 %v999, %v999
      %v1032 = vmul.f32 %v1000, %v1000
      %v1033 = vmul.f32 %v1001, %v1001
      %v1034 = vmul.f32 %v1002, %v1002
      %v1035 = vmul.f32 %v1003, %v1003
      %v1036 = vsel %vm480, %v1004, 0.0
      %1037 = vadd.xlane.f32.xlu0 %v1036
      %v1038 = vpop.xlane.xlu0 %1037
      %v1039 = vsel %vm480, %v1005, 0.0
      %1040 = vadd.xlane.f32.xlu0 %v1039
      %v1041 = vpop.xlane.xlu0 %1040
      %v1042 = vsel %vm480, %v1006, 0.0
      %1043 = vadd.xlane.f32.xlu0 %v1042
      %v1044 = vpop.xlane.xlu0 %1043
      %v1045 = vsel %vm480, %v1007, 0.0
      %1046 = vadd.xlane.f32.xlu0 %v1045
      %v1047 = vpop.xlane.xlu0 %1046
      %v1048 = vsel %vm480, %v1008, 0.0
      %1049 = vadd.xlane.f32.xlu0 %v1048
      %v1050 = vpop.xlane.xlu0 %1049
      %v1051 = vsel %vm480, %v1009, 0.0
      %1052 = vadd.xlane.f32.xlu0 %v1051
      %v1053 = vpop.xlane.xlu0 %1052
      %v1054 = vsel %vm480, %v1010, 0.0
      %1055 = vadd.xlane.f32.xlu0 %v1054
      %v1056 = vpop.xlane.xlu0 %1055
      %v1057 = vsel %vm480, %v1011, 0.0
      %1058 = vadd.xlane.f32.xlu0 %v1057
      %v1059 = vpop.xlane.xlu0 %1058
      %v1060 = vsel %vm480, %v1012, 0.0
      %1061 = vadd.xlane.f32.xlu0 %v1060
      %v1062 = vpop.xlane.xlu0 %1061
      %v1063 = vsel %vm480, %v1013, 0.0
      %1064 = vadd.xlane.f32.xlu0 %v1063
      %v1065 = vpop.xlane.xlu0 %1064
      %v1066 = vsel %vm480, %v1014, 0.0
      %1067 = vadd.xlane.f32.xlu0 %v1066
      %v1068 = vpop.xlane.xlu0 %1067
      %v1069 = vsel %vm480, %v1015, 0.0
      %1070 = vadd.xlane.f32.xlu0 %v1069
      %v1071 = vpop.xlane.xlu0 %1070
      %v1072 = vsel %vm480, %v1016, 0.0
      %1073 = vadd.xlane.f32.xlu0 %v1072
      %v1074 = vpop.xlane.xlu0 %1073
      %v1075 = vsel %vm480, %v1017, 0.0
      %1076 = vadd.xlane.f32.xlu0 %v1075
      %v1077 = vpop.xlane.xlu0 %1076
      %v1078 = vsel %vm480, %v1018, 0.0
      %1079 = vadd.xlane.f32.xlu0 %v1078
      %v1080 = vpop.xlane.xlu0 %1079
      %v1081 = vsel %vm480, %v1019, 0.0
      %1082 = vadd.xlane.f32.xlu0 %v1081
      %v1083 = vpop.xlane.xlu0 %1082
      %v1084 = vsel %vm480, %v1020, 0.0
      %1085 = vadd.xlane.f32.xlu0 %v1084
      %v1086 = vpop.xlane.xlu0 %1085
      %v1087 = vsel %vm480, %v1021, 0.0
      %1088 = vadd.xlane.f32.xlu0 %v1087
      %v1089 = vpop.xlane.xlu0 %1088
      %v1090 = vsel %vm480, %v1022, 0.0
      %1091 = vadd.xlane.f32.xlu0 %v1090
      %v1092 = vpop.xlane.xlu0 %1091
      %v1093 = vsel %vm480, %v1023, 0.0
      %1094 = vadd.xlane.f32.xlu0 %v1093
      %v1095 = vpop.xlane.xlu0 %1094
      %v1096 = vsel %vm480, %v1024, 0.0
      %1097 = vadd.xlane.f32.xlu0 %v1096
      %v1098 = vpop.xlane.xlu0 %1097
      %v1099 = vsel %vm480, %v1025, 0.0
      %1100 = vadd.xlane.f32.xlu0 %v1099
      %v1101 = vpop.xlane.xlu0 %1100
      %v1102 = vsel %vm480, %v1026, 0.0
      %1103 = vadd.xlane.f32.xlu0 %v1102
      %v1104 = vpop.xlane.xlu0 %1103
      %v1105 = vsel %vm480, %v1027, 0.0
      %1106 = vadd.xlane.f32.xlu0 %v1105
      %v1107 = vpop.xlane.xlu0 %1106
      %v1108 = vsel %vm480, %v1028, 0.0
      %1109 = vadd.xlane.f32.xlu0 %v1108
      %v1110 = vpop.xlane.xlu0 %1109
      %v1111 = vsel %vm480, %v1029, 0.0
      %1112 = vadd.xlane.f32.xlu0 %v1111
      %v1113 = vpop.xlane.xlu0 %1112
      %v1114 = vsel %vm480, %v1030, 0.0
      %1115 = vadd.xlane.f32.xlu0 %v1114
      %v1116 = vpop.xlane.xlu0 %1115
      %v1117 = vsel %vm480, %v1031, 0.0
      %1118 = vadd.xlane.f32.xlu0 %v1117
      %v1119 = vpop.xlane.xlu0 %1118
      %v1120 = vsel %vm480, %v1032, 0.0
      %1121 = vadd.xlane.f32.xlu0 %v1120
      %v1122 = vpop.xlane.xlu0 %1121
      %v1123 = vsel %vm480, %v1033, 0.0
      %1124 = vadd.xlane.f32.xlu0 %v1123
      %v1125 = vpop.xlane.xlu0 %1124
      %v1126 = vsel %vm480, %v1034, 0.0
      %1127 = vadd.xlane.f32.xlu0 %v1126
      %v1128 = vpop.xlane.xlu0 %1127
      %v1129 = vsel %vm480, %v1035, 0.0
      %1130 = vadd.xlane.f32.xlu0 %v1129
      %v1131 = vpop.xlane.xlu0 %1130
      %v1132 = vmul.f32 %v1038, %v939
      %v1133 = vmul.f32 %v1041, %v939
      %v1134 = vmul.f32 %v1044, %v939
      %v1135 = vmul.f32 %v1047, %v939
      %v1136 = vmul.f32 %v1050, %v939
      %v1137 = vmul.f32 %v1053, %v939
      %v1138 = vmul.f32 %v1056, %v939
      %v1139 = vmul.f32 %v1059, %v939
      %v1140 = vmul.f32 %v1062, %v939
      %v1141 = vmul.f32 %v1065, %v939
      %v1142 = vmul.f32 %v1068, %v939
      %v1143 = vmul.f32 %v1071, %v939
      %v1144 = vmul.f32 %v1074, %v939
      %v1145 = vmul.f32 %v1077, %v939
      %v1146 = vmul.f32 %v1080, %v939
      %v1147 = vmul.f32 %v1083, %v939
      %v1148 = vmul.f32 %v1086, %v939
      %v1149 = vmul.f32 %v1089, %v939
      %v1150 = vmul.f32 %v1092, %v939
      %v1151 = vmul.f32 %v1095, %v939
      %v1152 = vmul.f32 %v1098, %v939
      %v1153 = vmul.f32 %v1101, %v939
      %v1154 = vmul.f32 %v1104, %v939
      %v1155 = vmul.f32 %v1107, %v939
      %v1156 = vmul.f32 %v1110, %v939
      %v1157 = vmul.f32 %v1113, %v939
      %v1158 = vmul.f32 %v1116, %v939
      %v1159 = vmul.f32 %v1119, %v939
      %v1160 = vmul.f32 %v1122, %v939
      %v1161 = vmul.f32 %v1125, %v939
      %v1162 = vmul.f32 %v1128, %v939
      %v1163 = vmul.f32 %v1131, %v939
      %v1164 = vadd.f32 %v1132, 1e-05
      %v1165 = vadd.f32 %v1133, 1e-05
      %v1166 = vadd.f32 %v1134, 1e-05
      %v1167 = vadd.f32 %v1135, 1e-05
      %v1168 = vadd.f32 %v1136, 1e-05
      %v1169 = vadd.f32 %v1137, 1e-05
      %v1170 = vadd.f32 %v1138, 1e-05
      %v1171 = vadd.f32 %v1139, 1e-05
      %v1172 = vadd.f32 %v1140, 1e-05
      %v1173 = vadd.f32 %v1141, 1e-05
      %v1174 = vadd.f32 %v1142, 1e-05
      %v1175 = vadd.f32 %v1143, 1e-05
      %v1176 = vadd.f32 %v1144, 1e-05
      %v1177 = vadd.f32 %v1145, 1e-05
      %v1178 = vadd.f32 %v1146, 1e-05
      %v1179 = vadd.f32 %v1147, 1e-05
      %v1180 = vadd.f32 %v1148, 1e-05
      %v1181 = vadd.f32 %v1149, 1e-05
      %v1182 = vadd.f32 %v1150, 1e-05
      %v1183 = vadd.f32 %v1151, 1e-05
      %v1184 = vadd.f32 %v1152, 1e-05
      %v1185 = vadd.f32 %v1153, 1e-05
      %v1186 = vadd.f32 %v1154, 1e-05
      %v1187 = vadd.f32 %v1155, 1e-05
      %v1188 = vadd.f32 %v1156, 1e-05
      %v1189 = vadd.f32 %v1157, 1e-05
      %v1190 = vadd.f32 %v1158, 1e-05
      %v1191 = vadd.f32 %v1159, 1e-05
      %v1192 = vadd.f32 %v1160, 1e-05
      %v1193 = vadd.f32 %v1161, 1e-05
      %v1194 = vadd.f32 %v1162, 1e-05
      %v1195 = vadd.f32 %v1163, 1e-05
      %v1196 = vrsqrt.pop %v1164
      %v1197 = vrsqrt.pop %v1165
      %v1198 = vrsqrt.pop %v1166
      %v1199 = vrsqrt.pop %v1167
      %v1200 = vrsqrt.pop %v1168
      %v1201 = vrsqrt.pop %v1169
      %v1202 = vrsqrt.pop %v1170
      %v1203 = vrsqrt.pop %v1171
      %v1204 = vrsqrt.pop %v1172
      %v1205 = vrsqrt.pop %v1173
      %v1206 = vrsqrt.pop %v1174
      %v1207 = vrsqrt.pop %v1175
      %v1208 = vrsqrt.pop %v1176
      %v1209 = vrsqrt.pop %v1177
      %v1210 = vrsqrt.pop %v1178
      %v1211 = vrsqrt.pop %v1179
      %v1212 = vrsqrt.pop %v1180
      %v1213 = vrsqrt.pop %v1181
      %v1214 = vrsqrt.pop %v1182
      %v1215 = vrsqrt.pop %v1183
      %v1216 = vrsqrt.pop %v1184
      %v1217 = vrsqrt.pop %v1185
      %v1218 = vrsqrt.pop %v1186
      %v1219 = vrsqrt.pop %v1187
      %v1220 = vrsqrt.pop %v1188
      %v1221 = vrsqrt.pop %v1189
      %v1222 = vrsqrt.pop %v1190
      %v1223 = vrsqrt.pop %v1191
      %v1224 = vrsqrt.pop %v1192
      %v1225 = vrsqrt.pop %v1193
      %v1226 = vrsqrt.pop %v1194
      %v1227 = vrsqrt.pop %v1195
      %v1228 = vmul.f32 %v972, %v1196
      %v1229 = vmul.f32 %v973, %v1197
      %v1230 = vmul.f32 %v974, %v1198
      %v1231 = vmul.f32 %v975, %v1199
      %v1232 = vmul.f32 %v976, %v1200
      %v1233 = vmul.f32 %v977, %v1201
      %v1234 = vmul.f32 %v978, %v1202
      %v1235 = vmul.f32 %v979, %v1203
      %v1236 = vmul.f32 %v980, %v1204
      %v1237 = vmul.f32 %v981, %v1205
      %v1238 = vmul.f32 %v982, %v1206
      %v1239 = vmul.f32 %v983, %v1207
      %v1240 = vmul.f32 %v984, %v1208
      %v1241 = vmul.f32 %v985, %v1209
      %v1242 = vmul.f32 %v986, %v1210
      %v1243 = vmul.f32 %v987, %v1211
      %v1244 = vmul.f32 %v988, %v1212
      %v1245 = vmul.f32 %v989, %v1213
      %v1246 = vmul.f32 %v990, %v1214
      %v1247 = vmul.f32 %v991, %v1215
      %v1248 = vmul.f32 %v992, %v1216
      %v1249 = vmul.f32 %v993, %v1217
      %v1250 = vmul.f32 %v994, %v1218
      %v1251 = vmul.f32 %v995, %v1219
      %v1252 = vmul.f32 %v996, %v1220
      %v1253 = vmul.f32 %v997, %v1221
      %v1254 = vmul.f32 %v998, %v1222
      %v1255 = vmul.f32 %v999, %v1223
      %v1256 = vmul.f32 %v1000, %v1224
      %v1257 = vmul.f32 %v1001, %v1225
      %v1258 = vmul.f32 %v1002, %v1226
      %v1259 = vmul.f32 %v1003, %v1227
      %v1261 = vlaneseq
      %v1262 = vshrl.u32 %v1261, 7
      %v1263 = vsub.s32 0, %v1262
      %v1264 = vrot.slane %v841, %v1263
      %v1266 = vmul.f32 %v1228, %v1264
      %v1267 = vmul.f32 %v1229, %v1264
      %v1268 = vmul.f32 %v1230, %v1264
      %v1269 = vmul.f32 %v1231, %v1264
      %v1270 = vmul.f32 %v1232, %v1264
      %v1271 = vmul.f32 %v1233, %v1264
      %v1272 = vmul.f32 %v1234, %v1264
      %v1273 = vmul.f32 %v1235, %v1264
      %v1274 = vmul.f32 %v1236, %v1264
      %v1275 = vmul.f32 %v1237, %v1264
      %v1276 = vmul.f32 %v1238, %v1264
      %v1277 = vmul.f32 %v1239, %v1264
      %v1278 = vmul.f32 %v1240, %v1264
      %v1279 = vmul.f32 %v1241, %v1264
      %v1280 = vmul.f32 %v1242, %v1264
      %v1281 = vmul.f32 %v1243, %v1264
      %v1282 = vmul.f32 %v1244, %v1264
      %v1283 = vmul.f32 %v1245, %v1264
      %v1284 = vmul.f32 %v1246, %v1264
      %v1285 = vmul.f32 %v1247, %v1264
      %v1286 = vmul.f32 %v1248, %v1264
      %v1287 = vmul.f32 %v1249, %v1264
      %v1288 = vmul.f32 %v1250, %v1264
      %v1289 = vmul.f32 %v1251, %v1264
      %v1290 = vmul.f32 %v1252, %v1264
      %v1291 = vmul.f32 %v1253, %v1264
      %v1292 = vmul.f32 %v1254, %v1264
      %v1293 = vmul.f32 %v1255, %v1264
      %v1294 = vmul.f32 %v1256, %v1264
      %v1295 = vmul.f32 %v1257, %v1264
      %v1296 = vmul.f32 %v1258, %v1264
      %v1297 = vmul.f32 %v1259, %v1264
      %v1299 = vlaneseq
      %v1300 = vshrl.u32 %v1299, 7
      %v1301 = vsub.s32 0, %v1300
      %v1302 = vrot.slane %v842, %v1301
      %v1304 = vadd.f32 %v1266, %v1302
      %v1305 = vadd.f32 %v1267, %v1302
      %v1306 = vadd.f32 %v1268, %v1302
      %v1307 = vadd.f32 %v1269, %v1302
      %v1308 = vadd.f32 %v1270, %v1302
      %v1309 = vadd.f32 %v1271, %v1302
      %v1310 = vadd.f32 %v1272, %v1302
      %v1311 = vadd.f32 %v1273, %v1302
      %v1312 = vadd.f32 %v1274, %v1302
      %v1313 = vadd.f32 %v1275, %v1302
      %v1314 = vadd.f32 %v1276, %v1302
      %v1315 = vadd.f32 %v1277, %v1302
      %v1316 = vadd.f32 %v1278, %v1302
      %v1317 = vadd.f32 %v1279, %v1302
      %v1318 = vadd.f32 %v1280, %v1302
      %v1319 = vadd.f32 %v1281, %v1302
      %v1320 = vadd.f32 %v1282, %v1302
      %v1321 = vadd.f32 %v1283, %v1302
      %v1322 = vadd.f32 %v1284, %v1302
      %v1323 = vadd.f32 %v1285, %v1302
      %v1324 = vadd.f32 %v1286, %v1302
      %v1325 = vadd.f32 %v1287, %v1302
      %v1326 = vadd.f32 %v1288, %v1302
      %v1327 = vadd.f32 %v1289, %v1302
      %v1328 = vadd.f32 %v1290, %v1302
      %v1329 = vadd.f32 %v1291, %v1302
      %v1330 = vadd.f32 %v1292, %v1302
      %v1331 = vadd.f32 %v1293, %v1302
      %v1332 = vadd.f32 %v1294, %v1302
      %v1333 = vadd.f32 %v1295, %v1302
      %v1334 = vadd.f32 %v1296, %v1302
      %v1335 = vadd.f32 %v1297, %v1302
      %v1336 = vmax.f32 %v1304, 0.0
      %v1337 = vmax.f32 %v1305, 0.0
      %v1338 = vmax.f32 %v1306, 0.0
      %v1339 = vmax.f32 %v1307, 0.0
      %v1340 = vmax.f32 %v1308, 0.0
      %v1341 = vmax.f32 %v1309, 0.0
      %v1342 = vmax.f32 %v1310, 0.0
      %v1343 = vmax.f32 %v1311, 0.0
      %v1344 = vmax.f32 %v1312, 0.0
      %v1345 = vmax.f32 %v1313, 0.0
      %v1346 = vmax.f32 %v1314, 0.0
      %v1347 = vmax.f32 %v1315, 0.0
      %v1348 = vmax.f32 %v1316, 0.0
      %v1349 = vmax.f32 %v1317, 0.0
      %v1350 = vmax.f32 %v1318, 0.0
      %v1351 = vmax.f32 %v1319, 0.0
      %v1352 = vmax.f32 %v1320, 0.0
      %v1353 = vmax.f32 %v1321, 0.0
      %v1354 = vmax.f32 %v1322, 0.0
      %v1355 = vmax.f32 %v1323, 0.0
      %v1356 = vmax.f32 %v1324, 0.0
      %v1357 = vmax.f32 %v1325, 0.0
      %v1358 = vmax.f32 %v1326, 0.0
      %v1359 = vmax.f32 %v1327, 0.0
      %v1360 = vmax.f32 %v1328, 0.0
      %v1361 = vmax.f32 %v1329, 0.0
      %v1362 = vmax.f32 %v1330, 0.0
      %v1363 = vmax.f32 %v1331, 0.0
      %v1364 = vmax.f32 %v1332, 0.0
      %v1365 = vmax.f32 %v1333, 0.0
      %v1366 = vmax.f32 %v1334, 0.0
      %v1367 = vmax.f32 %v1335, 0.0
      %v1368 = vld [vmem:[%s5] sm:$0xff]
      %v1369 = vld [vmem:[%s5 + $0x8] sm:$0xff]
      %v1370 = vld [vmem:[%s5 + $0x10] sm:$0xff]
      %v1371 = vld [vmem:[%s5 + $0x18] sm:$0xff]
      %1404 = vrot.lane.b32.xlu0 %v644, 96
      %v1405 = vpop.permute.xlu0 %1404
      %1406 = vrot.lane.b32.xlu0 %v649, 96
      %v1407 = vpop.permute.xlu0 %1406
      %1408 = vrot.lane.b32.xlu0 %v654, 96
      %v1409 = vpop.permute.xlu0 %1408
      %1410 = vrot.lane.b32.xlu0 %v659, 96
      %v1411 = vpop.permute.xlu0 %1410
      %1412 = vrot.lane.b32.xlu0 %v664, 96
      %v1413 = vpop.permute.xlu0 %1412
      %1414 = vrot.lane.b32.xlu0 %v669, 96
      %v1415 = vpop.permute.xlu0 %1414
      %1416 = vrot.lane.b32.xlu0 %v674, 96
      %v1417 = vpop.permute.xlu0 %1416
      %1418 = vrot.lane.b32.xlu0 %v679, 96
      %v1419 = vpop.permute.xlu0 %1418
      %1420 = vrot.lane.b32.xlu0 %v684, 96
      %v1421 = vpop.permute.xlu0 %1420
      %1422 = vrot.lane.b32.xlu0 %v689, 96
      %v1423 = vpop.permute.xlu0 %1422
      %1424 = vrot.lane.b32.xlu0 %v694, 96
      %v1425 = vpop.permute.xlu0 %1424
      %1426 = vrot.lane.b32.xlu0 %v699, 96
      %v1427 = vpop.permute.xlu0 %1426
      %1428 = vrot.lane.b32.xlu0 %v704, 96
      %v1429 = vpop.permute.xlu0 %1428
      %1430 = vrot.lane.b32.xlu0 %v709, 96
      %v1431 = vpop.permute.xlu0 %1430
      %1432 = vrot.lane.b32.xlu0 %v714, 96
      %v1433 = vpop.permute.xlu0 %1432
      %1434 = vrot.lane.b32.xlu0 %v719, 96
      %v1435 = vpop.permute.xlu0 %1434
      %1436 = vrot.lane.b32.xlu0 %v724, 96
      %v1437 = vpop.permute.xlu0 %1436
      %1438 = vrot.lane.b32.xlu0 %v729, 96
      %v1439 = vpop.permute.xlu0 %1438
      %1440 = vrot.lane.b32.xlu0 %v734, 96
      %v1441 = vpop.permute.xlu0 %1440
      %1442 = vrot.lane.b32.xlu0 %v739, 96
      %v1443 = vpop.permute.xlu0 %1442
      %1444 = vrot.lane.b32.xlu0 %v744, 96
      %v1445 = vpop.permute.xlu0 %1444
      %1446 = vrot.lane.b32.xlu0 %v749, 96
      %v1447 = vpop.permute.xlu0 %1446
      %1448 = vrot.lane.b32.xlu0 %v754, 96
      %v1449 = vpop.permute.xlu0 %1448
      %1450 = vrot.lane.b32.xlu0 %v759, 96
      %v1451 = vpop.permute.xlu0 %1450
      %1452 = vrot.lane.b32.xlu0 %v764, 96
      %v1453 = vpop.permute.xlu0 %1452
      %1454 = vrot.lane.b32.xlu0 %v769, 96
      %v1455 = vpop.permute.xlu0 %1454
      %1456 = vrot.lane.b32.xlu0 %v774, 96
      %v1457 = vpop.permute.xlu0 %1456
      %1458 = vrot.lane.b32.xlu0 %v779, 96
      %v1459 = vpop.permute.xlu0 %1458
      %1460 = vrot.lane.b32.xlu0 %v784, 96
      %v1461 = vpop.permute.xlu0 %1460
      %1462 = vrot.lane.b32.xlu0 %v789, 96
      %v1463 = vpop.permute.xlu0 %1462
      %1464 = vrot.lane.b32.xlu0 %v794, 96
      %v1465 = vpop.permute.xlu0 %1464
      %1466 = vrot.lane.b32.xlu0 %v799, 96
      %v1467 = vpop.permute.xlu0 %1466
      %v1501 = vsel %vm480, %v1336, 0
      %v1504 = vsel %vm480, %v1337, 0
      %v1507 = vsel %vm480, %v1338, 0
      %v1510 = vsel %vm480, %v1339, 0
      %v1513 = vsel %vm480, %v1340, 0
      %v1516 = vsel %vm480, %v1341, 0
      %v1519 = vsel %vm480, %v1342, 0
      %v1522 = vsel %vm480, %v1343, 0
      %v1525 = vsel %vm480, %v1344, 0
      %v1528 = vsel %vm480, %v1345, 0
      %v1531 = vsel %vm480, %v1346, 0
      %v1534 = vsel %vm480, %v1347, 0
      %v1537 = vsel %vm480, %v1348, 0
      %v1540 = vsel %vm480, %v1349, 0
      %v1543 = vsel %vm480, %v1350, 0
      %v1546 = vsel %vm480, %v1351, 0
      %v1549 = vsel %vm480, %v1352, 0
      %v1552 = vsel %vm480, %v1353, 0
      %v1555 = vsel %vm480, %v1354, 0
      %v1558 = vsel %vm480, %v1355, 0
      %v1561 = vsel %vm480, %v1356, 0
      %v1564 = vsel %vm480, %v1357, 0
      %v1567 = vsel %vm480, %v1358, 0
      %v1570 = vsel %vm480, %v1359, 0
      %v1573 = vsel %vm480, %v1360, 0
      %v1576 = vsel %vm480, %v1361, 0
      %v1579 = vsel %vm480, %v1362, 0
      %v1582 = vsel %vm480, %v1363, 0
      %v1585 = vsel %vm480, %v1364, 0
      %v1588 = vsel %vm480, %v1365, 0
      %v1591 = vsel %vm480, %v1366, 0
      %v1594 = vsel %vm480, %v1367, 0
      %1596 = vmatprep.subr.mxu0 0.0
      %1597 = vmatpush1.msra.mxu0 0.0
      %1598 = vmatprep.subr.mxu0 0.0
      %1599 = vmatpush1.msra.mxu0 0.0
      %1600 = vmatprep.subr.mxu0 0.0
      %1601 = vmatpush1.msra.mxu0 0.0
      %1602 = vmatprep.subr.mxu0 0.0
      %1603 = vmatpush1.msra.mxu0 0.0
      %1604 = vmatprep.subr.mxu0 0.0
      %1605 = vmatpush1.msra.mxu0 0.0
      %1606 = vmatprep.subr.mxu0 0.0
      %1607 = vmatpush1.msra.mxu0 0.0
      %1608 = vmatprep.subr.mxu0 0.0
      %1609 = vmatpush1.msra.mxu0 0.0
      %1610 = vmatprep.subr.mxu0 0.0
      %1611 = vmatpush1.msra.mxu0 0.0
      %1612 = vmatprep.subr.mxu0 0.0
      %1613 = vmatpush1.msra.mxu0 0.0
      %1614 = vmatprep.subr.mxu0 0.0
      %1615 = vmatpush1.msra.mxu0 0.0
      %1616 = vmatprep.subr.mxu0 0.0
      %1617 = vmatpush1.msra.mxu0 0.0
      %1618 = vmatprep.subr.mxu0 0.0
      %1619 = vmatpush1.msra.mxu0 0.0
      %1620 = vmatprep.subr.mxu0 0.0
      %1621 = vmatpush1.msra.mxu0 %v1371
      %1622 = vmatprep.subr.mxu0 0.0
      %1623 = vmatpush1.msra.mxu0 %v1370
      %1624 = vmatprep.subr.mxu0 0.0
      %1625 = vmatpush1.msra.mxu0 %v1369
      %1626 = vmatprep.subr.mxu0 0.0
      %1627 = vmatpush1.msra.mxu0 %v1368
      %1628 = vmatprep.subr.mxu0 0.0
      %1629 = vmatpush2.msra.mxu0 0.0
      %1630 = vmatprep.subr.mxu0 0.0
      %1631 = vmatpush2.msra.mxu0 0.0
      %1632 = vmatprep.subr.mxu0 0.0
      %1633 = vmatpush2.msra.mxu0 0.0
      %1634 = vmatprep.subr.mxu0 0.0
      %1635 = vmatpush2.msra.mxu0 0.0
      %1636 = vmatprep.subr.mxu0 0.0
      %1637 = vmatpush2.msra.mxu0 0.0
      %1638 = vmatprep.subr.mxu0 0.0
      %1639 = vmatpush2.msra.mxu0 0.0
      %1640 = vmatprep.subr.mxu0 0.0
      %1641 = vmatpush2.msra.mxu0 0.0
      %1642 = vmatprep.subr.mxu0 0.0
      %1643 = vmatpush2.msra.mxu0 0.0
      %1644 = vmatprep.subr.mxu0 0.0
      %1645 = vmatpush2.msra.mxu0 0.0
      %1646 = vmatprep.subr.mxu0 0.0
      %1647 = vmatpush2.msra.mxu0 0.0
      %1648 = vmatprep.subr.mxu0 0.0
      %1649 = vmatpush2.msra.mxu0 0.0
      %1650 = vmatprep.subr.mxu0 0.0
      %1651 = vmatpush2.msra.mxu0 0.0
      %1652 = vmatprep.subr.mxu0 0.0
      %1653 = vmatpush2.msra.mxu0 0.0
      %1654 = vmatprep.subr.mxu0 0.0
      %1655 = vmatpush2.msra.mxu0 0.0
      %1656 = vmatprep.subr.mxu0 0.0
      %1657 = vmatpush2.msra.mxu0 0.0
      %1658 = vmatprep.subr.mxu0 0.0
      %1659 = vmatpush2.msra.mxu0 0.0
      %1660 = vmatprep.mubr.f32.mxu0 0.0
      %1661 = vmatmul.mubr.f32.gmra.mxu0 %v1501
      %v1662 = vpop.f32.mrf.mxu0
      %v1663 = vadd.f32 %v1405, %v1662
      %v1664 = vpop.f32.mrf.mxu0
      %1665 = vmatprep.mubr.f32.mxu0 0.0
      %1666 = vmatmul.mubr.f32.gmra.mxu0 %v1504
      %v1667 = vpop.f32.mrf.mxu0
      %v1668 = vadd.f32 %v1407, %v1667
      %v1669 = vpop.f32.mrf.mxu0
      %1670 = vmatprep.mubr.f32.mxu0 0.0
      %1671 = vmatmul.mubr.f32.gmra.mxu0 %v1507
      %v1672 = vpop.f32.mrf.mxu0
      %v1673 = vadd.f32 %v1409, %v1672
      %v1674 = vpop.f32.mrf.mxu0
      %1675 = vmatprep.mubr.f32.mxu0 0.0
      %1676 = vmatmul.mubr.f32.gmra.mxu0 %v1510
      %v1677 = vpop.f32.mrf.mxu0
      %v1678 = vadd.f32 %v1411, %v1677
      %v1679 = vpop.f32.mrf.mxu0
      %1680 = vmatprep.mubr.f32.mxu0 0.0
      %1681 = vmatmul.mubr.f32.gmra.mxu0 %v1513
      %v1682 = vpop.f32.mrf.mxu0
      %v1683 = vadd.f32 %v1413, %v1682
      %v1684 = vpop.f32.mrf.mxu0
      %1685 = vmatprep.mubr.f32.mxu0 0.0
      %1686 = vmatmul.mubr.f32.gmra.mxu0 %v1516
      %v1687 = vpop.f32.mrf.mxu0
      %v1688 = vadd.f32 %v1415, %v1687
      %v1689 = vpop.f32.mrf.mxu0
      %1690 = vmatprep.mubr.f32.mxu0 0.0
      %1691 = vmatmul.mubr.f32.gmra.mxu0 %v1519
      %v1692 = vpop.f32.mrf.mxu0
      %v1693 = vadd.f32 %v1417, %v1692
      %v1694 = vpop.f32.mrf.mxu0
      %1695 = vmatprep.mubr.f32.mxu0 0.0
      %1696 = vmatmul.mubr.f32.gmra.mxu0 %v1522
      %v1697 = vpop.f32.mrf.mxu0
      %v1698 = vadd.f32 %v1419, %v1697
      %v1699 = vpop.f32.mrf.mxu0
      %1700 = vmatprep.mubr.f32.mxu0 0.0
      %1701 = vmatmul.mubr.f32.gmra.mxu0 %v1525
      %v1702 = vpop.f32.mrf.mxu0
      %v1703 = vadd.f32 %v1421, %v1702
      %v1704 = vpop.f32.mrf.mxu0
      %1705 = vmatprep.mubr.f32.mxu0 0.0
      %1706 = vmatmul.mubr.f32.gmra.mxu0 %v1528
      %v1707 = vpop.f32.mrf.mxu0
      %v1708 = vadd.f32 %v1423, %v1707
      %v1709 = vpop.f32.mrf.mxu0
      %1710 = vmatprep.mubr.f32.mxu0 0.0
      %1711 = vmatmul.mubr.f32.gmra.mxu0 %v1531
      %v1712 = vpop.f32.mrf.mxu0
      %v1713 = vadd.f32 %v1425, %v1712
      %v1714 = vpop.f32.mrf.mxu0
      %1715 = vmatprep.mubr.f32.mxu0 0.0
      %1716 = vmatmul.mubr.f32.gmra.mxu0 %v1534
      %v1717 = vpop.f32.mrf.mxu0
      %v1718 = vadd.f32 %v1427, %v1717
      %v1719 = vpop.f32.mrf.mxu0
      %1720 = vmatprep.mubr.f32.mxu0 0.0
      %1721 = vmatmul.mubr.f32.gmra.mxu0 %v1537
      %v1722 = vpop.f32.mrf.mxu0
      %v1723 = vadd.f32 %v1429, %v1722
      %v1724 = vpop.f32.mrf.mxu0
      %1725 = vmatprep.mubr.f32.mxu0 0.0
      %1726 = vmatmul.mubr.f32.gmra.mxu0 %v1540
      %v1727 = vpop.f32.mrf.mxu0
      %v1728 = vadd.f32 %v1431, %v1727
      %v1729 = vpop.f32.mrf.mxu0
      %1730 = vmatprep.mubr.f32.mxu0 0.0
      %1731 = vmatmul.mubr.f32.gmra.mxu0 %v1543
      %v1732 = vpop.f32.mrf.mxu0
      %v1733 = vadd.f32 %v1433, %v1732
      %v1734 = vpop.f32.mrf.mxu0
      %1735 = vmatprep.mubr.f32.mxu0 0.0
      %1736 = vmatmul.mubr.f32.gmra.mxu0 %v1546
      %v1737 = vpop.f32.mrf.mxu0
      %v1738 = vadd.f32 %v1435, %v1737
      %v1739 = vpop.f32.mrf.mxu0
      %1740 = vmatprep.mubr.f32.mxu0 0.0
      %1741 = vmatmul.mubr.f32.gmra.mxu0 %v1549
      %v1742 = vpop.f32.mrf.mxu0
      %v1743 = vadd.f32 %v1437, %v1742
      %v1744 = vpop.f32.mrf.mxu0
      %1745 = vmatprep.mubr.f32.mxu0 0.0
      %1746 = vmatmul.mubr.f32.gmra.mxu0 %v1552
      %v1747 = vpop.f32.mrf.mxu0
      %v1748 = vadd.f32 %v1439, %v1747
      %v1749 = vpop.f32.mrf.mxu0
      %1750 = vmatprep.mubr.f32.mxu0 0.0
      %1751 = vmatmul.mubr.f32.gmra.mxu0 %v1555
      %v1752 = vpop.f32.mrf.mxu0
      %v1753 = vadd.f32 %v1441, %v1752
      %v1754 = vpop.f32.mrf.mxu0
      %1755 = vmatprep.mubr.f32.mxu0 0.0
      %1756 = vmatmul.mubr.f32.gmra.mxu0 %v1558
      %v1757 = vpop.f32.mrf.mxu0
      %v1758 = vadd.f32 %v1443, %v1757
      %v1759 = vpop.f32.mrf.mxu0
      %1760 = vmatprep.mubr.f32.mxu0 0.0
      %1761 = vmatmul.mubr.f32.gmra.mxu0 %v1561
      %v1762 = vpop.f32.mrf.mxu0
      %v1763 = vadd.f32 %v1445, %v1762
      %v1764 = vpop.f32.mrf.mxu0
      %1765 = vmatprep.mubr.f32.mxu0 0.0
      %1766 = vmatmul.mubr.f32.gmra.mxu0 %v1564
      %v1767 = vpop.f32.mrf.mxu0
      %v1768 = vadd.f32 %v1447, %v1767
      %v1769 = vpop.f32.mrf.mxu0
      %1770 = vmatprep.mubr.f32.mxu0 0.0
      %1771 = vmatmul.mubr.f32.gmra.mxu0 %v1567
      %v1772 = vpop.f32.mrf.mxu0
      %v1773 = vadd.f32 %v1449, %v1772
      %v1774 = vpop.f32.mrf.mxu0
      %1775 = vmatprep.mubr.f32.mxu0 0.0
      %1776 = vmatmul.mubr.f32.gmra.mxu0 %v1570
      %v1777 = vpop.f32.mrf.mxu0
      %v1778 = vadd.f32 %v1451, %v1777
      %v1779 = vpop.f32.mrf.mxu0
      %1780 = vmatprep.mubr.f32.mxu0 0.0
      %1781 = vmatmul.mubr.f32.gmra.mxu0 %v1573
      %v1782 = vpop.f32.mrf.mxu0
      %v1783 = vadd.f32 %v1453, %v1782
      %v1784 = vpop.f32.mrf.mxu0
      %1785 = vmatprep.mubr.f32.mxu0 0.0
      %1786 = vmatmul.mubr.f32.gmra.mxu0 %v1576
      %v1787 = vpop.f32.mrf.mxu0
      %v1788 = vadd.f32 %v1455, %v1787
      %v1789 = vpop.f32.mrf.mxu0
      %1790 = vmatprep.mubr.f32.mxu0 0.0
      %1791 = vmatmul.mubr.f32.gmra.mxu0 %v1579
      %v1792 = vpop.f32.mrf.mxu0
      %v1793 = vadd.f32 %v1457, %v1792
      %v1794 = vpop.f32.mrf.mxu0
      %1795 = vmatprep.mubr.f32.mxu0 0.0
      %1796 = vmatmul.mubr.f32.gmra.mxu0 %v1582
      %v1797 = vpop.f32.mrf.mxu0
      %v1798 = vadd.f32 %v1459, %v1797
      %v1799 = vpop.f32.mrf.mxu0
      %1800 = vmatprep.mubr.f32.mxu0 0.0
      %1801 = vmatmul.mubr.f32.gmra.mxu0 %v1585
      %v1802 = vpop.f32.mrf.mxu0
      %v1803 = vadd.f32 %v1461, %v1802
      %v1804 = vpop.f32.mrf.mxu0
      %1805 = vmatprep.mubr.f32.mxu0 0.0
      %1806 = vmatmul.mubr.f32.gmra.mxu0 %v1588
      %v1807 = vpop.f32.mrf.mxu0
      %v1808 = vadd.f32 %v1463, %v1807
      %v1809 = vpop.f32.mrf.mxu0
      %1810 = vmatprep.mubr.f32.mxu0 0.0
      %1811 = vmatmul.mubr.f32.gmra.mxu0 %v1591
      %v1812 = vpop.f32.mrf.mxu0
      %v1813 = vadd.f32 %v1465, %v1812
      %v1814 = vpop.f32.mrf.mxu0
      %1815 = vmatprep.mubr.f32.mxu0 0.0
      %1816 = vmatmul.mubr.f32.gmra.mxu0 %v1594
      %v1817 = vpop.f32.mrf.mxu0
      %v1818 = vadd.f32 %v1467, %v1817
      %v1819 = vpop.f32.mrf.mxu0
      %1820 = vdwg.mxu0
      %v1821 = vld [vmem:[%s6] sm:$0x1]
      %v1823 = vlaneseq
      %v1824 = vshrl.u32 %v1823, 7
      %v1825 = vsub.s32 0, %v1824
      %v1826 = vrot.slane %v1821, %v1825
      %v1828 = vadd.f32 %v1663, %v1826
      %v1829 = vadd.f32 %v1668, %v1826
      %v1830 = vadd.f32 %v1673, %v1826
      %v1831 = vadd.f32 %v1678, %v1826
      %v1832 = vadd.f32 %v1683, %v1826
      %v1833 = vadd.f32 %v1688, %v1826
      %v1834 = vadd.f32 %v1693, %v1826
      %v1835 = vadd.f32 %v1698, %v1826
      %v1836 = vadd.f32 %v1703, %v1826
      %v1837 = vadd.f32 %v1708, %v1826
      %v1838 = vadd.f32 %v1713, %v1826
      %v1839 = vadd.f32 %v1718, %v1826
      %v1840 = vadd.f32 %v1723, %v1826
      %v1841 = vadd.f32 %v1728, %v1826
      %v1842 = vadd.f32 %v1733, %v1826
      %v1843 = vadd.f32 %v1738, %v1826
      %v1844 = vadd.f32 %v1743, %v1826
      %v1845 = vadd.f32 %v1748, %v1826
      %v1846 = vadd.f32 %v1753, %v1826
      %v1847 = vadd.f32 %v1758, %v1826
      %v1848 = vadd.f32 %v1763, %v1826
      %v1849 = vadd.f32 %v1768, %v1826
      %v1850 = vadd.f32 %v1773, %v1826
      %v1851 = vadd.f32 %v1778, %v1826
      %v1852 = vadd.f32 %v1783, %v1826
      %v1853 = vadd.f32 %v1788, %v1826
      %v1854 = vadd.f32 %v1793, %v1826
      %v1855 = vadd.f32 %v1798, %v1826
      %v1856 = vadd.f32 %v1803, %v1826
      %v1857 = vadd.f32 %v1808, %v1826
      %v1858 = vadd.f32 %v1813, %v1826
      %v1859 = vadd.f32 %v1818, %v1826
      %v1860 = vld [vmem:[%s7] sm:$0xff]
      %v1861 = vld [vmem:[%s7 + $0x8] sm:$0xff]
      %v1862 = vld [vmem:[%s7 + $0x10] sm:$0xff]
      %v1863 = vld [vmem:[%s7 + $0x18] sm:$0xff]
      %v1864 = vld [vmem:[%s7 + $0x20] sm:$0xff]
      %v1865 = vld [vmem:[%s7 + $0x28] sm:$0xff]
      %v1866 = vld [vmem:[%s7 + $0x30] sm:$0xff]
      %v1867 = vld [vmem:[%s7 + $0x38] sm:$0xff]
      %v1868 = vld [vmem:[%s7 + $0x40] sm:$0xff]
      %v1869 = vld [vmem:[%s7 + $0x48] sm:$0xff]
      %v1870 = vld [vmem:[%s7 + $0x50] sm:$0xff]
      %v1871 = vld [vmem:[%s7 + $0x58] sm:$0xff]
      %v1872 = vld [vmem:[%s7 + $0x60] sm:$0xff]
      %v1873 = vld [vmem:[%s7 + $0x68] sm:$0xff]
      %v1874 = vld [vmem:[%s7 + $0x70] sm:$0xff]
      %v1875 = vld [vmem:[%s7 + $0x78] sm:$0xff]
      %v1876 = vld [vmem:[%s7 + $0x80] sm:$0xff]
      %v1877 = vld [vmem:[%s7 + $0x88] sm:$0xff]
      %v1878 = vld [vmem:[%s7 + $0x90] sm:$0xff]
      %v1879 = vld [vmem:[%s7 + $0x98] sm:$0xff]
      %v1880 = vld [vmem:[%s7 + $0xa0] sm:$0xff]
      %v1881 = vld [vmem:[%s7 + $0xa8] sm:$0xff]
      %v1882 = vld [vmem:[%s7 + $0xb0] sm:$0xff]
      %v1883 = vld [vmem:[%s7 + $0xb8] sm:$0xff]
      %v1884 = vld [vmem:[%s7 + $0xc0] sm:$0xff]
      %v1885 = vld [vmem:[%s7 + $0xc8] sm:$0xff]
      %v1886 = vld [vmem:[%s7 + $0xd0] sm:$0xff]
      %v1887 = vld [vmem:[%s7 + $0xd8] sm:$0xff]
      %v1888 = vld [vmem:[%s8] sm:$0x7f]
      %v1890 = vlaneseq
      %v1891 = vshrl.u32 %v1890, 7
      %v1892 = vsub.s32 0, %v1891
      %v1893 = vrot.slane %v1888, %v1892
      %v1894 = vlaneseq
      %v1895 = vshrl.u32 %v1894, 7
      %v1896 = vsub.s32 1, %v1895
      %v1897 = vrot.slane %v1888, %v1896
      %v1898 = vlaneseq
      %v1899 = vshrl.u32 %v1898, 7
      %v1900 = vsub.s32 2, %v1899
      %v1901 = vrot.slane %v1888, %v1900
      %v1902 = vlaneseq
      %v1903 = vshrl.u32 %v1902, 7
      %v1904 = vsub.s32 3, %v1903
      %v1905 = vrot.slane %v1888, %v1904
      %v1906 = vlaneseq
      %v1907 = vshrl.u32 %v1906, 7
      %v1908 = vsub.s32 4, %v1907
      %v1909 = vrot.slane %v1888, %v1908
      %v1910 = vlaneseq
      %v1911 = vshrl.u32 %v1910, 7
      %v1912 = vsub.s32 5, %v1911
      %v1913 = vrot.slane %v1888, %v1912
      %v1914 = vlaneseq
      %v1915 = vshrl.u32 %v1914, 7
      %v1916 = vsub.s32 6, %v1915
      %v1917 = vrot.slane %v1888, %v1916
      %v1926 = vsel %vm480, %v1828, 0
      %v1929 = vsel %vm480, %v1829, 0
      %v1932 = vsel %vm480, %v1830, 0
      %v1935 = vsel %vm480, %v1831, 0
      %v1938 = vsel %vm480, %v1832, 0
      %v1941 = vsel %vm480, %v1833, 0
      %v1944 = vsel %vm480, %v1834, 0
      %v1947 = vsel %vm480, %v1835, 0
      %v1950 = vsel %vm480, %v1836, 0
      %v1953 = vsel %vm480, %v1837, 0
      %v1956 = vsel %vm480, %v1838, 0
      %v1959 = vsel %vm480, %v1839, 0
      %v1962 = vsel %vm480, %v1840, 0
      %v1965 = vsel %vm480, %v1841, 0
      %v1968 = vsel %vm480, %v1842, 0
      %v1971 = vsel %vm480, %v1843, 0
      %v1974 = vsel %vm480, %v1844, 0
      %v1977 = vsel %vm480, %v1845, 0
      %v1980 = vsel %vm480, %v1846, 0
      %v1983 = vsel %vm480, %v1847, 0
      %v1986 = vsel %vm480, %v1848, 0
      %v1989 = vsel %vm480, %v1849, 0
      %v1992 = vsel %vm480, %v1850, 0
      %v1995 = vsel %vm480, %v1851, 0
      %v1998 = vsel %vm480, %v1852, 0
      %v2001 = vsel %vm480, %v1853, 0
      %v2004 = vsel %vm480, %v1854, 0
      %v2007 = vsel %vm480, %v1855, 0
      %v2010 = vsel %vm480, %v1856, 0
      %v2013 = vsel %vm480, %v1857, 0
      %v2016 = vsel %vm480, %v1858, 0
      %v2019 = vsel %vm480, %v1859, 0
      %2021 = vmatprep.subr.mxu0 0.0
      %2022 = vmatpush1.msra.mxu0 0.0
      %2023 = vmatprep.subr.mxu0 0.0
      %2024 = vmatpush1.msra.mxu0 0.0
      %2025 = vmatprep.subr.mxu0 0.0
      %2026 = vmatpush1.msra.mxu0 0.0
      %2027 = vmatprep.subr.mxu0 0.0
      %2028 = vmatpush1.msra.mxu0 0.0
      %2029 = vmatprep.subr.mxu0 0.0
      %2030 = vmatpush1.msra.mxu0 0.0
      %2031 = vmatprep.subr.mxu0 0.0
      %2032 = vmatpush1.msra.mxu0 0.0
      %2033 = vmatprep.subr.mxu0 0.0
      %2034 = vmatpush1.msra.mxu0 0.0
      %2035 = vmatprep.subr.mxu0 0.0
      %2036 = vmatpush1.msra.mxu0 0.0
      %2037 = vmatprep.subr.mxu0 0.0
      %2038 = vmatpush1.msra.mxu0 0.0
      %2039 = vmatprep.subr.mxu0 0.0
      %2040 = vmatpush1.msra.mxu0 0.0
      %2041 = vmatprep.subr.mxu0 0.0
      %2042 = vmatpush1.msra.mxu0 0.0
      %2043 = vmatprep.subr.mxu0 0.0
      %2044 = vmatpush1.msra.mxu0 0.0
      %2045 = vmatprep.subr.mxu0 %v1882
      %2046 = vmatpush1.msra.mxu0 %v1881
      %2047 = vmatprep.subr.mxu0 %v1875
      %2048 = vmatpush1.msra.mxu0 %v1874
      %2049 = vmatprep.subr.mxu0 %v1868
      %2050 = vmatpush1.msra.mxu0 %v1867
      %2051 = vmatprep.subr.mxu0 %v1861
      %2052 = vmatpush1.msra.mxu0 %v1860
      %2053 = vmatprep.subr.mxu0 0.0
      %2054 = vmatpush2.msra.mxu0 0.0
      %2055 = vmatprep.subr.mxu0 0.0
      %2056 = vmatpush2.msra.mxu0 0.0
      %2057 = vmatprep.subr.mxu0 0.0
      %2058 = vmatpush2.msra.mxu0 0.0
      %2059 = vmatprep.subr.mxu0 0.0
      %2060 = vmatpush2.msra.mxu0 0.0
      %2061 = vmatprep.subr.mxu0 0.0
      %2062 = vmatpush2.msra.mxu0 0.0
      %2063 = vmatprep.subr.mxu0 0.0
      %2064 = vmatpush2.msra.mxu0 0.0
      %2065 = vmatprep.subr.mxu0 0.0
      %2066 = vmatpush2.msra.mxu0 0.0
      %2067 = vmatprep.subr.mxu0 0.0
      %2068 = vmatpush2.msra.mxu0 0.0
      %2069 = vmatprep.subr.mxu0 0.0
      %2070 = vmatpush2.msra.mxu0 0.0
      %2071 = vmatprep.subr.mxu0 0.0
      %2072 = vmatpush2.msra.mxu0 0.0
      %2073 = vmatprep.subr.mxu0 0.0
      %2074 = vmatpush2.msra.mxu0 0.0
      %2075 = vmatprep.subr.mxu0 0.0
      %2076 = vmatpush2.msra.mxu0 0.0
      %2077 = vmatprep.subr.mxu0 0.0
      %2078 = vmatpush2.msra.mxu0 0.0
      %2079 = vmatprep.subr.mxu0 0.0
      %2080 = vmatpush2.msra.mxu0 0.0
      %2081 = vmatprep.subr.mxu0 0.0
      %2082 = vmatpush2.msra.mxu0 0.0
      %2083 = vmatprep.subr.mxu0 0.0
      %2084 = vmatpush2.msra.mxu0 0.0
      %2085 = vmatprep.mubr.f32.mxu0 0.0
      %2086 = vmatmul.mubr.f32.gmra.mxu0 %v1926
      %v2087 = vpop.f32.mrf.mxu0
      %v2088 = vadd.f32 %v1893, %v2087
      %v2089 = vpop.f32.mrf.mxu0
      %v2090 = vadd.f32 %v1897, %v2089
      %2091 = vmatprep.mubr.f32.mxu0 0.0
      %2092 = vmatmul.mubr.f32.gmra.mxu0 %v1929
      %v2093 = vpop.f32.mrf.mxu0
      %v2094 = vadd.f32 %v1893, %v2093
      %v2095 = vpop.f32.mrf.mxu0
      %v2096 = vadd.f32 %v1897, %v2095
      %2097 = vmatprep.mubr.f32.mxu0 0.0
      %2098 = vmatmul.mubr.f32.gmra.mxu0 %v1932
      %v2099 = vpop.f32.mrf.mxu0
      %v2100 = vadd.f32 %v1893, %v2099
      %v2101 = vpop.f32.mrf.mxu0
      %v2102 = vadd.f32 %v1897, %v2101
      %2103 = vmatprep.mubr.f32.mxu0 0.0
      %2104 = vmatmul.mubr.f32.gmra.mxu0 %v1935
      %v2105 = vpop.f32.mrf.mxu0
      %v2106 = vadd.f32 %v1893, %v2105
      %v2107 = vpop.f32.mrf.mxu0
      %v2108 = vadd.f32 %v1897, %v2107
      %2109 = vmatprep.mubr.f32.mxu0 0.0
      %2110 = vmatmul.mubr.f32.gmra.mxu0 %v1938
      %v2111 = vpop.f32.mrf.mxu0
      %v2112 = vadd.f32 %v1893, %v2111
      %v2113 = vpop.f32.mrf.mxu0
      %v2114 = vadd.f32 %v1897, %v2113
      %2115 = vmatprep.mubr.f32.mxu0 0.0
      %2116 = vmatmul.mubr.f32.gmra.mxu0 %v1941
      %v2117 = vpop.f32.mrf.mxu0
      %v2118 = vadd.f32 %v1893, %v2117
      %v2119 = vpop.f32.mrf.mxu0
      %v2120 = vadd.f32 %v1897, %v2119
      %2121 = vmatprep.mubr.f32.mxu0 0.0
      %2122 = vmatmul.mubr.f32.gmra.mxu0 %v1944
      %v2123 = vpop.f32.mrf.mxu0
      %v2124 = vadd.f32 %v1893, %v2123
      %v2125 = vpop.f32.mrf.mxu0
      %v2126 = vadd.f32 %v1897, %v2125
      %2127 = vmatprep.mubr.f32.mxu0 0.0
      %2128 = vmatmul.mubr.f32.gmra.mxu0 %v1947
      %v2129 = vpop.f32.mrf.mxu0
      %v2130 = vadd.f32 %v1893, %v2129
      %v2131 = vpop.f32.mrf.mxu0
      %v2132 = vadd.f32 %v1897, %v2131
      %2133 = vmatprep.mubr.f32.mxu0 0.0
      %2134 = vmatmul.mubr.f32.gmra.mxu0 %v1950
      %v2135 = vpop.f32.mrf.mxu0
      %v2136 = vadd.f32 %v1893, %v2135
      %v2137 = vpop.f32.mrf.mxu0
      %v2138 = vadd.f32 %v1897, %v2137
      %2139 = vmatprep.mubr.f32.mxu0 0.0
      %2140 = vmatmul.mubr.f32.gmra.mxu0 %v1953
      %v2141 = vpop.f32.mrf.mxu0
      %v2142 = vadd.f32 %v1893, %v2141
      %v2143 = vpop.f32.mrf.mxu0
      %v2144 = vadd.f32 %v1897, %v2143
      %2145 = vmatprep.mubr.f32.mxu0 0.0
      %2146 = vmatmul.mubr.f32.gmra.mxu0 %v1956
      %v2147 = vpop.f32.mrf.mxu0
      %v2148 = vadd.f32 %v1893, %v2147
      %v2149 = vpop.f32.mrf.mxu0
      %v2150 = vadd.f32 %v1897, %v2149
      %2151 = vmatprep.mubr.f32.mxu0 0.0
      %2152 = vmatmul.mubr.f32.gmra.mxu0 %v1959
      %v2153 = vpop.f32.mrf.mxu0
      %v2154 = vadd.f32 %v1893, %v2153
      %v2155 = vpop.f32.mrf.mxu0
      %v2156 = vadd.f32 %v1897, %v2155
      %2157 = vmatprep.mubr.f32.mxu0 0.0
      %2158 = vmatmul.mubr.f32.gmra.mxu0 %v1962
      %v2159 = vpop.f32.mrf.mxu0
      %v2160 = vadd.f32 %v1893, %v2159
      %v2161 = vpop.f32.mrf.mxu0
      %v2162 = vadd.f32 %v1897, %v2161
      %2163 = vmatprep.mubr.f32.mxu0 0.0
      %2164 = vmatmul.mubr.f32.gmra.mxu0 %v1965
      %v2165 = vpop.f32.mrf.mxu0
      %v2166 = vadd.f32 %v1893, %v2165
      %v2167 = vpop.f32.mrf.mxu0
      %v2168 = vadd.f32 %v1897, %v2167
      %2169 = vmatprep.mubr.f32.mxu0 0.0
      %2170 = vmatmul.mubr.f32.gmra.mxu0 %v1968
      %v2171 = vpop.f32.mrf.mxu0
      %v2172 = vadd.f32 %v1893, %v2171
      %v2173 = vpop.f32.mrf.mxu0
      %v2174 = vadd.f32 %v1897, %v2173
      %2175 = vmatprep.mubr.f32.mxu0 0.0
      %2176 = vmatmul.mubr.f32.gmra.mxu0 %v1971
      %v2177 = vpop.f32.mrf.mxu0
      %v2178 = vadd.f32 %v1893, %v2177
      %v2179 = vpop.f32.mrf.mxu0
      %v2180 = vadd.f32 %v1897, %v2179
      %2181 = vmatprep.mubr.f32.mxu0 0.0
      %2182 = vmatmul.mubr.f32.gmra.mxu0 %v1974
      %v2183 = vpop.f32.mrf.mxu0
      %v2184 = vadd.f32 %v1893, %v2183
      %v2185 = vpop.f32.mrf.mxu0
      %v2186 = vadd.f32 %v1897, %v2185
      %2187 = vmatprep.mubr.f32.mxu0 0.0
      %2188 = vmatmul.mubr.f32.gmra.mxu0 %v1977
      %v2189 = vpop.f32.mrf.mxu0
      %v2190 = vadd.f32 %v1893, %v2189
      %v2191 = vpop.f32.mrf.mxu0
      %v2192 = vadd.f32 %v1897, %v2191
      %2193 = vmatprep.mubr.f32.mxu0 0.0
      %2194 = vmatmul.mubr.f32.gmra.mxu0 %v1980
      %v2195 = vpop.f32.mrf.mxu0
      %v2196 = vadd.f32 %v1893, %v2195
      %v2197 = vpop.f32.mrf.mxu0
      %v2198 = vadd.f32 %v1897, %v2197
      %2199 = vmatprep.mubr.f32.mxu0 0.0
      %2200 = vmatmul.mubr.f32.gmra.mxu0 %v1983
      %v2201 = vpop.f32.mrf.mxu0
      %v2202 = vadd.f32 %v1893, %v2201
      %v2203 = vpop.f32.mrf.mxu0
      %v2204 = vadd.f32 %v1897, %v2203
      %2205 = vmatprep.mubr.f32.mxu0 0.0
      %2206 = vmatmul.mubr.f32.gmra.mxu0 %v1986
      %v2207 = vpop.f32.mrf.mxu0
      %v2208 = vadd.f32 %v1893, %v2207
      %v2209 = vpop.f32.mrf.mxu0
      %v2210 = vadd.f32 %v1897, %v2209
      %2211 = vmatprep.mubr.f32.mxu0 0.0
      %2212 = vmatmul.mubr.f32.gmra.mxu0 %v1989
      %v2213 = vpop.f32.mrf.mxu0
      %v2214 = vadd.f32 %v1893, %v2213
      %v2215 = vpop.f32.mrf.mxu0
      %v2216 = vadd.f32 %v1897, %v2215
      %2217 = vmatprep.mubr.f32.mxu0 0.0
      %2218 = vmatmul.mubr.f32.gmra.mxu0 %v1992
      %v2219 = vpop.f32.mrf.mxu0
      %v2220 = vadd.f32 %v1893, %v2219
      %v2221 = vpop.f32.mrf.mxu0
      %v2222 = vadd.f32 %v1897, %v2221
      %2223 = vmatprep.mubr.f32.mxu0 0.0
      %2224 = vmatmul.mubr.f32.gmra.mxu0 %v1995
      %v2225 = vpop.f32.mrf.mxu0
      %v2226 = vadd.f32 %v1893, %v2225
      %v2227 = vpop.f32.mrf.mxu0
      %v2228 = vadd.f32 %v1897, %v2227
      %2229 = vmatprep.mubr.f32.mxu0 0.0
      %2230 = vmatmul.mubr.f32.gmra.mxu0 %v1998
      %v2231 = vpop.f32.mrf.mxu0
      %v2232 = vadd.f32 %v1893, %v2231
      %v2233 = vpop.f32.mrf.mxu0
      %v2234 = vadd.f32 %v1897, %v2233
      %2235 = vmatprep.mubr.f32.mxu0 0.0
      %2236 = vmatmul.mubr.f32.gmra.mxu0 %v2001
      %v2237 = vpop.f32.mrf.mxu0
      %v2238 = vadd.f32 %v1893, %v2237
      %v2239 = vpop.f32.mrf.mxu0
      %v2240 = vadd.f32 %v1897, %v2239
      %2241 = vmatprep.mubr.f32.mxu0 0.0
      %2242 = vmatmul.mubr.f32.gmra.mxu0 %v2004
      %v2243 = vpop.f32.mrf.mxu0
      %v2244 = vadd.f32 %v1893, %v2243
      %v2245 = vpop.f32.mrf.mxu0
      %v2246 = vadd.f32 %v1897, %v2245
      %2247 = vmatprep.mubr.f32.mxu0 0.0
      %2248 = vmatmul.mubr.f32.gmra.mxu0 %v2007
      %v2249 = vpop.f32.mrf.mxu0
      %v2250 = vadd.f32 %v1893, %v2249
      %v2251 = vpop.f32.mrf.mxu0
      %v2252 = vadd.f32 %v1897, %v2251
      %2253 = vmatprep.mubr.f32.mxu0 0.0
      %2254 = vmatmul.mubr.f32.gmra.mxu0 %v2010
      %v2255 = vpop.f32.mrf.mxu0
      %v2256 = vadd.f32 %v1893, %v2255
      %v2257 = vpop.f32.mrf.mxu0
      %v2258 = vadd.f32 %v1897, %v2257
      %2259 = vmatprep.mubr.f32.mxu0 0.0
      %2260 = vmatmul.mubr.f32.gmra.mxu0 %v2013
      %v2261 = vpop.f32.mrf.mxu0
      %v2262 = vadd.f32 %v1893, %v2261
      %v2263 = vpop.f32.mrf.mxu0
      %v2264 = vadd.f32 %v1897, %v2263
      %2265 = vmatprep.mubr.f32.mxu0 0.0
      %2266 = vmatmul.mubr.f32.gmra.mxu0 %v2016
      %v2267 = vpop.f32.mrf.mxu0
      %v2268 = vadd.f32 %v1893, %v2267
      %v2269 = vpop.f32.mrf.mxu0
      %v2270 = vadd.f32 %v1897, %v2269
      %2271 = vmatprep.mubr.f32.mxu0 0.0
      %2272 = vmatmul.mubr.f32.gmra.mxu0 %v2019
      %v2273 = vpop.f32.mrf.mxu0
      %v2274 = vadd.f32 %v1893, %v2273
      %v2275 = vpop.f32.mrf.mxu0
      %v2276 = vadd.f32 %v1897, %v2275
      %2277 = vdwg.mxu0
      %2278 = vmatprep.subr.mxu0 0.0
      %2279 = vmatpush1.msra.mxu0 0.0
      %2280 = vmatprep.subr.mxu0 0.0
      %2281 = vmatpush1.msra.mxu0 0.0
      %2282 = vmatprep.subr.mxu0 0.0
      %2283 = vmatpush1.msra.mxu0 0.0
      %2284 = vmatprep.subr.mxu0 0.0
      %2285 = vmatpush1.msra.mxu0 0.0
      %2286 = vmatprep.subr.mxu0 0.0
      %2287 = vmatpush1.msra.mxu0 0.0
      %2288 = vmatprep.subr.mxu0 0.0
      %2289 = vmatpush1.msra.mxu0 0.0
      %2290 = vmatprep.subr.mxu0 0.0
      %2291 = vmatpush1.msra.mxu0 0.0
      %2292 = vmatprep.subr.mxu0 0.0
      %2293 = vmatpush1.msra.mxu0 0.0
      %2294 = vmatprep.subr.mxu0 0.0
      %2295 = vmatpush1.msra.mxu0 0.0
      %2296 = vmatprep.subr.mxu0 0.0
      %2297 = vmatpush1.msra.mxu0 0.0
      %2298 = vmatprep.subr.mxu0 0.0
      %2299 = vmatpush1.msra.mxu0 0.0
      %2300 = vmatprep.subr.mxu0 0.0
      %2301 = vmatpush1.msra.mxu0 0.0
      %2302 = vmatprep.subr.mxu0 %v1884
      %2303 = vmatpush1.msra.mxu0 %v1883
      %2304 = vmatprep.subr.mxu0 %v1877
      %2305 = vmatpush1.msra.mxu0 %v1876
      %2306 = vmatprep.subr.mxu0 %v1870
      %2307 = vmatpush1.msra.mxu0 %v1869
      %2308 = vmatprep.subr.mxu0 %v1863
      %2309 = vmatpush1.msra.mxu0 %v1862
      %2310 = vmatprep.subr.mxu0 0.0
      %2311 = vmatpush2.msra.mxu0 0.0
      %2312 = vmatprep.subr.mxu0 0.0
      %2313 = vmatpush2.msra.mxu0 0.0
      %2314 = vmatprep.subr.mxu0 0.0
      %2315 = vmatpush2.msra.mxu0 0.0
      %2316 = vmatprep.subr.mxu0 0.0
      %2317 = vmatpush2.msra.mxu0 0.0
      %2318 = vmatprep.subr.mxu0 0.0
      %2319 = vmatpush2.msra.mxu0 0.0
      %2320 = vmatprep.subr.mxu0 0.0
      %2321 = vmatpush2.msra.mxu0 0.0
      %2322 = vmatprep.subr.mxu0 0.0
      %2323 = vmatpush2.msra.mxu0 0.0
      %2324 = vmatprep.subr.mxu0 0.0
      %2325 = vmatpush2.msra.mxu0 0.0
      %2326 = vmatprep.subr.mxu0 0.0
      %2327 = vmatpush2.msra.mxu0 0.0
      %2328 = vmatprep.subr.mxu0 0.0
      %2329 = vmatpush2.msra.mxu0 0.0
      %2330 = vmatprep.subr.mxu0 0.0
      %2331 = vmatpush2.msra.mxu0 0.0
      %2332 = vmatprep.subr.mxu0 0.0
      %2333 = vmatpush2.msra.mxu0 0.0
      %2334 = vmatprep.subr.mxu0 0.0
      %2335 = vmatpush2.msra.mxu0 0.0
      %2336 = vmatprep.subr.mxu0 0.0
      %2337 = vmatpush2.msra.mxu0 0.0
      %2338 = vmatprep.subr.mxu0 0.0
      %2339 = vmatpush2.msra.mxu0 0.0
      %2340 = vmatprep.subr.mxu0 0.0
      %2341 = vmatpush2.msra.mxu0 0.0
      %2342 = vmatprep.mubr.f32.mxu0 0.0
      %2343 = vmatmul.mubr.f32.gmra.mxu0 %v1926
      %v2344 = vpop.f32.mrf.mxu0
      %v2345 = vadd.f32 %v1901, %v2344
      %v2346 = vpop.f32.mrf.mxu0
      %v2347 = vadd.f32 %v1905, %v2346
      %2348 = vmatprep.mubr.f32.mxu0 0.0
      %2349 = vmatmul.mubr.f32.gmra.mxu0 %v1929
      %v2350 = vpop.f32.mrf.mxu0
      %v2351 = vadd.f32 %v1901, %v2350
      %v2352 = vpop.f32.mrf.mxu0
      %v2353 = vadd.f32 %v1905, %v2352
      %2354 = vmatprep.mubr.f32.mxu0 0.0
      %2355 = vmatmul.mubr.f32.gmra.mxu0 %v1932
      %v2356 = vpop.f32.mrf.mxu0
      %v2357 = vadd.f32 %v1901, %v2356
      %v2358 = vpop.f32.mrf.mxu0
      %v2359 = vadd.f32 %v1905, %v2358
      %2360 = vmatprep.mubr.f32.mxu0 0.0
      %2361 = vmatmul.mubr.f32.gmra.mxu0 %v1935
      %v2362 = vpop.f32.mrf.mxu0
      %v2363 = vadd.f32 %v1901, %v2362
      %v2364 = vpop.f32.mrf.mxu0
      %v2365 = vadd.f32 %v1905, %v2364
      %2366 = vmatprep.mubr.f32.mxu0 0.0
      %2367 = vmatmul.mubr.f32.gmra.mxu0 %v1938
      %v2368 = vpop.f32.mrf.mxu0
      %v2369 = vadd.f32 %v1901, %v2368
      %v2370 = vpop.f32.mrf.mxu0
      %v2371 = vadd.f32 %v1905, %v2370
      %2372 = vmatprep.mubr.f32.mxu0 0.0
      %2373 = vmatmul.mubr.f32.gmra.mxu0 %v1941
      %v2374 = vpop.f32.mrf.mxu0
      %v2375 = vadd.f32 %v1901, %v2374
      %v2376 = vpop.f32.mrf.mxu0
      %v2377 = vadd.f32 %v1905, %v2376
      %2378 = vmatprep.mubr.f32.mxu0 0.0
      %2379 = vmatmul.mubr.f32.gmra.mxu0 %v1944
      %v2380 = vpop.f32.mrf.mxu0
      %v2381 = vadd.f32 %v1901, %v2380
      %v2382 = vpop.f32.mrf.mxu0
      %v2383 = vadd.f32 %v1905, %v2382
      %2384 = vmatprep.mubr.f32.mxu0 0.0
      %2385 = vmatmul.mubr.f32.gmra.mxu0 %v1947
      %v2386 = vpop.f32.mrf.mxu0
      %v2387 = vadd.f32 %v1901, %v2386
      %v2388 = vpop.f32.mrf.mxu0
      %v2389 = vadd.f32 %v1905, %v2388
      %2390 = vmatprep.mubr.f32.mxu0 0.0
      %2391 = vmatmul.mubr.f32.gmra.mxu0 %v1950
      %v2392 = vpop.f32.mrf.mxu0
      %v2393 = vadd.f32 %v1901, %v2392
      %v2394 = vpop.f32.mrf.mxu0
      %v2395 = vadd.f32 %v1905, %v2394
      %2396 = vmatprep.mubr.f32.mxu0 0.0
      %2397 = vmatmul.mubr.f32.gmra.mxu0 %v1953
      %v2398 = vpop.f32.mrf.mxu0
      %v2399 = vadd.f32 %v1901, %v2398
      %v2400 = vpop.f32.mrf.mxu0
      %v2401 = vadd.f32 %v1905, %v2400
      %2402 = vmatprep.mubr.f32.mxu0 0.0
      %2403 = vmatmul.mubr.f32.gmra.mxu0 %v1956
      %v2404 = vpop.f32.mrf.mxu0
      %v2405 = vadd.f32 %v1901, %v2404
      %v2406 = vpop.f32.mrf.mxu0
      %v2407 = vadd.f32 %v1905, %v2406
      %2408 = vmatprep.mubr.f32.mxu0 0.0
      %2409 = vmatmul.mubr.f32.gmra.mxu0 %v1959
      %v2410 = vpop.f32.mrf.mxu0
      %v2411 = vadd.f32 %v1901, %v2410
      %v2412 = vpop.f32.mrf.mxu0
      %v2413 = vadd.f32 %v1905, %v2412
      %2414 = vmatprep.mubr.f32.mxu0 0.0
      %2415 = vmatmul.mubr.f32.gmra.mxu0 %v1962
      %v2416 = vpop.f32.mrf.mxu0
      %v2417 = vadd.f32 %v1901, %v2416
      %v2418 = vpop.f32.mrf.mxu0
      %v2419 = vadd.f32 %v1905, %v2418
      %2420 = vmatprep.mubr.f32.mxu0 0.0
      %2421 = vmatmul.mubr.f32.gmra.mxu0 %v1965
      %v2422 = vpop.f32.mrf.mxu0
      %v2423 = vadd.f32 %v1901, %v2422
      %v2424 = vpop.f32.mrf.mxu0
      %v2425 = vadd.f32 %v1905, %v2424
      %2426 = vmatprep.mubr.f32.mxu0 0.0
      %2427 = vmatmul.mubr.f32.gmra.mxu0 %v1968
      %v2428 = vpop.f32.mrf.mxu0
      %v2429 = vadd.f32 %v1901, %v2428
      %v2430 = vpop.f32.mrf.mxu0
      %v2431 = vadd.f32 %v1905, %v2430
      %2432 = vmatprep.mubr.f32.mxu0 0.0
      %2433 = vmatmul.mubr.f32.gmra.mxu0 %v1971
      %v2434 = vpop.f32.mrf.mxu0
      %v2435 = vadd.f32 %v1901, %v2434
      %v2436 = vpop.f32.mrf.mxu0
      %v2437 = vadd.f32 %v1905, %v2436
      %2438 = vmatprep.mubr.f32.mxu0 0.0
      %2439 = vmatmul.mubr.f32.gmra.mxu0 %v1974
      %v2440 = vpop.f32.mrf.mxu0
      %v2441 = vadd.f32 %v1901, %v2440
      %v2442 = vpop.f32.mrf.mxu0
      %v2443 = vadd.f32 %v1905, %v2442
      %2444 = vmatprep.mubr.f32.mxu0 0.0
      %2445 = vmatmul.mubr.f32.gmra.mxu0 %v1977
      %v2446 = vpop.f32.mrf.mxu0
      %v2447 = vadd.f32 %v1901, %v2446
      %v2448 = vpop.f32.mrf.mxu0
      %v2449 = vadd.f32 %v1905, %v2448
      %2450 = vmatprep.mubr.f32.mxu0 0.0
      %2451 = vmatmul.mubr.f32.gmra.mxu0 %v1980
      %v2452 = vpop.f32.mrf.mxu0
      %v2453 = vadd.f32 %v1901, %v2452
      %v2454 = vpop.f32.mrf.mxu0
      %v2455 = vadd.f32 %v1905, %v2454
      %2456 = vmatprep.mubr.f32.mxu0 0.0
      %2457 = vmatmul.mubr.f32.gmra.mxu0 %v1983
      %v2458 = vpop.f32.mrf.mxu0
      %v2459 = vadd.f32 %v1901, %v2458
      %v2460 = vpop.f32.mrf.mxu0
      %v2461 = vadd.f32 %v1905, %v2460
      %2462 = vmatprep.mubr.f32.mxu0 0.0
      %2463 = vmatmul.mubr.f32.gmra.mxu0 %v1986
      %v2464 = vpop.f32.mrf.mxu0
      %v2465 = vadd.f32 %v1901, %v2464
      %v2466 = vpop.f32.mrf.mxu0
      %v2467 = vadd.f32 %v1905, %v2466
      %2468 = vmatprep.mubr.f32.mxu0 0.0
      %2469 = vmatmul.mubr.f32.gmra.mxu0 %v1989
      %v2470 = vpop.f32.mrf.mxu0
      %v2471 = vadd.f32 %v1901, %v2470
      %v2472 = vpop.f32.mrf.mxu0
      %v2473 = vadd.f32 %v1905, %v2472
      %2474 = vmatprep.mubr.f32.mxu0 0.0
      %2475 = vmatmul.mubr.f32.gmra.mxu0 %v1992
      %v2476 = vpop.f32.mrf.mxu0
      %v2477 = vadd.f32 %v1901, %v2476
      %v2478 = vpop.f32.mrf.mxu0
      %v2479 = vadd.f32 %v1905, %v2478
      %2480 = vmatprep.mubr.f32.mxu0 0.0
      %2481 = vmatmul.mubr.f32.gmra.mxu0 %v1995
      %v2482 = vpop.f32.mrf.mxu0
      %v2483 = vadd.f32 %v1901, %v2482
      %v2484 = vpop.f32.mrf.mxu0
      %v2485 = vadd.f32 %v1905, %v2484
      %2486 = vmatprep.mubr.f32.mxu0 0.0
      %2487 = vmatmul.mubr.f32.gmra.mxu0 %v1998
      %v2488 = vpop.f32.mrf.mxu0
      %v2489 = vadd.f32 %v1901, %v2488
      %v2490 = vpop.f32.mrf.mxu0
      %v2491 = vadd.f32 %v1905, %v2490
      %2492 = vmatprep.mubr.f32.mxu0 0.0
      %2493 = vmatmul.mubr.f32.gmra.mxu0 %v2001
      %v2494 = vpop.f32.mrf.mxu0
      %v2495 = vadd.f32 %v1901, %v2494
      %v2496 = vpop.f32.mrf.mxu0
      %v2497 = vadd.f32 %v1905, %v2496
      %2498 = vmatprep.mubr.f32.mxu0 0.0
      %2499 = vmatmul.mubr.f32.gmra.mxu0 %v2004
      %v2500 = vpop.f32.mrf.mxu0
      %v2501 = vadd.f32 %v1901, %v2500
      %v2502 = vpop.f32.mrf.mxu0
      %v2503 = vadd.f32 %v1905, %v2502
      %2504 = vmatprep.mubr.f32.mxu0 0.0
      %2505 = vmatmul.mubr.f32.gmra.mxu0 %v2007
      %v2506 = vpop.f32.mrf.mxu0
      %v2507 = vadd.f32 %v1901, %v2506
      %v2508 = vpop.f32.mrf.mxu0
      %v2509 = vadd.f32 %v1905, %v2508
      %2510 = vmatprep.mubr.f32.mxu0 0.0
      %2511 = vmatmul.mubr.f32.gmra.mxu0 %v2010
      %v2512 = vpop.f32.mrf.mxu0
      %v2513 = vadd.f32 %v1901, %v2512
      %v2514 = vpop.f32.mrf.mxu0
      %v2515 = vadd.f32 %v1905, %v2514
      %2516 = vmatprep.mubr.f32.mxu0 0.0
      %2517 = vmatmul.mubr.f32.gmra.mxu0 %v2013
      %v2518 = vpop.f32.mrf.mxu0
      %v2519 = vadd.f32 %v1901, %v2518
      %v2520 = vpop.f32.mrf.mxu0
      %v2521 = vadd.f32 %v1905, %v2520
      %2522 = vmatprep.mubr.f32.mxu0 0.0
      %2523 = vmatmul.mubr.f32.gmra.mxu0 %v2016
      %v2524 = vpop.f32.mrf.mxu0
      %v2525 = vadd.f32 %v1901, %v2524
      %v2526 = vpop.f32.mrf.mxu0
      %v2527 = vadd.f32 %v1905, %v2526
      %2528 = vmatprep.mubr.f32.mxu0 0.0
      %2529 = vmatmul.mubr.f32.gmra.mxu0 %v2019
      %v2530 = vpop.f32.mrf.mxu0
      %v2531 = vadd.f32 %v1901, %v2530
      %v2532 = vpop.f32.mrf.mxu0
      %v2533 = vadd.f32 %v1905, %v2532
      %2534 = vdwg.mxu0
      %2535 = vmatprep.subr.mxu0 0.0
      %2536 = vmatpush1.msra.mxu0 0.0
      %2537 = vmatprep.subr.mxu0 0.0
      %2538 = vmatpush1.msra.mxu0 0.0
      %2539 = vmatprep.subr.mxu0 0.0
      %2540 = vmatpush1.msra.mxu0 0.0
      %2541 = vmatprep.subr.mxu0 0.0
      %2542 = vmatpush1.msra.mxu0 0.0
      %2543 = vmatprep.subr.mxu0 0.0
      %2544 = vmatpush1.msra.mxu0 0.0
      %2545 = vmatprep.subr.mxu0 0.0
      %2546 = vmatpush1.msra.mxu0 0.0
      %2547 = vmatprep.subr.mxu0 0.0
      %2548 = vmatpush1.msra.mxu0 0.0
      %2549 = vmatprep.subr.mxu0 0.0
      %2550 = vmatpush1.msra.mxu0 0.0
      %2551 = vmatprep.subr.mxu0 0.0
      %2552 = vmatpush1.msra.mxu0 0.0
      %2553 = vmatprep.subr.mxu0 0.0
      %2554 = vmatpush1.msra.mxu0 0.0
      %2555 = vmatprep.subr.mxu0 0.0
      %2556 = vmatpush1.msra.mxu0 0.0
      %2557 = vmatprep.subr.mxu0 0.0
      %2558 = vmatpush1.msra.mxu0 0.0
      %2559 = vmatprep.subr.mxu0 %v1886
      %2560 = vmatpush1.msra.mxu0 %v1885
      %2561 = vmatprep.subr.mxu0 %v1879
      %2562 = vmatpush1.msra.mxu0 %v1878
      %2563 = vmatprep.subr.mxu0 %v1872
      %2564 = vmatpush1.msra.mxu0 %v1871
      %2565 = vmatprep.subr.mxu0 %v1865
      %2566 = vmatpush1.msra.mxu0 %v1864
      %2567 = vmatprep.subr.mxu0 0.0
      %2568 = vmatpush2.msra.mxu0 0.0
      %2569 = vmatprep.subr.mxu0 0.0
      %2570 = vmatpush2.msra.mxu0 0.0
      %2571 = vmatprep.subr.mxu0 0.0
      %2572 = vmatpush2.msra.mxu0 0.0
      %2573 = vmatprep.subr.mxu0 0.0
      %2574 = vmatpush2.msra.mxu0 0.0
      %2575 = vmatprep.subr.mxu0 0.0
      %2576 = vmatpush2.msra.mxu0 0.0
      %2577 = vmatprep.subr.mxu0 0.0
      %2578 = vmatpush2.msra.mxu0 0.0
      %2579 = vmatprep.subr.mxu0 0.0
      %2580 = vmatpush2.msra.mxu0 0.0
      %2581 = vmatprep.subr.mxu0 0.0
      %2582 = vmatpush2.msra.mxu0 0.0
      %2583 = vmatprep.subr.mxu0 0.0
      %2584 = vmatpush2.msra.mxu0 0.0
      %2585 = vmatprep.subr.mxu0 0.0
      %2586 = vmatpush2.msra.mxu0 0.0
      %2587 = vmatprep.subr.mxu0 0.0
      %2588 = vmatpush2.msra.mxu0 0.0
      %2589 = vmatprep.subr.mxu0 0.0
      %2590 = vmatpush2.msra.mxu0 0.0
      %2591 = vmatprep.subr.mxu0 0.0
      %2592 = vmatpush2.msra.mxu0 0.0
      %2593 = vmatprep.subr.mxu0 0.0
      %2594 = vmatpush2.msra.mxu0 0.0
      %2595 = vmatprep.subr.mxu0 0.0
      %2596 = vmatpush2.msra.mxu0 0.0
      %2597 = vmatprep.subr.mxu0 0.0
      %2598 = vmatpush2.msra.mxu0 0.0
      %2599 = vmatprep.mubr.f32.mxu0 0.0
      %2600 = vmatmul.mubr.f32.gmra.mxu0 %v1926
      %v2601 = vpop.f32.mrf.mxu0
      %v2602 = vadd.f32 %v1909, %v2601
      %v2603 = vpop.f32.mrf.mxu0
      %v2604 = vadd.f32 %v1913, %v2603
      %2605 = vmatprep.mubr.f32.mxu0 0.0
      %2606 = vmatmul.mubr.f32.gmra.mxu0 %v1929
      %v2607 = vpop.f32.mrf.mxu0
      %v2608 = vadd.f32 %v1909, %v2607
      %v2609 = vpop.f32.mrf.mxu0
      %v2610 = vadd.f32 %v1913, %v2609
      %2611 = vmatprep.mubr.f32.mxu0 0.0
      %2612 = vmatmul.mubr.f32.gmra.mxu0 %v1932
      %v2613 = vpop.f32.mrf.mxu0
      %v2614 = vadd.f32 %v1909, %v2613
      %v2615 = vpop.f32.mrf.mxu0
      %v2616 = vadd.f32 %v1913, %v2615
      %2617 = vmatprep.mubr.f32.mxu0 0.0
      %2618 = vmatmul.mubr.f32.gmra.mxu0 %v1935
      %v2619 = vpop.f32.mrf.mxu0
      %v2620 = vadd.f32 %v1909, %v2619
      %v2621 = vpop.f32.mrf.mxu0
      %v2622 = vadd.f32 %v1913, %v2621
      %2623 = vmatprep.mubr.f32.mxu0 0.0
      %2624 = vmatmul.mubr.f32.gmra.mxu0 %v1938
      %v2625 = vpop.f32.mrf.mxu0
      %v2626 = vadd.f32 %v1909, %v2625
      %v2627 = vpop.f32.mrf.mxu0
      %v2628 = vadd.f32 %v1913, %v2627
      %2629 = vmatprep.mubr.f32.mxu0 0.0
      %2630 = vmatmul.mubr.f32.gmra.mxu0 %v1941
      %v2631 = vpop.f32.mrf.mxu0
      %v2632 = vadd.f32 %v1909, %v2631
      %v2633 = vpop.f32.mrf.mxu0
      %v2634 = vadd.f32 %v1913, %v2633
      %2635 = vmatprep.mubr.f32.mxu0 0.0
      %2636 = vmatmul.mubr.f32.gmra.mxu0 %v1944
      %v2637 = vpop.f32.mrf.mxu0
      %v2638 = vadd.f32 %v1909, %v2637
      %v2639 = vpop.f32.mrf.mxu0
      %v2640 = vadd.f32 %v1913, %v2639
      %2641 = vmatprep.mubr.f32.mxu0 0.0
      %2642 = vmatmul.mubr.f32.gmra.mxu0 %v1947
      %v2643 = vpop.f32.mrf.mxu0
      %v2644 = vadd.f32 %v1909, %v2643
      %v2645 = vpop.f32.mrf.mxu0
      %v2646 = vadd.f32 %v1913, %v2645
      %2647 = vmatprep.mubr.f32.mxu0 0.0
      %2648 = vmatmul.mubr.f32.gmra.mxu0 %v1950
      %v2649 = vpop.f32.mrf.mxu0
      %v2650 = vadd.f32 %v1909, %v2649
      %v2651 = vpop.f32.mrf.mxu0
      %v2652 = vadd.f32 %v1913, %v2651
      %2653 = vmatprep.mubr.f32.mxu0 0.0
      %2654 = vmatmul.mubr.f32.gmra.mxu0 %v1953
      %v2655 = vpop.f32.mrf.mxu0
      %v2656 = vadd.f32 %v1909, %v2655
      %v2657 = vpop.f32.mrf.mxu0
      %v2658 = vadd.f32 %v1913, %v2657
      %2659 = vmatprep.mubr.f32.mxu0 0.0
      %2660 = vmatmul.mubr.f32.gmra.mxu0 %v1956
      %v2661 = vpop.f32.mrf.mxu0
      %v2662 = vadd.f32 %v1909, %v2661
      %v2663 = vpop.f32.mrf.mxu0
      %v2664 = vadd.f32 %v1913, %v2663
      %2665 = vmatprep.mubr.f32.mxu0 0.0
      %2666 = vmatmul.mubr.f32.gmra.mxu0 %v1959
      %v2667 = vpop.f32.mrf.mxu0
      %v2668 = vadd.f32 %v1909, %v2667
      %v2669 = vpop.f32.mrf.mxu0
      %v2670 = vadd.f32 %v1913, %v2669
      %2671 = vmatprep.mubr.f32.mxu0 0.0
      %2672 = vmatmul.mubr.f32.gmra.mxu0 %v1962
      %v2673 = vpop.f32.mrf.mxu0
      %v2674 = vadd.f32 %v1909, %v2673
      %v2675 = vpop.f32.mrf.mxu0
      %v2676 = vadd.f32 %v1913, %v2675
      %2677 = vmatprep.mubr.f32.mxu0 0.0
      %2678 = vmatmul.mubr.f32.gmra.mxu0 %v1965
      %v2679 = vpop.f32.mrf.mxu0
      %v2680 = vadd.f32 %v1909, %v2679
      %v2681 = vpop.f32.mrf.mxu0
      %v2682 = vadd.f32 %v1913, %v2681
      %2683 = vmatprep.mubr.f32.mxu0 0.0
      %2684 = vmatmul.mubr.f32.gmra.mxu0 %v1968
      %v2685 = vpop.f32.mrf.mxu0
      %v2686 = vadd.f32 %v1909, %v2685
      %v2687 = vpop.f32.mrf.mxu0
      %v2688 = vadd.f32 %v1913, %v2687
      %2689 = vmatprep.mubr.f32.mxu0 0.0
      %2690 = vmatmul.mubr.f32.gmra.mxu0 %v1971
      %v2691 = vpop.f32.mrf.mxu0
      %v2692 = vadd.f32 %v1909, %v2691
      %v2693 = vpop.f32.mrf.mxu0
      %v2694 = vadd.f32 %v1913, %v2693
      %2695 = vmatprep.mubr.f32.mxu0 0.0
      %2696 = vmatmul.mubr.f32.gmra.mxu0 %v1974
      %v2697 = vpop.f32.mrf.mxu0
      %v2698 = vadd.f32 %v1909, %v2697
      %v2699 = vpop.f32.mrf.mxu0
      %v2700 = vadd.f32 %v1913, %v2699
      %2701 = vmatprep.mubr.f32.mxu0 0.0
      %2702 = vmatmul.mubr.f32.gmra.mxu0 %v1977
      %v2703 = vpop.f32.mrf.mxu0
      %v2704 = vadd.f32 %v1909, %v2703
      %v2705 = vpop.f32.mrf.mxu0
      %v2706 = vadd.f32 %v1913, %v2705
      %2707 = vmatprep.mubr.f32.mxu0 0.0
      %2708 = vmatmul.mubr.f32.gmra.mxu0 %v1980
      %v2709 = vpop.f32.mrf.mxu0
      %v2710 = vadd.f32 %v1909, %v2709
      %v2711 = vpop.f32.mrf.mxu0
      %v2712 = vadd.f32 %v1913, %v2711
      %2713 = vmatprep.mubr.f32.mxu0 0.0
      %2714 = vmatmul.mubr.f32.gmra.mxu0 %v1983
      %v2715 = vpop.f32.mrf.mxu0
      %v2716 = vadd.f32 %v1909, %v2715
      %v2717 = vpop.f32.mrf.mxu0
      %v2718 = vadd.f32 %v1913, %v2717
      %2719 = vmatprep.mubr.f32.mxu0 0.0
      %2720 = vmatmul.mubr.f32.gmra.mxu0 %v1986
      %v2721 = vpop.f32.mrf.mxu0
      %v2722 = vadd.f32 %v1909, %v2721
      %v2723 = vpop.f32.mrf.mxu0
      %v2724 = vadd.f32 %v1913, %v2723
      %2725 = vmatprep.mubr.f32.mxu0 0.0
      %2726 = vmatmul.mubr.f32.gmra.mxu0 %v1989
      %v2727 = vpop.f32.mrf.mxu0
      %v2728 = vadd.f32 %v1909, %v2727
      %v2729 = vpop.f32.mrf.mxu0
      %v2730 = vadd.f32 %v1913, %v2729
      %2731 = vmatprep.mubr.f32.mxu0 0.0
      %2732 = vmatmul.mubr.f32.gmra.mxu0 %v1992
      %v2733 = vpop.f32.mrf.mxu0
      %v2734 = vadd.f32 %v1909, %v2733
      %v2735 = vpop.f32.mrf.mxu0
      %v2736 = vadd.f32 %v1913, %v2735
      %2737 = vmatprep.mubr.f32.mxu0 0.0
      %2738 = vmatmul.mubr.f32.gmra.mxu0 %v1995
      %v2739 = vpop.f32.mrf.mxu0
      %v2740 = vadd.f32 %v1909, %v2739
      %v2741 = vpop.f32.mrf.mxu0
      %v2742 = vadd.f32 %v1913, %v2741
      %2743 = vmatprep.mubr.f32.mxu0 0.0
      %2744 = vmatmul.mubr.f32.gmra.mxu0 %v1998
      %v2745 = vpop.f32.mrf.mxu0
      %v2746 = vadd.f32 %v1909, %v2745
      %v2747 = vpop.f32.mrf.mxu0
      %v2748 = vadd.f32 %v1913, %v2747
      %2749 = vmatprep.mubr.f32.mxu0 0.0
      %2750 = vmatmul.mubr.f32.gmra.mxu0 %v2001
      %v2751 = vpop.f32.mrf.mxu0
      %v2752 = vadd.f32 %v1909, %v2751
      %v2753 = vpop.f32.mrf.mxu0
      %v2754 = vadd.f32 %v1913, %v2753
      %2755 = vmatprep.mubr.f32.mxu0 0.0
      %2756 = vmatmul.mubr.f32.gmra.mxu0 %v2004
      %v2757 = vpop.f32.mrf.mxu0
      %v2758 = vadd.f32 %v1909, %v2757
      %v2759 = vpop.f32.mrf.mxu0
      %v2760 = vadd.f32 %v1913, %v2759
      %2761 = vmatprep.mubr.f32.mxu0 0.0
      %2762 = vmatmul.mubr.f32.gmra.mxu0 %v2007
      %v2763 = vpop.f32.mrf.mxu0
      %v2764 = vadd.f32 %v1909, %v2763
      %v2765 = vpop.f32.mrf.mxu0
      %v2766 = vadd.f32 %v1913, %v2765
      %2767 = vmatprep.mubr.f32.mxu0 0.0
      %2768 = vmatmul.mubr.f32.gmra.mxu0 %v2010
      %v2769 = vpop.f32.mrf.mxu0
      %v2770 = vadd.f32 %v1909, %v2769
      %v2771 = vpop.f32.mrf.mxu0
      %v2772 = vadd.f32 %v1913, %v2771
      %2773 = vmatprep.mubr.f32.mxu0 0.0
      %2774 = vmatmul.mubr.f32.gmra.mxu0 %v2013
      %v2775 = vpop.f32.mrf.mxu0
      %v2776 = vadd.f32 %v1909, %v2775
      %v2777 = vpop.f32.mrf.mxu0
      %v2778 = vadd.f32 %v1913, %v2777
      %2779 = vmatprep.mubr.f32.mxu0 0.0
      %2780 = vmatmul.mubr.f32.gmra.mxu0 %v2016
      %v2781 = vpop.f32.mrf.mxu0
      %v2782 = vadd.f32 %v1909, %v2781
      %v2783 = vpop.f32.mrf.mxu0
      %v2784 = vadd.f32 %v1913, %v2783
      %2785 = vmatprep.mubr.f32.mxu0 0.0
      %2786 = vmatmul.mubr.f32.gmra.mxu0 %v2019
      %v2787 = vpop.f32.mrf.mxu0
      %v2788 = vadd.f32 %v1909, %v2787
      %v2789 = vpop.f32.mrf.mxu0
      %v2790 = vadd.f32 %v1913, %v2789
      %2791 = vdwg.mxu0
      %2792 = vmatprep.subr.mxu0 0.0
      %2793 = vmatpush1.msra.mxu0 0.0
      %2794 = vmatprep.subr.mxu0 0.0
      %2795 = vmatpush1.msra.mxu0 0.0
      %2796 = vmatprep.subr.mxu0 0.0
      %2797 = vmatpush1.msra.mxu0 0.0
      %2798 = vmatprep.subr.mxu0 0.0
      %2799 = vmatpush1.msra.mxu0 0.0
      %2800 = vmatprep.subr.mxu0 0.0
      %2801 = vmatpush1.msra.mxu0 0.0
      %2802 = vmatprep.subr.mxu0 0.0
      %2803 = vmatpush1.msra.mxu0 0.0
      %2804 = vmatprep.subr.mxu0 0.0
      %2805 = vmatpush1.msra.mxu0 0.0
      %2806 = vmatprep.subr.mxu0 0.0
      %2807 = vmatpush1.msra.mxu0 0.0
      %2808 = vmatprep.subr.mxu0 0.0
      %2809 = vmatpush1.msra.mxu0 0.0
      %2810 = vmatprep.subr.mxu0 0.0
      %2811 = vmatpush1.msra.mxu0 0.0
      %2812 = vmatprep.subr.mxu0 0.0
      %2813 = vmatpush1.msra.mxu0 0.0
      %2814 = vmatprep.subr.mxu0 0.0
      %2815 = vmatpush1.msra.mxu0 0.0
      %2816 = vmatprep.subr.mxu0 0.0
      %2817 = vmatpush1.msra.mxu0 %v1887
      %2818 = vmatprep.subr.mxu0 0.0
      %2819 = vmatpush1.msra.mxu0 %v1880
      %2820 = vmatprep.subr.mxu0 0.0
      %2821 = vmatpush1.msra.mxu0 %v1873
      %2822 = vmatprep.subr.mxu0 0.0
      %2823 = vmatpush1.msra.mxu0 %v1866
      %2824 = vmatprep.subr.mxu0 0.0
      %2825 = vmatpush2.msra.mxu0 0.0
      %2826 = vmatprep.subr.mxu0 0.0
      %2827 = vmatpush2.msra.mxu0 0.0
      %2828 = vmatprep.subr.mxu0 0.0
      %2829 = vmatpush2.msra.mxu0 0.0
      %2830 = vmatprep.subr.mxu0 0.0
      %2831 = vmatpush2.msra.mxu0 0.0
      %2832 = vmatprep.subr.mxu0 0.0
      %2833 = vmatpush2.msra.mxu0 0.0
      %2834 = vmatprep.subr.mxu0 0.0
      %2835 = vmatpush2.msra.mxu0 0.0
      %2836 = vmatprep.subr.mxu0 0.0
      %2837 = vmatpush2.msra.mxu0 0.0
      %2838 = vmatprep.subr.mxu0 0.0
      %2839 = vmatpush2.msra.mxu0 0.0
      %2840 = vmatprep.subr.mxu0 0.0
      %2841 = vmatpush2.msra.mxu0 0.0
      %2842 = vmatprep.subr.mxu0 0.0
      %2843 = vmatpush2.msra.mxu0 0.0
      %2844 = vmatprep.subr.mxu0 0.0
      %2845 = vmatpush2.msra.mxu0 0.0
      %2846 = vmatprep.subr.mxu0 0.0
      %2847 = vmatpush2.msra.mxu0 0.0
      %2848 = vmatprep.subr.mxu0 0.0
      %2849 = vmatpush2.msra.mxu0 0.0
      %2850 = vmatprep.subr.mxu0 0.0
      %2851 = vmatpush2.msra.mxu0 0.0
      %2852 = vmatprep.subr.mxu0 0.0
      %2853 = vmatpush2.msra.mxu0 0.0
      %2854 = vmatprep.subr.mxu0 0.0
      %2855 = vmatpush2.msra.mxu0 0.0
      %2856 = vmatprep.mubr.f32.mxu0 0.0
      %2857 = vmatmul.mubr.f32.gmra.mxu0 %v1926
      %v2858 = vpop.f32.mrf.mxu0
      %v2859 = vadd.f32 %v1917, %v2858
      %v2860 = vpop.f32.mrf.mxu0
      %2861 = vmatprep.mubr.f32.mxu0 0.0
      %2862 = vmatmul.mubr.f32.gmra.mxu0 %v1929
      %v2863 = vpop.f32.mrf.mxu0
      %v2864 = vadd.f32 %v1917, %v2863
      %v2865 = vpop.f32.mrf.mxu0
      %2866 = vmatprep.mubr.f32.mxu0 0.0
      %2867 = vmatmul.mubr.f32.gmra.mxu0 %v1932
      %v2868 = vpop.f32.mrf.mxu0
      %v2869 = vadd.f32 %v1917, %v2868
      %v2870 = vpop.f32.mrf.mxu0
      %2871 = vmatprep.mubr.f32.mxu0 0.0
      %2872 = vmatmul.mubr.f32.gmra.mxu0 %v1935
      %v2873 = vpop.f32.mrf.mxu0
      %v2874 = vadd.f32 %v1917, %v2873
      %v2875 = vpop.f32.mrf.mxu0
      %2876 = vmatprep.mubr.f32.mxu0 0.0
      %2877 = vmatmul.mubr.f32.gmra.mxu0 %v1938
      %v2878 = vpop.f32.mrf.mxu0
      %v2879 = vadd.f32 %v1917, %v2878
      %v2880 = vpop.f32.mrf.mxu0
      %2881 = vmatprep.mubr.f32.mxu0 0.0
      %2882 = vmatmul.mubr.f32.gmra.mxu0 %v1941
      %v2883 = vpop.f32.mrf.mxu0
      %v2884 = vadd.f32 %v1917, %v2883
      %v2885 = vpop.f32.mrf.mxu0
      %2886 = vmatprep.mubr.f32.mxu0 0.0
      %2887 = vmatmul.mubr.f32.gmra.mxu0 %v1944
      %v2888 = vpop.f32.mrf.mxu0
      %v2889 = vadd.f32 %v1917, %v2888
      %v2890 = vpop.f32.mrf.mxu0
      %2891 = vmatprep.mubr.f32.mxu0 0.0
      %2892 = vmatmul.mubr.f32.gmra.mxu0 %v1947
      %v2893 = vpop.f32.mrf.mxu0
      %v2894 = vadd.f32 %v1917, %v2893
      %v2895 = vpop.f32.mrf.mxu0
      %2896 = vmatprep.mubr.f32.mxu0 0.0
      %2897 = vmatmul.mubr.f32.gmra.mxu0 %v1950
      %v2898 = vpop.f32.mrf.mxu0
      %v2899 = vadd.f32 %v1917, %v2898
      %v2900 = vpop.f32.mrf.mxu0
      %2901 = vmatprep.mubr.f32.mxu0 0.0
      %2902 = vmatmul.mubr.f32.gmra.mxu0 %v1953
      %v2903 = vpop.f32.mrf.mxu0
      %v2904 = vadd.f32 %v1917, %v2903
      %v2905 = vpop.f32.mrf.mxu0
      %2906 = vmatprep.mubr.f32.mxu0 0.0
      %2907 = vmatmul.mubr.f32.gmra.mxu0 %v1956
      %v2908 = vpop.f32.mrf.mxu0
      %v2909 = vadd.f32 %v1917, %v2908
      %v2910 = vpop.f32.mrf.mxu0
      %2911 = vmatprep.mubr.f32.mxu0 0.0
      %2912 = vmatmul.mubr.f32.gmra.mxu0 %v1959
      %v2913 = vpop.f32.mrf.mxu0
      %v2914 = vadd.f32 %v1917, %v2913
      %v2915 = vpop.f32.mrf.mxu0
      %2916 = vmatprep.mubr.f32.mxu0 0.0
      %2917 = vmatmul.mubr.f32.gmra.mxu0 %v1962
      %v2918 = vpop.f32.mrf.mxu0
      %v2919 = vadd.f32 %v1917, %v2918
      %v2920 = vpop.f32.mrf.mxu0
      %2921 = vmatprep.mubr.f32.mxu0 0.0
      %2922 = vmatmul.mubr.f32.gmra.mxu0 %v1965
      %v2923 = vpop.f32.mrf.mxu0
      %v2924 = vadd.f32 %v1917, %v2923
      %v2925 = vpop.f32.mrf.mxu0
      %2926 = vmatprep.mubr.f32.mxu0 0.0
      %2927 = vmatmul.mubr.f32.gmra.mxu0 %v1968
      %v2928 = vpop.f32.mrf.mxu0
      %v2929 = vadd.f32 %v1917, %v2928
      %v2930 = vpop.f32.mrf.mxu0
      %2931 = vmatprep.mubr.f32.mxu0 0.0
      %2932 = vmatmul.mubr.f32.gmra.mxu0 %v1971
      %v2933 = vpop.f32.mrf.mxu0
      %v2934 = vadd.f32 %v1917, %v2933
      %v2935 = vpop.f32.mrf.mxu0
      %2936 = vmatprep.mubr.f32.mxu0 0.0
      %2937 = vmatmul.mubr.f32.gmra.mxu0 %v1974
      %v2938 = vpop.f32.mrf.mxu0
      %v2939 = vadd.f32 %v1917, %v2938
      %v2940 = vpop.f32.mrf.mxu0
      %2941 = vmatprep.mubr.f32.mxu0 0.0
      %2942 = vmatmul.mubr.f32.gmra.mxu0 %v1977
      %v2943 = vpop.f32.mrf.mxu0
      %v2944 = vadd.f32 %v1917, %v2943
      %v2945 = vpop.f32.mrf.mxu0
      %2946 = vmatprep.mubr.f32.mxu0 0.0
      %2947 = vmatmul.mubr.f32.gmra.mxu0 %v1980
      %v2948 = vpop.f32.mrf.mxu0
      %v2949 = vadd.f32 %v1917, %v2948
      %v2950 = vpop.f32.mrf.mxu0
      %2951 = vmatprep.mubr.f32.mxu0 0.0
      %2952 = vmatmul.mubr.f32.gmra.mxu0 %v1983
      %v2953 = vpop.f32.mrf.mxu0
      %v2954 = vadd.f32 %v1917, %v2953
      %v2955 = vpop.f32.mrf.mxu0
      %2956 = vmatprep.mubr.f32.mxu0 0.0
      %2957 = vmatmul.mubr.f32.gmra.mxu0 %v1986
      %v2958 = vpop.f32.mrf.mxu0
      %v2959 = vadd.f32 %v1917, %v2958
      %v2960 = vpop.f32.mrf.mxu0
      %2961 = vmatprep.mubr.f32.mxu0 0.0
      %2962 = vmatmul.mubr.f32.gmra.mxu0 %v1989
      %v2963 = vpop.f32.mrf.mxu0
      %v2964 = vadd.f32 %v1917, %v2963
      %v2965 = vpop.f32.mrf.mxu0
      %2966 = vmatprep.mubr.f32.mxu0 0.0
      %2967 = vmatmul.mubr.f32.gmra.mxu0 %v1992
      %v2968 = vpop.f32.mrf.mxu0
      %v2969 = vadd.f32 %v1917, %v2968
      %v2970 = vpop.f32.mrf.mxu0
      %2971 = vmatprep.mubr.f32.mxu0 0.0
      %2972 = vmatmul.mubr.f32.gmra.mxu0 %v1995
      %v2973 = vpop.f32.mrf.mxu0
      %v2974 = vadd.f32 %v1917, %v2973
      %v2975 = vpop.f32.mrf.mxu0
      %2976 = vmatprep.mubr.f32.mxu0 0.0
      %2977 = vmatmul.mubr.f32.gmra.mxu0 %v1998
      %v2978 = vpop.f32.mrf.mxu0
      %v2979 = vadd.f32 %v1917, %v2978
      %v2980 = vpop.f32.mrf.mxu0
      %2981 = vmatprep.mubr.f32.mxu0 0.0
      %2982 = vmatmul.mubr.f32.gmra.mxu0 %v2001
      %v2983 = vpop.f32.mrf.mxu0
      %v2984 = vadd.f32 %v1917, %v2983
      %v2985 = vpop.f32.mrf.mxu0
      %2986 = vmatprep.mubr.f32.mxu0 0.0
      %2987 = vmatmul.mubr.f32.gmra.mxu0 %v2004
      %v2988 = vpop.f32.mrf.mxu0
      %v2989 = vadd.f32 %v1917, %v2988
      %v2990 = vpop.f32.mrf.mxu0
      %2991 = vmatprep.mubr.f32.mxu0 0.0
      %2992 = vmatmul.mubr.f32.gmra.mxu0 %v2007
      %v2993 = vpop.f32.mrf.mxu0
      %v2994 = vadd.f32 %v1917, %v2993
      %v2995 = vpop.f32.mrf.mxu0
      %2996 = vmatprep.mubr.f32.mxu0 0.0
      %2997 = vmatmul.mubr.f32.gmra.mxu0 %v2010
      %v2998 = vpop.f32.mrf.mxu0
      %v2999 = vadd.f32 %v1917, %v2998
      %v3000 = vpop.f32.mrf.mxu0
      %3001 = vmatprep.mubr.f32.mxu0 0.0
      %3002 = vmatmul.mubr.f32.gmra.mxu0 %v2013
      %v3003 = vpop.f32.mrf.mxu0
      %v3004 = vadd.f32 %v1917, %v3003
      %v3005 = vpop.f32.mrf.mxu0
      %3006 = vmatprep.mubr.f32.mxu0 0.0
      %3007 = vmatmul.mubr.f32.gmra.mxu0 %v2016
      %v3008 = vpop.f32.mrf.mxu0
      %v3009 = vadd.f32 %v1917, %v3008
      %v3010 = vpop.f32.mrf.mxu0
      %3011 = vmatprep.mubr.f32.mxu0 0.0
      %3012 = vmatmul.mubr.f32.gmra.mxu0 %v2019
      %v3013 = vpop.f32.mrf.mxu0
      %v3014 = vadd.f32 %v1917, %v3013
      %v3015 = vpop.f32.mrf.mxu0
      %3016 = vdwg.mxu0
      %3017 = vrot.lane.b32.xlu0 %v444, 32
      %v3018 = vpop.permute.xlu0 %3017
      %3019 = vrot.lane.b32.xlu0 %v445, 32
      %v3020 = vpop.permute.xlu0 %3019
      %3021 = vrot.lane.b32.xlu0 %v446, 32
      %v3022 = vpop.permute.xlu0 %3021
      %3023 = vrot.lane.b32.xlu0 %v447, 32
      %v3024 = vpop.permute.xlu0 %3023
      %3025 = vrot.lane.b32.xlu0 %v448, 32
      %v3026 = vpop.permute.xlu0 %3025
      %3027 = vrot.lane.b32.xlu0 %v449, 32
      %v3028 = vpop.permute.xlu0 %3027
      %3029 = vrot.lane.b32.xlu0 %v450, 32
      %v3030 = vpop.permute.xlu0 %3029
      %3031 = vrot.lane.b32.xlu0 %v451, 32
      %v3032 = vpop.permute.xlu0 %3031
      %3033 = vrot.lane.b32.xlu0 %v452, 32
      %v3034 = vpop.permute.xlu0 %3033
      %3035 = vrot.lane.b32.xlu0 %v453, 32
      %v3036 = vpop.permute.xlu0 %3035
      %3037 = vrot.lane.b32.xlu0 %v454, 32
      %v3038 = vpop.permute.xlu0 %3037
      %3039 = vrot.lane.b32.xlu0 %v455, 32
      %v3040 = vpop.permute.xlu0 %3039
      %3041 = vrot.lane.b32.xlu0 %v456, 32
      %v3042 = vpop.permute.xlu0 %3041
      %3043 = vrot.lane.b32.xlu0 %v457, 32
      %v3044 = vpop.permute.xlu0 %3043
      %3045 = vrot.lane.b32.xlu0 %v458, 32
      %v3046 = vpop.permute.xlu0 %3045
      %3047 = vrot.lane.b32.xlu0 %v459, 32
      %v3048 = vpop.permute.xlu0 %3047
      %3049 = vrot.lane.b32.xlu0 %v460, 32
      %v3050 = vpop.permute.xlu0 %3049
      %3051 = vrot.lane.b32.xlu0 %v461, 32
      %v3052 = vpop.permute.xlu0 %3051
      %3053 = vrot.lane.b32.xlu0 %v462, 32
      %v3054 = vpop.permute.xlu0 %3053
      %3055 = vrot.lane.b32.xlu0 %v463, 32
      %v3056 = vpop.permute.xlu0 %3055
      %3057 = vrot.lane.b32.xlu0 %v464, 32
      %v3058 = vpop.permute.xlu0 %3057
      %3059 = vrot.lane.b32.xlu0 %v465, 32
      %v3060 = vpop.permute.xlu0 %3059
      %3061 = vrot.lane.b32.xlu0 %v466, 32
      %v3062 = vpop.permute.xlu0 %3061
      %3063 = vrot.lane.b32.xlu0 %v467, 32
      %v3064 = vpop.permute.xlu0 %3063
      %3065 = vrot.lane.b32.xlu0 %v468, 32
      %v3066 = vpop.permute.xlu0 %3065
      %3067 = vrot.lane.b32.xlu0 %v469, 32
      %v3068 = vpop.permute.xlu0 %3067
      %3069 = vrot.lane.b32.xlu0 %v470, 32
      %v3070 = vpop.permute.xlu0 %3069
      %3071 = vrot.lane.b32.xlu0 %v471, 32
      %v3072 = vpop.permute.xlu0 %3071
      %3073 = vrot.lane.b32.xlu0 %v472, 32
      %v3074 = vpop.permute.xlu0 %3073
      %3075 = vrot.lane.b32.xlu0 %v473, 32
      %v3076 = vpop.permute.xlu0 %3075
      %3077 = vrot.lane.b32.xlu0 %v474, 32
      %v3078 = vpop.permute.xlu0 %3077
      %3079 = vrot.lane.b32.xlu0 %v475, 32
      %v3080 = vpop.permute.xlu0 %3079
      %3113 = vrot.lane.b32.xlu0 %v444, 64
      %v3114 = vpop.permute.xlu0 %3113
      %3115 = vrot.lane.b32.xlu0 %v445, 64
      %v3116 = vpop.permute.xlu0 %3115
      %3117 = vrot.lane.b32.xlu0 %v446, 64
      %v3118 = vpop.permute.xlu0 %3117
      %3119 = vrot.lane.b32.xlu0 %v447, 64
      %v3120 = vpop.permute.xlu0 %3119
      %3121 = vrot.lane.b32.xlu0 %v448, 64
      %v3122 = vpop.permute.xlu0 %3121
      %3123 = vrot.lane.b32.xlu0 %v449, 64
      %v3124 = vpop.permute.xlu0 %3123
      %3125 = vrot.lane.b32.xlu0 %v450, 64
      %v3126 = vpop.permute.xlu0 %3125
      %3127 = vrot.lane.b32.xlu0 %v451, 64
      %v3128 = vpop.permute.xlu0 %3127
      %3129 = vrot.lane.b32.xlu0 %v452, 64
      %v3130 = vpop.permute.xlu0 %3129
      %3131 = vrot.lane.b32.xlu0 %v453, 64
      %v3132 = vpop.permute.xlu0 %3131
      %3133 = vrot.lane.b32.xlu0 %v454, 64
      %v3134 = vpop.permute.xlu0 %3133
      %3135 = vrot.lane.b32.xlu0 %v455, 64
      %v3136 = vpop.permute.xlu0 %3135
      %3137 = vrot.lane.b32.xlu0 %v456, 64
      %v3138 = vpop.permute.xlu0 %3137
      %3139 = vrot.lane.b32.xlu0 %v457, 64
      %v3140 = vpop.permute.xlu0 %3139
      %3141 = vrot.lane.b32.xlu0 %v458, 64
      %v3142 = vpop.permute.xlu0 %3141
      %3143 = vrot.lane.b32.xlu0 %v459, 64
      %v3144 = vpop.permute.xlu0 %3143
      %3145 = vrot.lane.b32.xlu0 %v460, 64
      %v3146 = vpop.permute.xlu0 %3145
      %3147 = vrot.lane.b32.xlu0 %v461, 64
      %v3148 = vpop.permute.xlu0 %3147
      %3149 = vrot.lane.b32.xlu0 %v462, 64
      %v3150 = vpop.permute.xlu0 %3149
      %3151 = vrot.lane.b32.xlu0 %v463, 64
      %v3152 = vpop.permute.xlu0 %3151
      %3153 = vrot.lane.b32.xlu0 %v464, 64
      %v3154 = vpop.permute.xlu0 %3153
      %3155 = vrot.lane.b32.xlu0 %v465, 64
      %v3156 = vpop.permute.xlu0 %3155
      %3157 = vrot.lane.b32.xlu0 %v466, 64
      %v3158 = vpop.permute.xlu0 %3157
      %3159 = vrot.lane.b32.xlu0 %v467, 64
      %v3160 = vpop.permute.xlu0 %3159
      %3161 = vrot.lane.b32.xlu0 %v468, 64
      %v3162 = vpop.permute.xlu0 %3161
      %3163 = vrot.lane.b32.xlu0 %v469, 64
      %v3164 = vpop.permute.xlu0 %3163
      %3165 = vrot.lane.b32.xlu0 %v470, 64
      %v3166 = vpop.permute.xlu0 %3165
      %3167 = vrot.lane.b32.xlu0 %v471, 64
      %v3168 = vpop.permute.xlu0 %3167
      %3169 = vrot.lane.b32.xlu0 %v472, 64
      %v3170 = vpop.permute.xlu0 %3169
      %3171 = vrot.lane.b32.xlu0 %v473, 64
      %v3172 = vpop.permute.xlu0 %3171
      %3173 = vrot.lane.b32.xlu0 %v474, 64
      %v3174 = vpop.permute.xlu0 %3173
      %3175 = vrot.lane.b32.xlu0 %v475, 64
      %v3176 = vpop.permute.xlu0 %3175
      %3209 = vrot.lane.b32.xlu0 %v444, 96
      %v3210 = vpop.permute.xlu0 %3209
      %3211 = vrot.lane.b32.xlu0 %v445, 96
      %v3212 = vpop.permute.xlu0 %3211
      %3213 = vrot.lane.b32.xlu0 %v446, 96
      %v3214 = vpop.permute.xlu0 %3213
      %3215 = vrot.lane.b32.xlu0 %v447, 96
      %v3216 = vpop.permute.xlu0 %3215
      %3217 = vrot.lane.b32.xlu0 %v448, 96
      %v3218 = vpop.permute.xlu0 %3217
      %3219 = vrot.lane.b32.xlu0 %v449, 96
      %v3220 = vpop.permute.xlu0 %3219
      %3221 = vrot.lane.b32.xlu0 %v450, 96
      %v3222 = vpop.permute.xlu0 %3221
      %3223 = vrot.lane.b32.xlu0 %v451, 96
      %v3224 = vpop.permute.xlu0 %3223
      %3225 = vrot.lane.b32.xlu0 %v452, 96
      %v3226 = vpop.permute.xlu0 %3225
      %3227 = vrot.lane.b32.xlu0 %v453, 96
      %v3228 = vpop.permute.xlu0 %3227
      %3229 = vrot.lane.b32.xlu0 %v454, 96
      %v3230 = vpop.permute.xlu0 %3229
      %3231 = vrot.lane.b32.xlu0 %v455, 96
      %v3232 = vpop.permute.xlu0 %3231
      %3233 = vrot.lane.b32.xlu0 %v456, 96
      %v3234 = vpop.permute.xlu0 %3233
      %3235 = vrot.lane.b32.xlu0 %v457, 96
      %v3236 = vpop.permute.xlu0 %3235
      %3237 = vrot.lane.b32.xlu0 %v458, 96
      %v3238 = vpop.permute.xlu0 %3237
      %3239 = vrot.lane.b32.xlu0 %v459, 96
      %v3240 = vpop.permute.xlu0 %3239
      %3241 = vrot.lane.b32.xlu0 %v460, 96
      %v3242 = vpop.permute.xlu0 %3241
      %3243 = vrot.lane.b32.xlu0 %v461, 96
      %v3244 = vpop.permute.xlu0 %3243
      %3245 = vrot.lane.b32.xlu0 %v462, 96
      %v3246 = vpop.permute.xlu0 %3245
      %3247 = vrot.lane.b32.xlu0 %v463, 96
      %v3248 = vpop.permute.xlu0 %3247
      %3249 = vrot.lane.b32.xlu0 %v464, 96
      %v3250 = vpop.permute.xlu0 %3249
      %3251 = vrot.lane.b32.xlu0 %v465, 96
      %v3252 = vpop.permute.xlu0 %3251
      %3253 = vrot.lane.b32.xlu0 %v466, 96
      %v3254 = vpop.permute.xlu0 %3253
      %3255 = vrot.lane.b32.xlu0 %v467, 96
      %v3256 = vpop.permute.xlu0 %3255
      %3257 = vrot.lane.b32.xlu0 %v468, 96
      %v3258 = vpop.permute.xlu0 %3257
      %3259 = vrot.lane.b32.xlu0 %v469, 96
      %v3260 = vpop.permute.xlu0 %3259
      %3261 = vrot.lane.b32.xlu0 %v470, 96
      %v3262 = vpop.permute.xlu0 %3261
      %3263 = vrot.lane.b32.xlu0 %v471, 96
      %v3264 = vpop.permute.xlu0 %3263
      %3265 = vrot.lane.b32.xlu0 %v472, 96
      %v3266 = vpop.permute.xlu0 %3265
      %3267 = vrot.lane.b32.xlu0 %v473, 96
      %v3268 = vpop.permute.xlu0 %3267
      %3269 = vrot.lane.b32.xlu0 %v474, 96
      %v3270 = vpop.permute.xlu0 %3269
      %3271 = vrot.lane.b32.xlu0 %v475, 96
      %v3272 = vpop.permute.xlu0 %3271
      %v3305 = vsel %vm480, %v444, %v3018
      %v3306 = vsel %vm480, %v445, %v3020
      %v3307 = vsel %vm480, %v446, %v3022
      %v3308 = vsel %vm480, %v447, %v3024
      %v3309 = vsel %vm480, %v448, %v3026
      %v3310 = vsel %vm480, %v449, %v3028
      %v3311 = vsel %vm480, %v450, %v3030
      %v3312 = vsel %vm480, %v451, %v3032
      %v3313 = vsel %vm480, %v452, %v3034
      %v3314 = vsel %vm480, %v453, %v3036
      %v3315 = vsel %vm480, %v454, %v3038
      %v3316 = vsel %vm480, %v455, %v3040
      %v3317 = vsel %vm480, %v456, %v3042
      %v3318 = vsel %vm480, %v457, %v3044
      %v3319 = vsel %vm480, %v458, %v3046
      %v3320 = vsel %vm480, %v459, %v3048
      %v3321 = vsel %vm480, %v460, %v3050
      %v3322 = vsel %vm480, %v461, %v3052
      %v3323 = vsel %vm480, %v462, %v3054
      %v3324 = vsel %vm480, %v463, %v3056
      %v3325 = vsel %vm480, %v464, %v3058
      %v3326 = vsel %vm480, %v465, %v3060
      %v3327 = vsel %vm480, %v466, %v3062
      %v3328 = vsel %vm480, %v467, %v3064
      %v3329 = vsel %vm480, %v468, %v3066
      %v3330 = vsel %vm480, %v469, %v3068
      %v3331 = vsel %vm480, %v470, %v3070
      %v3332 = vsel %vm480, %v471, %v3072
      %v3333 = vsel %vm480, %v472, %v3074
      %v3334 = vsel %vm480, %v473, %v3076
      %v3335 = vsel %vm480, %v474, %v3078
      %v3336 = vsel %vm480, %v475, %v3080
      %vm3337 = vcmask 523264
      %v3338 = vsel %vm3337, %v3305, %v3114
      %v3339 = vsel %vm3337, %v3306, %v3116
      %v3340 = vsel %vm3337, %v3307, %v3118
      %v3341 = vsel %vm3337, %v3308, %v3120
      %v3342 = vsel %vm3337, %v3309, %v3122
      %v3343 = vsel %vm3337, %v3310, %v3124
      %v3344 = vsel %vm3337, %v3311, %v3126
      %v3345 = vsel %vm3337, %v3312, %v3128
      %v3346 = vsel %vm3337, %v3313, %v3130
      %v3347 = vsel %vm3337, %v3314, %v3132
      %v3348 = vsel %vm3337, %v3315, %v3134
      %v3349 = vsel %vm3337, %v3316, %v3136
      %v3350 = vsel %vm3337, %v3317, %v3138
      %v3351 = vsel %vm3337, %v3318, %v3140
      %v3352 = vsel %vm3337, %v3319, %v3142
      %v3353 = vsel %vm3337, %v3320, %v3144
      %v3354 = vsel %vm3337, %v3321, %v3146
      %v3355 = vsel %vm3337, %v3322, %v3148
      %v3356 = vsel %vm3337, %v3323, %v3150
      %v3357 = vsel %vm3337, %v3324, %v3152
      %v3358 = vsel %vm3337, %v3325, %v3154
      %v3359 = vsel %vm3337, %v3326, %v3156
      %v3360 = vsel %vm3337, %v3327, %v3158
      %v3361 = vsel %vm3337, %v3328, %v3160
      %v3362 = vsel %vm3337, %v3329, %v3162
      %v3363 = vsel %vm3337, %v3330, %v3164
      %v3364 = vsel %vm3337, %v3331, %v3166
      %v3365 = vsel %vm3337, %v3332, %v3168
      %v3366 = vsel %vm3337, %v3333, %v3170
      %v3367 = vsel %vm3337, %v3334, %v3172
      %v3368 = vsel %vm3337, %v3335, %v3174
      %v3369 = vsel %vm3337, %v3336, %v3176
      %vm3370 = vcmask 785408
      %v3371 = vsel %vm3370, %v3338, %v3210
      %v3372 = vsel %vm3370, %v3339, %v3212
      %v3373 = vsel %vm3370, %v3340, %v3214
      %v3374 = vsel %vm3370, %v3341, %v3216
      %v3375 = vsel %vm3370, %v3342, %v3218
      %v3376 = vsel %vm3370, %v3343, %v3220
      %v3377 = vsel %vm3370, %v3344, %v3222
      %v3378 = vsel %vm3370, %v3345, %v3224
      %v3379 = vsel %vm3370, %v3346, %v3226
      %v3380 = vsel %vm3370, %v3347, %v3228
      %v3381 = vsel %vm3370, %v3348, %v3230
      %v3382 = vsel %vm3370, %v3349, %v3232
      %v3383 = vsel %vm3370, %v3350, %v3234
      %v3384 = vsel %vm3370, %v3351, %v3236
      %v3385 = vsel %vm3370, %v3352, %v3238
      %v3386 = vsel %vm3370, %v3353, %v3240
      %v3387 = vsel %vm3370, %v3354, %v3242
      %v3388 = vsel %vm3370, %v3355, %v3244
      %v3389 = vsel %vm3370, %v3356, %v3246
      %v3390 = vsel %vm3370, %v3357, %v3248
      %v3391 = vsel %vm3370, %v3358, %v3250
      %v3392 = vsel %vm3370, %v3359, %v3252
      %v3393 = vsel %vm3370, %v3360, %v3254
      %v3394 = vsel %vm3370, %v3361, %v3256
      %v3395 = vsel %vm3370, %v3362, %v3258
      %v3396 = vsel %vm3370, %v3363, %v3260
      %v3397 = vsel %vm3370, %v3364, %v3262
      %v3398 = vsel %vm3370, %v3365, %v3264
      %v3399 = vsel %vm3370, %v3366, %v3266
      %v3400 = vsel %vm3370, %v3367, %v3268
      %v3401 = vsel %vm3370, %v3368, %v3270
      %v3402 = vsel %vm3370, %v3369, %v3272
      %v3403 = vmul.f32 %v2088, %v3371
      %v3404 = vmul.f32 %v2094, %v3372
      %v3405 = vmul.f32 %v2100, %v3373
      %v3406 = vmul.f32 %v2106, %v3374
      %v3407 = vmul.f32 %v2112, %v3375
      %v3408 = vmul.f32 %v2118, %v3376
      %v3409 = vmul.f32 %v2124, %v3377
      %v3410 = vmul.f32 %v2130, %v3378
      %v3411 = vmul.f32 %v2136, %v3379
      %v3412 = vmul.f32 %v2142, %v3380
      %v3413 = vmul.f32 %v2148, %v3381
      %v3414 = vmul.f32 %v2154, %v3382
      %v3415 = vmul.f32 %v2160, %v3383
      %v3416 = vmul.f32 %v2166, %v3384
      %v3417 = vmul.f32 %v2172, %v3385
      %v3418 = vmul.f32 %v2178, %v3386
      %v3419 = vmul.f32 %v2184, %v3387
      %v3420 = vmul.f32 %v2190, %v3388
      %v3421 = vmul.f32 %v2196, %v3389
      %v3422 = vmul.f32 %v2202, %v3390
      %v3423 = vmul.f32 %v2208, %v3391
      %v3424 = vmul.f32 %v2214, %v3392
      %v3425 = vmul.f32 %v2220, %v3393
      %v3426 = vmul.f32 %v2226, %v3394
      %v3427 = vmul.f32 %v2232, %v3395
      %v3428 = vmul.f32 %v2238, %v3396
      %v3429 = vmul.f32 %v2244, %v3397
      %v3430 = vmul.f32 %v2250, %v3398
      %v3431 = vmul.f32 %v2256, %v3399
      %v3432 = vmul.f32 %v2262, %v3400
      %v3433 = vmul.f32 %v2268, %v3401
      %v3434 = vmul.f32 %v2274, %v3402
      %v3435 = vld [vmem:[%s11] sm:$0xff]
      %v3436 = vld [vmem:[%s11 + $0x8] sm:$0xff]
      %v3437 = vld [vmem:[%s11 + $0x10] sm:$0xff]
      %v3438 = vld [vmem:[%s11 + $0x18] sm:$0xff]
      %v3439 = vld [vmem:[%s11 + $0x20] sm:$0xff]
      %v3440 = vld [vmem:[%s11 + $0x28] sm:$0xff]
      %v3441 = vld [vmem:[%s11 + $0x30] sm:$0xff]
      %v3442 = vld [vmem:[%s11 + $0x38] sm:$0xff]
      %v3443 = vld [vmem:[%s11 + $0x40] sm:$0xff]
      %v3444 = vld [vmem:[%s11 + $0x48] sm:$0xff]
      %v3445 = vld [vmem:[%s11 + $0x50] sm:$0xff]
      %v3446 = vld [vmem:[%s11 + $0x58] sm:$0xff]
      %v3447 = vld [vmem:[%s11 + $0x60] sm:$0xff]
      %v3448 = vld [vmem:[%s11 + $0x68] sm:$0xff]
      %v3449 = vld [vmem:[%s11 + $0x70] sm:$0xff]
      %v3450 = vld [vmem:[%s11 + $0x78] sm:$0xff]
      %3451 = vmatprep.subr.mxu0 0.0
      %3452 = vmatpush1.msra.mxu0 %v3450
      %3453 = vmatprep.subr.mxu0 0.0
      %3454 = vmatpush1.msra.mxu0 %v3449
      %3455 = vmatprep.subr.mxu0 0.0
      %3456 = vmatpush1.msra.mxu0 %v3448
      %3457 = vmatprep.subr.mxu0 0.0
      %3458 = vmatpush1.msra.mxu0 %v3447
      %3459 = vmatprep.subr.mxu0 0.0
      %3460 = vmatpush1.msra.mxu0 %v3446
      %3461 = vmatprep.subr.mxu0 0.0
      %3462 = vmatpush1.msra.mxu0 %v3445
      %3463 = vmatprep.subr.mxu0 0.0
      %3464 = vmatpush1.msra.mxu0 %v3444
      %3465 = vmatprep.subr.mxu0 0.0
      %3466 = vmatpush1.msra.mxu0 %v3443
      %3467 = vmatprep.subr.mxu0 0.0
      %3468 = vmatpush1.msra.mxu0 %v3442
      %3469 = vmatprep.subr.mxu0 0.0
      %3470 = vmatpush1.msra.mxu0 %v3441
      %3471 = vmatprep.subr.mxu0 0.0
      %3472 = vmatpush1.msra.mxu0 %v3440
      %3473 = vmatprep.subr.mxu0 0.0
      %3474 = vmatpush1.msra.mxu0 %v3439
      %3475 = vmatprep.subr.mxu0 0.0
      %3476 = vmatpush1.msra.mxu0 %v3438
      %3477 = vmatprep.subr.mxu0 0.0
      %3478 = vmatpush1.msra.mxu0 %v3437
      %3479 = vmatprep.subr.mxu0 0.0
      %3480 = vmatpush1.msra.mxu0 %v3436
      %3481 = vmatprep.subr.mxu0 0.0
      %3482 = vmatpush1.msra.mxu0 %v3435
      %3483 = vmatprep.subr.mxu0 0.0
      %3484 = vmatpush2.msra.mxu0 0.0
      %3485 = vmatprep.subr.mxu0 0.0
      %3486 = vmatpush2.msra.mxu0 0.0
      %3487 = vmatprep.subr.mxu0 0.0
      %3488 = vmatpush2.msra.mxu0 0.0
      %3489 = vmatprep.subr.mxu0 0.0
      %3490 = vmatpush2.msra.mxu0 0.0
      %3491 = vmatprep.subr.mxu0 0.0
      %3492 = vmatpush2.msra.mxu0 0.0
      %3493 = vmatprep.subr.mxu0 0.0
      %3494 = vmatpush2.msra.mxu0 0.0
      %3495 = vmatprep.subr.mxu0 0.0
      %3496 = vmatpush2.msra.mxu0 0.0
      %3497 = vmatprep.subr.mxu0 0.0
      %3498 = vmatpush2.msra.mxu0 0.0
      %3499 = vmatprep.subr.mxu0 0.0
      %3500 = vmatpush2.msra.mxu0 0.0
      %3501 = vmatprep.subr.mxu0 0.0
      %3502 = vmatpush2.msra.mxu0 0.0
      %3503 = vmatprep.subr.mxu0 0.0
      %3504 = vmatpush2.msra.mxu0 0.0
      %3505 = vmatprep.subr.mxu0 0.0
      %3506 = vmatpush2.msra.mxu0 0.0
      %3507 = vmatprep.subr.mxu0 0.0
      %3508 = vmatpush2.msra.mxu0 0.0
      %3509 = vmatprep.subr.mxu0 0.0
      %3510 = vmatpush2.msra.mxu0 0.0
      %3511 = vmatprep.subr.mxu0 0.0
      %3512 = vmatpush2.msra.mxu0 0.0
      %3513 = vmatprep.subr.mxu0 0.0
      %3514 = vmatpush2.msra.mxu0 0.0
      %3515 = vmatprep.mubr.f32.mxu0 0.0
      %3516 = vmatmul.mubr.f32.gmra.mxu0 %v3403
      %v3517 = vpop.f32.mrf.mxu0
      %v3518 = vadd.f32 0.0, %v3517
      %v3519 = vpop.f32.mrf.mxu0
      %3520 = vmatprep.mubr.f32.mxu0 0.0
      %3521 = vmatmul.mubr.f32.gmra.mxu0 %v3404
      %v3522 = vpop.f32.mrf.mxu0
      %v3523 = vadd.f32 0.0, %v3522
      %v3524 = vpop.f32.mrf.mxu0
      %3525 = vmatprep.mubr.f32.mxu0 0.0
      %3526 = vmatmul.mubr.f32.gmra.mxu0 %v3405
      %v3527 = vpop.f32.mrf.mxu0
      %v3528 = vadd.f32 0.0, %v3527
      %v3529 = vpop.f32.mrf.mxu0
      %3530 = vmatprep.mubr.f32.mxu0 0.0
      %3531 = vmatmul.mubr.f32.gmra.mxu0 %v3406
      %v3532 = vpop.f32.mrf.mxu0
      %v3533 = vadd.f32 0.0, %v3532
      %v3534 = vpop.f32.mrf.mxu0
      %3535 = vmatprep.mubr.f32.mxu0 0.0
      %3536 = vmatmul.mubr.f32.gmra.mxu0 %v3407
      %v3537 = vpop.f32.mrf.mxu0
      %v3538 = vadd.f32 0.0, %v3537
      %v3539 = vpop.f32.mrf.mxu0
      %3540 = vmatprep.mubr.f32.mxu0 0.0
      %3541 = vmatmul.mubr.f32.gmra.mxu0 %v3408
      %v3542 = vpop.f32.mrf.mxu0
      %v3543 = vadd.f32 0.0, %v3542
      %v3544 = vpop.f32.mrf.mxu0
      %3545 = vmatprep.mubr.f32.mxu0 0.0
      %3546 = vmatmul.mubr.f32.gmra.mxu0 %v3409
      %v3547 = vpop.f32.mrf.mxu0
      %v3548 = vadd.f32 0.0, %v3547
      %v3549 = vpop.f32.mrf.mxu0
      %3550 = vmatprep.mubr.f32.mxu0 0.0
      %3551 = vmatmul.mubr.f32.gmra.mxu0 %v3410
      %v3552 = vpop.f32.mrf.mxu0
      %v3553 = vadd.f32 0.0, %v3552
      %v3554 = vpop.f32.mrf.mxu0
      %3555 = vmatprep.mubr.f32.mxu0 0.0
      %3556 = vmatmul.mubr.f32.gmra.mxu0 %v3411
      %v3557 = vpop.f32.mrf.mxu0
      %v3558 = vadd.f32 0.0, %v3557
      %v3559 = vpop.f32.mrf.mxu0
      %3560 = vmatprep.mubr.f32.mxu0 0.0
      %3561 = vmatmul.mubr.f32.gmra.mxu0 %v3412
      %v3562 = vpop.f32.mrf.mxu0
      %v3563 = vadd.f32 0.0, %v3562
      %v3564 = vpop.f32.mrf.mxu0
      %3565 = vmatprep.mubr.f32.mxu0 0.0
      %3566 = vmatmul.mubr.f32.gmra.mxu0 %v3413
      %v3567 = vpop.f32.mrf.mxu0
      %v3568 = vadd.f32 0.0, %v3567
      %v3569 = vpop.f32.mrf.mxu0
      %3570 = vmatprep.mubr.f32.mxu0 0.0
      %3571 = vmatmul.mubr.f32.gmra.mxu0 %v3414
      %v3572 = vpop.f32.mrf.mxu0
      %v3573 = vadd.f32 0.0, %v3572
      %v3574 = vpop.f32.mrf.mxu0
      %3575 = vmatprep.mubr.f32.mxu0 0.0
      %3576 = vmatmul.mubr.f32.gmra.mxu0 %v3415
      %v3577 = vpop.f32.mrf.mxu0
      %v3578 = vadd.f32 0.0, %v3577
      %v3579 = vpop.f32.mrf.mxu0
      %3580 = vmatprep.mubr.f32.mxu0 0.0
      %3581 = vmatmul.mubr.f32.gmra.mxu0 %v3416
      %v3582 = vpop.f32.mrf.mxu0
      %v3583 = vadd.f32 0.0, %v3582
      %v3584 = vpop.f32.mrf.mxu0
      %3585 = vmatprep.mubr.f32.mxu0 0.0
      %3586 = vmatmul.mubr.f32.gmra.mxu0 %v3417
      %v3587 = vpop.f32.mrf.mxu0
      %v3588 = vadd.f32 0.0, %v3587
      %v3589 = vpop.f32.mrf.mxu0
      %3590 = vmatprep.mubr.f32.mxu0 0.0
      %3591 = vmatmul.mubr.f32.gmra.mxu0 %v3418
      %v3592 = vpop.f32.mrf.mxu0
      %v3593 = vadd.f32 0.0, %v3592
      %v3594 = vpop.f32.mrf.mxu0
      %3595 = vmatprep.mubr.f32.mxu0 0.0
      %3596 = vmatmul.mubr.f32.gmra.mxu0 %v3419
      %v3597 = vpop.f32.mrf.mxu0
      %v3598 = vadd.f32 0.0, %v3597
      %v3599 = vpop.f32.mrf.mxu0
      %3600 = vmatprep.mubr.f32.mxu0 0.0
      %3601 = vmatmul.mubr.f32.gmra.mxu0 %v3420
      %v3602 = vpop.f32.mrf.mxu0
      %v3603 = vadd.f32 0.0, %v3602
      %v3604 = vpop.f32.mrf.mxu0
      %3605 = vmatprep.mubr.f32.mxu0 0.0
      %3606 = vmatmul.mubr.f32.gmra.mxu0 %v3421
      %v3607 = vpop.f32.mrf.mxu0
      %v3608 = vadd.f32 0.0, %v3607
      %v3609 = vpop.f32.mrf.mxu0
      %3610 = vmatprep.mubr.f32.mxu0 0.0
      %3611 = vmatmul.mubr.f32.gmra.mxu0 %v3422
      %v3612 = vpop.f32.mrf.mxu0
      %v3613 = vadd.f32 0.0, %v3612
      %v3614 = vpop.f32.mrf.mxu0
      %3615 = vmatprep.mubr.f32.mxu0 0.0
      %3616 = vmatmul.mubr.f32.gmra.mxu0 %v3423
      %v3617 = vpop.f32.mrf.mxu0
      %v3618 = vadd.f32 0.0, %v3617
      %v3619 = vpop.f32.mrf.mxu0
      %3620 = vmatprep.mubr.f32.mxu0 0.0
      %3621 = vmatmul.mubr.f32.gmra.mxu0 %v3424
      %v3622 = vpop.f32.mrf.mxu0
      %v3623 = vadd.f32 0.0, %v3622
      %v3624 = vpop.f32.mrf.mxu0
      %3625 = vmatprep.mubr.f32.mxu0 0.0
      %3626 = vmatmul.mubr.f32.gmra.mxu0 %v3425
      %v3627 = vpop.f32.mrf.mxu0
      %v3628 = vadd.f32 0.0, %v3627
      %v3629 = vpop.f32.mrf.mxu0
      %3630 = vmatprep.mubr.f32.mxu0 0.0
      %3631 = vmatmul.mubr.f32.gmra.mxu0 %v3426
      %v3632 = vpop.f32.mrf.mxu0
      %v3633 = vadd.f32 0.0, %v3632
      %v3634 = vpop.f32.mrf.mxu0
      %3635 = vmatprep.mubr.f32.mxu0 0.0
      %3636 = vmatmul.mubr.f32.gmra.mxu0 %v3427
      %v3637 = vpop.f32.mrf.mxu0
      %v3638 = vadd.f32 0.0, %v3637
      %v3639 = vpop.f32.mrf.mxu0
      %3640 = vmatprep.mubr.f32.mxu0 0.0
      %3641 = vmatmul.mubr.f32.gmra.mxu0 %v3428
      %v3642 = vpop.f32.mrf.mxu0
      %v3643 = vadd.f32 0.0, %v3642
      %v3644 = vpop.f32.mrf.mxu0
      %3645 = vmatprep.mubr.f32.mxu0 0.0
      %3646 = vmatmul.mubr.f32.gmra.mxu0 %v3429
      %v3647 = vpop.f32.mrf.mxu0
      %v3648 = vadd.f32 0.0, %v3647
      %v3649 = vpop.f32.mrf.mxu0
      %3650 = vmatprep.mubr.f32.mxu0 0.0
      %3651 = vmatmul.mubr.f32.gmra.mxu0 %v3430
      %v3652 = vpop.f32.mrf.mxu0
      %v3653 = vadd.f32 0.0, %v3652
      %v3654 = vpop.f32.mrf.mxu0
      %3655 = vmatprep.mubr.f32.mxu0 0.0
      %3656 = vmatmul.mubr.f32.gmra.mxu0 %v3431
      %v3657 = vpop.f32.mrf.mxu0
      %v3658 = vadd.f32 0.0, %v3657
      %v3659 = vpop.f32.mrf.mxu0
      %3660 = vmatprep.mubr.f32.mxu0 0.0
      %3661 = vmatmul.mubr.f32.gmra.mxu0 %v3432
      %v3662 = vpop.f32.mrf.mxu0
      %v3663 = vadd.f32 0.0, %v3662
      %v3664 = vpop.f32.mrf.mxu0
      %3665 = vmatprep.mubr.f32.mxu0 0.0
      %3666 = vmatmul.mubr.f32.gmra.mxu0 %v3433
      %v3667 = vpop.f32.mrf.mxu0
      %v3668 = vadd.f32 0.0, %v3667
      %v3669 = vpop.f32.mrf.mxu0
      %3670 = vmatprep.mubr.f32.mxu0 0.0
      %3671 = vmatmul.mubr.f32.gmra.mxu0 %v3434
      %v3672 = vpop.f32.mrf.mxu0
      %v3673 = vadd.f32 0.0, %v3672
      %v3674 = vpop.f32.mrf.mxu0
      %3675 = vdwg.mxu0
      %v3676 = vadd.f32 %v2859, %v3518
      %v3677 = vadd.f32 %v2864, %v3523
      %v3678 = vadd.f32 %v2869, %v3528
      %v3679 = vadd.f32 %v2874, %v3533
      %v3680 = vadd.f32 %v2879, %v3538
      %v3681 = vadd.f32 %v2884, %v3543
      %v3682 = vadd.f32 %v2889, %v3548
      %v3683 = vadd.f32 %v2894, %v3553
      %v3684 = vadd.f32 %v2899, %v3558
      %v3685 = vadd.f32 %v2904, %v3563
      %v3686 = vadd.f32 %v2909, %v3568
      %v3687 = vadd.f32 %v2914, %v3573
      %v3688 = vadd.f32 %v2919, %v3578
      %v3689 = vadd.f32 %v2924, %v3583
      %v3690 = vadd.f32 %v2929, %v3588
      %v3691 = vadd.f32 %v2934, %v3593
      %v3692 = vadd.f32 %v2939, %v3598
      %v3693 = vadd.f32 %v2944, %v3603
      %v3694 = vadd.f32 %v2949, %v3608
      %v3695 = vadd.f32 %v2954, %v3613
      %v3696 = vadd.f32 %v2959, %v3618
      %v3697 = vadd.f32 %v2964, %v3623
      %v3698 = vadd.f32 %v2969, %v3628
      %v3699 = vadd.f32 %v2974, %v3633
      %v3700 = vadd.f32 %v2979, %v3638
      %v3701 = vadd.f32 %v2984, %v3643
      %v3702 = vadd.f32 %v2989, %v3648
      %v3703 = vadd.f32 %v2994, %v3653
      %v3704 = vadd.f32 %v2999, %v3658
      %v3705 = vadd.f32 %v3004, %v3663
      %v3706 = vadd.f32 %v3009, %v3668
      %v3707 = vadd.f32 %v3014, %v3673
      %v3708 = vmul.f32 %v2090, %v3371
      %v3709 = vmul.f32 %v2096, %v3372
      %v3710 = vmul.f32 %v2102, %v3373
      %v3711 = vmul.f32 %v2108, %v3374
      %v3712 = vmul.f32 %v2114, %v3375
      %v3713 = vmul.f32 %v2120, %v3376
      %v3714 = vmul.f32 %v2126, %v3377
      %v3715 = vmul.f32 %v2132, %v3378
      %v3716 = vmul.f32 %v2138, %v3379
      %v3717 = vmul.f32 %v2144, %v3380
      %v3718 = vmul.f32 %v2150, %v3381
      %v3719 = vmul.f32 %v2156, %v3382
      %v3720 = vmul.f32 %v2162, %v3383
      %v3721 = vmul.f32 %v2168, %v3384
      %v3722 = vmul.f32 %v2174, %v3385
      %v3723 = vmul.f32 %v2180, %v3386
      %v3724 = vmul.f32 %v2186, %v3387
      %v3725 = vmul.f32 %v2192, %v3388
      %v3726 = vmul.f32 %v2198, %v3389
      %v3727 = vmul.f32 %v2204, %v3390
      %v3728 = vmul.f32 %v2210, %v3391
      %v3729 = vmul.f32 %v2216, %v3392
      %v3730 = vmul.f32 %v2222, %v3393
      %v3731 = vmul.f32 %v2228, %v3394
      %v3732 = vmul.f32 %v2234, %v3395
      %v3733 = vmul.f32 %v2240, %v3396
      %v3734 = vmul.f32 %v2246, %v3397
      %v3735 = vmul.f32 %v2252, %v3398
      %v3736 = vmul.f32 %v2258, %v3399
      %v3737 = vmul.f32 %v2264, %v3400
      %v3738 = vmul.f32 %v2270, %v3401
      %v3739 = vmul.f32 %v2276, %v3402
      %s3740 = scalar_lea.vmem %s11, 128
      %v3741 = vld [vmem:[%s3740] sm:$0xff]
      %v3742 = vld [vmem:[%s3740 + $0x8] sm:$0xff]
      %v3743 = vld [vmem:[%s3740 + $0x10] sm:$0xff]
      %v3744 = vld [vmem:[%s3740 + $0x18] sm:$0xff]
      %v3745 = vld [vmem:[%s3740 + $0x20] sm:$0xff]
      %v3746 = vld [vmem:[%s3740 + $0x28] sm:$0xff]
      %v3747 = vld [vmem:[%s3740 + $0x30] sm:$0xff]
      %v3748 = vld [vmem:[%s3740 + $0x38] sm:$0xff]
      %v3749 = vld [vmem:[%s3740 + $0x40] sm:$0xff]
      %v3750 = vld [vmem:[%s3740 + $0x48] sm:$0xff]
      %v3751 = vld [vmem:[%s3740 + $0x50] sm:$0xff]
      %v3752 = vld [vmem:[%s3740 + $0x58] sm:$0xff]
      %v3753 = vld [vmem:[%s3740 + $0x60] sm:$0xff]
      %v3754 = vld [vmem:[%s3740 + $0x68] sm:$0xff]
      %v3755 = vld [vmem:[%s3740 + $0x70] sm:$0xff]
      %v3756 = vld [vmem:[%s3740 + $0x78] sm:$0xff]
      %3757 = vmatprep.subr.mxu0 0.0
      %3758 = vmatpush1.msra.mxu0 %v3756
      %3759 = vmatprep.subr.mxu0 0.0
      %3760 = vmatpush1.msra.mxu0 %v3755
      %3761 = vmatprep.subr.mxu0 0.0
      %3762 = vmatpush1.msra.mxu0 %v3754
      %3763 = vmatprep.subr.mxu0 0.0
      %3764 = vmatpush1.msra.mxu0 %v3753
      %3765 = vmatprep.subr.mxu0 0.0
      %3766 = vmatpush1.msra.mxu0 %v3752
      %3767 = vmatprep.subr.mxu0 0.0
      %3768 = vmatpush1.msra.mxu0 %v3751
      %3769 = vmatprep.subr.mxu0 0.0
      %3770 = vmatpush1.msra.mxu0 %v3750
      %3771 = vmatprep.subr.mxu0 0.0
      %3772 = vmatpush1.msra.mxu0 %v3749
      %3773 = vmatprep.subr.mxu0 0.0
      %3774 = vmatpush1.msra.mxu0 %v3748
      %3775 = vmatprep.subr.mxu0 0.0
      %3776 = vmatpush1.msra.mxu0 %v3747
      %3777 = vmatprep.subr.mxu0 0.0
      %3778 = vmatpush1.msra.mxu0 %v3746
      %3779 = vmatprep.subr.mxu0 0.0
      %3780 = vmatpush1.msra.mxu0 %v3745
      %3781 = vmatprep.subr.mxu0 0.0
      %3782 = vmatpush1.msra.mxu0 %v3744
      %3783 = vmatprep.subr.mxu0 0.0
      %3784 = vmatpush1.msra.mxu0 %v3743
      %3785 = vmatprep.subr.mxu0 0.0
      %3786 = vmatpush1.msra.mxu0 %v3742
      %3787 = vmatprep.subr.mxu0 0.0
      %3788 = vmatpush1.msra.mxu0 %v3741
      %3789 = vmatprep.subr.mxu0 0.0
      %3790 = vmatpush2.msra.mxu0 0.0
      %3791 = vmatprep.subr.mxu0 0.0
      %3792 = vmatpush2.msra.mxu0 0.0
      %3793 = vmatprep.subr.mxu0 0.0
      %3794 = vmatpush2.msra.mxu0 0.0
      %3795 = vmatprep.subr.mxu0 0.0
      %3796 = vmatpush2.msra.mxu0 0.0
      %3797 = vmatprep.subr.mxu0 0.0
      %3798 = vmatpush2.msra.mxu0 0.0
      %3799 = vmatprep.subr.mxu0 0.0
      %3800 = vmatpush2.msra.mxu0 0.0
      %3801 = vmatprep.subr.mxu0 0.0
      %3802 = vmatpush2.msra.mxu0 0.0
      %3803 = vmatprep.subr.mxu0 0.0
      %3804 = vmatpush2.msra.mxu0 0.0
      %3805 = vmatprep.subr.mxu0 0.0
      %3806 = vmatpush2.msra.mxu0 0.0
      %3807 = vmatprep.subr.mxu0 0.0
      %3808 = vmatpush2.msra.mxu0 0.0
      %3809 = vmatprep.subr.mxu0 0.0
      %3810 = vmatpush2.msra.mxu0 0.0
      %3811 = vmatprep.subr.mxu0 0.0
      %3812 = vmatpush2.msra.mxu0 0.0
      %3813 = vmatprep.subr.mxu0 0.0
      %3814 = vmatpush2.msra.mxu0 0.0
      %3815 = vmatprep.subr.mxu0 0.0
      %3816 = vmatpush2.msra.mxu0 0.0
      %3817 = vmatprep.subr.mxu0 0.0
      %3818 = vmatpush2.msra.mxu0 0.0
      %3819 = vmatprep.subr.mxu0 0.0
      %3820 = vmatpush2.msra.mxu0 0.0
      %3821 = vmatprep.mubr.f32.mxu0 0.0
      %3822 = vmatmul.mubr.f32.gmra.mxu0 %v3708
      %v3823 = vpop.f32.mrf.mxu0
      %v3824 = vadd.f32 0.0, %v3823
      %v3825 = vpop.f32.mrf.mxu0
      %3826 = vmatprep.mubr.f32.mxu0 0.0
      %3827 = vmatmul.mubr.f32.gmra.mxu0 %v3709
      %v3828 = vpop.f32.mrf.mxu0
      %v3829 = vadd.f32 0.0, %v3828
      %v3830 = vpop.f32.mrf.mxu0
      %3831 = vmatprep.mubr.f32.mxu0 0.0
      %3832 = vmatmul.mubr.f32.gmra.mxu0 %v3710
      %v3833 = vpop.f32.mrf.mxu0
      %v3834 = vadd.f32 0.0, %v3833
      %v3835 = vpop.f32.mrf.mxu0
      %3836 = vmatprep.mubr.f32.mxu0 0.0
      %3837 = vmatmul.mubr.f32.gmra.mxu0 %v3711
      %v3838 = vpop.f32.mrf.mxu0
      %v3839 = vadd.f32 0.0, %v3838
      %v3840 = vpop.f32.mrf.mxu0
      %3841 = vmatprep.mubr.f32.mxu0 0.0
      %3842 = vmatmul.mubr.f32.gmra.mxu0 %v3712
      %v3843 = vpop.f32.mrf.mxu0
      %v3844 = vadd.f32 0.0, %v3843
      %v3845 = vpop.f32.mrf.mxu0
      %3846 = vmatprep.mubr.f32.mxu0 0.0
      %3847 = vmatmul.mubr.f32.gmra.mxu0 %v3713
      %v3848 = vpop.f32.mrf.mxu0
      %v3849 = vadd.f32 0.0, %v3848
      %v3850 = vpop.f32.mrf.mxu0
      %3851 = vmatprep.mubr.f32.mxu0 0.0
      %3852 = vmatmul.mubr.f32.gmra.mxu0 %v3714
      %v3853 = vpop.f32.mrf.mxu0
      %v3854 = vadd.f32 0.0, %v3853
      %v3855 = vpop.f32.mrf.mxu0
      %3856 = vmatprep.mubr.f32.mxu0 0.0
      %3857 = vmatmul.mubr.f32.gmra.mxu0 %v3715
      %v3858 = vpop.f32.mrf.mxu0
      %v3859 = vadd.f32 0.0, %v3858
      %v3860 = vpop.f32.mrf.mxu0
      %3861 = vmatprep.mubr.f32.mxu0 0.0
      %3862 = vmatmul.mubr.f32.gmra.mxu0 %v3716
      %v3863 = vpop.f32.mrf.mxu0
      %v3864 = vadd.f32 0.0, %v3863
      %v3865 = vpop.f32.mrf.mxu0
      %3866 = vmatprep.mubr.f32.mxu0 0.0
      %3867 = vmatmul.mubr.f32.gmra.mxu0 %v3717
      %v3868 = vpop.f32.mrf.mxu0
      %v3869 = vadd.f32 0.0, %v3868
      %v3870 = vpop.f32.mrf.mxu0
      %3871 = vmatprep.mubr.f32.mxu0 0.0
      %3872 = vmatmul.mubr.f32.gmra.mxu0 %v3718
      %v3873 = vpop.f32.mrf.mxu0
      %v3874 = vadd.f32 0.0, %v3873
      %v3875 = vpop.f32.mrf.mxu0
      %3876 = vmatprep.mubr.f32.mxu0 0.0
      %3877 = vmatmul.mubr.f32.gmra.mxu0 %v3719
      %v3878 = vpop.f32.mrf.mxu0
      %v3879 = vadd.f32 0.0, %v3878
      %v3880 = vpop.f32.mrf.mxu0
      %3881 = vmatprep.mubr.f32.mxu0 0.0
      %3882 = vmatmul.mubr.f32.gmra.mxu0 %v3720
      %v3883 = vpop.f32.mrf.mxu0
      %v3884 = vadd.f32 0.0, %v3883
      %v3885 = vpop.f32.mrf.mxu0
      %3886 = vmatprep.mubr.f32.mxu0 0.0
      %3887 = vmatmul.mubr.f32.gmra.mxu0 %v3721
      %v3888 = vpop.f32.mrf.mxu0
      %v3889 = vadd.f32 0.0, %v3888
      %v3890 = vpop.f32.mrf.mxu0
      %3891 = vmatprep.mubr.f32.mxu0 0.0
      %3892 = vmatmul.mubr.f32.gmra.mxu0 %v3722
      %v3893 = vpop.f32.mrf.mxu0
      %v3894 = vadd.f32 0.0, %v3893
      %v3895 = vpop.f32.mrf.mxu0
      %3896 = vmatprep.mubr.f32.mxu0 0.0
      %3897 = vmatmul.mubr.f32.gmra.mxu0 %v3723
      %v3898 = vpop.f32.mrf.mxu0
      %v3899 = vadd.f32 0.0, %v3898
      %v3900 = vpop.f32.mrf.mxu0
      %3901 = vmatprep.mubr.f32.mxu0 0.0
      %3902 = vmatmul.mubr.f32.gmra.mxu0 %v3724
      %v3903 = vpop.f32.mrf.mxu0
      %v3904 = vadd.f32 0.0, %v3903
      %v3905 = vpop.f32.mrf.mxu0
      %3906 = vmatprep.mubr.f32.mxu0 0.0
      %3907 = vmatmul.mubr.f32.gmra.mxu0 %v3725
      %v3908 = vpop.f32.mrf.mxu0
      %v3909 = vadd.f32 0.0, %v3908
      %v3910 = vpop.f32.mrf.mxu0
      %3911 = vmatprep.mubr.f32.mxu0 0.0
      %3912 = vmatmul.mubr.f32.gmra.mxu0 %v3726
      %v3913 = vpop.f32.mrf.mxu0
      %v3914 = vadd.f32 0.0, %v3913
      %v3915 = vpop.f32.mrf.mxu0
      %3916 = vmatprep.mubr.f32.mxu0 0.0
      %3917 = vmatmul.mubr.f32.gmra.mxu0 %v3727
      %v3918 = vpop.f32.mrf.mxu0
      %v3919 = vadd.f32 0.0, %v3918
      %v3920 = vpop.f32.mrf.mxu0
      %3921 = vmatprep.mubr.f32.mxu0 0.0
      %3922 = vmatmul.mubr.f32.gmra.mxu0 %v3728
      %v3923 = vpop.f32.mrf.mxu0
      %v3924 = vadd.f32 0.0, %v3923
      %v3925 = vpop.f32.mrf.mxu0
      %3926 = vmatprep.mubr.f32.mxu0 0.0
      %3927 = vmatmul.mubr.f32.gmra.mxu0 %v3729
      %v3928 = vpop.f32.mrf.mxu0
      %v3929 = vadd.f32 0.0, %v3928
      %v3930 = vpop.f32.mrf.mxu0
      %3931 = vmatprep.mubr.f32.mxu0 0.0
      %3932 = vmatmul.mubr.f32.gmra.mxu0 %v3730
      %v3933 = vpop.f32.mrf.mxu0
      %v3934 = vadd.f32 0.0, %v3933
      %v3935 = vpop.f32.mrf.mxu0
      %3936 = vmatprep.mubr.f32.mxu0 0.0
      %3937 = vmatmul.mubr.f32.gmra.mxu0 %v3731
      %v3938 = vpop.f32.mrf.mxu0
      %v3939 = vadd.f32 0.0, %v3938
      %v3940 = vpop.f32.mrf.mxu0
      %3941 = vmatprep.mubr.f32.mxu0 0.0
      %3942 = vmatmul.mubr.f32.gmra.mxu0 %v3732
      %v3943 = vpop.f32.mrf.mxu0
      %v3944 = vadd.f32 0.0, %v3943
      %v3945 = vpop.f32.mrf.mxu0
      %3946 = vmatprep.mubr.f32.mxu0 0.0
      %3947 = vmatmul.mubr.f32.gmra.mxu0 %v3733
      %v3948 = vpop.f32.mrf.mxu0
      %v3949 = vadd.f32 0.0, %v3948
      %v3950 = vpop.f32.mrf.mxu0
      %3951 = vmatprep.mubr.f32.mxu0 0.0
      %3952 = vmatmul.mubr.f32.gmra.mxu0 %v3734
      %v3953 = vpop.f32.mrf.mxu0
      %v3954 = vadd.f32 0.0, %v3953
      %v3955 = vpop.f32.mrf.mxu0
      %3956 = vmatprep.mubr.f32.mxu0 0.0
      %3957 = vmatmul.mubr.f32.gmra.mxu0 %v3735
      %v3958 = vpop.f32.mrf.mxu0
      %v3959 = vadd.f32 0.0, %v3958
      %v3960 = vpop.f32.mrf.mxu0
      %3961 = vmatprep.mubr.f32.mxu0 0.0
      %3962 = vmatmul.mubr.f32.gmra.mxu0 %v3736
      %v3963 = vpop.f32.mrf.mxu0
      %v3964 = vadd.f32 0.0, %v3963
      %v3965 = vpop.f32.mrf.mxu0
      %3966 = vmatprep.mubr.f32.mxu0 0.0
      %3967 = vmatmul.mubr.f32.gmra.mxu0 %v3737
      %v3968 = vpop.f32.mrf.mxu0
      %v3969 = vadd.f32 0.0, %v3968
      %v3970 = vpop.f32.mrf.mxu0
      %3971 = vmatprep.mubr.f32.mxu0 0.0
      %3972 = vmatmul.mubr.f32.gmra.mxu0 %v3738
      %v3973 = vpop.f32.mrf.mxu0
      %v3974 = vadd.f32 0.0, %v3973
      %v3975 = vpop.f32.mrf.mxu0
      %3976 = vmatprep.mubr.f32.mxu0 0.0
      %3977 = vmatmul.mubr.f32.gmra.mxu0 %v3739
      %v3978 = vpop.f32.mrf.mxu0
      %v3979 = vadd.f32 0.0, %v3978
      %v3980 = vpop.f32.mrf.mxu0
      %3981 = vdwg.mxu0
      %v3982 = vadd.f32 %v3676, %v3824
      %v3983 = vadd.f32 %v3677, %v3829
      %v3984 = vadd.f32 %v3678, %v3834
      %v3985 = vadd.f32 %v3679, %v3839
      %v3986 = vadd.f32 %v3680, %v3844
      %v3987 = vadd.f32 %v3681, %v3849
      %v3988 = vadd.f32 %v3682, %v3854
      %v3989 = vadd.f32 %v3683, %v3859
      %v3990 = vadd.f32 %v3684, %v3864
      %v3991 = vadd.f32 %v3685, %v3869
      %v3992 = vadd.f32 %v3686, %v3874
      %v3993 = vadd.f32 %v3687, %v3879
      %v3994 = vadd.f32 %v3688, %v3884
      %v3995 = vadd.f32 %v3689, %v3889
      %v3996 = vadd.f32 %v3690, %v3894
      %v3997 = vadd.f32 %v3691, %v3899
      %v3998 = vadd.f32 %v3692, %v3904
      %v3999 = vadd.f32 %v3693, %v3909
      %v4000 = vadd.f32 %v3694, %v3914
      %v4001 = vadd.f32 %v3695, %v3919
      %v4002 = vadd.f32 %v3696, %v3924
      %v4003 = vadd.f32 %v3697, %v3929
      %v4004 = vadd.f32 %v3698, %v3934
      %v4005 = vadd.f32 %v3699, %v3939
      %v4006 = vadd.f32 %v3700, %v3944
      %v4007 = vadd.f32 %v3701, %v3949
      %v4008 = vadd.f32 %v3702, %v3954
      %v4009 = vadd.f32 %v3703, %v3959
      %v4010 = vadd.f32 %v3704, %v3964
      %v4011 = vadd.f32 %v3705, %v3969
      %v4012 = vadd.f32 %v3706, %v3974
      %v4013 = vadd.f32 %v3707, %v3979
      %v4014 = vmul.f32 %v2345, %v3371
      %v4015 = vmul.f32 %v2351, %v3372
      %v4016 = vmul.f32 %v2357, %v3373
      %v4017 = vmul.f32 %v2363, %v3374
      %v4018 = vmul.f32 %v2369, %v3375
      %v4019 = vmul.f32 %v2375, %v3376
      %v4020 = vmul.f32 %v2381, %v3377
      %v4021 = vmul.f32 %v2387, %v3378
      %v4022 = vmul.f32 %v2393, %v3379
      %v4023 = vmul.f32 %v2399, %v3380
      %v4024 = vmul.f32 %v2405, %v3381
      %v4025 = vmul.f32 %v2411, %v3382
      %v4026 = vmul.f32 %v2417, %v3383
      %v4027 = vmul.f32 %v2423, %v3384
      %v4028 = vmul.f32 %v2429, %v3385
      %v4029 = vmul.f32 %v2435, %v3386
      %v4030 = vmul.f32 %v2441, %v3387
      %v4031 = vmul.f32 %v2447, %v3388
      %v4032 = vmul.f32 %v2453, %v3389
      %v4033 = vmul.f32 %v2459, %v3390
      %v4034 = vmul.f32 %v2465, %v3391
      %v4035 = vmul.f32 %v2471, %v3392
      %v4036 = vmul.f32 %v2477, %v3393
      %v4037 = vmul.f32 %v2483, %v3394
      %v4038 = vmul.f32 %v2489, %v3395
      %v4039 = vmul.f32 %v2495, %v3396
      %v4040 = vmul.f32 %v2501, %v3397
      %v4041 = vmul.f32 %v2507, %v3398
      %v4042 = vmul.f32 %v2513, %v3399
      %v4043 = vmul.f32 %v2519, %v3400
      %v4044 = vmul.f32 %v2525, %v3401
      %v4045 = vmul.f32 %v2531, %v3402
      %s4046 = scalar_lea.vmem %s11, 256
      %v4047 = vld [vmem:[%s4046] sm:$0xff]
      %v4048 = vld [vmem:[%s4046 + $0x8] sm:$0xff]
      %v4049 = vld [vmem:[%s4046 + $0x10] sm:$0xff]
      %v4050 = vld [vmem:[%s4046 + $0x18] sm:$0xff]
      %v4051 = vld [vmem:[%s4046 + $0x20] sm:$0xff]
      %v4052 = vld [vmem:[%s4046 + $0x28] sm:$0xff]
      %v4053 = vld [vmem:[%s4046 + $0x30] sm:$0xff]
      %v4054 = vld [vmem:[%s4046 + $0x38] sm:$0xff]
      %v4055 = vld [vmem:[%s4046 + $0x40] sm:$0xff]
      %v4056 = vld [vmem:[%s4046 + $0x48] sm:$0xff]
      %v4057 = vld [vmem:[%s4046 + $0x50] sm:$0xff]
      %v4058 = vld [vmem:[%s4046 + $0x58] sm:$0xff]
      %v4059 = vld [vmem:[%s4046 + $0x60] sm:$0xff]
      %v4060 = vld [vmem:[%s4046 + $0x68] sm:$0xff]
      %v4061 = vld [vmem:[%s4046 + $0x70] sm:$0xff]
      %v4062 = vld [vmem:[%s4046 + $0x78] sm:$0xff]
      %4063 = vmatprep.subr.mxu0 0.0
      %4064 = vmatpush1.msra.mxu0 %v4062
      %4065 = vmatprep.subr.mxu0 0.0
      %4066 = vmatpush1.msra.mxu0 %v4061
      %4067 = vmatprep.subr.mxu0 0.0
      %4068 = vmatpush1.msra.mxu0 %v4060
      %4069 = vmatprep.subr.mxu0 0.0
      %4070 = vmatpush1.msra.mxu0 %v4059
      %4071 = vmatprep.subr.mxu0 0.0
      %4072 = vmatpush1.msra.mxu0 %v4058
      %4073 = vmatprep.subr.mxu0 0.0
      %4074 = vmatpush1.msra.mxu0 %v4057
      %4075 = vmatprep.subr.mxu0 0.0
      %4076 = vmatpush1.msra.mxu0 %v4056
      %4077 = vmatprep.subr.mxu0 0.0
      %4078 = vmatpush1.msra.mxu0 %v4055
      %4079 = vmatprep.subr.mxu0 0.0
      %4080 = vmatpush1.msra.mxu0 %v4054
      %4081 = vmatprep.subr.mxu0 0.0
      %4082 = vmatpush1.msra.mxu0 %v4053
      %4083 = vmatprep.subr.mxu0 0.0
      %4084 = vmatpush1.msra.mxu0 %v4052
      %4085 = vmatprep.subr.mxu0 0.0
      %4086 = vmatpush1.msra.mxu0 %v4051
      %4087 = vmatprep.subr.mxu0 0.0
      %4088 = vmatpush1.msra.mxu0 %v4050
      %4089 = vmatprep.subr.mxu0 0.0
      %4090 = vmatpush1.msra.mxu0 %v4049
      %4091 = vmatprep.subr.mxu0 0.0
      %4092 = vmatpush1.msra.mxu0 %v4048
      %4093 = vmatprep.subr.mxu0 0.0
      %4094 = vmatpush1.msra.mxu0 %v4047
      %4095 = vmatprep.subr.mxu0 0.0
      %4096 = vmatpush2.msra.mxu0 0.0
      %4097 = vmatprep.subr.mxu0 0.0
      %4098 = vmatpush2.msra.mxu0 0.0
      %4099 = vmatprep.subr.mxu0 0.0
      %4100 = vmatpush2.msra.mxu0 0.0
      %4101 = vmatprep.subr.mxu0 0.0
      %4102 = vmatpush2.msra.mxu0 0.0
      %4103 = vmatprep.subr.mxu0 0.0
      %4104 = vmatpush2.msra.mxu0 0.0
      %4105 = vmatprep.subr.mxu0 0.0
      %4106 = vmatpush2.msra.mxu0 0.0
      %4107 = vmatprep.subr.mxu0 0.0
      %4108 = vmatpush2.msra.mxu0 0.0
      %4109 = vmatprep.subr.mxu0 0.0
      %4110 = vmatpush2.msra.mxu0 0.0
      %4111 = vmatprep.subr.mxu0 0.0
      %4112 = vmatpush2.msra.mxu0 0.0
      %4113 = vmatprep.subr.mxu0 0.0
      %4114 = vmatpush2.msra.mxu0 0.0
      %4115 = vmatprep.subr.mxu0 0.0
      %4116 = vmatpush2.msra.mxu0 0.0
      %4117 = vmatprep.subr.mxu0 0.0
      %4118 = vmatpush2.msra.mxu0 0.0
      %4119 = vmatprep.subr.mxu0 0.0
      %4120 = vmatpush2.msra.mxu0 0.0
      %4121 = vmatprep.subr.mxu0 0.0
      %4122 = vmatpush2.msra.mxu0 0.0
      %4123 = vmatprep.subr.mxu0 0.0
      %4124 = vmatpush2.msra.mxu0 0.0
      %4125 = vmatprep.subr.mxu0 0.0
      %4126 = vmatpush2.msra.mxu0 0.0
      %4127 = vmatprep.mubr.f32.mxu0 0.0
      %4128 = vmatmul.mubr.f32.gmra.mxu0 %v4014
      %v4129 = vpop.f32.mrf.mxu0
      %v4130 = vadd.f32 0.0, %v4129
      %v4131 = vpop.f32.mrf.mxu0
      %4132 = vmatprep.mubr.f32.mxu0 0.0
      %4133 = vmatmul.mubr.f32.gmra.mxu0 %v4015
      %v4134 = vpop.f32.mrf.mxu0
      %v4135 = vadd.f32 0.0, %v4134
      %v4136 = vpop.f32.mrf.mxu0
      %4137 = vmatprep.mubr.f32.mxu0 0.0
      %4138 = vmatmul.mubr.f32.gmra.mxu0 %v4016
      %v4139 = vpop.f32.mrf.mxu0
      %v4140 = vadd.f32 0.0, %v4139
      %v4141 = vpop.f32.mrf.mxu0
      %4142 = vmatprep.mubr.f32.mxu0 0.0
      %4143 = vmatmul.mubr.f32.gmra.mxu0 %v4017
      %v4144 = vpop.f32.mrf.mxu0
      %v4145 = vadd.f32 0.0, %v4144
      %v4146 = vpop.f32.mrf.mxu0
      %4147 = vmatprep.mubr.f32.mxu0 0.0
      %4148 = vmatmul.mubr.f32.gmra.mxu0 %v4018
      %v4149 = vpop.f32.mrf.mxu0
      %v4150 = vadd.f32 0.0, %v4149
      %v4151 = vpop.f32.mrf.mxu0
      %4152 = vmatprep.mubr.f32.mxu0 0.0
      %4153 = vmatmul.mubr.f32.gmra.mxu0 %v4019
      %v4154 = vpop.f32.mrf.mxu0
      %v4155 = vadd.f32 0.0, %v4154
      %v4156 = vpop.f32.mrf.mxu0
      %4157 = vmatprep.mubr.f32.mxu0 0.0
      %4158 = vmatmul.mubr.f32.gmra.mxu0 %v4020
      %v4159 = vpop.f32.mrf.mxu0
      %v4160 = vadd.f32 0.0, %v4159
      %v4161 = vpop.f32.mrf.mxu0
      %4162 = vmatprep.mubr.f32.mxu0 0.0
      %4163 = vmatmul.mubr.f32.gmra.mxu0 %v4021
      %v4164 = vpop.f32.mrf.mxu0
      %v4165 = vadd.f32 0.0, %v4164
      %v4166 = vpop.f32.mrf.mxu0
      %4167 = vmatprep.mubr.f32.mxu0 0.0
      %4168 = vmatmul.mubr.f32.gmra.mxu0 %v4022
      %v4169 = vpop.f32.mrf.mxu0
      %v4170 = vadd.f32 0.0, %v4169
      %v4171 = vpop.f32.mrf.mxu0
      %4172 = vmatprep.mubr.f32.mxu0 0.0
      %4173 = vmatmul.mubr.f32.gmra.mxu0 %v4023
      %v4174 = vpop.f32.mrf.mxu0
      %v4175 = vadd.f32 0.0, %v4174
      %v4176 = vpop.f32.mrf.mxu0
      %4177 = vmatprep.mubr.f32.mxu0 0.0
      %4178 = vmatmul.mubr.f32.gmra.mxu0 %v4024
      %v4179 = vpop.f32.mrf.mxu0
      %v4180 = vadd.f32 0.0, %v4179
      %v4181 = vpop.f32.mrf.mxu0
      %4182 = vmatprep.mubr.f32.mxu0 0.0
      %4183 = vmatmul.mubr.f32.gmra.mxu0 %v4025
      %v4184 = vpop.f32.mrf.mxu0
      %v4185 = vadd.f32 0.0, %v4184
      %v4186 = vpop.f32.mrf.mxu0
      %4187 = vmatprep.mubr.f32.mxu0 0.0
      %4188 = vmatmul.mubr.f32.gmra.mxu0 %v4026
      %v4189 = vpop.f32.mrf.mxu0
      %v4190 = vadd.f32 0.0, %v4189
      %v4191 = vpop.f32.mrf.mxu0
      %4192 = vmatprep.mubr.f32.mxu0 0.0
      %4193 = vmatmul.mubr.f32.gmra.mxu0 %v4027
      %v4194 = vpop.f32.mrf.mxu0
      %v4195 = vadd.f32 0.0, %v4194
      %v4196 = vpop.f32.mrf.mxu0
      %4197 = vmatprep.mubr.f32.mxu0 0.0
      %4198 = vmatmul.mubr.f32.gmra.mxu0 %v4028
      %v4199 = vpop.f32.mrf.mxu0
      %v4200 = vadd.f32 0.0, %v4199
      %v4201 = vpop.f32.mrf.mxu0
      %4202 = vmatprep.mubr.f32.mxu0 0.0
      %4203 = vmatmul.mubr.f32.gmra.mxu0 %v4029
      %v4204 = vpop.f32.mrf.mxu0
      %v4205 = vadd.f32 0.0, %v4204
      %v4206 = vpop.f32.mrf.mxu0
      %4207 = vmatprep.mubr.f32.mxu0 0.0
      %4208 = vmatmul.mubr.f32.gmra.mxu0 %v4030
      %v4209 = vpop.f32.mrf.mxu0
      %v4210 = vadd.f32 0.0, %v4209
      %v4211 = vpop.f32.mrf.mxu0
      %4212 = vmatprep.mubr.f32.mxu0 0.0
      %4213 = vmatmul.mubr.f32.gmra.mxu0 %v4031
      %v4214 = vpop.f32.mrf.mxu0
      %v4215 = vadd.f32 0.0, %v4214
      %v4216 = vpop.f32.mrf.mxu0
      %4217 = vmatprep.mubr.f32.mxu0 0.0
      %4218 = vmatmul.mubr.f32.gmra.mxu0 %v4032
      %v4219 = vpop.f32.mrf.mxu0
      %v4220 = vadd.f32 0.0, %v4219
      %v4221 = vpop.f32.mrf.mxu0
      %4222 = vmatprep.mubr.f32.mxu0 0.0
      %4223 = vmatmul.mubr.f32.gmra.mxu0 %v4033
      %v4224 = vpop.f32.mrf.mxu0
      %v4225 = vadd.f32 0.0, %v4224
      %v4226 = vpop.f32.mrf.mxu0
      %4227 = vmatprep.mubr.f32.mxu0 0.0
      %4228 = vmatmul.mubr.f32.gmra.mxu0 %v4034
      %v4229 = vpop.f32.mrf.mxu0
      %v4230 = vadd.f32 0.0, %v4229
      %v4231 = vpop.f32.mrf.mxu0
      %4232 = vmatprep.mubr.f32.mxu0 0.0
      %4233 = vmatmul.mubr.f32.gmra.mxu0 %v4035
      %v4234 = vpop.f32.mrf.mxu0
      %v4235 = vadd.f32 0.0, %v4234
      %v4236 = vpop.f32.mrf.mxu0
      %4237 = vmatprep.mubr.f32.mxu0 0.0
      %4238 = vmatmul.mubr.f32.gmra.mxu0 %v4036
      %v4239 = vpop.f32.mrf.mxu0
      %v4240 = vadd.f32 0.0, %v4239
      %v4241 = vpop.f32.mrf.mxu0
      %4242 = vmatprep.mubr.f32.mxu0 0.0
      %4243 = vmatmul.mubr.f32.gmra.mxu0 %v4037
      %v4244 = vpop.f32.mrf.mxu0
      %v4245 = vadd.f32 0.0, %v4244
      %v4246 = vpop.f32.mrf.mxu0
      %4247 = vmatprep.mubr.f32.mxu0 0.0
      %4248 = vmatmul.mubr.f32.gmra.mxu0 %v4038
      %v4249 = vpop.f32.mrf.mxu0
      %v4250 = vadd.f32 0.0, %v4249
      %v4251 = vpop.f32.mrf.mxu0
      %4252 = vmatprep.mubr.f32.mxu0 0.0
      %4253 = vmatmul.mubr.f32.gmra.mxu0 %v4039
      %v4254 = vpop.f32.mrf.mxu0
      %v4255 = vadd.f32 0.0, %v4254
      %v4256 = vpop.f32.mrf.mxu0
      %4257 = vmatprep.mubr.f32.mxu0 0.0
      %4258 = vmatmul.mubr.f32.gmra.mxu0 %v4040
      %v4259 = vpop.f32.mrf.mxu0
      %v4260 = vadd.f32 0.0, %v4259
      %v4261 = vpop.f32.mrf.mxu0
      %4262 = vmatprep.mubr.f32.mxu0 0.0
      %4263 = vmatmul.mubr.f32.gmra.mxu0 %v4041
      %v4264 = vpop.f32.mrf.mxu0
      %v4265 = vadd.f32 0.0, %v4264
      %v4266 = vpop.f32.mrf.mxu0
      %4267 = vmatprep.mubr.f32.mxu0 0.0
      %4268 = vmatmul.mubr.f32.gmra.mxu0 %v4042
      %v4269 = vpop.f32.mrf.mxu0
      %v4270 = vadd.f32 0.0, %v4269
      %v4271 = vpop.f32.mrf.mxu0
      %4272 = vmatprep.mubr.f32.mxu0 0.0
      %4273 = vmatmul.mubr.f32.gmra.mxu0 %v4043
      %v4274 = vpop.f32.mrf.mxu0
      %v4275 = vadd.f32 0.0, %v4274
      %v4276 = vpop.f32.mrf.mxu0
      %4277 = vmatprep.mubr.f32.mxu0 0.0
      %4278 = vmatmul.mubr.f32.gmra.mxu0 %v4044
      %v4279 = vpop.f32.mrf.mxu0
      %v4280 = vadd.f32 0.0, %v4279
      %v4281 = vpop.f32.mrf.mxu0
      %4282 = vmatprep.mubr.f32.mxu0 0.0
      %4283 = vmatmul.mubr.f32.gmra.mxu0 %v4045
      %v4284 = vpop.f32.mrf.mxu0
      %v4285 = vadd.f32 0.0, %v4284
      %v4286 = vpop.f32.mrf.mxu0
      %4287 = vdwg.mxu0
      %v4288 = vadd.f32 %v3982, %v4130
      %v4289 = vadd.f32 %v3983, %v4135
      %v4290 = vadd.f32 %v3984, %v4140
      %v4291 = vadd.f32 %v3985, %v4145
      %v4292 = vadd.f32 %v3986, %v4150
      %v4293 = vadd.f32 %v3987, %v4155
      %v4294 = vadd.f32 %v3988, %v4160
      %v4295 = vadd.f32 %v3989, %v4165
      %v4296 = vadd.f32 %v3990, %v4170
      %v4297 = vadd.f32 %v3991, %v4175
      %v4298 = vadd.f32 %v3992, %v4180
      %v4299 = vadd.f32 %v3993, %v4185
      %v4300 = vadd.f32 %v3994, %v4190
      %v4301 = vadd.f32 %v3995, %v4195
      %v4302 = vadd.f32 %v3996, %v4200
      %v4303 = vadd.f32 %v3997, %v4205
      %v4304 = vadd.f32 %v3998, %v4210
      %v4305 = vadd.f32 %v3999, %v4215
      %v4306 = vadd.f32 %v4000, %v4220
      %v4307 = vadd.f32 %v4001, %v4225
      %v4308 = vadd.f32 %v4002, %v4230
      %v4309 = vadd.f32 %v4003, %v4235
      %v4310 = vadd.f32 %v4004, %v4240
      %v4311 = vadd.f32 %v4005, %v4245
      %v4312 = vadd.f32 %v4006, %v4250
      %v4313 = vadd.f32 %v4007, %v4255
      %v4314 = vadd.f32 %v4008, %v4260
      %v4315 = vadd.f32 %v4009, %v4265
      %v4316 = vadd.f32 %v4010, %v4270
      %v4317 = vadd.f32 %v4011, %v4275
      %v4318 = vadd.f32 %v4012, %v4280
      %v4319 = vadd.f32 %v4013, %v4285
      %v4320 = vmul.f32 %v2347, %v3371
      %v4321 = vmul.f32 %v2353, %v3372
      %v4322 = vmul.f32 %v2359, %v3373
      %v4323 = vmul.f32 %v2365, %v3374
      %v4324 = vmul.f32 %v2371, %v3375
      %v4325 = vmul.f32 %v2377, %v3376
      %v4326 = vmul.f32 %v2383, %v3377
      %v4327 = vmul.f32 %v2389, %v3378
      %v4328 = vmul.f32 %v2395, %v3379
      %v4329 = vmul.f32 %v2401, %v3380
      %v4330 = vmul.f32 %v2407, %v3381
      %v4331 = vmul.f32 %v2413, %v3382
      %v4332 = vmul.f32 %v2419, %v3383
      %v4333 = vmul.f32 %v2425, %v3384
      %v4334 = vmul.f32 %v2431, %v3385
      %v4335 = vmul.f32 %v2437, %v3386
      %v4336 = vmul.f32 %v2443, %v3387
      %v4337 = vmul.f32 %v2449, %v3388
      %v4338 = vmul.f32 %v2455, %v3389
      %v4339 = vmul.f32 %v2461, %v3390
      %v4340 = vmul.f32 %v2467, %v3391
      %v4341 = vmul.f32 %v2473, %v3392
      %v4342 = vmul.f32 %v2479, %v3393
      %v4343 = vmul.f32 %v2485, %v3394
      %v4344 = vmul.f32 %v2491, %v3395
      %v4345 = vmul.f32 %v2497, %v3396
      %v4346 = vmul.f32 %v2503, %v3397
      %v4347 = vmul.f32 %v2509, %v3398
      %v4348 = vmul.f32 %v2515, %v3399
      %v4349 = vmul.f32 %v2521, %v3400
      %v4350 = vmul.f32 %v2527, %v3401
      %v4351 = vmul.f32 %v2533, %v3402
      %s4352 = scalar_lea.vmem %s11, 384
      %v4353 = vld [vmem:[%s4352] sm:$0xff]
      %v4354 = vld [vmem:[%s4352 + $0x8] sm:$0xff]
      %v4355 = vld [vmem:[%s4352 + $0x10] sm:$0xff]
      %v4356 = vld [vmem:[%s4352 + $0x18] sm:$0xff]
      %v4357 = vld [vmem:[%s4352 + $0x20] sm:$0xff]
      %v4358 = vld [vmem:[%s4352 + $0x28] sm:$0xff]
      %v4359 = vld [vmem:[%s4352 + $0x30] sm:$0xff]
      %v4360 = vld [vmem:[%s4352 + $0x38] sm:$0xff]
      %v4361 = vld [vmem:[%s4352 + $0x40] sm:$0xff]
      %v4362 = vld [vmem:[%s4352 + $0x48] sm:$0xff]
      %v4363 = vld [vmem:[%s4352 + $0x50] sm:$0xff]
      %v4364 = vld [vmem:[%s4352 + $0x58] sm:$0xff]
      %v4365 = vld [vmem:[%s4352 + $0x60] sm:$0xff]
      %v4366 = vld [vmem:[%s4352 + $0x68] sm:$0xff]
      %v4367 = vld [vmem:[%s4352 + $0x70] sm:$0xff]
      %v4368 = vld [vmem:[%s4352 + $0x78] sm:$0xff]
      %4369 = vmatprep.subr.mxu0 0.0
      %4370 = vmatpush1.msra.mxu0 %v4368
      %4371 = vmatprep.subr.mxu0 0.0
      %4372 = vmatpush1.msra.mxu0 %v4367
      %4373 = vmatprep.subr.mxu0 0.0
      %4374 = vmatpush1.msra.mxu0 %v4366
      %4375 = vmatprep.subr.mxu0 0.0
      %4376 = vmatpush1.msra.mxu0 %v4365
      %4377 = vmatprep.subr.mxu0 0.0
      %4378 = vmatpush1.msra.mxu0 %v4364
      %4379 = vmatprep.subr.mxu0 0.0
      %4380 = vmatpush1.msra.mxu0 %v4363
      %4381 = vmatprep.subr.mxu0 0.0
      %4382 = vmatpush1.msra.mxu0 %v4362
      %4383 = vmatprep.subr.mxu0 0.0
      %4384 = vmatpush1.msra.mxu0 %v4361
      %4385 = vmatprep.subr.mxu0 0.0
      %4386 = vmatpush1.msra.mxu0 %v4360
      %4387 = vmatprep.subr.mxu0 0.0
      %4388 = vmatpush1.msra.mxu0 %v4359
      %4389 = vmatprep.subr.mxu0 0.0
      %4390 = vmatpush1.msra.mxu0 %v4358
      %4391 = vmatprep.subr.mxu0 0.0
      %4392 = vmatpush1.msra.mxu0 %v4357
      %4393 = vmatprep.subr.mxu0 0.0
      %4394 = vmatpush1.msra.mxu0 %v4356
      %4395 = vmatprep.subr.mxu0 0.0
      %4396 = vmatpush1.msra.mxu0 %v4355
      %4397 = vmatprep.subr.mxu0 0.0
      %4398 = vmatpush1.msra.mxu0 %v4354
      %4399 = vmatprep.subr.mxu0 0.0
      %4400 = vmatpush1.msra.mxu0 %v4353
      %4401 = vmatprep.subr.mxu0 0.0
      %4402 = vmatpush2.msra.mxu0 0.0
      %4403 = vmatprep.subr.mxu0 0.0
      %4404 = vmatpush2.msra.mxu0 0.0
      %4405 = vmatprep.subr.mxu0 0.0
      %4406 = vmatpush2.msra.mxu0 0.0
      %4407 = vmatprep.subr.mxu0 0.0
      %4408 = vmatpush2.msra.mxu0 0.0
      %4409 = vmatprep.subr.mxu0 0.0
      %4410 = vmatpush2.msra.mxu0 0.0
      %4411 = vmatprep.subr.mxu0 0.0
      %4412 = vmatpush2.msra.mxu0 0.0
      %4413 = vmatprep.subr.mxu0 0.0
      %4414 = vmatpush2.msra.mxu0 0.0
      %4415 = vmatprep.subr.mxu0 0.0
      %4416 = vmatpush2.msra.mxu0 0.0
      %4417 = vmatprep.subr.mxu0 0.0
      %4418 = vmatpush2.msra.mxu0 0.0
      %4419 = vmatprep.subr.mxu0 0.0
      %4420 = vmatpush2.msra.mxu0 0.0
      %4421 = vmatprep.subr.mxu0 0.0
      %4422 = vmatpush2.msra.mxu0 0.0
      %4423 = vmatprep.subr.mxu0 0.0
      %4424 = vmatpush2.msra.mxu0 0.0
      %4425 = vmatprep.subr.mxu0 0.0
      %4426 = vmatpush2.msra.mxu0 0.0
      %4427 = vmatprep.subr.mxu0 0.0
      %4428 = vmatpush2.msra.mxu0 0.0
      %4429 = vmatprep.subr.mxu0 0.0
      %4430 = vmatpush2.msra.mxu0 0.0
      %4431 = vmatprep.subr.mxu0 0.0
      %4432 = vmatpush2.msra.mxu0 0.0
      %4433 = vmatprep.mubr.f32.mxu0 0.0
      %4434 = vmatmul.mubr.f32.gmra.mxu0 %v4320
      %v4435 = vpop.f32.mrf.mxu0
      %v4436 = vadd.f32 0.0, %v4435
      %v4437 = vpop.f32.mrf.mxu0
      %4438 = vmatprep.mubr.f32.mxu0 0.0
      %4439 = vmatmul.mubr.f32.gmra.mxu0 %v4321
      %v4440 = vpop.f32.mrf.mxu0
      %v4441 = vadd.f32 0.0, %v4440
      %v4442 = vpop.f32.mrf.mxu0
      %4443 = vmatprep.mubr.f32.mxu0 0.0
      %4444 = vmatmul.mubr.f32.gmra.mxu0 %v4322
      %v4445 = vpop.f32.mrf.mxu0
      %v4446 = vadd.f32 0.0, %v4445
      %v4447 = vpop.f32.mrf.mxu0
      %4448 = vmatprep.mubr.f32.mxu0 0.0
      %4449 = vmatmul.mubr.f32.gmra.mxu0 %v4323
      %v4450 = vpop.f32.mrf.mxu0
      %v4451 = vadd.f32 0.0, %v4450
      %v4452 = vpop.f32.mrf.mxu0
      %4453 = vmatprep.mubr.f32.mxu0 0.0
      %4454 = vmatmul.mubr.f32.gmra.mxu0 %v4324
      %v4455 = vpop.f32.mrf.mxu0
      %v4456 = vadd.f32 0.0, %v4455
      %v4457 = vpop.f32.mrf.mxu0
      %4458 = vmatprep.mubr.f32.mxu0 0.0
      %4459 = vmatmul.mubr.f32.gmra.mxu0 %v4325
      %v4460 = vpop.f32.mrf.mxu0
      %v4461 = vadd.f32 0.0, %v4460
      %v4462 = vpop.f32.mrf.mxu0
      %4463 = vmatprep.mubr.f32.mxu0 0.0
      %4464 = vmatmul.mubr.f32.gmra.mxu0 %v4326
      %v4465 = vpop.f32.mrf.mxu0
      %v4466 = vadd.f32 0.0, %v4465
      %v4467 = vpop.f32.mrf.mxu0
      %4468 = vmatprep.mubr.f32.mxu0 0.0
      %4469 = vmatmul.mubr.f32.gmra.mxu0 %v4327
      %v4470 = vpop.f32.mrf.mxu0
      %v4471 = vadd.f32 0.0, %v4470
      %v4472 = vpop.f32.mrf.mxu0
      %4473 = vmatprep.mubr.f32.mxu0 0.0
      %4474 = vmatmul.mubr.f32.gmra.mxu0 %v4328
      %v4475 = vpop.f32.mrf.mxu0
      %v4476 = vadd.f32 0.0, %v4475
      %v4477 = vpop.f32.mrf.mxu0
      %4478 = vmatprep.mubr.f32.mxu0 0.0
      %4479 = vmatmul.mubr.f32.gmra.mxu0 %v4329
      %v4480 = vpop.f32.mrf.mxu0
      %v4481 = vadd.f32 0.0, %v4480
      %v4482 = vpop.f32.mrf.mxu0
      %4483 = vmatprep.mubr.f32.mxu0 0.0
      %4484 = vmatmul.mubr.f32.gmra.mxu0 %v4330
      %v4485 = vpop.f32.mrf.mxu0
      %v4486 = vadd.f32 0.0, %v4485
      %v4487 = vpop.f32.mrf.mxu0
      %4488 = vmatprep.mubr.f32.mxu0 0.0
      %4489 = vmatmul.mubr.f32.gmra.mxu0 %v4331
      %v4490 = vpop.f32.mrf.mxu0
      %v4491 = vadd.f32 0.0, %v4490
      %v4492 = vpop.f32.mrf.mxu0
      %4493 = vmatprep.mubr.f32.mxu0 0.0
      %4494 = vmatmul.mubr.f32.gmra.mxu0 %v4332
      %v4495 = vpop.f32.mrf.mxu0
      %v4496 = vadd.f32 0.0, %v4495
      %v4497 = vpop.f32.mrf.mxu0
      %4498 = vmatprep.mubr.f32.mxu0 0.0
      %4499 = vmatmul.mubr.f32.gmra.mxu0 %v4333
      %v4500 = vpop.f32.mrf.mxu0
      %v4501 = vadd.f32 0.0, %v4500
      %v4502 = vpop.f32.mrf.mxu0
      %4503 = vmatprep.mubr.f32.mxu0 0.0
      %4504 = vmatmul.mubr.f32.gmra.mxu0 %v4334
      %v4505 = vpop.f32.mrf.mxu0
      %v4506 = vadd.f32 0.0, %v4505
      %v4507 = vpop.f32.mrf.mxu0
      %4508 = vmatprep.mubr.f32.mxu0 0.0
      %4509 = vmatmul.mubr.f32.gmra.mxu0 %v4335
      %v4510 = vpop.f32.mrf.mxu0
      %v4511 = vadd.f32 0.0, %v4510
      %v4512 = vpop.f32.mrf.mxu0
      %4513 = vmatprep.mubr.f32.mxu0 0.0
      %4514 = vmatmul.mubr.f32.gmra.mxu0 %v4336
      %v4515 = vpop.f32.mrf.mxu0
      %v4516 = vadd.f32 0.0, %v4515
      %v4517 = vpop.f32.mrf.mxu0
      %4518 = vmatprep.mubr.f32.mxu0 0.0
      %4519 = vmatmul.mubr.f32.gmra.mxu0 %v4337
      %v4520 = vpop.f32.mrf.mxu0
      %v4521 = vadd.f32 0.0, %v4520
      %v4522 = vpop.f32.mrf.mxu0
      %4523 = vmatprep.mubr.f32.mxu0 0.0
      %4524 = vmatmul.mubr.f32.gmra.mxu0 %v4338
      %v4525 = vpop.f32.mrf.mxu0
      %v4526 = vadd.f32 0.0, %v4525
      %v4527 = vpop.f32.mrf.mxu0
      %4528 = vmatprep.mubr.f32.mxu0 0.0
      %4529 = vmatmul.mubr.f32.gmra.mxu0 %v4339
      %v4530 = vpop.f32.mrf.mxu0
      %v4531 = vadd.f32 0.0, %v4530
      %v4532 = vpop.f32.mrf.mxu0
      %4533 = vmatprep.mubr.f32.mxu0 0.0
      %4534 = vmatmul.mubr.f32.gmra.mxu0 %v4340
      %v4535 = vpop.f32.mrf.mxu0
      %v4536 = vadd.f32 0.0, %v4535
      %v4537 = vpop.f32.mrf.mxu0
      %4538 = vmatprep.mubr.f32.mxu0 0.0
      %4539 = vmatmul.mubr.f32.gmra.mxu0 %v4341
      %v4540 = vpop.f32.mrf.mxu0
      %v4541 = vadd.f32 0.0, %v4540
      %v4542 = vpop.f32.mrf.mxu0
      %4543 = vmatprep.mubr.f32.mxu0 0.0
      %4544 = vmatmul.mubr.f32.gmra.mxu0 %v4342
      %v4545 = vpop.f32.mrf.mxu0
      %v4546 = vadd.f32 0.0, %v4545
      %v4547 = vpop.f32.mrf.mxu0
      %4548 = vmatprep.mubr.f32.mxu0 0.0
      %4549 = vmatmul.mubr.f32.gmra.mxu0 %v4343
      %v4550 = vpop.f32.mrf.mxu0
      %v4551 = vadd.f32 0.0, %v4550
      %v4552 = vpop.f32.mrf.mxu0
      %4553 = vmatprep.mubr.f32.mxu0 0.0
      %4554 = vmatmul.mubr.f32.gmra.mxu0 %v4344
      %v4555 = vpop.f32.mrf.mxu0
      %v4556 = vadd.f32 0.0, %v4555
      %v4557 = vpop.f32.mrf.mxu0
      %4558 = vmatprep.mubr.f32.mxu0 0.0
      %4559 = vmatmul.mubr.f32.gmra.mxu0 %v4345
      %v4560 = vpop.f32.mrf.mxu0
      %v4561 = vadd.f32 0.0, %v4560
      %v4562 = vpop.f32.mrf.mxu0
      %4563 = vmatprep.mubr.f32.mxu0 0.0
      %4564 = vmatmul.mubr.f32.gmra.mxu0 %v4346
      %v4565 = vpop.f32.mrf.mxu0
      %v4566 = vadd.f32 0.0, %v4565
      %v4567 = vpop.f32.mrf.mxu0
      %4568 = vmatprep.mubr.f32.mxu0 0.0
      %4569 = vmatmul.mubr.f32.gmra.mxu0 %v4347
      %v4570 = vpop.f32.mrf.mxu0
      %v4571 = vadd.f32 0.0, %v4570
      %v4572 = vpop.f32.mrf.mxu0
      %4573 = vmatprep.mubr.f32.mxu0 0.0
      %4574 = vmatmul.mubr.f32.gmra.mxu0 %v4348
      %v4575 = vpop.f32.mrf.mxu0
      %v4576 = vadd.f32 0.0, %v4575
      %v4577 = vpop.f32.mrf.mxu0
      %4578 = vmatprep.mubr.f32.mxu0 0.0
      %4579 = vmatmul.mubr.f32.gmra.mxu0 %v4349
      %v4580 = vpop.f32.mrf.mxu0
      %v4581 = vadd.f32 0.0, %v4580
      %v4582 = vpop.f32.mrf.mxu0
      %4583 = vmatprep.mubr.f32.mxu0 0.0
      %4584 = vmatmul.mubr.f32.gmra.mxu0 %v4350
      %v4585 = vpop.f32.mrf.mxu0
      %v4586 = vadd.f32 0.0, %v4585
      %v4587 = vpop.f32.mrf.mxu0
      %4588 = vmatprep.mubr.f32.mxu0 0.0
      %4589 = vmatmul.mubr.f32.gmra.mxu0 %v4351
      %v4590 = vpop.f32.mrf.mxu0
      %v4591 = vadd.f32 0.0, %v4590
      %v4592 = vpop.f32.mrf.mxu0
      %4593 = vdwg.mxu0
      %v4594 = vadd.f32 %v4288, %v4436
      %v4595 = vadd.f32 %v4289, %v4441
      %v4596 = vadd.f32 %v4290, %v4446
      %v4597 = vadd.f32 %v4291, %v4451
      %v4598 = vadd.f32 %v4292, %v4456
      %v4599 = vadd.f32 %v4293, %v4461
      %v4600 = vadd.f32 %v4294, %v4466
      %v4601 = vadd.f32 %v4295, %v4471
      %v4602 = vadd.f32 %v4296, %v4476
      %v4603 = vadd.f32 %v4297, %v4481
      %v4604 = vadd.f32 %v4298, %v4486
      %v4605 = vadd.f32 %v4299, %v4491
      %v4606 = vadd.f32 %v4300, %v4496
      %v4607 = vadd.f32 %v4301, %v4501
      %v4608 = vadd.f32 %v4302, %v4506
      %v4609 = vadd.f32 %v4303, %v4511
      %v4610 = vadd.f32 %v4304, %v4516
      %v4611 = vadd.f32 %v4305, %v4521
      %v4612 = vadd.f32 %v4306, %v4526
      %v4613 = vadd.f32 %v4307, %v4531
      %v4614 = vadd.f32 %v4308, %v4536
      %v4615 = vadd.f32 %v4309, %v4541
      %v4616 = vadd.f32 %v4310, %v4546
      %v4617 = vadd.f32 %v4311, %v4551
      %v4618 = vadd.f32 %v4312, %v4556
      %v4619 = vadd.f32 %v4313, %v4561
      %v4620 = vadd.f32 %v4314, %v4566
      %v4621 = vadd.f32 %v4315, %v4571
      %v4622 = vadd.f32 %v4316, %v4576
      %v4623 = vadd.f32 %v4317, %v4581
      %v4624 = vadd.f32 %v4318, %v4586
      %v4625 = vadd.f32 %v4319, %v4591
      %v4626 = vld [vmem:[%s9] sm:$0x1]
      %v4627 = vld [vmem:[%s10] sm:$0x1]
      %vm4628 = vcmask 130048
      %v4629 = vsel %vm4628, %v4594, 0.0
      %4630 = vadd.xlane.f32.xlu0 %v4629
      %v4631 = vpop.xlane.xlu0 %4630
      %v4632 = vsel %vm4628, %v4595, 0.0
      %4633 = vadd.xlane.f32.xlu0 %v4632
      %v4634 = vpop.xlane.xlu0 %4633
      %v4635 = vsel %vm4628, %v4596, 0.0
      %4636 = vadd.xlane.f32.xlu0 %v4635
      %v4637 = vpop.xlane.xlu0 %4636
      %v4638 = vsel %vm4628, %v4597, 0.0
      %4639 = vadd.xlane.f32.xlu0 %v4638
      %v4640 = vpop.xlane.xlu0 %4639
      %v4641 = vsel %vm4628, %v4598, 0.0
      %4642 = vadd.xlane.f32.xlu0 %v4641
      %v4643 = vpop.xlane.xlu0 %4642
      %v4644 = vsel %vm4628, %v4599, 0.0
      %4645 = vadd.xlane.f32.xlu0 %v4644
      %v4646 = vpop.xlane.xlu0 %4645
      %v4647 = vsel %vm4628, %v4600, 0.0
      %4648 = vadd.xlane.f32.xlu0 %v4647
      %v4649 = vpop.xlane.xlu0 %4648
      %v4650 = vsel %vm4628, %v4601, 0.0
      %4651 = vadd.xlane.f32.xlu0 %v4650
      %v4652 = vpop.xlane.xlu0 %4651
      %v4653 = vsel %vm4628, %v4602, 0.0
      %4654 = vadd.xlane.f32.xlu0 %v4653
      %v4655 = vpop.xlane.xlu0 %4654
      %v4656 = vsel %vm4628, %v4603, 0.0
      %4657 = vadd.xlane.f32.xlu0 %v4656
      %v4658 = vpop.xlane.xlu0 %4657
      %v4659 = vsel %vm4628, %v4604, 0.0
      %4660 = vadd.xlane.f32.xlu0 %v4659
      %v4661 = vpop.xlane.xlu0 %4660
      %v4662 = vsel %vm4628, %v4605, 0.0
      %4663 = vadd.xlane.f32.xlu0 %v4662
      %v4664 = vpop.xlane.xlu0 %4663
      %v4665 = vsel %vm4628, %v4606, 0.0
      %4666 = vadd.xlane.f32.xlu0 %v4665
      %v4667 = vpop.xlane.xlu0 %4666
      %v4668 = vsel %vm4628, %v4607, 0.0
      %4669 = vadd.xlane.f32.xlu0 %v4668
      %v4670 = vpop.xlane.xlu0 %4669
      %v4671 = vsel %vm4628, %v4608, 0.0
      %4672 = vadd.xlane.f32.xlu0 %v4671
      %v4673 = vpop.xlane.xlu0 %4672
      %v4674 = vsel %vm4628, %v4609, 0.0
      %4675 = vadd.xlane.f32.xlu0 %v4674
      %v4676 = vpop.xlane.xlu0 %4675
      %v4677 = vsel %vm4628, %v4610, 0.0
      %4678 = vadd.xlane.f32.xlu0 %v4677
      %v4679 = vpop.xlane.xlu0 %4678
      %v4680 = vsel %vm4628, %v4611, 0.0
      %4681 = vadd.xlane.f32.xlu0 %v4680
      %v4682 = vpop.xlane.xlu0 %4681
      %v4683 = vsel %vm4628, %v4612, 0.0
      %4684 = vadd.xlane.f32.xlu0 %v4683
      %v4685 = vpop.xlane.xlu0 %4684
      %v4686 = vsel %vm4628, %v4613, 0.0
      %4687 = vadd.xlane.f32.xlu0 %v4686
      %v4688 = vpop.xlane.xlu0 %4687
      %v4689 = vsel %vm4628, %v4614, 0.0
      %4690 = vadd.xlane.f32.xlu0 %v4689
      %v4691 = vpop.xlane.xlu0 %4690
      %v4692 = vsel %vm4628, %v4615, 0.0
      %4693 = vadd.xlane.f32.xlu0 %v4692
      %v4694 = vpop.xlane.xlu0 %4693
      %v4695 = vsel %vm4628, %v4616, 0.0
      %4696 = vadd.xlane.f32.xlu0 %v4695
      %v4697 = vpop.xlane.xlu0 %4696
      %v4698 = vsel %vm4628, %v4617, 0.0
      %4699 = vadd.xlane.f32.xlu0 %v4698
      %v4700 = vpop.xlane.xlu0 %4699
      %v4701 = vsel %vm4628, %v4618, 0.0
      %4702 = vadd.xlane.f32.xlu0 %v4701
      %v4703 = vpop.xlane.xlu0 %4702
      %v4704 = vsel %vm4628, %v4619, 0.0
      %4705 = vadd.xlane.f32.xlu0 %v4704
      %v4706 = vpop.xlane.xlu0 %4705
      %v4707 = vsel %vm4628, %v4620, 0.0
      %4708 = vadd.xlane.f32.xlu0 %v4707
      %v4709 = vpop.xlane.xlu0 %4708
      %v4710 = vsel %vm4628, %v4621, 0.0
      %4711 = vadd.xlane.f32.xlu0 %v4710
      %v4712 = vpop.xlane.xlu0 %4711
      %v4713 = vsel %vm4628, %v4622, 0.0
      %4714 = vadd.xlane.f32.xlu0 %v4713
      %v4715 = vpop.xlane.xlu0 %4714
      %v4716 = vsel %vm4628, %v4623, 0.0
      %4717 = vadd.xlane.f32.xlu0 %v4716
      %v4718 = vpop.xlane.xlu0 %4717
      %v4719 = vsel %vm4628, %v4624, 0.0
      %4720 = vadd.xlane.f32.xlu0 %v4719
      %v4721 = vpop.xlane.xlu0 %4720
      %v4722 = vsel %vm4628, %v4625, 0.0
      %4723 = vadd.xlane.f32.xlu0 %v4722
      %v4724 = vpop.xlane.xlu0 %4723
      %v4725 = vrcp.pop 16.0
      %v4726 = vmul.f32 %v4631, %v4725
      %v4727 = vmul.f32 %v4634, %v4725
      %v4728 = vmul.f32 %v4637, %v4725
      %v4729 = vmul.f32 %v4640, %v4725
      %v4730 = vmul.f32 %v4643, %v4725
      %v4731 = vmul.f32 %v4646, %v4725
      %v4732 = vmul.f32 %v4649, %v4725
      %v4733 = vmul.f32 %v4652, %v4725
      %v4734 = vmul.f32 %v4655, %v4725
      %v4735 = vmul.f32 %v4658, %v4725
      %v4736 = vmul.f32 %v4661, %v4725
      %v4737 = vmul.f32 %v4664, %v4725
      %v4738 = vmul.f32 %v4667, %v4725
      %v4739 = vmul.f32 %v4670, %v4725
      %v4740 = vmul.f32 %v4673, %v4725
      %v4741 = vmul.f32 %v4676, %v4725
      %v4742 = vmul.f32 %v4679, %v4725
      %v4743 = vmul.f32 %v4682, %v4725
      %v4744 = vmul.f32 %v4685, %v4725
      %v4745 = vmul.f32 %v4688, %v4725
      %v4746 = vmul.f32 %v4691, %v4725
      %v4747 = vmul.f32 %v4694, %v4725
      %v4748 = vmul.f32 %v4697, %v4725
      %v4749 = vmul.f32 %v4700, %v4725
      %v4750 = vmul.f32 %v4703, %v4725
      %v4751 = vmul.f32 %v4706, %v4725
      %v4752 = vmul.f32 %v4709, %v4725
      %v4753 = vmul.f32 %v4712, %v4725
      %v4754 = vmul.f32 %v4715, %v4725
      %v4755 = vmul.f32 %v4718, %v4725
      %v4756 = vmul.f32 %v4721, %v4725
      %v4757 = vmul.f32 %v4724, %v4725
      %v4758 = vsub.f32 %v4594, %v4726
      %v4759 = vsub.f32 %v4595, %v4727
      %v4760 = vsub.f32 %v4596, %v4728
      %v4761 = vsub.f32 %v4597, %v4729
      %v4762 = vsub.f32 %v4598, %v4730
      %v4763 = vsub.f32 %v4599, %v4731
      %v4764 = vsub.f32 %v4600, %v4732
      %v4765 = vsub.f32 %v4601, %v4733
      %v4766 = vsub.f32 %v4602, %v4734
      %v4767 = vsub.f32 %v4603, %v4735
      %v4768 = vsub.f32 %v4604, %v4736
      %v4769 = vsub.f32 %v4605, %v4737
      %v4770 = vsub.f32 %v4606, %v4738
      %v4771 = vsub.f32 %v4607, %v4739
      %v4772 = vsub.f32 %v4608, %v4740
      %v4773 = vsub.f32 %v4609, %v4741
      %v4774 = vsub.f32 %v4610, %v4742
      %v4775 = vsub.f32 %v4611, %v4743
      %v4776 = vsub.f32 %v4612, %v4744
      %v4777 = vsub.f32 %v4613, %v4745
      %v4778 = vsub.f32 %v4614, %v4746
      %v4779 = vsub.f32 %v4615, %v4747
      %v4780 = vsub.f32 %v4616, %v4748
      %v4781 = vsub.f32 %v4617, %v4749
      %v4782 = vsub.f32 %v4618, %v4750
      %v4783 = vsub.f32 %v4619, %v4751
      %v4784 = vsub.f32 %v4620, %v4752
      %v4785 = vsub.f32 %v4621, %v4753
      %v4786 = vsub.f32 %v4622, %v4754
      %v4787 = vsub.f32 %v4623, %v4755
      %v4788 = vsub.f32 %v4624, %v4756
      %v4789 = vsub.f32 %v4625, %v4757
      %v4790 = vmul.f32 %v4758, %v4758
      %v4791 = vmul.f32 %v4759, %v4759
      %v4792 = vmul.f32 %v4760, %v4760
      %v4793 = vmul.f32 %v4761, %v4761
      %v4794 = vmul.f32 %v4762, %v4762
      %v4795 = vmul.f32 %v4763, %v4763
      %v4796 = vmul.f32 %v4764, %v4764
      %v4797 = vmul.f32 %v4765, %v4765
      %v4798 = vmul.f32 %v4766, %v4766
      %v4799 = vmul.f32 %v4767, %v4767
      %v4800 = vmul.f32 %v4768, %v4768
      %v4801 = vmul.f32 %v4769, %v4769
      %v4802 = vmul.f32 %v4770, %v4770
      %v4803 = vmul.f32 %v4771, %v4771
      %v4804 = vmul.f32 %v4772, %v4772
      %v4805 = vmul.f32 %v4773, %v4773
      %v4806 = vmul.f32 %v4774, %v4774
      %v4807 = vmul.f32 %v4775, %v4775
      %v4808 = vmul.f32 %v4776, %v4776
      %v4809 = vmul.f32 %v4777, %v4777
      %v4810 = vmul.f32 %v4778, %v4778
      %v4811 = vmul.f32 %v4779, %v4779
      %v4812 = vmul.f32 %v4780, %v4780
      %v4813 = vmul.f32 %v4781, %v4781
      %v4814 = vmul.f32 %v4782, %v4782
      %v4815 = vmul.f32 %v4783, %v4783
      %v4816 = vmul.f32 %v4784, %v4784
      %v4817 = vmul.f32 %v4785, %v4785
      %v4818 = vmul.f32 %v4786, %v4786
      %v4819 = vmul.f32 %v4787, %v4787
      %v4820 = vmul.f32 %v4788, %v4788
      %v4821 = vmul.f32 %v4789, %v4789
      %v4822 = vsel %vm4628, %v4790, 0.0
      %4823 = vadd.xlane.f32.xlu0 %v4822
      %v4824 = vpop.xlane.xlu0 %4823
      %v4825 = vsel %vm4628, %v4791, 0.0
      %4826 = vadd.xlane.f32.xlu0 %v4825
      %v4827 = vpop.xlane.xlu0 %4826
      %v4828 = vsel %vm4628, %v4792, 0.0
      %4829 = vadd.xlane.f32.xlu0 %v4828
      %v4830 = vpop.xlane.xlu0 %4829
      %v4831 = vsel %vm4628, %v4793, 0.0
      %4832 = vadd.xlane.f32.xlu0 %v4831
      %v4833 = vpop.xlane.xlu0 %4832
      %v4834 = vsel %vm4628, %v4794, 0.0
      %4835 = vadd.xlane.f32.xlu0 %v4834
      %v4836 = vpop.xlane.xlu0 %4835
      %v4837 = vsel %vm4628, %v4795, 0.0
      %4838 = vadd.xlane.f32.xlu0 %v4837
      %v4839 = vpop.xlane.xlu0 %4838
      %v4840 = vsel %vm4628, %v4796, 0.0
      %4841 = vadd.xlane.f32.xlu0 %v4840
      %v4842 = vpop.xlane.xlu0 %4841
      %v4843 = vsel %vm4628, %v4797, 0.0
      %4844 = vadd.xlane.f32.xlu0 %v4843
      %v4845 = vpop.xlane.xlu0 %4844
      %v4846 = vsel %vm4628, %v4798, 0.0
      %4847 = vadd.xlane.f32.xlu0 %v4846
      %v4848 = vpop.xlane.xlu0 %4847
      %v4849 = vsel %vm4628, %v4799, 0.0
      %4850 = vadd.xlane.f32.xlu0 %v4849
      %v4851 = vpop.xlane.xlu0 %4850
      %v4852 = vsel %vm4628, %v4800, 0.0
      %4853 = vadd.xlane.f32.xlu0 %v4852
      %v4854 = vpop.xlane.xlu0 %4853
      %v4855 = vsel %vm4628, %v4801, 0.0
      %4856 = vadd.xlane.f32.xlu0 %v4855
      %v4857 = vpop.xlane.xlu0 %4856
      %v4858 = vsel %vm4628, %v4802, 0.0
      %4859 = vadd.xlane.f32.xlu0 %v4858
      %v4860 = vpop.xlane.xlu0 %4859
      %v4861 = vsel %vm4628, %v4803, 0.0
      %4862 = vadd.xlane.f32.xlu0 %v4861
      %v4863 = vpop.xlane.xlu0 %4862
      %v4864 = vsel %vm4628, %v4804, 0.0
      %4865 = vadd.xlane.f32.xlu0 %v4864
      %v4866 = vpop.xlane.xlu0 %4865
      %v4867 = vsel %vm4628, %v4805, 0.0
      %4868 = vadd.xlane.f32.xlu0 %v4867
      %v4869 = vpop.xlane.xlu0 %4868
      %v4870 = vsel %vm4628, %v4806, 0.0
      %4871 = vadd.xlane.f32.xlu0 %v4870
      %v4872 = vpop.xlane.xlu0 %4871
      %v4873 = vsel %vm4628, %v4807, 0.0
      %4874 = vadd.xlane.f32.xlu0 %v4873
      %v4875 = vpop.xlane.xlu0 %4874
      %v4876 = vsel %vm4628, %v4808, 0.0
      %4877 = vadd.xlane.f32.xlu0 %v4876
      %v4878 = vpop.xlane.xlu0 %4877
      %v4879 = vsel %vm4628, %v4809, 0.0
      %4880 = vadd.xlane.f32.xlu0 %v4879
      %v4881 = vpop.xlane.xlu0 %4880
      %v4882 = vsel %vm4628, %v4810, 0.0
      %4883 = vadd.xlane.f32.xlu0 %v4882
      %v4884 = vpop.xlane.xlu0 %4883
      %v4885 = vsel %vm4628, %v4811, 0.0
      %4886 = vadd.xlane.f32.xlu0 %v4885
      %v4887 = vpop.xlane.xlu0 %4886
      %v4888 = vsel %vm4628, %v4812, 0.0
      %4889 = vadd.xlane.f32.xlu0 %v4888
      %v4890 = vpop.xlane.xlu0 %4889
      %v4891 = vsel %vm4628, %v4813, 0.0
      %4892 = vadd.xlane.f32.xlu0 %v4891
      %v4893 = vpop.xlane.xlu0 %4892
      %v4894 = vsel %vm4628, %v4814, 0.0
      %4895 = vadd.xlane.f32.xlu0 %v4894
      %v4896 = vpop.xlane.xlu0 %4895
      %v4897 = vsel %vm4628, %v4815, 0.0
      %4898 = vadd.xlane.f32.xlu0 %v4897
      %v4899 = vpop.xlane.xlu0 %4898
      %v4900 = vsel %vm4628, %v4816, 0.0
      %4901 = vadd.xlane.f32.xlu0 %v4900
      %v4902 = vpop.xlane.xlu0 %4901
      %v4903 = vsel %vm4628, %v4817, 0.0
      %4904 = vadd.xlane.f32.xlu0 %v4903
      %v4905 = vpop.xlane.xlu0 %4904
      %v4906 = vsel %vm4628, %v4818, 0.0
      %4907 = vadd.xlane.f32.xlu0 %v4906
      %v4908 = vpop.xlane.xlu0 %4907
      %v4909 = vsel %vm4628, %v4819, 0.0
      %4910 = vadd.xlane.f32.xlu0 %v4909
      %v4911 = vpop.xlane.xlu0 %4910
      %v4912 = vsel %vm4628, %v4820, 0.0
      %4913 = vadd.xlane.f32.xlu0 %v4912
      %v4914 = vpop.xlane.xlu0 %4913
      %v4915 = vsel %vm4628, %v4821, 0.0
      %4916 = vadd.xlane.f32.xlu0 %v4915
      %v4917 = vpop.xlane.xlu0 %4916
      %v4918 = vmul.f32 %v4824, %v4725
      %v4919 = vmul.f32 %v4827, %v4725
      %v4920 = vmul.f32 %v4830, %v4725
      %v4921 = vmul.f32 %v4833, %v4725
      %v4922 = vmul.f32 %v4836, %v4725
      %v4923 = vmul.f32 %v4839, %v4725
      %v4924 = vmul.f32 %v4842, %v4725
      %v4925 = vmul.f32 %v4845, %v4725
      %v4926 = vmul.f32 %v4848, %v4725
      %v4927 = vmul.f32 %v4851, %v4725
      %v4928 = vmul.f32 %v4854, %v4725
      %v4929 = vmul.f32 %v4857, %v4725
      %v4930 = vmul.f32 %v4860, %v4725
      %v4931 = vmul.f32 %v4863, %v4725
      %v4932 = vmul.f32 %v4866, %v4725
      %v4933 = vmul.f32 %v4869, %v4725
      %v4934 = vmul.f32 %v4872, %v4725
      %v4935 = vmul.f32 %v4875, %v4725
      %v4936 = vmul.f32 %v4878, %v4725
      %v4937 = vmul.f32 %v4881, %v4725
      %v4938 = vmul.f32 %v4884, %v4725
      %v4939 = vmul.f32 %v4887, %v4725
      %v4940 = vmul.f32 %v4890, %v4725
      %v4941 = vmul.f32 %v4893, %v4725
      %v4942 = vmul.f32 %v4896, %v4725
      %v4943 = vmul.f32 %v4899, %v4725
      %v4944 = vmul.f32 %v4902, %v4725
      %v4945 = vmul.f32 %v4905, %v4725
      %v4946 = vmul.f32 %v4908, %v4725
      %v4947 = vmul.f32 %v4911, %v4725
      %v4948 = vmul.f32 %v4914, %v4725
      %v4949 = vmul.f32 %v4917, %v4725
      %v4950 = vadd.f32 %v4918, 1e-05
      %v4951 = vadd.f32 %v4919, 1e-05
      %v4952 = vadd.f32 %v4920, 1e-05
      %v4953 = vadd.f32 %v4921, 1e-05
      %v4954 = vadd.f32 %v4922, 1e-05
      %v4955 = vadd.f32 %v4923, 1e-05
      %v4956 = vadd.f32 %v4924, 1e-05
      %v4957 = vadd.f32 %v4925, 1e-05
      %v4958 = vadd.f32 %v4926, 1e-05
      %v4959 = vadd.f32 %v4927, 1e-05
      %v4960 = vadd.f32 %v4928, 1e-05
      %v4961 = vadd.f32 %v4929, 1e-05
      %v4962 = vadd.f32 %v4930, 1e-05
      %v4963 = vadd.f32 %v4931, 1e-05
      %v4964 = vadd.f32 %v4932, 1e-05
      %v4965 = vadd.f32 %v4933, 1e-05
      %v4966 = vadd.f32 %v4934, 1e-05
      %v4967 = vadd.f32 %v4935, 1e-05
      %v4968 = vadd.f32 %v4936, 1e-05
      %v4969 = vadd.f32 %v4937, 1e-05
      %v4970 = vadd.f32 %v4938, 1e-05
      %v4971 = vadd.f32 %v4939, 1e-05
      %v4972 = vadd.f32 %v4940, 1e-05
      %v4973 = vadd.f32 %v4941, 1e-05
      %v4974 = vadd.f32 %v4942, 1e-05
      %v4975 = vadd.f32 %v4943, 1e-05
      %v4976 = vadd.f32 %v4944, 1e-05
      %v4977 = vadd.f32 %v4945, 1e-05
      %v4978 = vadd.f32 %v4946, 1e-05
      %v4979 = vadd.f32 %v4947, 1e-05
      %v4980 = vadd.f32 %v4948, 1e-05
      %v4981 = vadd.f32 %v4949, 1e-05
      %v4982 = vrsqrt.pop %v4950
      %v4983 = vrsqrt.pop %v4951
      %v4984 = vrsqrt.pop %v4952
      %v4985 = vrsqrt.pop %v4953
      %v4986 = vrsqrt.pop %v4954
      %v4987 = vrsqrt.pop %v4955
      %v4988 = vrsqrt.pop %v4956
      %v4989 = vrsqrt.pop %v4957
      %v4990 = vrsqrt.pop %v4958
      %v4991 = vrsqrt.pop %v4959
      %v4992 = vrsqrt.pop %v4960
      %v4993 = vrsqrt.pop %v4961
      %v4994 = vrsqrt.pop %v4962
      %v4995 = vrsqrt.pop %v4963
      %v4996 = vrsqrt.pop %v4964
      %v4997 = vrsqrt.pop %v4965
      %v4998 = vrsqrt.pop %v4966
      %v4999 = vrsqrt.pop %v4967
      %v5000 = vrsqrt.pop %v4968
      %v5001 = vrsqrt.pop %v4969
      %v5002 = vrsqrt.pop %v4970
      %v5003 = vrsqrt.pop %v4971
      %v5004 = vrsqrt.pop %v4972
      %v5005 = vrsqrt.pop %v4973
      %v5006 = vrsqrt.pop %v4974
      %v5007 = vrsqrt.pop %v4975
      %v5008 = vrsqrt.pop %v4976
      %v5009 = vrsqrt.pop %v4977
      %v5010 = vrsqrt.pop %v4978
      %v5011 = vrsqrt.pop %v4979
      %v5012 = vrsqrt.pop %v4980
      %v5013 = vrsqrt.pop %v4981
      %v5014 = vmul.f32 %v4758, %v4982
      %v5015 = vmul.f32 %v4759, %v4983
      %v5016 = vmul.f32 %v4760, %v4984
      %v5017 = vmul.f32 %v4761, %v4985
      %v5018 = vmul.f32 %v4762, %v4986
      %v5019 = vmul.f32 %v4763, %v4987
      %v5020 = vmul.f32 %v4764, %v4988
      %v5021 = vmul.f32 %v4765, %v4989
      %v5022 = vmul.f32 %v4766, %v4990
      %v5023 = vmul.f32 %v4767, %v4991
      %v5024 = vmul.f32 %v4768, %v4992
      %v5025 = vmul.f32 %v4769, %v4993
      %v5026 = vmul.f32 %v4770, %v4994
      %v5027 = vmul.f32 %v4771, %v4995
      %v5028 = vmul.f32 %v4772, %v4996
      %v5029 = vmul.f32 %v4773, %v4997
      %v5030 = vmul.f32 %v4774, %v4998
      %v5031 = vmul.f32 %v4775, %v4999
      %v5032 = vmul.f32 %v4776, %v5000
      %v5033 = vmul.f32 %v4777, %v5001
      %v5034 = vmul.f32 %v4778, %v5002
      %v5035 = vmul.f32 %v4779, %v5003
      %v5036 = vmul.f32 %v4780, %v5004
      %v5037 = vmul.f32 %v4781, %v5005
      %v5038 = vmul.f32 %v4782, %v5006
      %v5039 = vmul.f32 %v4783, %v5007
      %v5040 = vmul.f32 %v4784, %v5008
      %v5041 = vmul.f32 %v4785, %v5009
      %v5042 = vmul.f32 %v4786, %v5010
      %v5043 = vmul.f32 %v4787, %v5011
      %v5044 = vmul.f32 %v4788, %v5012
      %v5045 = vmul.f32 %v4789, %v5013
      %v5047 = vlaneseq
      %v5048 = vshrl.u32 %v5047, 7
      %v5049 = vsub.s32 0, %v5048
      %v5050 = vrot.slane %v4626, %v5049
      %v5052 = vmul.f32 %v5014, %v5050
      %v5053 = vmul.f32 %v5015, %v5050
      %v5054 = vmul.f32 %v5016, %v5050
      %v5055 = vmul.f32 %v5017, %v5050
      %v5056 = vmul.f32 %v5018, %v5050
      %v5057 = vmul.f32 %v5019, %v5050
      %v5058 = vmul.f32 %v5020, %v5050
      %v5059 = vmul.f32 %v5021, %v5050
      %v5060 = vmul.f32 %v5022, %v5050
      %v5061 = vmul.f32 %v5023, %v5050
      %v5062 = vmul.f32 %v5024, %v5050
      %v5063 = vmul.f32 %v5025, %v5050
      %v5064 = vmul.f32 %v5026, %v5050
      %v5065 = vmul.f32 %v5027, %v5050
      %v5066 = vmul.f32 %v5028, %v5050
      %v5067 = vmul.f32 %v5029, %v5050
      %v5068 = vmul.f32 %v5030, %v5050
      %v5069 = vmul.f32 %v5031, %v5050
      %v5070 = vmul.f32 %v5032, %v5050
      %v5071 = vmul.f32 %v5033, %v5050
      %v5072 = vmul.f32 %v5034, %v5050
      %v5073 = vmul.f32 %v5035, %v5050
      %v5074 = vmul.f32 %v5036, %v5050
      %v5075 = vmul.f32 %v5037, %v5050
      %v5076 = vmul.f32 %v5038, %v5050
      %v5077 = vmul.f32 %v5039, %v5050
      %v5078 = vmul.f32 %v5040, %v5050
      %v5079 = vmul.f32 %v5041, %v5050
      %v5080 = vmul.f32 %v5042, %v5050
      %v5081 = vmul.f32 %v5043, %v5050
      %v5082 = vmul.f32 %v5044, %v5050
      %v5083 = vmul.f32 %v5045, %v5050
      %v5085 = vlaneseq
      %v5086 = vshrl.u32 %v5085, 7
      %v5087 = vsub.s32 0, %v5086
      %v5088 = vrot.slane %v4627, %v5087
      %v5090 = vadd.f32 %v5052, %v5088
      %v5091 = vadd.f32 %v5053, %v5088
      %v5092 = vadd.f32 %v5054, %v5088
      %v5093 = vadd.f32 %v5055, %v5088
      %v5094 = vadd.f32 %v5056, %v5088
      %v5095 = vadd.f32 %v5057, %v5088
      %v5096 = vadd.f32 %v5058, %v5088
      %v5097 = vadd.f32 %v5059, %v5088
      %v5098 = vadd.f32 %v5060, %v5088
      %v5099 = vadd.f32 %v5061, %v5088
      %v5100 = vadd.f32 %v5062, %v5088
      %v5101 = vadd.f32 %v5063, %v5088
      %v5102 = vadd.f32 %v5064, %v5088
      %v5103 = vadd.f32 %v5065, %v5088
      %v5104 = vadd.f32 %v5066, %v5088
      %v5105 = vadd.f32 %v5067, %v5088
      %v5106 = vadd.f32 %v5068, %v5088
      %v5107 = vadd.f32 %v5069, %v5088
      %v5108 = vadd.f32 %v5070, %v5088
      %v5109 = vadd.f32 %v5071, %v5088
      %v5110 = vadd.f32 %v5072, %v5088
      %v5111 = vadd.f32 %v5073, %v5088
      %v5112 = vadd.f32 %v5074, %v5088
      %v5113 = vadd.f32 %v5075, %v5088
      %v5114 = vadd.f32 %v5076, %v5088
      %v5115 = vadd.f32 %v5077, %v5088
      %v5116 = vadd.f32 %v5078, %v5088
      %v5117 = vadd.f32 %v5079, %v5088
      %v5118 = vadd.f32 %v5080, %v5088
      %v5119 = vadd.f32 %v5081, %v5088
      %v5120 = vadd.f32 %v5082, %v5088
      %v5121 = vadd.f32 %v5083, %v5088
      %v5122 = vmax.f32 %v5090, 0.0
      %v5123 = vmax.f32 %v5091, 0.0
      %v5124 = vmax.f32 %v5092, 0.0
      %v5125 = vmax.f32 %v5093, 0.0
      %v5126 = vmax.f32 %v5094, 0.0
      %v5127 = vmax.f32 %v5095, 0.0
      %v5128 = vmax.f32 %v5096, 0.0
      %v5129 = vmax.f32 %v5097, 0.0
      %v5130 = vmax.f32 %v5098, 0.0
      %v5131 = vmax.f32 %v5099, 0.0
      %v5132 = vmax.f32 %v5100, 0.0
      %v5133 = vmax.f32 %v5101, 0.0
      %v5134 = vmax.f32 %v5102, 0.0
      %v5135 = vmax.f32 %v5103, 0.0
      %v5136 = vmax.f32 %v5104, 0.0
      %v5137 = vmax.f32 %v5105, 0.0
      %v5138 = vmax.f32 %v5106, 0.0
      %v5139 = vmax.f32 %v5107, 0.0
      %v5140 = vmax.f32 %v5108, 0.0
      %v5141 = vmax.f32 %v5109, 0.0
      %v5142 = vmax.f32 %v5110, 0.0
      %v5143 = vmax.f32 %v5111, 0.0
      %v5144 = vmax.f32 %v5112, 0.0
      %v5145 = vmax.f32 %v5113, 0.0
      %v5146 = vmax.f32 %v5114, 0.0
      %v5147 = vmax.f32 %v5115, 0.0
      %v5148 = vmax.f32 %v5116, 0.0
      %v5149 = vmax.f32 %v5117, 0.0
      %v5150 = vmax.f32 %v5118, 0.0
      %v5151 = vmax.f32 %v5119, 0.0
      %v5152 = vmax.f32 %v5120, 0.0
      %v5153 = vmax.f32 %v5121, 0.0
      %5186 = vrot.lane.b32.xlu0 %v5122, 16
      %v5187 = vpop.permute.xlu0 %5186
      %5188 = vrot.lane.b32.xlu0 %v5123, 16
      %v5189 = vpop.permute.xlu0 %5188
      %5190 = vrot.lane.b32.xlu0 %v5124, 16
      %v5191 = vpop.permute.xlu0 %5190
      %5192 = vrot.lane.b32.xlu0 %v5125, 16
      %v5193 = vpop.permute.xlu0 %5192
      %5194 = vrot.lane.b32.xlu0 %v5126, 16
      %v5195 = vpop.permute.xlu0 %5194
      %5196 = vrot.lane.b32.xlu0 %v5127, 16
      %v5197 = vpop.permute.xlu0 %5196
      %5198 = vrot.lane.b32.xlu0 %v5128, 16
      %v5199 = vpop.permute.xlu0 %5198
      %5200 = vrot.lane.b32.xlu0 %v5129, 16
      %v5201 = vpop.permute.xlu0 %5200
      %5202 = vrot.lane.b32.xlu0 %v5130, 16
      %v5203 = vpop.permute.xlu0 %5202
      %5204 = vrot.lane.b32.xlu0 %v5131, 16
      %v5205 = vpop.permute.xlu0 %5204
      %5206 = vrot.lane.b32.xlu0 %v5132, 16
      %v5207 = vpop.permute.xlu0 %5206
      %5208 = vrot.lane.b32.xlu0 %v5133, 16
      %v5209 = vpop.permute.xlu0 %5208
      %5210 = vrot.lane.b32.xlu0 %v5134, 16
      %v5211 = vpop.permute.xlu0 %5210
      %5212 = vrot.lane.b32.xlu0 %v5135, 16
      %v5213 = vpop.permute.xlu0 %5212
      %5214 = vrot.lane.b32.xlu0 %v5136, 16
      %v5215 = vpop.permute.xlu0 %5214
      %5216 = vrot.lane.b32.xlu0 %v5137, 16
      %v5217 = vpop.permute.xlu0 %5216
      %5218 = vrot.lane.b32.xlu0 %v5138, 16
      %v5219 = vpop.permute.xlu0 %5218
      %5220 = vrot.lane.b32.xlu0 %v5139, 16
      %v5221 = vpop.permute.xlu0 %5220
      %5222 = vrot.lane.b32.xlu0 %v5140, 16
      %v5223 = vpop.permute.xlu0 %5222
      %5224 = vrot.lane.b32.xlu0 %v5141, 16
      %v5225 = vpop.permute.xlu0 %5224
      %5226 = vrot.lane.b32.xlu0 %v5142, 16
      %v5227 = vpop.permute.xlu0 %5226
      %5228 = vrot.lane.b32.xlu0 %v5143, 16
      %v5229 = vpop.permute.xlu0 %5228
      %5230 = vrot.lane.b32.xlu0 %v5144, 16
      %v5231 = vpop.permute.xlu0 %5230
      %5232 = vrot.lane.b32.xlu0 %v5145, 16
      %v5233 = vpop.permute.xlu0 %5232
      %5234 = vrot.lane.b32.xlu0 %v5146, 16
      %v5235 = vpop.permute.xlu0 %5234
      %5236 = vrot.lane.b32.xlu0 %v5147, 16
      %v5237 = vpop.permute.xlu0 %5236
      %5238 = vrot.lane.b32.xlu0 %v5148, 16
      %v5239 = vpop.permute.xlu0 %5238
      %5240 = vrot.lane.b32.xlu0 %v5149, 16
      %v5241 = vpop.permute.xlu0 %5240
      %5242 = vrot.lane.b32.xlu0 %v5150, 16
      %v5243 = vpop.permute.xlu0 %5242
      %5244 = vrot.lane.b32.xlu0 %v5151, 16
      %v5245 = vpop.permute.xlu0 %5244
      %5246 = vrot.lane.b32.xlu0 %v5152, 16
      %v5247 = vpop.permute.xlu0 %5246
      %5248 = vrot.lane.b32.xlu0 %v5153, 16
      %v5249 = vpop.permute.xlu0 %5248
      %5282 = vrot.lane.b32.xlu0 %v5122, 32
      %v5283 = vpop.permute.xlu0 %5282
      %5284 = vrot.lane.b32.xlu0 %v5123, 32
      %v5285 = vpop.permute.xlu0 %5284
      %5286 = vrot.lane.b32.xlu0 %v5124, 32
      %v5287 = vpop.permute.xlu0 %5286
      %5288 = vrot.lane.b32.xlu0 %v5125, 32
      %v5289 = vpop.permute.xlu0 %5288
      %5290 = vrot.lane.b32.xlu0 %v5126, 32
      %v5291 = vpop.permute.xlu0 %5290
      %5292 = vrot.lane.b32.xlu0 %v5127, 32
      %v5293 = vpop.permute.xlu0 %5292
      %5294 = vrot.lane.b32.xlu0 %v5128, 32
      %v5295 = vpop.permute.xlu0 %5294
      %5296 = vrot.lane.b32.xlu0 %v5129, 32
      %v5297 = vpop.permute.xlu0 %5296
      %5298 = vrot.lane.b32.xlu0 %v5130, 32
      %v5299 = vpop.permute.xlu0 %5298
      %5300 = vrot.lane.b32.xlu0 %v5131, 32
      %v5301 = vpop.permute.xlu0 %5300
      %5302 = vrot.lane.b32.xlu0 %v5132, 32
      %v5303 = vpop.permute.xlu0 %5302
      %5304 = vrot.lane.b32.xlu0 %v5133, 32
      %v5305 = vpop.permute.xlu0 %5304
      %5306 = vrot.lane.b32.xlu0 %v5134, 32
      %v5307 = vpop.permute.xlu0 %5306
      %5308 = vrot.lane.b32.xlu0 %v5135, 32
      %v5309 = vpop.permute.xlu0 %5308
      %5310 = vrot.lane.b32.xlu0 %v5136, 32
      %v5311 = vpop.permute.xlu0 %5310
      %5312 = vrot.lane.b32.xlu0 %v5137, 32
      %v5313 = vpop.permute.xlu0 %5312
      %5314 = vrot.lane.b32.xlu0 %v5138, 32
      %v5315 = vpop.permute.xlu0 %5314
      %5316 = vrot.lane.b32.xlu0 %v5139, 32
      %v5317 = vpop.permute.xlu0 %5316
      %5318 = vrot.lane.b32.xlu0 %v5140, 32
      %v5319 = vpop.permute.xlu0 %5318
      %5320 = vrot.lane.b32.xlu0 %v5141, 32
      %v5321 = vpop.permute.xlu0 %5320
      %5322 = vrot.lane.b32.xlu0 %v5142, 32
      %v5323 = vpop.permute.xlu0 %5322
      %5324 = vrot.lane.b32.xlu0 %v5143, 32
      %v5325 = vpop.permute.xlu0 %5324
      %5326 = vrot.lane.b32.xlu0 %v5144, 32
      %v5327 = vpop.permute.xlu0 %5326
      %5328 = vrot.lane.b32.xlu0 %v5145, 32
      %v5329 = vpop.permute.xlu0 %5328
      %5330 = vrot.lane.b32.xlu0 %v5146, 32
      %v5331 = vpop.permute.xlu0 %5330
      %5332 = vrot.lane.b32.xlu0 %v5147, 32
      %v5333 = vpop.permute.xlu0 %5332
      %5334 = vrot.lane.b32.xlu0 %v5148, 32
      %v5335 = vpop.permute.xlu0 %5334
      %5336 = vrot.lane.b32.xlu0 %v5149, 32
      %v5337 = vpop.permute.xlu0 %5336
      %5338 = vrot.lane.b32.xlu0 %v5150, 32
      %v5339 = vpop.permute.xlu0 %5338
      %5340 = vrot.lane.b32.xlu0 %v5151, 32
      %v5341 = vpop.permute.xlu0 %5340
      %5342 = vrot.lane.b32.xlu0 %v5152, 32
      %v5343 = vpop.permute.xlu0 %5342
      %5344 = vrot.lane.b32.xlu0 %v5153, 32
      %v5345 = vpop.permute.xlu0 %5344
      %5378 = vrot.lane.b32.xlu0 %v5122, 48
      %v5379 = vpop.permute.xlu0 %5378
      %5380 = vrot.lane.b32.xlu0 %v5123, 48
      %v5381 = vpop.permute.xlu0 %5380
      %5382 = vrot.lane.b32.xlu0 %v5124, 48
      %v5383 = vpop.permute.xlu0 %5382
      %5384 = vrot.lane.b32.xlu0 %v5125, 48
      %v5385 = vpop.permute.xlu0 %5384
      %5386 = vrot.lane.b32.xlu0 %v5126, 48
      %v5387 = vpop.permute.xlu0 %5386
      %5388 = vrot.lane.b32.xlu0 %v5127, 48
      %v5389 = vpop.permute.xlu0 %5388
      %5390 = vrot.lane.b32.xlu0 %v5128, 48
      %v5391 = vpop.permute.xlu0 %5390
      %5392 = vrot.lane.b32.xlu0 %v5129, 48
      %v5393 = vpop.permute.xlu0 %5392
      %5394 = vrot.lane.b32.xlu0 %v5130, 48
      %v5395 = vpop.permute.xlu0 %5394
      %5396 = vrot.lane.b32.xlu0 %v5131, 48
      %v5397 = vpop.permute.xlu0 %5396
      %5398 = vrot.lane.b32.xlu0 %v5132, 48
      %v5399 = vpop.permute.xlu0 %5398
      %5400 = vrot.lane.b32.xlu0 %v5133, 48
      %v5401 = vpop.permute.xlu0 %5400
      %5402 = vrot.lane.b32.xlu0 %v5134, 48
      %v5403 = vpop.permute.xlu0 %5402
      %5404 = vrot.lane.b32.xlu0 %v5135, 48
      %v5405 = vpop.permute.xlu0 %5404
      %5406 = vrot.lane.b32.xlu0 %v5136, 48
      %v5407 = vpop.permute.xlu0 %5406
      %5408 = vrot.lane.b32.xlu0 %v5137, 48
      %v5409 = vpop.permute.xlu0 %5408
      %5410 = vrot.lane.b32.xlu0 %v5138, 48
      %v5411 = vpop.permute.xlu0 %5410
      %5412 = vrot.lane.b32.xlu0 %v5139, 48
      %v5413 = vpop.permute.xlu0 %5412
      %5414 = vrot.lane.b32.xlu0 %v5140, 48
      %v5415 = vpop.permute.xlu0 %5414
      %5416 = vrot.lane.b32.xlu0 %v5141, 48
      %v5417 = vpop.permute.xlu0 %5416
      %5418 = vrot.lane.b32.xlu0 %v5142, 48
      %v5419 = vpop.permute.xlu0 %5418
      %5420 = vrot.lane.b32.xlu0 %v5143, 48
      %v5421 = vpop.permute.xlu0 %5420
      %5422 = vrot.lane.b32.xlu0 %v5144, 48
      %v5423 = vpop.permute.xlu0 %5422
      %5424 = vrot.lane.b32.xlu0 %v5145, 48
      %v5425 = vpop.permute.xlu0 %5424
      %5426 = vrot.lane.b32.xlu0 %v5146, 48
      %v5427 = vpop.permute.xlu0 %5426
      %5428 = vrot.lane.b32.xlu0 %v5147, 48
      %v5429 = vpop.permute.xlu0 %5428
      %5430 = vrot.lane.b32.xlu0 %v5148, 48
      %v5431 = vpop.permute.xlu0 %5430
      %5432 = vrot.lane.b32.xlu0 %v5149, 48
      %v5433 = vpop.permute.xlu0 %5432
      %5434 = vrot.lane.b32.xlu0 %v5150, 48
      %v5435 = vpop.permute.xlu0 %5434
      %5436 = vrot.lane.b32.xlu0 %v5151, 48
      %v5437 = vpop.permute.xlu0 %5436
      %5438 = vrot.lane.b32.xlu0 %v5152, 48
      %v5439 = vpop.permute.xlu0 %5438
      %5440 = vrot.lane.b32.xlu0 %v5153, 48
      %v5441 = vpop.permute.xlu0 %5440
      %5474 = vrot.lane.b32.xlu0 %v5122, 64
      %v5475 = vpop.permute.xlu0 %5474
      %5476 = vrot.lane.b32.xlu0 %v5123, 64
      %v5477 = vpop.permute.xlu0 %5476
      %5478 = vrot.lane.b32.xlu0 %v5124, 64
      %v5479 = vpop.permute.xlu0 %5478
      %5480 = vrot.lane.b32.xlu0 %v5125, 64
      %v5481 = vpop.permute.xlu0 %5480
      %5482 = vrot.lane.b32.xlu0 %v5126, 64
      %v5483 = vpop.permute.xlu0 %5482
      %5484 = vrot.lane.b32.xlu0 %v5127, 64
      %v5485 = vpop.permute.xlu0 %5484
      %5486 = vrot.lane.b32.xlu0 %v5128, 64
      %v5487 = vpop.permute.xlu0 %5486
      %5488 = vrot.lane.b32.xlu0 %v5129, 64
      %v5489 = vpop.permute.xlu0 %5488
      %5490 = vrot.lane.b32.xlu0 %v5130, 64
      %v5491 = vpop.permute.xlu0 %5490
      %5492 = vrot.lane.b32.xlu0 %v5131, 64
      %v5493 = vpop.permute.xlu0 %5492
      %5494 = vrot.lane.b32.xlu0 %v5132, 64
      %v5495 = vpop.permute.xlu0 %5494
      %5496 = vrot.lane.b32.xlu0 %v5133, 64
      %v5497 = vpop.permute.xlu0 %5496
      %5498 = vrot.lane.b32.xlu0 %v5134, 64
      %v5499 = vpop.permute.xlu0 %5498
      %5500 = vrot.lane.b32.xlu0 %v5135, 64
      %v5501 = vpop.permute.xlu0 %5500
      %5502 = vrot.lane.b32.xlu0 %v5136, 64
      %v5503 = vpop.permute.xlu0 %5502
      %5504 = vrot.lane.b32.xlu0 %v5137, 64
      %v5505 = vpop.permute.xlu0 %5504
      %5506 = vrot.lane.b32.xlu0 %v5138, 64
      %v5507 = vpop.permute.xlu0 %5506
      %5508 = vrot.lane.b32.xlu0 %v5139, 64
      %v5509 = vpop.permute.xlu0 %5508
      %5510 = vrot.lane.b32.xlu0 %v5140, 64
      %v5511 = vpop.permute.xlu0 %5510
      %5512 = vrot.lane.b32.xlu0 %v5141, 64
      %v5513 = vpop.permute.xlu0 %5512
      %5514 = vrot.lane.b32.xlu0 %v5142, 64
      %v5515 = vpop.permute.xlu0 %5514
      %5516 = vrot.lane.b32.xlu0 %v5143, 64
      %v5517 = vpop.permute.xlu0 %5516
      %5518 = vrot.lane.b32.xlu0 %v5144, 64
      %v5519 = vpop.permute.xlu0 %5518
      %5520 = vrot.lane.b32.xlu0 %v5145, 64
      %v5521 = vpop.permute.xlu0 %5520
      %5522 = vrot.lane.b32.xlu0 %v5146, 64
      %v5523 = vpop.permute.xlu0 %5522
      %5524 = vrot.lane.b32.xlu0 %v5147, 64
      %v5525 = vpop.permute.xlu0 %5524
      %5526 = vrot.lane.b32.xlu0 %v5148, 64
      %v5527 = vpop.permute.xlu0 %5526
      %5528 = vrot.lane.b32.xlu0 %v5149, 64
      %v5529 = vpop.permute.xlu0 %5528
      %5530 = vrot.lane.b32.xlu0 %v5150, 64
      %v5531 = vpop.permute.xlu0 %5530
      %5532 = vrot.lane.b32.xlu0 %v5151, 64
      %v5533 = vpop.permute.xlu0 %5532
      %5534 = vrot.lane.b32.xlu0 %v5152, 64
      %v5535 = vpop.permute.xlu0 %5534
      %5536 = vrot.lane.b32.xlu0 %v5153, 64
      %v5537 = vpop.permute.xlu0 %5536
      %5570 = vrot.lane.b32.xlu0 %v5122, 80
      %v5571 = vpop.permute.xlu0 %5570
      %5572 = vrot.lane.b32.xlu0 %v5123, 80
      %v5573 = vpop.permute.xlu0 %5572
      %5574 = vrot.lane.b32.xlu0 %v5124, 80
      %v5575 = vpop.permute.xlu0 %5574
      %5576 = vrot.lane.b32.xlu0 %v5125, 80
      %v5577 = vpop.permute.xlu0 %5576
      %5578 = vrot.lane.b32.xlu0 %v5126, 80
      %v5579 = vpop.permute.xlu0 %5578
      %5580 = vrot.lane.b32.xlu0 %v5127, 80
      %v5581 = vpop.permute.xlu0 %5580
      %5582 = vrot.lane.b32.xlu0 %v5128, 80
      %v5583 = vpop.permute.xlu0 %5582
      %5584 = vrot.lane.b32.xlu0 %v5129, 80
      %v5585 = vpop.permute.xlu0 %5584
      %5586 = vrot.lane.b32.xlu0 %v5130, 80
      %v5587 = vpop.permute.xlu0 %5586
      %5588 = vrot.lane.b32.xlu0 %v5131, 80
      %v5589 = vpop.permute.xlu0 %5588
      %5590 = vrot.lane.b32.xlu0 %v5132, 80
      %v5591 = vpop.permute.xlu0 %5590
      %5592 = vrot.lane.b32.xlu0 %v5133, 80
      %v5593 = vpop.permute.xlu0 %5592
      %5594 = vrot.lane.b32.xlu0 %v5134, 80
      %v5595 = vpop.permute.xlu0 %5594
      %5596 = vrot.lane.b32.xlu0 %v5135, 80
      %v5597 = vpop.permute.xlu0 %5596
      %5598 = vrot.lane.b32.xlu0 %v5136, 80
      %v5599 = vpop.permute.xlu0 %5598
      %5600 = vrot.lane.b32.xlu0 %v5137, 80
      %v5601 = vpop.permute.xlu0 %5600
      %5602 = vrot.lane.b32.xlu0 %v5138, 80
      %v5603 = vpop.permute.xlu0 %5602
      %5604 = vrot.lane.b32.xlu0 %v5139, 80
      %v5605 = vpop.permute.xlu0 %5604
      %5606 = vrot.lane.b32.xlu0 %v5140, 80
      %v5607 = vpop.permute.xlu0 %5606
      %5608 = vrot.lane.b32.xlu0 %v5141, 80
      %v5609 = vpop.permute.xlu0 %5608
      %5610 = vrot.lane.b32.xlu0 %v5142, 80
      %v5611 = vpop.permute.xlu0 %5610
      %5612 = vrot.lane.b32.xlu0 %v5143, 80
      %v5613 = vpop.permute.xlu0 %5612
      %5614 = vrot.lane.b32.xlu0 %v5144, 80
      %v5615 = vpop.permute.xlu0 %5614
      %5616 = vrot.lane.b32.xlu0 %v5145, 80
      %v5617 = vpop.permute.xlu0 %5616
      %5618 = vrot.lane.b32.xlu0 %v5146, 80
      %v5619 = vpop.permute.xlu0 %5618
      %5620 = vrot.lane.b32.xlu0 %v5147, 80
      %v5621 = vpop.permute.xlu0 %5620
      %5622 = vrot.lane.b32.xlu0 %v5148, 80
      %v5623 = vpop.permute.xlu0 %5622
      %5624 = vrot.lane.b32.xlu0 %v5149, 80
      %v5625 = vpop.permute.xlu0 %5624
      %5626 = vrot.lane.b32.xlu0 %v5150, 80
      %v5627 = vpop.permute.xlu0 %5626
      %5628 = vrot.lane.b32.xlu0 %v5151, 80
      %v5629 = vpop.permute.xlu0 %5628
      %5630 = vrot.lane.b32.xlu0 %v5152, 80
      %v5631 = vpop.permute.xlu0 %5630
      %5632 = vrot.lane.b32.xlu0 %v5153, 80
      %v5633 = vpop.permute.xlu0 %5632
      %5666 = vrot.lane.b32.xlu0 %v5122, 96
      %v5667 = vpop.permute.xlu0 %5666
      %5668 = vrot.lane.b32.xlu0 %v5123, 96
      %v5669 = vpop.permute.xlu0 %5668
      %5670 = vrot.lane.b32.xlu0 %v5124, 96
      %v5671 = vpop.permute.xlu0 %5670
      %5672 = vrot.lane.b32.xlu0 %v5125, 96
      %v5673 = vpop.permute.xlu0 %5672
      %5674 = vrot.lane.b32.xlu0 %v5126, 96
      %v5675 = vpop.permute.xlu0 %5674
      %5676 = vrot.lane.b32.xlu0 %v5127, 96
      %v5677 = vpop.permute.xlu0 %5676
      %5678 = vrot.lane.b32.xlu0 %v5128, 96
      %v5679 = vpop.permute.xlu0 %5678
      %5680 = vrot.lane.b32.xlu0 %v5129, 96
      %v5681 = vpop.permute.xlu0 %5680
      %5682 = vrot.lane.b32.xlu0 %v5130, 96
      %v5683 = vpop.permute.xlu0 %5682
      %5684 = vrot.lane.b32.xlu0 %v5131, 96
      %v5685 = vpop.permute.xlu0 %5684
      %5686 = vrot.lane.b32.xlu0 %v5132, 96
      %v5687 = vpop.permute.xlu0 %5686
      %5688 = vrot.lane.b32.xlu0 %v5133, 96
      %v5689 = vpop.permute.xlu0 %5688
      %5690 = vrot.lane.b32.xlu0 %v5134, 96
      %v5691 = vpop.permute.xlu0 %5690
      %5692 = vrot.lane.b32.xlu0 %v5135, 96
      %v5693 = vpop.permute.xlu0 %5692
      %5694 = vrot.lane.b32.xlu0 %v5136, 96
      %v5695 = vpop.permute.xlu0 %5694
      %5696 = vrot.lane.b32.xlu0 %v5137, 96
      %v5697 = vpop.permute.xlu0 %5696
      %5698 = vrot.lane.b32.xlu0 %v5138, 96
      %v5699 = vpop.permute.xlu0 %5698
      %5700 = vrot.lane.b32.xlu0 %v5139, 96
      %v5701 = vpop.permute.xlu0 %5700
      %5702 = vrot.lane.b32.xlu0 %v5140, 96
      %v5703 = vpop.permute.xlu0 %5702
      %5704 = vrot.lane.b32.xlu0 %v5141, 96
      %v5705 = vpop.permute.xlu0 %5704
      %5706 = vrot.lane.b32.xlu0 %v5142, 96
      %v5707 = vpop.permute.xlu0 %5706
      %5708 = vrot.lane.b32.xlu0 %v5143, 96
      %v5709 = vpop.permute.xlu0 %5708
      %5710 = vrot.lane.b32.xlu0 %v5144, 96
      %v5711 = vpop.permute.xlu0 %5710
      %5712 = vrot.lane.b32.xlu0 %v5145, 96
      %v5713 = vpop.permute.xlu0 %5712
      %5714 = vrot.lane.b32.xlu0 %v5146, 96
      %v5715 = vpop.permute.xlu0 %5714
      %5716 = vrot.lane.b32.xlu0 %v5147, 96
      %v5717 = vpop.permute.xlu0 %5716
      %5718 = vrot.lane.b32.xlu0 %v5148, 96
      %v5719 = vpop.permute.xlu0 %5718
      %5720 = vrot.lane.b32.xlu0 %v5149, 96
      %v5721 = vpop.permute.xlu0 %5720
      %5722 = vrot.lane.b32.xlu0 %v5150, 96
      %v5723 = vpop.permute.xlu0 %5722
      %5724 = vrot.lane.b32.xlu0 %v5151, 96
      %v5725 = vpop.permute.xlu0 %5724
      %5726 = vrot.lane.b32.xlu0 %v5152, 96
      %v5727 = vpop.permute.xlu0 %5726
      %5728 = vrot.lane.b32.xlu0 %v5153, 96
      %v5729 = vpop.permute.xlu0 %5728
      %5762 = vrot.lane.b32.xlu0 %v5122, 112
      %v5763 = vpop.permute.xlu0 %5762
      %5764 = vrot.lane.b32.xlu0 %v5123, 112
      %v5765 = vpop.permute.xlu0 %5764
      %5766 = vrot.lane.b32.xlu0 %v5124, 112
      %v5767 = vpop.permute.xlu0 %5766
      %5768 = vrot.lane.b32.xlu0 %v5125, 112
      %v5769 = vpop.permute.xlu0 %5768
      %5770 = vrot.lane.b32.xlu0 %v5126, 112
      %v5771 = vpop.permute.xlu0 %5770
      %5772 = vrot.lane.b32.xlu0 %v5127, 112
      %v5773 = vpop.permute.xlu0 %5772
      %5774 = vrot.lane.b32.xlu0 %v5128, 112
      %v5775 = vpop.permute.xlu0 %5774
      %5776 = vrot.lane.b32.xlu0 %v5129, 112
      %v5777 = vpop.permute.xlu0 %5776
      %5778 = vrot.lane.b32.xlu0 %v5130, 112
      %v5779 = vpop.permute.xlu0 %5778
      %5780 = vrot.lane.b32.xlu0 %v5131, 112
      %v5781 = vpop.permute.xlu0 %5780
      %5782 = vrot.lane.b32.xlu0 %v5132, 112
      %v5783 = vpop.permute.xlu0 %5782
      %5784 = vrot.lane.b32.xlu0 %v5133, 112
      %v5785 = vpop.permute.xlu0 %5784
      %5786 = vrot.lane.b32.xlu0 %v5134, 112
      %v5787 = vpop.permute.xlu0 %5786
      %5788 = vrot.lane.b32.xlu0 %v5135, 112
      %v5789 = vpop.permute.xlu0 %5788
      %5790 = vrot.lane.b32.xlu0 %v5136, 112
      %v5791 = vpop.permute.xlu0 %5790
      %5792 = vrot.lane.b32.xlu0 %v5137, 112
      %v5793 = vpop.permute.xlu0 %5792
      %5794 = vrot.lane.b32.xlu0 %v5138, 112
      %v5795 = vpop.permute.xlu0 %5794
      %5796 = vrot.lane.b32.xlu0 %v5139, 112
      %v5797 = vpop.permute.xlu0 %5796
      %5798 = vrot.lane.b32.xlu0 %v5140, 112
      %v5799 = vpop.permute.xlu0 %5798
      %5800 = vrot.lane.b32.xlu0 %v5141, 112
      %v5801 = vpop.permute.xlu0 %5800
      %5802 = vrot.lane.b32.xlu0 %v5142, 112
      %v5803 = vpop.permute.xlu0 %5802
      %5804 = vrot.lane.b32.xlu0 %v5143, 112
      %v5805 = vpop.permute.xlu0 %5804
      %5806 = vrot.lane.b32.xlu0 %v5144, 112
      %v5807 = vpop.permute.xlu0 %5806
      %5808 = vrot.lane.b32.xlu0 %v5145, 112
      %v5809 = vpop.permute.xlu0 %5808
      %5810 = vrot.lane.b32.xlu0 %v5146, 112
      %v5811 = vpop.permute.xlu0 %5810
      %5812 = vrot.lane.b32.xlu0 %v5147, 112
      %v5813 = vpop.permute.xlu0 %5812
      %5814 = vrot.lane.b32.xlu0 %v5148, 112
      %v5815 = vpop.permute.xlu0 %5814
      %5816 = vrot.lane.b32.xlu0 %v5149, 112
      %v5817 = vpop.permute.xlu0 %5816
      %5818 = vrot.lane.b32.xlu0 %v5150, 112
      %v5819 = vpop.permute.xlu0 %5818
      %5820 = vrot.lane.b32.xlu0 %v5151, 112
      %v5821 = vpop.permute.xlu0 %5820
      %5822 = vrot.lane.b32.xlu0 %v5152, 112
      %v5823 = vpop.permute.xlu0 %5822
      %5824 = vrot.lane.b32.xlu0 %v5153, 112
      %v5825 = vpop.permute.xlu0 %5824
      %v5858 = vsel %vm4628, %v5122, %v5187
      %v5859 = vsel %vm4628, %v5123, %v5189
      %v5860 = vsel %vm4628, %v5124, %v5191
      %v5861 = vsel %vm4628, %v5125, %v5193
      %v5862 = vsel %vm4628, %v5126, %v5195
      %v5863 = vsel %vm4628, %v5127, %v5197
      %v5864 = vsel %vm4628, %v5128, %v5199
      %v5865 = vsel %vm4628, %v5129, %v5201
      %v5866 = vsel %vm4628, %v5130, %v5203
      %v5867 = vsel %vm4628, %v5131, %v5205
      %v5868 = vsel %vm4628, %v5132, %v5207
      %v5869 = vsel %vm4628, %v5133, %v5209
      %v5870 = vsel %vm4628, %v5134, %v5211
      %v5871 = vsel %vm4628, %v5135, %v5213
      %v5872 = vsel %vm4628, %v5136, %v5215
      %v5873 = vsel %vm4628, %v5137, %v5217
      %v5874 = vsel %vm4628, %v5138, %v5219
      %v5875 = vsel %vm4628, %v5139, %v5221
      %v5876 = vsel %vm4628, %v5140, %v5223
      %v5877 = vsel %vm4628, %v5141, %v5225
      %v5878 = vsel %vm4628, %v5142, %v5227
      %v5879 = vsel %vm4628, %v5143, %v5229
      %v5880 = vsel %vm4628, %v5144, %v5231
      %v5881 = vsel %vm4628, %v5145, %v5233
      %v5882 = vsel %vm4628, %v5146, %v5235
      %v5883 = vsel %vm4628, %v5147, %v5237
      %v5884 = vsel %vm4628, %v5148, %v5239
      %v5885 = vsel %vm4628, %v5149, %v5241
      %v5886 = vsel %vm4628, %v5150, %v5243
      %v5887 = vsel %vm4628, %v5151, %v5245
      %v5888 = vsel %vm4628, %v5152, %v5247
      %v5889 = vsel %vm4628, %v5153, %v5249
      %v5890 = vsel %vm480, %v5858, %v5283
      %v5891 = vsel %vm480, %v5859, %v5285
      %v5892 = vsel %vm480, %v5860, %v5287
      %v5893 = vsel %vm480, %v5861, %v5289
      %v5894 = vsel %vm480, %v5862, %v5291
      %v5895 = vsel %vm480, %v5863, %v5293
      %v5896 = vsel %vm480, %v5864, %v5295
      %v5897 = vsel %vm480, %v5865, %v5297
      %v5898 = vsel %vm480, %v5866, %v5299
      %v5899 = vsel %vm480, %v5867, %v5301
      %v5900 = vsel %vm480, %v5868, %v5303
      %v5901 = vsel %vm480, %v5869, %v5305
      %v5902 = vsel %vm480, %v5870, %v5307
      %v5903 = vsel %vm480, %v5871, %v5309
      %v5904 = vsel %vm480, %v5872, %v5311
      %v5905 = vsel %vm480, %v5873, %v5313
      %v5906 = vsel %vm480, %v5874, %v5315
      %v5907 = vsel %vm480, %v5875, %v5317
      %v5908 = vsel %vm480, %v5876, %v5319
      %v5909 = vsel %vm480, %v5877, %v5321
      %v5910 = vsel %vm480, %v5878, %v5323
      %v5911 = vsel %vm480, %v5879, %v5325
      %v5912 = vsel %vm480, %v5880, %v5327
      %v5913 = vsel %vm480, %v5881, %v5329
      %v5914 = vsel %vm480, %v5882, %v5331
      %v5915 = vsel %vm480, %v5883, %v5333
      %v5916 = vsel %vm480, %v5884, %v5335
      %v5917 = vsel %vm480, %v5885, %v5337
      %v5918 = vsel %vm480, %v5886, %v5339
      %v5919 = vsel %vm480, %v5887, %v5341
      %v5920 = vsel %vm480, %v5888, %v5343
      %v5921 = vsel %vm480, %v5889, %v5345
      %vm5922 = vcmask 392192
      %v5923 = vsel %vm5922, %v5890, %v5379
      %v5924 = vsel %vm5922, %v5891, %v5381
      %v5925 = vsel %vm5922, %v5892, %v5383
      %v5926 = vsel %vm5922, %v5893, %v5385
      %v5927 = vsel %vm5922, %v5894, %v5387
      %v5928 = vsel %vm5922, %v5895, %v5389
      %v5929 = vsel %vm5922, %v5896, %v5391
      %v5930 = vsel %vm5922, %v5897, %v5393
      %v5931 = vsel %vm5922, %v5898, %v5395
      %v5932 = vsel %vm5922, %v5899, %v5397
      %v5933 = vsel %vm5922, %v5900, %v5399
      %v5934 = vsel %vm5922, %v5901, %v5401
      %v5935 = vsel %vm5922, %v5902, %v5403
      %v5936 = vsel %vm5922, %v5903, %v5405
      %v5937 = vsel %vm5922, %v5904, %v5407
      %v5938 = vsel %vm5922, %v5905, %v5409
      %v5939 = vsel %vm5922, %v5906, %v5411
      %v5940 = vsel %vm5922, %v5907, %v5413
      %v5941 = vsel %vm5922, %v5908, %v5415
      %v5942 = vsel %vm5922, %v5909, %v5417
      %v5943 = vsel %vm5922, %v5910, %v5419
      %v5944 = vsel %vm5922, %v5911, %v5421
      %v5945 = vsel %vm5922, %v5912, %v5423
      %v5946 = vsel %vm5922, %v5913, %v5425
      %v5947 = vsel %vm5922, %v5914, %v5427
      %v5948 = vsel %vm5922, %v5915, %v5429
      %v5949 = vsel %vm5922, %v5916, %v5431
      %v5950 = vsel %vm5922, %v5917, %v5433
      %v5951 = vsel %vm5922, %v5918, %v5435
      %v5952 = vsel %vm5922, %v5919, %v5437
      %v5953 = vsel %vm5922, %v5920, %v5439
      %v5954 = vsel %vm5922, %v5921, %v5441
      %v5955 = vsel %vm3337, %v5923, %v5475
      %v5956 = vsel %vm3337, %v5924, %v5477
      %v5957 = vsel %vm3337, %v5925, %v5479
      %v5958 = vsel %vm3337, %v5926, %v5481
      %v5959 = vsel %vm3337, %v5927, %v5483
      %v5960 = vsel %vm3337, %v5928, %v5485
      %v5961 = vsel %vm3337, %v5929, %v5487
      %v5962 = vsel %vm3337, %v5930, %v5489
      %v5963 = vsel %vm3337, %v5931, %v5491
      %v5964 = vsel %vm3337, %v5932, %v5493
      %v5965 = vsel %vm3337, %v5933, %v5495
      %v5966 = vsel %vm3337, %v5934, %v5497
      %v5967 = vsel %vm3337, %v5935, %v5499
      %v5968 = vsel %vm3337, %v5936, %v5501
      %v5969 = vsel %vm3337, %v5937, %v5503
      %v5970 = vsel %vm3337, %v5938, %v5505
      %v5971 = vsel %vm3337, %v5939, %v5507
      %v5972 = vsel %vm3337, %v5940, %v5509
      %v5973 = vsel %vm3337, %v5941, %v5511
      %v5974 = vsel %vm3337, %v5942, %v5513
      %v5975 = vsel %vm3337, %v5943, %v5515
      %v5976 = vsel %vm3337, %v5944, %v5517
      %v5977 = vsel %vm3337, %v5945, %v5519
      %v5978 = vsel %vm3337, %v5946, %v5521
      %v5979 = vsel %vm3337, %v5947, %v5523
      %v5980 = vsel %vm3337, %v5948, %v5525
      %v5981 = vsel %vm3337, %v5949, %v5527
      %v5982 = vsel %vm3337, %v5950, %v5529
      %v5983 = vsel %vm3337, %v5951, %v5531
      %v5984 = vsel %vm3337, %v5952, %v5533
      %v5985 = vsel %vm3337, %v5953, %v5535
      %v5986 = vsel %vm3337, %v5954, %v5537
      %vm5987 = vcmask 654336
      %v5988 = vsel %vm5987, %v5955, %v5571
      %v5989 = vsel %vm5987, %v5956, %v5573
      %v5990 = vsel %vm5987, %v5957, %v5575
      %v5991 = vsel %vm5987, %v5958, %v5577
      %v5992 = vsel %vm5987, %v5959, %v5579
      %v5993 = vsel %vm5987, %v5960, %v5581
      %v5994 = vsel %vm5987, %v5961, %v5583
      %v5995 = vsel %vm5987, %v5962, %v5585
      %v5996 = vsel %vm5987, %v5963, %v5587
      %v5997 = vsel %vm5987, %v5964, %v5589
      %v5998 = vsel %vm5987, %v5965, %v5591
      %v5999 = vsel %vm5987, %v5966, %v5593
      %v6000 = vsel %vm5987, %v5967, %v5595
      %v6001 = vsel %vm5987, %v5968, %v5597
      %v6002 = vsel %vm5987, %v5969, %v5599
      %v6003 = vsel %vm5987, %v5970, %v5601
      %v6004 = vsel %vm5987, %v5971, %v5603
      %v6005 = vsel %vm5987, %v5972, %v5605
      %v6006 = vsel %vm5987, %v5973, %v5607
      %v6007 = vsel %vm5987, %v5974, %v5609
      %v6008 = vsel %vm5987, %v5975, %v5611
      %v6009 = vsel %vm5987, %v5976, %v5613
      %v6010 = vsel %vm5987, %v5977, %v5615
      %v6011 = vsel %vm5987, %v5978, %v5617
      %v6012 = vsel %vm5987, %v5979, %v5619
      %v6013 = vsel %vm5987, %v5980, %v5621
      %v6014 = vsel %vm5987, %v5981, %v5623
      %v6015 = vsel %vm5987, %v5982, %v5625
      %v6016 = vsel %vm5987, %v5983, %v5627
      %v6017 = vsel %vm5987, %v5984, %v5629
      %v6018 = vsel %vm5987, %v5985, %v5631
      %v6019 = vsel %vm5987, %v5986, %v5633
      %v6020 = vsel %vm3370, %v5988, %v5667
      %v6021 = vsel %vm3370, %v5989, %v5669
      %v6022 = vsel %vm3370, %v5990, %v5671
      %v6023 = vsel %vm3370, %v5991, %v5673
      %v6024 = vsel %vm3370, %v5992, %v5675
      %v6025 = vsel %vm3370, %v5993, %v5677
      %v6026 = vsel %vm3370, %v5994, %v5679
      %v6027 = vsel %vm3370, %v5995, %v5681
      %v6028 = vsel %vm3370, %v5996, %v5683
      %v6029 = vsel %vm3370, %v5997, %v5685
      %v6030 = vsel %vm3370, %v5998, %v5687
      %v6031 = vsel %vm3370, %v5999, %v5689
      %v6032 = vsel %vm3370, %v6000, %v5691
      %v6033 = vsel %vm3370, %v6001, %v5693
      %v6034 = vsel %vm3370, %v6002, %v5695
      %v6035 = vsel %vm3370, %v6003, %v5697
      %v6036 = vsel %vm3370, %v6004, %v5699
      %v6037 = vsel %vm3370, %v6005, %v5701
      %v6038 = vsel %vm3370, %v6006, %v5703
      %v6039 = vsel %vm3370, %v6007, %v5705
      %v6040 = vsel %vm3370, %v6008, %v5707
      %v6041 = vsel %vm3370, %v6009, %v5709
      %v6042 = vsel %vm3370, %v6010, %v5711
      %v6043 = vsel %vm3370, %v6011, %v5713
      %v6044 = vsel %vm3370, %v6012, %v5715
      %v6045 = vsel %vm3370, %v6013, %v5717
      %v6046 = vsel %vm3370, %v6014, %v5719
      %v6047 = vsel %vm3370, %v6015, %v5721
      %v6048 = vsel %vm3370, %v6016, %v5723
      %v6049 = vsel %vm3370, %v6017, %v5725
      %v6050 = vsel %vm3370, %v6018, %v5727
      %v6051 = vsel %vm3370, %v6019, %v5729
      %vm6052 = vcmask 916480
      %v6053 = vsel %vm6052, %v6020, %v5763
      %v6054 = vsel %vm6052, %v6021, %v5765
      %v6055 = vsel %vm6052, %v6022, %v5767
      %v6056 = vsel %vm6052, %v6023, %v5769
      %v6057 = vsel %vm6052, %v6024, %v5771
      %v6058 = vsel %vm6052, %v6025, %v5773
      %v6059 = vsel %vm6052, %v6026, %v5775
      %v6060 = vsel %vm6052, %v6027, %v5777
      %v6061 = vsel %vm6052, %v6028, %v5779
      %v6062 = vsel %vm6052, %v6029, %v5781
      %v6063 = vsel %vm6052, %v6030, %v5783
      %v6064 = vsel %vm6052, %v6031, %v5785
      %v6065 = vsel %vm6052, %v6032, %v5787
      %v6066 = vsel %vm6052, %v6033, %v5789
      %v6067 = vsel %vm6052, %v6034, %v5791
      %v6068 = vsel %vm6052, %v6035, %v5793
      %v6069 = vsel %vm6052, %v6036, %v5795
      %v6070 = vsel %vm6052, %v6037, %v5797
      %v6071 = vsel %vm6052, %v6038, %v5799
      %v6072 = vsel %vm6052, %v6039, %v5801
      %v6073 = vsel %vm6052, %v6040, %v5803
      %v6074 = vsel %vm6052, %v6041, %v5805
      %v6075 = vsel %vm6052, %v6042, %v5807
      %v6076 = vsel %vm6052, %v6043, %v5809
      %v6077 = vsel %vm6052, %v6044, %v5811
      %v6078 = vsel %vm6052, %v6045, %v5813
      %v6079 = vsel %vm6052, %v6046, %v5815
      %v6080 = vsel %vm6052, %v6047, %v5817
      %v6081 = vsel %vm6052, %v6048, %v5819
      %v6082 = vsel %vm6052, %v6049, %v5821
      %v6083 = vsel %vm6052, %v6050, %v5823
      %v6084 = vsel %vm6052, %v6051, %v5825
      %v6085 = vmul.f32 %v2602, %v6053
      %v6086 = vmul.f32 %v2608, %v6054
      %v6087 = vmul.f32 %v2614, %v6055
      %v6088 = vmul.f32 %v2620, %v6056
      %v6089 = vmul.f32 %v2626, %v6057
      %v6090 = vmul.f32 %v2632, %v6058
      %v6091 = vmul.f32 %v2638, %v6059
      %v6092 = vmul.f32 %v2644, %v6060
      %v6093 = vmul.f32 %v2650, %v6061
      %v6094 = vmul.f32 %v2656, %v6062
      %v6095 = vmul.f32 %v2662, %v6063
      %v6096 = vmul.f32 %v2668, %v6064
      %v6097 = vmul.f32 %v2674, %v6065
      %v6098 = vmul.f32 %v2680, %v6066
      %v6099 = vmul.f32 %v2686, %v6067
      %v6100 = vmul.f32 %v2692, %v6068
      %v6101 = vmul.f32 %v2698, %v6069
      %v6102 = vmul.f32 %v2704, %v6070
      %v6103 = vmul.f32 %v2710, %v6071
      %v6104 = vmul.f32 %v2716, %v6072
      %v6105 = vmul.f32 %v2722, %v6073
      %v6106 = vmul.f32 %v2728, %v6074
      %v6107 = vmul.f32 %v2734, %v6075
      %v6108 = vmul.f32 %v2740, %v6076
      %v6109 = vmul.f32 %v2746, %v6077
      %v6110 = vmul.f32 %v2752, %v6078
      %v6111 = vmul.f32 %v2758, %v6079
      %v6112 = vmul.f32 %v2764, %v6080
      %v6113 = vmul.f32 %v2770, %v6081
      %v6114 = vmul.f32 %v2776, %v6082
      %v6115 = vmul.f32 %v2782, %v6083
      %v6116 = vmul.f32 %v2788, %v6084
      %v6117 = vld [vmem:[%s12] sm:$0xff]
      %v6118 = vld [vmem:[%s12 + $0x8] sm:$0xff]
      %v6119 = vld [vmem:[%s12 + $0x10] sm:$0xff]
      %v6120 = vld [vmem:[%s12 + $0x18] sm:$0xff]
      %v6121 = vld [vmem:[%s12 + $0x20] sm:$0xff]
      %v6122 = vld [vmem:[%s12 + $0x28] sm:$0xff]
      %v6123 = vld [vmem:[%s12 + $0x30] sm:$0xff]
      %v6124 = vld [vmem:[%s12 + $0x38] sm:$0xff]
      %v6125 = vld [vmem:[%s12 + $0x40] sm:$0xff]
      %v6126 = vld [vmem:[%s12 + $0x48] sm:$0xff]
      %v6127 = vld [vmem:[%s12 + $0x50] sm:$0xff]
      %v6128 = vld [vmem:[%s12 + $0x58] sm:$0xff]
      %v6129 = vld [vmem:[%s12 + $0x60] sm:$0xff]
      %v6130 = vld [vmem:[%s12 + $0x68] sm:$0xff]
      %v6131 = vld [vmem:[%s12 + $0x70] sm:$0xff]
      %v6132 = vld [vmem:[%s12 + $0x78] sm:$0xff]
      %6133 = vmatprep.subr.mxu0 0.0
      %6134 = vmatpush1.msra.mxu0 %v6132
      %6135 = vmatprep.subr.mxu0 0.0
      %6136 = vmatpush1.msra.mxu0 %v6131
      %6137 = vmatprep.subr.mxu0 0.0
      %6138 = vmatpush1.msra.mxu0 %v6130
      %6139 = vmatprep.subr.mxu0 0.0
      %6140 = vmatpush1.msra.mxu0 %v6129
      %6141 = vmatprep.subr.mxu0 0.0
      %6142 = vmatpush1.msra.mxu0 %v6128
      %6143 = vmatprep.subr.mxu0 0.0
      %6144 = vmatpush1.msra.mxu0 %v6127
      %6145 = vmatprep.subr.mxu0 0.0
      %6146 = vmatpush1.msra.mxu0 %v6126
      %6147 = vmatprep.subr.mxu0 0.0
      %6148 = vmatpush1.msra.mxu0 %v6125
      %6149 = vmatprep.subr.mxu0 0.0
      %6150 = vmatpush1.msra.mxu0 %v6124
      %6151 = vmatprep.subr.mxu0 0.0
      %6152 = vmatpush1.msra.mxu0 %v6123
      %6153 = vmatprep.subr.mxu0 0.0
      %6154 = vmatpush1.msra.mxu0 %v6122
      %6155 = vmatprep.subr.mxu0 0.0
      %6156 = vmatpush1.msra.mxu0 %v6121
      %6157 = vmatprep.subr.mxu0 0.0
      %6158 = vmatpush1.msra.mxu0 %v6120
      %6159 = vmatprep.subr.mxu0 0.0
      %6160 = vmatpush1.msra.mxu0 %v6119
      %6161 = vmatprep.subr.mxu0 0.0
      %6162 = vmatpush1.msra.mxu0 %v6118
      %6163 = vmatprep.subr.mxu0 0.0
      %6164 = vmatpush1.msra.mxu0 %v6117
      %6165 = vmatprep.subr.mxu0 0.0
      %6166 = vmatpush2.msra.mxu0 0.0
      %6167 = vmatprep.subr.mxu0 0.0
      %6168 = vmatpush2.msra.mxu0 0.0
      %6169 = vmatprep.subr.mxu0 0.0
      %6170 = vmatpush2.msra.mxu0 0.0
      %6171 = vmatprep.subr.mxu0 0.0
      %6172 = vmatpush2.msra.mxu0 0.0
      %6173 = vmatprep.subr.mxu0 0.0
      %6174 = vmatpush2.msra.mxu0 0.0
      %6175 = vmatprep.subr.mxu0 0.0
      %6176 = vmatpush2.msra.mxu0 0.0
      %6177 = vmatprep.subr.mxu0 0.0
      %6178 = vmatpush2.msra.mxu0 0.0
      %6179 = vmatprep.subr.mxu0 0.0
      %6180 = vmatpush2.msra.mxu0 0.0
      %6181 = vmatprep.subr.mxu0 0.0
      %6182 = vmatpush2.msra.mxu0 0.0
      %6183 = vmatprep.subr.mxu0 0.0
      %6184 = vmatpush2.msra.mxu0 0.0
      %6185 = vmatprep.subr.mxu0 0.0
      %6186 = vmatpush2.msra.mxu0 0.0
      %6187 = vmatprep.subr.mxu0 0.0
      %6188 = vmatpush2.msra.mxu0 0.0
      %6189 = vmatprep.subr.mxu0 0.0
      %6190 = vmatpush2.msra.mxu0 0.0
      %6191 = vmatprep.subr.mxu0 0.0
      %6192 = vmatpush2.msra.mxu0 0.0
      %6193 = vmatprep.subr.mxu0 0.0
      %6194 = vmatpush2.msra.mxu0 0.0
      %6195 = vmatprep.subr.mxu0 0.0
      %6196 = vmatpush2.msra.mxu0 0.0
      %6197 = vmatprep.mubr.f32.mxu0 0.0
      %6198 = vmatmul.mubr.f32.gmra.mxu0 %v6085
      %v6199 = vpop.f32.mrf.mxu0
      %v6200 = vadd.f32 0.0, %v6199
      %v6201 = vpop.f32.mrf.mxu0
      %6202 = vmatprep.mubr.f32.mxu0 0.0
      %6203 = vmatmul.mubr.f32.gmra.mxu0 %v6086
      %v6204 = vpop.f32.mrf.mxu0
      %v6205 = vadd.f32 0.0, %v6204
      %v6206 = vpop.f32.mrf.mxu0
      %6207 = vmatprep.mubr.f32.mxu0 0.0
      %6208 = vmatmul.mubr.f32.gmra.mxu0 %v6087
      %v6209 = vpop.f32.mrf.mxu0
      %v6210 = vadd.f32 0.0, %v6209
      %v6211 = vpop.f32.mrf.mxu0
      %6212 = vmatprep.mubr.f32.mxu0 0.0
      %6213 = vmatmul.mubr.f32.gmra.mxu0 %v6088
      %v6214 = vpop.f32.mrf.mxu0
      %v6215 = vadd.f32 0.0, %v6214
      %v6216 = vpop.f32.mrf.mxu0
      %6217 = vmatprep.mubr.f32.mxu0 0.0
      %6218 = vmatmul.mubr.f32.gmra.mxu0 %v6089
      %v6219 = vpop.f32.mrf.mxu0
      %v6220 = vadd.f32 0.0, %v6219
      %v6221 = vpop.f32.mrf.mxu0
      %6222 = vmatprep.mubr.f32.mxu0 0.0
      %6223 = vmatmul.mubr.f32.gmra.mxu0 %v6090
      %v6224 = vpop.f32.mrf.mxu0
      %v6225 = vadd.f32 0.0, %v6224
      %v6226 = vpop.f32.mrf.mxu0
      %6227 = vmatprep.mubr.f32.mxu0 0.0
      %6228 = vmatmul.mubr.f32.gmra.mxu0 %v6091
      %v6229 = vpop.f32.mrf.mxu0
      %v6230 = vadd.f32 0.0, %v6229
      %v6231 = vpop.f32.mrf.mxu0
      %6232 = vmatprep.mubr.f32.mxu0 0.0
      %6233 = vmatmul.mubr.f32.gmra.mxu0 %v6092
      %v6234 = vpop.f32.mrf.mxu0
      %v6235 = vadd.f32 0.0, %v6234
      %v6236 = vpop.f32.mrf.mxu0
      %6237 = vmatprep.mubr.f32.mxu0 0.0
      %6238 = vmatmul.mubr.f32.gmra.mxu0 %v6093
      %v6239 = vpop.f32.mrf.mxu0
      %v6240 = vadd.f32 0.0, %v6239
      %v6241 = vpop.f32.mrf.mxu0
      %6242 = vmatprep.mubr.f32.mxu0 0.0
      %6243 = vmatmul.mubr.f32.gmra.mxu0 %v6094
      %v6244 = vpop.f32.mrf.mxu0
      %v6245 = vadd.f32 0.0, %v6244
      %v6246 = vpop.f32.mrf.mxu0
      %6247 = vmatprep.mubr.f32.mxu0 0.0
      %6248 = vmatmul.mubr.f32.gmra.mxu0 %v6095
      %v6249 = vpop.f32.mrf.mxu0
      %v6250 = vadd.f32 0.0, %v6249
      %v6251 = vpop.f32.mrf.mxu0
      %6252 = vmatprep.mubr.f32.mxu0 0.0
      %6253 = vmatmul.mubr.f32.gmra.mxu0 %v6096
      %v6254 = vpop.f32.mrf.mxu0
      %v6255 = vadd.f32 0.0, %v6254
      %v6256 = vpop.f32.mrf.mxu0
      %6257 = vmatprep.mubr.f32.mxu0 0.0
      %6258 = vmatmul.mubr.f32.gmra.mxu0 %v6097
      %v6259 = vpop.f32.mrf.mxu0
      %v6260 = vadd.f32 0.0, %v6259
      %v6261 = vpop.f32.mrf.mxu0
      %6262 = vmatprep.mubr.f32.mxu0 0.0
      %6263 = vmatmul.mubr.f32.gmra.mxu0 %v6098
      %v6264 = vpop.f32.mrf.mxu0
      %v6265 = vadd.f32 0.0, %v6264
      %v6266 = vpop.f32.mrf.mxu0
      %6267 = vmatprep.mubr.f32.mxu0 0.0
      %6268 = vmatmul.mubr.f32.gmra.mxu0 %v6099
      %v6269 = vpop.f32.mrf.mxu0
      %v6270 = vadd.f32 0.0, %v6269
      %v6271 = vpop.f32.mrf.mxu0
      %6272 = vmatprep.mubr.f32.mxu0 0.0
      %6273 = vmatmul.mubr.f32.gmra.mxu0 %v6100
      %v6274 = vpop.f32.mrf.mxu0
      %v6275 = vadd.f32 0.0, %v6274
      %v6276 = vpop.f32.mrf.mxu0
      %6277 = vmatprep.mubr.f32.mxu0 0.0
      %6278 = vmatmul.mubr.f32.gmra.mxu0 %v6101
      %v6279 = vpop.f32.mrf.mxu0
      %v6280 = vadd.f32 0.0, %v6279
      %v6281 = vpop.f32.mrf.mxu0
      %6282 = vmatprep.mubr.f32.mxu0 0.0
      %6283 = vmatmul.mubr.f32.gmra.mxu0 %v6102
      %v6284 = vpop.f32.mrf.mxu0
      %v6285 = vadd.f32 0.0, %v6284
      %v6286 = vpop.f32.mrf.mxu0
      %6287 = vmatprep.mubr.f32.mxu0 0.0
      %6288 = vmatmul.mubr.f32.gmra.mxu0 %v6103
      %v6289 = vpop.f32.mrf.mxu0
      %v6290 = vadd.f32 0.0, %v6289
      %v6291 = vpop.f32.mrf.mxu0
      %6292 = vmatprep.mubr.f32.mxu0 0.0
      %6293 = vmatmul.mubr.f32.gmra.mxu0 %v6104
      %v6294 = vpop.f32.mrf.mxu0
      %v6295 = vadd.f32 0.0, %v6294
      %v6296 = vpop.f32.mrf.mxu0
      %6297 = vmatprep.mubr.f32.mxu0 0.0
      %6298 = vmatmul.mubr.f32.gmra.mxu0 %v6105
      %v6299 = vpop.f32.mrf.mxu0
      %v6300 = vadd.f32 0.0, %v6299
      %v6301 = vpop.f32.mrf.mxu0
      %6302 = vmatprep.mubr.f32.mxu0 0.0
      %6303 = vmatmul.mubr.f32.gmra.mxu0 %v6106
      %v6304 = vpop.f32.mrf.mxu0
      %v6305 = vadd.f32 0.0, %v6304
      %v6306 = vpop.f32.mrf.mxu0
      %6307 = vmatprep.mubr.f32.mxu0 0.0
      %6308 = vmatmul.mubr.f32.gmra.mxu0 %v6107
      %v6309 = vpop.f32.mrf.mxu0
      %v6310 = vadd.f32 0.0, %v6309
      %v6311 = vpop.f32.mrf.mxu0
      %6312 = vmatprep.mubr.f32.mxu0 0.0
      %6313 = vmatmul.mubr.f32.gmra.mxu0 %v6108
      %v6314 = vpop.f32.mrf.mxu0
      %v6315 = vadd.f32 0.0, %v6314
      %v6316 = vpop.f32.mrf.mxu0
      %6317 = vmatprep.mubr.f32.mxu0 0.0
      %6318 = vmatmul.mubr.f32.gmra.mxu0 %v6109
      %v6319 = vpop.f32.mrf.mxu0
      %v6320 = vadd.f32 0.0, %v6319
      %v6321 = vpop.f32.mrf.mxu0
      %6322 = vmatprep.mubr.f32.mxu0 0.0
      %6323 = vmatmul.mubr.f32.gmra.mxu0 %v6110
      %v6324 = vpop.f32.mrf.mxu0
      %v6325 = vadd.f32 0.0, %v6324
      %v6326 = vpop.f32.mrf.mxu0
      %6327 = vmatprep.mubr.f32.mxu0 0.0
      %6328 = vmatmul.mubr.f32.gmra.mxu0 %v6111
      %v6329 = vpop.f32.mrf.mxu0
      %v6330 = vadd.f32 0.0, %v6329
      %v6331 = vpop.f32.mrf.mxu0
      %6332 = vmatprep.mubr.f32.mxu0 0.0
      %6333 = vmatmul.mubr.f32.gmra.mxu0 %v6112
      %v6334 = vpop.f32.mrf.mxu0
      %v6335 = vadd.f32 0.0, %v6334
      %v6336 = vpop.f32.mrf.mxu0
      %6337 = vmatprep.mubr.f32.mxu0 0.0
      %6338 = vmatmul.mubr.f32.gmra.mxu0 %v6113
      %v6339 = vpop.f32.mrf.mxu0
      %v6340 = vadd.f32 0.0, %v6339
      %v6341 = vpop.f32.mrf.mxu0
      %6342 = vmatprep.mubr.f32.mxu0 0.0
      %6343 = vmatmul.mubr.f32.gmra.mxu0 %v6114
      %v6344 = vpop.f32.mrf.mxu0
      %v6345 = vadd.f32 0.0, %v6344
      %v6346 = vpop.f32.mrf.mxu0
      %6347 = vmatprep.mubr.f32.mxu0 0.0
      %6348 = vmatmul.mubr.f32.gmra.mxu0 %v6115
      %v6349 = vpop.f32.mrf.mxu0
      %v6350 = vadd.f32 0.0, %v6349
      %v6351 = vpop.f32.mrf.mxu0
      %6352 = vmatprep.mubr.f32.mxu0 0.0
      %6353 = vmatmul.mubr.f32.gmra.mxu0 %v6116
      %v6354 = vpop.f32.mrf.mxu0
      %v6355 = vadd.f32 0.0, %v6354
      %v6356 = vpop.f32.mrf.mxu0
      %6357 = vdwg.mxu0
      %6390 = vrot.lane.b32.xlu0 %v6200, 16
      %v6391 = vpop.permute.xlu0 %6390
      %6392 = vrot.lane.b32.xlu0 %v6205, 16
      %v6393 = vpop.permute.xlu0 %6392
      %6394 = vrot.lane.b32.xlu0 %v6210, 16
      %v6395 = vpop.permute.xlu0 %6394
      %6396 = vrot.lane.b32.xlu0 %v6215, 16
      %v6397 = vpop.permute.xlu0 %6396
      %6398 = vrot.lane.b32.xlu0 %v6220, 16
      %v6399 = vpop.permute.xlu0 %6398
      %6400 = vrot.lane.b32.xlu0 %v6225, 16
      %v6401 = vpop.permute.xlu0 %6400
      %6402 = vrot.lane.b32.xlu0 %v6230, 16
      %v6403 = vpop.permute.xlu0 %6402
      %6404 = vrot.lane.b32.xlu0 %v6235, 16
      %v6405 = vpop.permute.xlu0 %6404
      %6406 = vrot.lane.b32.xlu0 %v6240, 16
      %v6407 = vpop.permute.xlu0 %6406
      %6408 = vrot.lane.b32.xlu0 %v6245, 16
      %v6409 = vpop.permute.xlu0 %6408
      %6410 = vrot.lane.b32.xlu0 %v6250, 16
      %v6411 = vpop.permute.xlu0 %6410
      %6412 = vrot.lane.b32.xlu0 %v6255, 16
      %v6413 = vpop.permute.xlu0 %6412
      %6414 = vrot.lane.b32.xlu0 %v6260, 16
      %v6415 = vpop.permute.xlu0 %6414
      %6416 = vrot.lane.b32.xlu0 %v6265, 16
      %v6417 = vpop.permute.xlu0 %6416
      %6418 = vrot.lane.b32.xlu0 %v6270, 16
      %v6419 = vpop.permute.xlu0 %6418
      %6420 = vrot.lane.b32.xlu0 %v6275, 16
      %v6421 = vpop.permute.xlu0 %6420
      %6422 = vrot.lane.b32.xlu0 %v6280, 16
      %v6423 = vpop.permute.xlu0 %6422
      %6424 = vrot.lane.b32.xlu0 %v6285, 16
      %v6425 = vpop.permute.xlu0 %6424
      %6426 = vrot.lane.b32.xlu0 %v6290, 16
      %v6427 = vpop.permute.xlu0 %6426
      %6428 = vrot.lane.b32.xlu0 %v6295, 16
      %v6429 = vpop.permute.xlu0 %6428
      %6430 = vrot.lane.b32.xlu0 %v6300, 16
      %v6431 = vpop.permute.xlu0 %6430
      %6432 = vrot.lane.b32.xlu0 %v6305, 16
      %v6433 = vpop.permute.xlu0 %6432
      %6434 = vrot.lane.b32.xlu0 %v6310, 16
      %v6435 = vpop.permute.xlu0 %6434
      %6436 = vrot.lane.b32.xlu0 %v6315, 16
      %v6437 = vpop.permute.xlu0 %6436
      %6438 = vrot.lane.b32.xlu0 %v6320, 16
      %v6439 = vpop.permute.xlu0 %6438
      %6440 = vrot.lane.b32.xlu0 %v6325, 16
      %v6441 = vpop.permute.xlu0 %6440
      %6442 = vrot.lane.b32.xlu0 %v6330, 16
      %v6443 = vpop.permute.xlu0 %6442
      %6444 = vrot.lane.b32.xlu0 %v6335, 16
      %v6445 = vpop.permute.xlu0 %6444
      %6446 = vrot.lane.b32.xlu0 %v6340, 16
      %v6447 = vpop.permute.xlu0 %6446
      %6448 = vrot.lane.b32.xlu0 %v6345, 16
      %v6449 = vpop.permute.xlu0 %6448
      %6450 = vrot.lane.b32.xlu0 %v6350, 16
      %v6451 = vpop.permute.xlu0 %6450
      %6452 = vrot.lane.b32.xlu0 %v6355, 16
      %v6453 = vpop.permute.xlu0 %6452
      %v6486 = vadd.f32 %v2859, %v6391
      %v6487 = vadd.f32 %v2864, %v6393
      %v6488 = vadd.f32 %v2869, %v6395
      %v6489 = vadd.f32 %v2874, %v6397
      %v6490 = vadd.f32 %v2879, %v6399
      %v6491 = vadd.f32 %v2884, %v6401
      %v6492 = vadd.f32 %v2889, %v6403
      %v6493 = vadd.f32 %v2894, %v6405
      %v6494 = vadd.f32 %v2899, %v6407
      %v6495 = vadd.f32 %v2904, %v6409
      %v6496 = vadd.f32 %v2909, %v6411
      %v6497 = vadd.f32 %v2914, %v6413
      %v6498 = vadd.f32 %v2919, %v6415
      %v6499 = vadd.f32 %v2924, %v6417
      %v6500 = vadd.f32 %v2929, %v6419
      %v6501 = vadd.f32 %v2934, %v6421
      %v6502 = vadd.f32 %v2939, %v6423
      %v6503 = vadd.f32 %v2944, %v6425
      %v6504 = vadd.f32 %v2949, %v6427
      %v6505 = vadd.f32 %v2954, %v6429
      %v6506 = vadd.f32 %v2959, %v6431
      %v6507 = vadd.f32 %v2964, %v6433
      %v6508 = vadd.f32 %v2969, %v6435
      %v6509 = vadd.f32 %v2974, %v6437
      %v6510 = vadd.f32 %v2979, %v6439
      %v6511 = vadd.f32 %v2984, %v6441
      %v6512 = vadd.f32 %v2989, %v6443
      %v6513 = vadd.f32 %v2994, %v6445
      %v6514 = vadd.f32 %v2999, %v6447
      %v6515 = vadd.f32 %v3004, %v6449
      %v6516 = vadd.f32 %v3009, %v6451
      %v6517 = vadd.f32 %v3014, %v6453
      %v6518 = vmul.f32 %v2604, %v6053
      %v6519 = vmul.f32 %v2610, %v6054
      %v6520 = vmul.f32 %v2616, %v6055
      %v6521 = vmul.f32 %v2622, %v6056
      %v6522 = vmul.f32 %v2628, %v6057
      %v6523 = vmul.f32 %v2634, %v6058
      %v6524 = vmul.f32 %v2640, %v6059
      %v6525 = vmul.f32 %v2646, %v6060
      %v6526 = vmul.f32 %v2652, %v6061
      %v6527 = vmul.f32 %v2658, %v6062
      %v6528 = vmul.f32 %v2664, %v6063
      %v6529 = vmul.f32 %v2670, %v6064
      %v6530 = vmul.f32 %v2676, %v6065
      %v6531 = vmul.f32 %v2682, %v6066
      %v6532 = vmul.f32 %v2688, %v6067
      %v6533 = vmul.f32 %v2694, %v6068
      %v6534 = vmul.f32 %v2700, %v6069
      %v6535 = vmul.f32 %v2706, %v6070
      %v6536 = vmul.f32 %v2712, %v6071
      %v6537 = vmul.f32 %v2718, %v6072
      %v6538 = vmul.f32 %v2724, %v6073
      %v6539 = vmul.f32 %v2730, %v6074
      %v6540 = vmul.f32 %v2736, %v6075
      %v6541 = vmul.f32 %v2742, %v6076
      %v6542 = vmul.f32 %v2748, %v6077
      %v6543 = vmul.f32 %v2754, %v6078
      %v6544 = vmul.f32 %v2760, %v6079
      %v6545 = vmul.f32 %v2766, %v6080
      %v6546 = vmul.f32 %v2772, %v6081
      %v6547 = vmul.f32 %v2778, %v6082
      %v6548 = vmul.f32 %v2784, %v6083
      %v6549 = vmul.f32 %v2790, %v6084
      %s6550 = scalar_lea.vmem %s12, 128
      %v6551 = vld [vmem:[%s6550] sm:$0xff]
      %v6552 = vld [vmem:[%s6550 + $0x8] sm:$0xff]
      %v6553 = vld [vmem:[%s6550 + $0x10] sm:$0xff]
      %v6554 = vld [vmem:[%s6550 + $0x18] sm:$0xff]
      %v6555 = vld [vmem:[%s6550 + $0x20] sm:$0xff]
      %v6556 = vld [vmem:[%s6550 + $0x28] sm:$0xff]
      %v6557 = vld [vmem:[%s6550 + $0x30] sm:$0xff]
      %v6558 = vld [vmem:[%s6550 + $0x38] sm:$0xff]
      %v6559 = vld [vmem:[%s6550 + $0x40] sm:$0xff]
      %v6560 = vld [vmem:[%s6550 + $0x48] sm:$0xff]
      %v6561 = vld [vmem:[%s6550 + $0x50] sm:$0xff]
      %v6562 = vld [vmem:[%s6550 + $0x58] sm:$0xff]
      %v6563 = vld [vmem:[%s6550 + $0x60] sm:$0xff]
      %v6564 = vld [vmem:[%s6550 + $0x68] sm:$0xff]
      %v6565 = vld [vmem:[%s6550 + $0x70] sm:$0xff]
      %v6566 = vld [vmem:[%s6550 + $0x78] sm:$0xff]
      %6567 = vmatprep.subr.mxu0 0.0
      %6568 = vmatpush1.msra.mxu0 %v6566
      %6569 = vmatprep.subr.mxu0 0.0
      %6570 = vmatpush1.msra.mxu0 %v6565
      %6571 = vmatprep.subr.mxu0 0.0
      %6572 = vmatpush1.msra.mxu0 %v6564
      %6573 = vmatprep.subr.mxu0 0.0
      %6574 = vmatpush1.msra.mxu0 %v6563
      %6575 = vmatprep.subr.mxu0 0.0
      %6576 = vmatpush1.msra.mxu0 %v6562
      %6577 = vmatprep.subr.mxu0 0.0
      %6578 = vmatpush1.msra.mxu0 %v6561
      %6579 = vmatprep.subr.mxu0 0.0
      %6580 = vmatpush1.msra.mxu0 %v6560
      %6581 = vmatprep.subr.mxu0 0.0
      %6582 = vmatpush1.msra.mxu0 %v6559
      %6583 = vmatprep.subr.mxu0 0.0
      %6584 = vmatpush1.msra.mxu0 %v6558
      %6585 = vmatprep.subr.mxu0 0.0
      %6586 = vmatpush1.msra.mxu0 %v6557
      %6587 = vmatprep.subr.mxu0 0.0
      %6588 = vmatpush1.msra.mxu0 %v6556
      %6589 = vmatprep.subr.mxu0 0.0
      %6590 = vmatpush1.msra.mxu0 %v6555
      %6591 = vmatprep.subr.mxu0 0.0
      %6592 = vmatpush1.msra.mxu0 %v6554
      %6593 = vmatprep.subr.mxu0 0.0
      %6594 = vmatpush1.msra.mxu0 %v6553
      %6595 = vmatprep.subr.mxu0 0.0
      %6596 = vmatpush1.msra.mxu0 %v6552
      %6597 = vmatprep.subr.mxu0 0.0
      %6598 = vmatpush1.msra.mxu0 %v6551
      %6599 = vmatprep.subr.mxu0 0.0
      %6600 = vmatpush2.msra.mxu0 0.0
      %6601 = vmatprep.subr.mxu0 0.0
      %6602 = vmatpush2.msra.mxu0 0.0
      %6603 = vmatprep.subr.mxu0 0.0
      %6604 = vmatpush2.msra.mxu0 0.0
      %6605 = vmatprep.subr.mxu0 0.0
      %6606 = vmatpush2.msra.mxu0 0.0
      %6607 = vmatprep.subr.mxu0 0.0
      %6608 = vmatpush2.msra.mxu0 0.0
      %6609 = vmatprep.subr.mxu0 0.0
      %6610 = vmatpush2.msra.mxu0 0.0
      %6611 = vmatprep.subr.mxu0 0.0
      %6612 = vmatpush2.msra.mxu0 0.0
      %6613 = vmatprep.subr.mxu0 0.0
      %6614 = vmatpush2.msra.mxu0 0.0
      %6615 = vmatprep.subr.mxu0 0.0
      %6616 = vmatpush2.msra.mxu0 0.0
      %6617 = vmatprep.subr.mxu0 0.0
      %6618 = vmatpush2.msra.mxu0 0.0
      %6619 = vmatprep.subr.mxu0 0.0
      %6620 = vmatpush2.msra.mxu0 0.0
      %6621 = vmatprep.subr.mxu0 0.0
      %6622 = vmatpush2.msra.mxu0 0.0
      %6623 = vmatprep.subr.mxu0 0.0
      %6624 = vmatpush2.msra.mxu0 0.0
      %6625 = vmatprep.subr.mxu0 0.0
      %6626 = vmatpush2.msra.mxu0 0.0
      %6627 = vmatprep.subr.mxu0 0.0
      %6628 = vmatpush2.msra.mxu0 0.0
      %6629 = vmatprep.subr.mxu0 0.0
      %6630 = vmatpush2.msra.mxu0 0.0
      %6631 = vmatprep.mubr.f32.mxu0 0.0
      %6632 = vmatmul.mubr.f32.gmra.mxu0 %v6518
      %v6633 = vpop.f32.mrf.mxu0
      %v6634 = vadd.f32 0.0, %v6633
      %v6635 = vpop.f32.mrf.mxu0
      %6636 = vmatprep.mubr.f32.mxu0 0.0
      %6637 = vmatmul.mubr.f32.gmra.mxu0 %v6519
      %v6638 = vpop.f32.mrf.mxu0
      %v6639 = vadd.f32 0.0, %v6638
      %v6640 = vpop.f32.mrf.mxu0
      %6641 = vmatprep.mubr.f32.mxu0 0.0
      %6642 = vmatmul.mubr.f32.gmra.mxu0 %v6520
      %v6643 = vpop.f32.mrf.mxu0
      %v6644 = vadd.f32 0.0, %v6643
      %v6645 = vpop.f32.mrf.mxu0
      %6646 = vmatprep.mubr.f32.mxu0 0.0
      %6647 = vmatmul.mubr.f32.gmra.mxu0 %v6521
      %v6648 = vpop.f32.mrf.mxu0
      %v6649 = vadd.f32 0.0, %v6648
      %v6650 = vpop.f32.mrf.mxu0
      %6651 = vmatprep.mubr.f32.mxu0 0.0
      %6652 = vmatmul.mubr.f32.gmra.mxu0 %v6522
      %v6653 = vpop.f32.mrf.mxu0
      %v6654 = vadd.f32 0.0, %v6653
      %v6655 = vpop.f32.mrf.mxu0
      %6656 = vmatprep.mubr.f32.mxu0 0.0
      %6657 = vmatmul.mubr.f32.gmra.mxu0 %v6523
      %v6658 = vpop.f32.mrf.mxu0
      %v6659 = vadd.f32 0.0, %v6658
      %v6660 = vpop.f32.mrf.mxu0
      %6661 = vmatprep.mubr.f32.mxu0 0.0
      %6662 = vmatmul.mubr.f32.gmra.mxu0 %v6524
      %v6663 = vpop.f32.mrf.mxu0
      %v6664 = vadd.f32 0.0, %v6663
      %v6665 = vpop.f32.mrf.mxu0
      %6666 = vmatprep.mubr.f32.mxu0 0.0
      %6667 = vmatmul.mubr.f32.gmra.mxu0 %v6525
      %v6668 = vpop.f32.mrf.mxu0
      %v6669 = vadd.f32 0.0, %v6668
      %v6670 = vpop.f32.mrf.mxu0
      %6671 = vmatprep.mubr.f32.mxu0 0.0
      %6672 = vmatmul.mubr.f32.gmra.mxu0 %v6526
      %v6673 = vpop.f32.mrf.mxu0
      %v6674 = vadd.f32 0.0, %v6673
      %v6675 = vpop.f32.mrf.mxu0
      %6676 = vmatprep.mubr.f32.mxu0 0.0
      %6677 = vmatmul.mubr.f32.gmra.mxu0 %v6527
      %v6678 = vpop.f32.mrf.mxu0
      %v6679 = vadd.f32 0.0, %v6678
      %v6680 = vpop.f32.mrf.mxu0
      %6681 = vmatprep.mubr.f32.mxu0 0.0
      %6682 = vmatmul.mubr.f32.gmra.mxu0 %v6528
      %v6683 = vpop.f32.mrf.mxu0
      %v6684 = vadd.f32 0.0, %v6683
      %v6685 = vpop.f32.mrf.mxu0
      %6686 = vmatprep.mubr.f32.mxu0 0.0
      %6687 = vmatmul.mubr.f32.gmra.mxu0 %v6529
      %v6688 = vpop.f32.mrf.mxu0
      %v6689 = vadd.f32 0.0, %v6688
      %v6690 = vpop.f32.mrf.mxu0
      %6691 = vmatprep.mubr.f32.mxu0 0.0
      %6692 = vmatmul.mubr.f32.gmra.mxu0 %v6530
      %v6693 = vpop.f32.mrf.mxu0
      %v6694 = vadd.f32 0.0, %v6693
      %v6695 = vpop.f32.mrf.mxu0
      %6696 = vmatprep.mubr.f32.mxu0 0.0
      %6697 = vmatmul.mubr.f32.gmra.mxu0 %v6531
      %v6698 = vpop.f32.mrf.mxu0
      %v6699 = vadd.f32 0.0, %v6698
      %v6700 = vpop.f32.mrf.mxu0
      %6701 = vmatprep.mubr.f32.mxu0 0.0
      %6702 = vmatmul.mubr.f32.gmra.mxu0 %v6532
      %v6703 = vpop.f32.mrf.mxu0
      %v6704 = vadd.f32 0.0, %v6703
      %v6705 = vpop.f32.mrf.mxu0
      %6706 = vmatprep.mubr.f32.mxu0 0.0
      %6707 = vmatmul.mubr.f32.gmra.mxu0 %v6533
      %v6708 = vpop.f32.mrf.mxu0
      %v6709 = vadd.f32 0.0, %v6708
      %v6710 = vpop.f32.mrf.mxu0
      %6711 = vmatprep.mubr.f32.mxu0 0.0
      %6712 = vmatmul.mubr.f32.gmra.mxu0 %v6534
      %v6713 = vpop.f32.mrf.mxu0
      %v6714 = vadd.f32 0.0, %v6713
      %v6715 = vpop.f32.mrf.mxu0
      %6716 = vmatprep.mubr.f32.mxu0 0.0
      %6717 = vmatmul.mubr.f32.gmra.mxu0 %v6535
      %v6718 = vpop.f32.mrf.mxu0
      %v6719 = vadd.f32 0.0, %v6718
      %v6720 = vpop.f32.mrf.mxu0
      %6721 = vmatprep.mubr.f32.mxu0 0.0
      %6722 = vmatmul.mubr.f32.gmra.mxu0 %v6536
      %v6723 = vpop.f32.mrf.mxu0
      %v6724 = vadd.f32 0.0, %v6723
      %v6725 = vpop.f32.mrf.mxu0
      %6726 = vmatprep.mubr.f32.mxu0 0.0
      %6727 = vmatmul.mubr.f32.gmra.mxu0 %v6537
      %v6728 = vpop.f32.mrf.mxu0
      %v6729 = vadd.f32 0.0, %v6728
      %v6730 = vpop.f32.mrf.mxu0
      %6731 = vmatprep.mubr.f32.mxu0 0.0
      %6732 = vmatmul.mubr.f32.gmra.mxu0 %v6538
      %v6733 = vpop.f32.mrf.mxu0
      %v6734 = vadd.f32 0.0, %v6733
      %v6735 = vpop.f32.mrf.mxu0
      %6736 = vmatprep.mubr.f32.mxu0 0.0
      %6737 = vmatmul.mubr.f32.gmra.mxu0 %v6539
      %v6738 = vpop.f32.mrf.mxu0
      %v6739 = vadd.f32 0.0, %v6738
      %v6740 = vpop.f32.mrf.mxu0
      %6741 = vmatprep.mubr.f32.mxu0 0.0
      %6742 = vmatmul.mubr.f32.gmra.mxu0 %v6540
      %v6743 = vpop.f32.mrf.mxu0
      %v6744 = vadd.f32 0.0, %v6743
      %v6745 = vpop.f32.mrf.mxu0
      %6746 = vmatprep.mubr.f32.mxu0 0.0
      %6747 = vmatmul.mubr.f32.gmra.mxu0 %v6541
      %v6748 = vpop.f32.mrf.mxu0
      %v6749 = vadd.f32 0.0, %v6748
      %v6750 = vpop.f32.mrf.mxu0
      %6751 = vmatprep.mubr.f32.mxu0 0.0
      %6752 = vmatmul.mubr.f32.gmra.mxu0 %v6542
      %v6753 = vpop.f32.mrf.mxu0
      %v6754 = vadd.f32 0.0, %v6753
      %v6755 = vpop.f32.mrf.mxu0
      %6756 = vmatprep.mubr.f32.mxu0 0.0
      %6757 = vmatmul.mubr.f32.gmra.mxu0 %v6543
      %v6758 = vpop.f32.mrf.mxu0
      %v6759 = vadd.f32 0.0, %v6758
      %v6760 = vpop.f32.mrf.mxu0
      %6761 = vmatprep.mubr.f32.mxu0 0.0
      %6762 = vmatmul.mubr.f32.gmra.mxu0 %v6544
      %v6763 = vpop.f32.mrf.mxu0
      %v6764 = vadd.f32 0.0, %v6763
      %v6765 = vpop.f32.mrf.mxu0
      %6766 = vmatprep.mubr.f32.mxu0 0.0
      %6767 = vmatmul.mubr.f32.gmra.mxu0 %v6545
      %v6768 = vpop.f32.mrf.mxu0
      %v6769 = vadd.f32 0.0, %v6768
      %v6770 = vpop.f32.mrf.mxu0
      %6771 = vmatprep.mubr.f32.mxu0 0.0
      %6772 = vmatmul.mubr.f32.gmra.mxu0 %v6546
      %v6773 = vpop.f32.mrf.mxu0
      %v6774 = vadd.f32 0.0, %v6773
      %v6775 = vpop.f32.mrf.mxu0
      %6776 = vmatprep.mubr.f32.mxu0 0.0
      %6777 = vmatmul.mubr.f32.gmra.mxu0 %v6547
      %v6778 = vpop.f32.mrf.mxu0
      %v6779 = vadd.f32 0.0, %v6778
      %v6780 = vpop.f32.mrf.mxu0
      %6781 = vmatprep.mubr.f32.mxu0 0.0
      %6782 = vmatmul.mubr.f32.gmra.mxu0 %v6548
      %v6783 = vpop.f32.mrf.mxu0
      %v6784 = vadd.f32 0.0, %v6783
      %v6785 = vpop.f32.mrf.mxu0
      %6786 = vmatprep.mubr.f32.mxu0 0.0
      %6787 = vmatmul.mubr.f32.gmra.mxu0 %v6549
      %v6788 = vpop.f32.mrf.mxu0
      %v6789 = vadd.f32 0.0, %v6788
      %v6790 = vpop.f32.mrf.mxu0
      %6791 = vdwg.mxu0
      %6824 = vrot.lane.b32.xlu0 %v6634, 16
      %v6825 = vpop.permute.xlu0 %6824
      %6826 = vrot.lane.b32.xlu0 %v6639, 16
      %v6827 = vpop.permute.xlu0 %6826
      %6828 = vrot.lane.b32.xlu0 %v6644, 16
      %v6829 = vpop.permute.xlu0 %6828
      %6830 = vrot.lane.b32.xlu0 %v6649, 16
      %v6831 = vpop.permute.xlu0 %6830
      %6832 = vrot.lane.b32.xlu0 %v6654, 16
      %v6833 = vpop.permute.xlu0 %6832
      %6834 = vrot.lane.b32.xlu0 %v6659, 16
      %v6835 = vpop.permute.xlu0 %6834
      %6836 = vrot.lane.b32.xlu0 %v6664, 16
      %v6837 = vpop.permute.xlu0 %6836
      %6838 = vrot.lane.b32.xlu0 %v6669, 16
      %v6839 = vpop.permute.xlu0 %6838
      %6840 = vrot.lane.b32.xlu0 %v6674, 16
      %v6841 = vpop.permute.xlu0 %6840
      %6842 = vrot.lane.b32.xlu0 %v6679, 16
      %v6843 = vpop.permute.xlu0 %6842
      %6844 = vrot.lane.b32.xlu0 %v6684, 16
      %v6845 = vpop.permute.xlu0 %6844
      %6846 = vrot.lane.b32.xlu0 %v6689, 16
      %v6847 = vpop.permute.xlu0 %6846
      %6848 = vrot.lane.b32.xlu0 %v6694, 16
      %v6849 = vpop.permute.xlu0 %6848
      %6850 = vrot.lane.b32.xlu0 %v6699, 16
      %v6851 = vpop.permute.xlu0 %6850
      %6852 = vrot.lane.b32.xlu0 %v6704, 16
      %v6853 = vpop.permute.xlu0 %6852
      %6854 = vrot.lane.b32.xlu0 %v6709, 16
      %v6855 = vpop.permute.xlu0 %6854
      %6856 = vrot.lane.b32.xlu0 %v6714, 16
      %v6857 = vpop.permute.xlu0 %6856
      %6858 = vrot.lane.b32.xlu0 %v6719, 16
      %v6859 = vpop.permute.xlu0 %6858
      %6860 = vrot.lane.b32.xlu0 %v6724, 16
      %v6861 = vpop.permute.xlu0 %6860
      %6862 = vrot.lane.b32.xlu0 %v6729, 16
      %v6863 = vpop.permute.xlu0 %6862
      %6864 = vrot.lane.b32.xlu0 %v6734, 16
      %v6865 = vpop.permute.xlu0 %6864
      %6866 = vrot.lane.b32.xlu0 %v6739, 16
      %v6867 = vpop.permute.xlu0 %6866
      %6868 = vrot.lane.b32.xlu0 %v6744, 16
      %v6869 = vpop.permute.xlu0 %6868
      %6870 = vrot.lane.b32.xlu0 %v6749, 16
      %v6871 = vpop.permute.xlu0 %6870
      %6872 = vrot.lane.b32.xlu0 %v6754, 16
      %v6873 = vpop.permute.xlu0 %6872
      %6874 = vrot.lane.b32.xlu0 %v6759, 16
      %v6875 = vpop.permute.xlu0 %6874
      %6876 = vrot.lane.b32.xlu0 %v6764, 16
      %v6877 = vpop.permute.xlu0 %6876
      %6878 = vrot.lane.b32.xlu0 %v6769, 16
      %v6879 = vpop.permute.xlu0 %6878
      %6880 = vrot.lane.b32.xlu0 %v6774, 16
      %v6881 = vpop.permute.xlu0 %6880
      %6882 = vrot.lane.b32.xlu0 %v6779, 16
      %v6883 = vpop.permute.xlu0 %6882
      %6884 = vrot.lane.b32.xlu0 %v6784, 16
      %v6885 = vpop.permute.xlu0 %6884
      %6886 = vrot.lane.b32.xlu0 %v6789, 16
      %v6887 = vpop.permute.xlu0 %6886
      %v6920 = vadd.f32 %v6486, %v6825
      %v6921 = vadd.f32 %v6487, %v6827
      %v6922 = vadd.f32 %v6488, %v6829
      %v6923 = vadd.f32 %v6489, %v6831
      %v6924 = vadd.f32 %v6490, %v6833
      %v6925 = vadd.f32 %v6491, %v6835
      %v6926 = vadd.f32 %v6492, %v6837
      %v6927 = vadd.f32 %v6493, %v6839
      %v6928 = vadd.f32 %v6494, %v6841
      %v6929 = vadd.f32 %v6495, %v6843
      %v6930 = vadd.f32 %v6496, %v6845
      %v6931 = vadd.f32 %v6497, %v6847
      %v6932 = vadd.f32 %v6498, %v6849
      %v6933 = vadd.f32 %v6499, %v6851
      %v6934 = vadd.f32 %v6500, %v6853
      %v6935 = vadd.f32 %v6501, %v6855
      %v6936 = vadd.f32 %v6502, %v6857
      %v6937 = vadd.f32 %v6503, %v6859
      %v6938 = vadd.f32 %v6504, %v6861
      %v6939 = vadd.f32 %v6505, %v6863
      %v6940 = vadd.f32 %v6506, %v6865
      %v6941 = vadd.f32 %v6507, %v6867
      %v6942 = vadd.f32 %v6508, %v6869
      %v6943 = vadd.f32 %v6509, %v6871
      %v6944 = vadd.f32 %v6510, %v6873
      %v6945 = vadd.f32 %v6511, %v6875
      %v6946 = vadd.f32 %v6512, %v6877
      %v6947 = vadd.f32 %v6513, %v6879
      %v6948 = vadd.f32 %v6514, %v6881
      %v6949 = vadd.f32 %v6515, %v6883
      %v6950 = vadd.f32 %v6516, %v6885
      %v6951 = vadd.f32 %v6517, %v6887
      %6984 = vrot.lane.b32.xlu0 %v6920, 112
      %v6985 = vpop.permute.xlu0 %6984
      %6986 = vrot.lane.b32.xlu0 %v6921, 112
      %v6987 = vpop.permute.xlu0 %6986
      %6988 = vrot.lane.b32.xlu0 %v6922, 112
      %v6989 = vpop.permute.xlu0 %6988
      %6990 = vrot.lane.b32.xlu0 %v6923, 112
      %v6991 = vpop.permute.xlu0 %6990
      %6992 = vrot.lane.b32.xlu0 %v6924, 112
      %v6993 = vpop.permute.xlu0 %6992
      %6994 = vrot.lane.b32.xlu0 %v6925, 112
      %v6995 = vpop.permute.xlu0 %6994
      %6996 = vrot.lane.b32.xlu0 %v6926, 112
      %v6997 = vpop.permute.xlu0 %6996
      %6998 = vrot.lane.b32.xlu0 %v6927, 112
      %v6999 = vpop.permute.xlu0 %6998
      %7000 = vrot.lane.b32.xlu0 %v6928, 112
      %v7001 = vpop.permute.xlu0 %7000
      %7002 = vrot.lane.b32.xlu0 %v6929, 112
      %v7003 = vpop.permute.xlu0 %7002
      %7004 = vrot.lane.b32.xlu0 %v6930, 112
      %v7005 = vpop.permute.xlu0 %7004
      %7006 = vrot.lane.b32.xlu0 %v6931, 112
      %v7007 = vpop.permute.xlu0 %7006
      %7008 = vrot.lane.b32.xlu0 %v6932, 112
      %v7009 = vpop.permute.xlu0 %7008
      %7010 = vrot.lane.b32.xlu0 %v6933, 112
      %v7011 = vpop.permute.xlu0 %7010
      %7012 = vrot.lane.b32.xlu0 %v6934, 112
      %v7013 = vpop.permute.xlu0 %7012
      %7014 = vrot.lane.b32.xlu0 %v6935, 112
      %v7015 = vpop.permute.xlu0 %7014
      %7016 = vrot.lane.b32.xlu0 %v6936, 112
      %v7017 = vpop.permute.xlu0 %7016
      %7018 = vrot.lane.b32.xlu0 %v6937, 112
      %v7019 = vpop.permute.xlu0 %7018
      %7020 = vrot.lane.b32.xlu0 %v6938, 112
      %v7021 = vpop.permute.xlu0 %7020
      %7022 = vrot.lane.b32.xlu0 %v6939, 112
      %v7023 = vpop.permute.xlu0 %7022
      %7024 = vrot.lane.b32.xlu0 %v6940, 112
      %v7025 = vpop.permute.xlu0 %7024
      %7026 = vrot.lane.b32.xlu0 %v6941, 112
      %v7027 = vpop.permute.xlu0 %7026
      %7028 = vrot.lane.b32.xlu0 %v6942, 112
      %v7029 = vpop.permute.xlu0 %7028
      %7030 = vrot.lane.b32.xlu0 %v6943, 112
      %v7031 = vpop.permute.xlu0 %7030
      %7032 = vrot.lane.b32.xlu0 %v6944, 112
      %v7033 = vpop.permute.xlu0 %7032
      %7034 = vrot.lane.b32.xlu0 %v6945, 112
      %v7035 = vpop.permute.xlu0 %7034
      %7036 = vrot.lane.b32.xlu0 %v6946, 112
      %v7037 = vpop.permute.xlu0 %7036
      %7038 = vrot.lane.b32.xlu0 %v6947, 112
      %v7039 = vpop.permute.xlu0 %7038
      %7040 = vrot.lane.b32.xlu0 %v6948, 112
      %v7041 = vpop.permute.xlu0 %7040
      %7042 = vrot.lane.b32.xlu0 %v6949, 112
      %v7043 = vpop.permute.xlu0 %7042
      %7044 = vrot.lane.b32.xlu0 %v6950, 112
      %v7045 = vpop.permute.xlu0 %7044
      %7046 = vrot.lane.b32.xlu0 %v6951, 112
      %v7047 = vpop.permute.xlu0 %7046
      %7080 = vst.msk [vmem:[%s442] sm:$0xff] %vm4628, %v6985
      %7081 = vst.msk [vmem:[%s442 + $0x8] sm:$0xff] %vm4628, %v6987
      %7082 = vst.msk [vmem:[%s442 + $0x10] sm:$0xff] %vm4628, %v6989
      %7083 = vst.msk [vmem:[%s442 + $0x18] sm:$0xff] %vm4628, %v6991
      %7084 = vst.msk [vmem:[%s442 + $0x20] sm:$0xff] %vm4628, %v6993
      %7085 = vst.msk [vmem:[%s442 + $0x28] sm:$0xff] %vm4628, %v6995
      %7086 = vst.msk [vmem:[%s442 + $0x30] sm:$0xff] %vm4628, %v6997
      %7087 = vst.msk [vmem:[%s442 + $0x38] sm:$0xff] %vm4628, %v6999
      %7088 = vst.msk [vmem:[%s442 + $0x40] sm:$0xff] %vm4628, %v7001
      %7089 = vst.msk [vmem:[%s442 + $0x48] sm:$0xff] %vm4628, %v7003
      %7090 = vst.msk [vmem:[%s442 + $0x50] sm:$0xff] %vm4628, %v7005
      %7091 = vst.msk [vmem:[%s442 + $0x58] sm:$0xff] %vm4628, %v7007
      %7092 = vst.msk [vmem:[%s442 + $0x60] sm:$0xff] %vm4628, %v7009
      %7093 = vst.msk [vmem:[%s442 + $0x68] sm:$0xff] %vm4628, %v7011
      %7094 = vst.msk [vmem:[%s442 + $0x70] sm:$0xff] %vm4628, %v7013
      %7095 = vst.msk [vmem:[%s442 + $0x78] sm:$0xff] %vm4628, %v7015
      %7096 = vst.msk [vmem:[%s442 + $0x80] sm:$0xff] %vm4628, %v7017
      %7097 = vst.msk [vmem:[%s442 + $0x88] sm:$0xff] %vm4628, %v7019
      %7098 = vst.msk [vmem:[%s442 + $0x90] sm:$0xff] %vm4628, %v7021
      %7099 = vst.msk [vmem:[%s442 + $0x98] sm:$0xff] %vm4628, %v7023
      %7100 = vst.msk [vmem:[%s442 + $0xa0] sm:$0xff] %vm4628, %v7025
      %7101 = vst.msk [vmem:[%s442 + $0xa8] sm:$0xff] %vm4628, %v7027
      %7102 = vst.msk [vmem:[%s442 + $0xb0] sm:$0xff] %vm4628, %v7029
      %7103 = vst.msk [vmem:[%s442 + $0xb8] sm:$0xff] %vm4628, %v7031
      %7104 = vst.msk [vmem:[%s442 + $0xc0] sm:$0xff] %vm4628, %v7033
      %7105 = vst.msk [vmem:[%s442 + $0xc8] sm:$0xff] %vm4628, %v7035
      %7106 = vst.msk [vmem:[%s442 + $0xd0] sm:$0xff] %vm4628, %v7037
      %7107 = vst.msk [vmem:[%s442 + $0xd8] sm:$0xff] %vm4628, %v7039
      %7108 = vst.msk [vmem:[%s442 + $0xe0] sm:$0xff] %vm4628, %v7041
      %7109 = vst.msk [vmem:[%s442 + $0xe8] sm:$0xff] %vm4628, %v7043
      %7110 = vst.msk [vmem:[%s442 + $0xf0] sm:$0xff] %vm4628, %v7045
      %7111 = vst.msk [vmem:[%s442 + $0xf8] sm:$0xff] %vm4628, %v7047
      %s7112 = smul.u32 32, %s24
      %p7113 = scmp.lt.s32.totalorder %s7112, 63
      %s7114 = scalar_select %p7113, %s7112, 63
      %s7115 = smul.addr %s7114, 8
      %s7116 = scalar_lea.vmem %s13, %s7115
      // Predicated region
      $region73: #{tpu_custom_call.1} parent=71 // pred_check
        %p7117 = pneg %p320
      $region74: #{tpu_custom_call.1} parent=71 // pred_check_branch
        %7119 = sbr.rel (%p7117) target = $region76
      $region75: #{tpu_custom_call.1} parent=71 // pred_region
        %s7120 = smul.u32 32, %s24
      $region76: #{tpu_custom_call.1} parent=71 // pred_fallthru
        _
    $region72: #{tpu_custom_call.1} parent=5 // pred_fallthru
      _
    %p7121 = scmp.le.s32.totalorder 2, %s19
    // Predicated region
    $region77: #{tpu_custom_call.1} parent=5 // pred_check
      %p7122 = pneg %p7121
    $region78: #{tpu_custom_call.1} parent=5 // pred_check_branch
      %7124 = sbr.rel (%p7122) target = $region80
    $region79: #{tpu_custom_call.1} parent=5 // pred_region
      %s7125 = ssub.s32 %s19, 2
      // Predicated region
      $region81: #{tpu_custom_call.1} parent=79 // pred_check
        %p7126 = pneg %p326
      $region82: #{tpu_custom_call.1} parent=79 // pred_check_branch
        %7128 = sbr.rel (%p7126) target = $region84
      $region83: #{tpu_custom_call.1} parent=79 // pred_region
        %s7129 = smul.u32 32, %s25
        %p7130 = scmp.lt.s32.totalorder %s7129, 63
        %s7131 = scalar_select %p7130, %s7129, 63
        %s7132 = smul.addr %s7131, 8
        %s7133 = scalar_lea.vmem %s13, %s7132
      $region84: #{tpu_custom_call.1} parent=79 // pred_fallthru
        _
    $region80: #{tpu_custom_call.1} parent=5 // pred_fallthru
      _
  $region6: #{tpu_custom_call.1} parent=0 // loop_footer
    %s23 = sadd.s32 1, %s19
  $region7: #{tpu_custom_call.1} parent=0 // loop_footer_branch
    %18 = sbr.rel target = $region3
  $region8: #{tpu_custom_call.1} parent=0 // loop_exit
    _

</llo_original>
